<compile_context>
chip_gen: v5e
topology: v5e:2x2
jax: 0.10.0
libtpu: 0.0.40
codegen_flags: <defaults>
</compile_context>

<pallas_src>
import jax
import jax.numpy as jnp
from jax.experimental import pallas as pl
from jax.experimental.pallas import tpu as pltpu

KH = KW = 7
CIN, COUT = 3, 32
H = W = 32                        # fc(5408) in the torch module implies 3x32x32 inputs
OH = OW = H - KH + 1              # 26
PH = PW = OH // 2                 # 13
K_UNF = KH * W * CIN              # 672  unfold columns (kh, w, cin)
N_CONV = OW * COUT                # 832  conv output lanes (ow-parity, pw, cout)
PWC = PW * COUT                   # 416  pooled lanes (pw, cout)
FC_IN = COUT * PH * PW            # 5408
FC_OUT = 10
FC_OUT_PAD = 16                   # pad the 10 logits to 16 lanes only (not 128)


def _rup(x, m):
    return (x + m - 1) // m * m


# ------------------------------- fused kernel -------------------------------

def _fused_cnn_kernel(unf_ref, wbig_ref, cb_ref, fcw_ref, fcb_ref, o_ref, y_ref):
    """conv7x7 + bias + ReLU + maxpool2x2/2 + fc for one block of B images.

    unf_ref : (OH*B, 672)  bf16  vertically-unfolded rows, row index = oh*B + b
    wbig_ref: (672, 832)   bf16  banded conv weight, col = parity(ow)*416 + pw*32 + cout
    cb_ref  : (1, 416)     f32   conv bias tiled over pw
    fcw_ref : (13, 416, 16) bf16 fc weight, one (416,16) slab per pooled row ph
    fcb_ref : (1, 16)      f32   fc bias (10 padded to 16)
    o_ref   : (1, B, 16)   f32   logits
    y_ref   : (OH*B, 832)  f32   conv activation scratch
    """
    bsz = o_ref.shape[1]

    # Whole 7x7 conv for the block as ONE MXU matmul, f32 accumulation.
    y_ref[...] = jnp.dot(unf_ref[...], wbig_ref[...],
                         preferred_element_type=jnp.float32)

    bias = cb_ref[...]                                        # (1, 416), hoisted
    logits = jnp.zeros((bsz, FC_OUT_PAD), jnp.float32)
    for ph in range(PH):                                      # 13, static unroll
        top = y_ref[(2 * ph) * bsz:(2 * ph + 1) * bsz, :]     # rows oh = 2*ph   (B, 832)
        bot = y_ref[(2 * ph + 1) * bsz:(2 * ph + 2) * bsz, :]  # rows oh = 2*ph+1
        v = jnp.maximum(top, bot)                             # vertical 2:1 pool
        p = jnp.maximum(v[:, :PWC], v[:, PWC:])               # horizontal 2:1 pool
        p = jnp.maximum(p + bias, 0.0)                        # bias + ReLU (exact post-max)
        logits = logits + jnp.dot(p.astype(jnp.bfloat16), fcw_ref[ph],
                                  preferred_element_type=jnp.float32)
    o_ref[0] = logits + fcb_ref[...]


def _fused_forward(unf_rows, wbig, cb_row, fcw_k, fcb_row, *, block_b, num_blocks):
    rows_per_block = OH * block_b
    flops = num_blocks * (2 * rows_per_block * K_UNF * N_CONV
                          + PH * 2 * block_b * PWC * FC_OUT_PAD)
    bytes_accessed = (unf_rows.size * 2 + wbig.size * 2 + fcw_k.size * 2
                      + cb_row.size * 4 + fcb_row.size * 4
                      + num_blocks * block_b * FC_OUT_PAD * 4)
    return pl.pallas_call(
        _fused_cnn_kernel,
        grid=(num_blocks,),
        in_specs=[
            pl.BlockSpec((rows_per_block, K_UNF), lambda i: (i, 0)),
            pl.BlockSpec((K_UNF, N_CONV), lambda i: (0, 0)),          # VMEM-resident
            pl.BlockSpec((1, PWC), lambda i: (0, 0)),                 # VMEM-resident
            pl.BlockSpec((PH, PWC, FC_OUT_PAD), lambda i: (0, 0, 0)),  # VMEM-resident
            pl.BlockSpec((1, FC_OUT_PAD), lambda i: (0, 0)),
        ],
        out_specs=pl.BlockSpec((1, block_b, FC_OUT_PAD), lambda i: (i, 0, 0)),
        out_shape=jax.ShapeDtypeStruct((num_blocks, block_b, FC_OUT_PAD), jnp.float32),
        scratch_shapes=[pltpu.VMEM((rows_per_block, N_CONV), jnp.float32)],
        compiler_params=pltpu.CompilerParams(
            dimension_semantics=("parallel",),
            vmem_limit_bytes=32 * 1024 * 1024),
        cost_estimate=pl.CostEstimate(flops=flops, transcendentals=0,
                                      bytes_accessed=bytes_accessed),
    )(unf_rows, wbig, cb_row, fcw_k, fcb_row)


# --------------------------------- params -----------------------------------

def init_torch_params(key):
    """Parameters in the PyTorch module's native layouts."""
    k1, k2, k3, k4 = jax.random.split(key, 4)
    conv_w = jax.random.normal(k1, (COUT, CIN, KH, KW), jnp.float32) * 0.05
    conv_b = jax.random.normal(k2, (COUT,), jnp.float32) * 0.05
    fc_w = jax.random.normal(k3, (FC_OUT, FC_IN), jnp.float32) * 0.02   # [out, in]
    fc_b = jax.random.normal(k4, (FC_OUT,), jnp.float32) * 0.02
    return conv_w, conv_b, fc_w, fc_b


def prepare_params(torch_params):
    """One-time permute / band / pad / cast of the torch-layout weights."""
    conv_w, conv_b, fc_w, fc_b = torch_params

    # Banded shift-matmul conv weight: W_big[(kh, w, cin), (par, pw, cout)] =
    # conv_w[cout, cin, kh, w - ow] for ow = 2*pw + par and 0 <= w - ow < 7, else 0.
    w_hwio = jnp.transpose(conv_w, (2, 3, 1, 0))            # (kh, kw, cin, cout)
    wbig = jnp.zeros((KH, W, CIN, 2, PW, COUT), jnp.float32)
    for ow in range(OW):
        wbig = wbig.at[:, ow:ow + KW, :, ow % 2, ow // 2, :].set(w_hwio)
    wbig = wbig.reshape(K_UNF, N_CONV).astype(jnp.bfloat16)  # (672, 832)

    cb_row = jnp.tile(conv_b, PW).reshape(1, PWC).astype(jnp.float32)   # (1, 416)

    # fc: torch flattens the pooled maps NCHW (c, ph, pw); the kernel consumes rows of
    # ph with (pw, c) lanes.  Reorder once; pad the 10 outputs to 16 lanes only.
    fcw_k = (fc_w.reshape(FC_OUT, COUT, PH, PW)
             .transpose(2, 3, 1, 0)                          # (ph, pw, c, o)
             .reshape(PH, PWC, FC_OUT))
    fcw_k = jnp.pad(fcw_k, ((0, 0), (0, 0), (0, FC_OUT_PAD - FC_OUT))).astype(jnp.bfloat16)
    fcb_row = jnp.pad(fc_b, (0, FC_OUT_PAD - FC_OUT)).reshape(1, FC_OUT_PAD).astype(jnp.float32)
    return wbig, cb_row, fcw_k, fcb_row


# -------------------------------- forward -----------------------------------

def vanilla_cnn_forward(x, params):
    """x: [N, 3, 32, 32] float32 (NCHW) -> logits [N, 10] float32."""
    wbig, cb_row, fcw_k, fcb_row = params
    n = x.shape[0]
    assert x.shape[1:] == (CIN, H, W), x.shape

    # Images per grid step: 8 for real batches (>=2 steps for the v7x megacore when
    # n >= 16), 4 for tiny batches.  26*B rows keeps the block sublane-aligned.
    block_b = 8 if n >= 16 else 4
    n_pad = _rup(n, block_b)
    num_blocks = n_pad // block_b

    # NCHW -> (n, h, w*cin) rows: the only transpose touches the 6 KB/img raw input.
    x_rows = jnp.transpose(x, (0, 2, 3, 1)).reshape(n, H, W * CIN).astype(jnp.bfloat16)
    if n_pad != n:
        x_rows = jnp.pad(x_rows, ((0, n_pad - n), (0, 0), (0, 0)))

    # Vertical-only unfold (7 shifted row-slices, 34 KB/img) with rows interleaved
    # (oh, b) inside each block so every kernel slice is contiguous.
    x5 = x_rows.reshape(num_blocks, block_b, H, W * CIN).transpose(0, 2, 1, 3)
    unf = jnp.concatenate([x5[:, kh:kh + OH, :, :] for kh in range(KH)], axis=-1)
    unf_rows = unf.reshape(num_blocks * OH * block_b, K_UNF)

    out = _fused_forward(unf_rows, wbig, cb_row, fcw_k, fcb_row,
                         block_b=block_b, num_blocks=num_blocks)
    return out.reshape(n_pad, FC_OUT_PAD)[:n, :FC_OUT]


# -------------------------- references (pure XLA) ----------------------------

def reference_forward_f32(x, torch_params):
    """Exact torch semantics, f32 everywhere."""
    conv_w, conv_b, fc_w, fc_b = torch_params
    y = jax.lax.conv_general_dilated(x, conv_w, (1, 1), "VALID",
                                     dimension_numbers=("NCHW", "OIHW", "NCHW"))
    y = jnp.maximum(y + conv_b[None, :, None, None], 0.0)
    y = jax.lax.reduce_window(y, -jnp.inf, jax.lax.max,
                              (1, 1, 2, 2), (1, 1, 2, 2), "VALID")
    flat = y.reshape(y.shape[0], -1)
    return flat @ fc_w.T + fc_b


def reference_forward_bf16(x, torch_params):
    """Reference with the kernel's bf16-matmul / f32-accumulate precision."""
    conv_w, conv_b, fc_w, fc_b = torch_params
    y = jax.lax.conv_general_dilated(
        x.astype(jnp.bfloat16), conv_w.astype(jnp.bfloat16), (1, 1), "VALID",
        dimension_numbers=("NCHW", "OIHW", "NCHW"),
        preferred_element_type=jnp.float32)
    y = jnp.maximum(y + conv_b[None, :, None, None], 0.0)
    y = jax.lax.reduce_window(y, -jnp.inf, jax.lax.max,
                              (1, 1, 2, 2), (1, 1, 2, 2), "VALID")
    flat = y.reshape(y.shape[0], -1).astype(jnp.bfloat16)
    return jnp.dot(flat, fc_w.T.astype(jnp.bfloat16),
                   preferred_element_type=jnp.float32) + fc_b


if __name__ == "__main__":
    key = jax.random.PRNGKey(0)
    kx, kp = jax.random.split(key)
    x = jax.random.normal(kx, (2, CIN, H, W), jnp.float32)
    torch_params = init_torch_params(kp)
    params = prepare_params(torch_params)

    out = jax.block_until_ready(jax.jit(vanilla_cnn_forward)(x, params))
    ref16 = reference_forward_bf16(x, torch_params)
    ref32 = reference_forward_f32(x, torch_params)

    assert out.shape == (2, FC_OUT) and out.dtype == jnp.float32
    assert bool(jnp.all(jnp.isfinite(out)))
    err16 = float(jnp.max(jnp.abs(out - ref16)))
    err32 = float(jnp.max(jnp.abs(out - ref32)))
    # Tight check vs a precision-matched (bf16 matmuls, f32 accumulation) reference.
    assert bool(jnp.allclose(out, ref16, rtol=2e-2, atol=2e-2)), (
        "bf16-matched max abs diff %f" % err16)
    # Loose check vs the exact f32 torch-semantics reference.
    assert bool(jnp.allclose(out, ref32, rtol=1e-1, atol=1e-1)), (
        "f32 max abs diff %f" % err32)
    print("KERNEL_OK")
</pallas_src>

<mosaic_0001>
module attributes {stable_mosaic.version = 11 : i64} {
  func.func @_fused_cnn_kernel(%arg0: i32, %arg1: memref<104x672xbf16, #tpu.memory_space<vmem>>, %arg2: memref<672x832xbf16, #tpu.memory_space<vmem>>, %arg3: memref<1x416xf32, #tpu.memory_space<vmem>>, %arg4: memref<13x416x16xbf16, #tpu.memory_space<vmem>>, %arg5: memref<1x16xf32, #tpu.memory_space<vmem>>, %arg6: memref<1x4x16xf32, #tpu.memory_space<vmem>>, %arg7: memref<104x832xf32, #tpu.memory_space<vmem>>) attributes {dimension_semantics = [#tpu.dimension_semantics<parallel>], iteration_bounds = array<i64: 1>, scalar_prefetch = 0 : i64, scratch_operands = 1 : i64, tpu.core_type = #tpu.core_type<tc>, window_params = [{transform_indices = @transform_0, window_bounds = array<i64: 104, 672>}, {pipeline_mode = #tpu.pipeline_mode<synchronous>, transform_indices = @transform_1, window_bounds = array<i64: 672, 832>}, {pipeline_mode = #tpu.pipeline_mode<synchronous>, transform_indices = @transform_2, window_bounds = array<i64: 1, 416>}, {pipeline_mode = #tpu.pipeline_mode<synchronous>, transform_indices = @transform_3, window_bounds = array<i64: 13, 416, 16>}, {pipeline_mode = #tpu.pipeline_mode<synchronous>, transform_indices = @transform_4, window_bounds = array<i64: 1, 16>}, {transform_indices = @transform_5, window_bounds = array<i64: 1, 4, 16>}]} {
    %c0 = arith.constant 0 : index
    %c0_0 = arith.constant 0 : index
    %0 = vector.load %arg1[%c0, %c0_0] : memref<104x672xbf16, #tpu.memory_space<vmem>>, vector<104x672xbf16>
    %c0_1 = arith.constant 0 : index
    %c0_2 = arith.constant 0 : index
    %1 = vector.load %arg2[%c0_1, %c0_2] : memref<672x832xbf16, #tpu.memory_space<vmem>>, vector<672x832xbf16>
    %cst = arith.constant dense<0.000000e+00> : vector<104x832xf32>
    %2 = tpu.matmul %0, %1, %cst {dimension_numbers = #tpu.dot_dimension_numbers<[1], [0], [0], [1], [0, 0, 1, 1], [], []>} : vector<104x672xbf16>, vector<672x832xbf16>, vector<104x832xf32> -> vector<104x832xf32>
    %c0_3 = arith.constant 0 : index
    %c0_4 = arith.constant 0 : index
    %3 = vector.load %arg7[%c0_3, %c0_4] : memref<104x832xf32, #tpu.memory_space<vmem>>, vector<104x832xf32>
    tpu.vector_store %arg7[%c0_3, %c0_4], %2 {strides = array<i32>} : memref<104x832xf32, #tpu.memory_space<vmem>>, vector<104x832xf32>,
    %c0_5 = arith.constant 0 : index
    %c0_6 = arith.constant 0 : index
    %4 = vector.load %arg3[%c0_5, %c0_6] : memref<1x416xf32, #tpu.memory_space<vmem>>, vector<1x416xf32>
    %cst_7 = arith.constant 0.000000e+00 : f32
    %5 = vector.broadcast %cst_7 : f32 to vector<4x16xf32>
    %c0_8 = arith.constant 0 : index
    %c0_9 = arith.constant 0 : index
    %6 = vector.load %arg7[%c0_8, %c0_9] : memref<104x832xf32, #tpu.memory_space<vmem>>, vector<4x832xf32>
    %c4 = arith.constant 4 : index
    %c0_10 = arith.constant 0 : index
    %7 = vector.load %arg7[%c4, %c0_10] : memref<104x832xf32, #tpu.memory_space<vmem>>, vector<4x832xf32>
    %8 = arith.maximumf %6, %7 : vector<4x832xf32>
    %9 = vector.extract_strided_slice %8 {offsets = [0, 0], sizes = [4, 416], strides = [1, 1]} : vector<4x832xf32> to vector<4x416xf32>
    %10 = vector.extract_strided_slice %8 {offsets = [0, 416], sizes = [4, 416], strides = [1, 1]} : vector<4x832xf32> to vector<4x416xf32>
    %11 = arith.maximumf %9, %10 : vector<4x416xf32>
    %12 = vector.broadcast %4 : vector<1x416xf32> to vector<4x416xf32>
    %13 = arith.addf %11, %12 : vector<4x416xf32>
    %cst_11 = arith.constant 0.000000e+00 : f32
    %14 = vector.broadcast %cst_11 : f32 to vector<4x416xf32>
    %15 = arith.maximumf %13, %14 : vector<4x416xf32>
    %16 = arith.truncf %15 : vector<4x416xf32> to vector<4x416xbf16>
    %c0_12 = arith.constant 0 : index
    %c0_13 = arith.constant 0 : index
    %c0_14 = arith.constant 0 : index
    %17 = vector.load %arg4[%c0_12, %c0_13, %c0_14] : memref<13x416x16xbf16, #tpu.memory_space<vmem>>, vector<1x416x16xbf16>
    %18 = vector.shape_cast %17 : vector<1x416x16xbf16> to vector<416x16xbf16>
    %cst_15 = arith.constant dense<0.000000e+00> : vector<4x16xf32>
    %19 = tpu.matmul %16, %18, %cst_15 {dimension_numbers = #tpu.dot_dimension_numbers<[1], [0], [0], [1], [0, 0, 1, 1], [], []>} : vector<4x416xbf16>, vector<416x16xbf16>, vector<4x16xf32> -> vector<4x16xf32>
    %20 = arith.addf %5, %19 : vector<4x16xf32>
    %c8 = arith.constant 8 : index
    %c0_16 = arith.constant 0 : index
    %21 = vector.load %arg7[%c8, %c0_16] : memref<104x832xf32, #tpu.memory_space<vmem>>, vector<4x832xf32>
    %c12 = arith.constant 12 : index
    %c0_17 = arith.constant 0 : index
    %22 = vector.load %arg7[%c12, %c0_17] : memref<104x832xf32, #tpu.memory_space<vmem>>, vector<4x832xf32>
    %23 = arith.maximumf %21, %22 : vector<4x832xf32>
    %24 = vector.extract_strided_slice %23 {offsets = [0, 0], sizes = [4, 416], strides = [1, 1]} : vector<4x832xf32> to vector<4x416xf32>
    %25 = vector.extract_strided_slice %23 {offsets = [0, 416], sizes = [4, 416], strides = [1, 1]} : vector<4x832xf32> to vector<4x416xf32>
    %26 = arith.maximumf %24, %25 : vector<4x416xf32>
    %27 = vector.broadcast %4 : vector<1x416xf32> to vector<4x416xf32>
    %28 = arith.addf %26, %27 : vector<4x416xf32>
    %cst_18 = arith.constant 0.000000e+00 : f32
    %29 = vector.broadcast %cst_18 : f32 to vector<4x416xf32>
    %30 = arith.maximumf %28, %29 : vector<4x416xf32>
    %31 = arith.truncf %30 : vector<4x416xf32> to vector<4x416xbf16>
    %c1 = arith.constant 1 : index
    %c0_19 = arith.constant 0 : index
    %c0_20 = arith.constant 0 : index
    %32 = vector.load %arg4[%c1, %c0_19, %c0_20] : memref<13x416x16xbf16, #tpu.memory_space<vmem>>, vector<1x416x16xbf16>
    %33 = vector.shape_cast %32 : vector<1x416x16xbf16> to vector<416x16xbf16>
    %cst_21 = arith.constant dense<0.000000e+00> : vector<4x16xf32>
    %34 = tpu.matmul %31, %33, %cst_21 {dimension_numbers = #tpu.dot_dimension_numbers<[1], [0], [0], [1], [0, 0, 1, 1], [], []>} : vector<4x416xbf16>, vector<416x16xbf16>, vector<4x16xf32> -> vector<4x16xf32>
    %35 = arith.addf %20, %34 : vector<4x16xf32>
    %c16 = arith.constant 16 : index
    %c0_22 = arith.constant 0 : index
    %36 = vector.load %arg7[%c16, %c0_22] : memref<104x832xf32, #tpu.memory_space<vmem>>, vector<4x832xf32>
    %c20 = arith.constant 20 : index
    %c0_23 = arith.constant 0 : index
    %37 = vector.load %arg7[%c20, %c0_23] : memref<104x832xf32, #tpu.memory_space<vmem>>, vector<4x832xf32>
    %38 = arith.maximumf %36, %37 : vector<4x832xf32>
    %39 = vector.extract_strided_slice %38 {offsets = [0, 0], sizes = [4, 416], strides = [1, 1]} : vector<4x832xf32> to vector<4x416xf32>
    %40 = vector.extract_strided_slice %38 {offsets = [0, 416], sizes = [4, 416], strides = [1, 1]} : vector<4x832xf32> to vector<4x416xf32>
    %41 = arith.maximumf %39, %40 : vector<4x416xf32>
    %42 = vector.broadcast %4 : vector<1x416xf32> to vector<4x416xf32>
    %43 = arith.addf %41, %42 : vector<4x416xf32>
    %cst_24 = arith.constant 0.000000e+00 : f32
    %44 = vector.broadcast %cst_24 : f32 to vector<4x416xf32>
    %45 = arith.maximumf %43, %44 : vector<4x416xf32>
    %46 = arith.truncf %45 : vector<4x416xf32> to vector<4x416xbf16>
    %c2 = arith.constant 2 : index
    %c0_25 = arith.constant 0 : index
    %c0_26 = arith.constant 0 : index
    %47 = vector.load %arg4[%c2, %c0_25, %c0_26] : memref<13x416x16xbf16, #tpu.memory_space<vmem>>, vector<1x416x16xbf16>
    %48 = vector.shape_cast %47 : vector<1x416x16xbf16> to vector<416x16xbf16>
    %cst_27 = arith.constant dense<0.000000e+00> : vector<4x16xf32>
    %49 = tpu.matmul %46, %48, %cst_27 {dimension_numbers = #tpu.dot_dimension_numbers<[1], [0], [0], [1], [0, 0, 1, 1], [], []>} : vector<4x416xbf16>, vector<416x16xbf16>, vector<4x16xf32> -> vector<4x16xf32>
    %50 = arith.addf %35, %49 : vector<4x16xf32>
    %c24 = arith.constant 24 : index
    %c0_28 = arith.constant 0 : index
    %51 = vector.load %arg7[%c24, %c0_28] : memref<104x832xf32, #tpu.memory_space<vmem>>, vector<4x832xf32>
    %c28 = arith.constant 28 : index
    %c0_29 = arith.constant 0 : index
    %52 = vector.load %arg7[%c28, %c0_29] : memref<104x832xf32, #tpu.memory_space<vmem>>, vector<4x832xf32>
    %53 = arith.maximumf %51, %52 : vector<4x832xf32>
    %54 = vector.extract_strided_slice %53 {offsets = [0, 0], sizes = [4, 416], strides = [1, 1]} : vector<4x832xf32> to vector<4x416xf32>
    %55 = vector.extract_strided_slice %53 {offsets = [0, 416], sizes = [4, 416], strides = [1, 1]} : vector<4x832xf32> to vector<4x416xf32>
    %56 = arith.maximumf %54, %55 : vector<4x416xf32>
    %57 = vector.broadcast %4 : vector<1x416xf32> to vector<4x416xf32>
    %58 = arith.addf %56, %57 : vector<4x416xf32>
    %cst_30 = arith.constant 0.000000e+00 : f32
    %59 = vector.broadcast %cst_30 : f32 to vector<4x416xf32>
    %60 = arith.maximumf %58, %59 : vector<4x416xf32>
    %61 = arith.truncf %60 : vector<4x416xf32> to vector<4x416xbf16>
    %c3 = arith.constant 3 : index
    %c0_31 = arith.constant 0 : index
    %c0_32 = arith.constant 0 : index
    %62 = vector.load %arg4[%c3, %c0_31, %c0_32] : memref<13x416x16xbf16, #tpu.memory_space<vmem>>, vector<1x416x16xbf16>
    %63 = vector.shape_cast %62 : vector<1x416x16xbf16> to vector<416x16xbf16>
    %cst_33 = arith.constant dense<0.000000e+00> : vector<4x16xf32>
    %64 = tpu.matmul %61, %63, %cst_33 {dimension_numbers = #tpu.dot_dimension_numbers<[1], [0], [0], [1], [0, 0, 1, 1], [], []>} : vector<4x416xbf16>, vector<416x16xbf16>, vector<4x16xf32> -> vector<4x16xf32>
    %65 = arith.addf %50, %64 : vector<4x16xf32>
    %c32 = arith.constant 32 : index
    %c0_34 = arith.constant 0 : index
    %66 = vector.load %arg7[%c32, %c0_34] : memref<104x832xf32, #tpu.memory_space<vmem>>, vector<4x832xf32>
    %c36 = arith.constant 36 : index
    %c0_35 = arith.constant 0 : index
    %67 = vector.load %arg7[%c36, %c0_35] : memref<104x832xf32, #tpu.memory_space<vmem>>, vector<4x832xf32>
    %68 = arith.maximumf %66, %67 : vector<4x832xf32>
    %69 = vector.extract_strided_slice %68 {offsets = [0, 0], sizes = [4, 416], strides = [1, 1]} : vector<4x832xf32> to vector<4x416xf32>
    %70 = vector.extract_strided_slice %68 {offsets = [0, 416], sizes = [4, 416], strides = [1, 1]} : vector<4x832xf32> to vector<4x416xf32>
    %71 = arith.maximumf %69, %70 : vector<4x416xf32>
    %72 = vector.broadcast %4 : vector<1x416xf32> to vector<4x416xf32>
    %73 = arith.addf %71, %72 : vector<4x416xf32>
    %cst_36 = arith.constant 0.000000e+00 : f32
    %74 = vector.broadcast %cst_36 : f32 to vector<4x416xf32>
    %75 = arith.maximumf %73, %74 : vector<4x416xf32>
    %76 = arith.truncf %75 : vector<4x416xf32> to vector<4x416xbf16>
    %c4_37 = arith.constant 4 : index
    %c0_38 = arith.constant 0 : index
    %c0_39 = arith.constant 0 : index
    %77 = vector.load %arg4[%c4_37, %c0_38, %c0_39] : memref<13x416x16xbf16, #tpu.memory_space<vmem>>, vector<1x416x16xbf16>
    %78 = vector.shape_cast %77 : vector<1x416x16xbf16> to vector<416x16xbf16>
    %cst_40 = arith.constant dense<0.000000e+00> : vector<4x16xf32>
    %79 = tpu.matmul %76, %78, %cst_40 {dimension_numbers = #tpu.dot_dimension_numbers<[1], [0], [0], [1], [0, 0, 1, 1], [], []>} : vector<4x416xbf16>, vector<416x16xbf16>, vector<4x16xf32> -> vector<4x16xf32>
    %80 = arith.addf %65, %79 : vector<4x16xf32>
    %c40 = arith.constant 40 : index
    %c0_41 = arith.constant 0 : index
    %81 = vector.load %arg7[%c40, %c0_41] : memref<104x832xf32, #tpu.memory_space<vmem>>, vector<4x832xf32>
    %c44 = arith.constant 44 : index
    %c0_42 = arith.constant 0 : index
    %82 = vector.load %arg7[%c44, %c0_42] : memref<104x832xf32, #tpu.memory_space<vmem>>, vector<4x832xf32>
    %83 = arith.maximumf %81, %82 : vector<4x832xf32>
    %84 = vector.extract_strided_slice %83 {offsets = [0, 0], sizes = [4, 416], strides = [1, 1]} : vector<4x832xf32> to vector<4x416xf32>
    %85 = vector.extract_strided_slice %83 {offsets = [0, 416], sizes = [4, 416], strides = [1, 1]} : vector<4x832xf32> to vector<4x416xf32>
    %86 = arith.maximumf %84, %85 : vector<4x416xf32>
    %87 = vector.broadcast %4 : vector<1x416xf32> to vector<4x416xf32>
    %88 = arith.addf %86, %87 : vector<4x416xf32>
    %cst_43 = arith.constant 0.000000e+00 : f32
    %89 = vector.broadcast %cst_43 : f32 to vector<4x416xf32>
    %90 = arith.maximumf %88, %89 : vector<4x416xf32>
    %91 = arith.truncf %90 : vector<4x416xf32> to vector<4x416xbf16>
    %c5 = arith.constant 5 : index
    %c0_44 = arith.constant 0 : index
    %c0_45 = arith.constant 0 : index
    %92 = vector.load %arg4[%c5, %c0_44, %c0_45] : memref<13x416x16xbf16, #tpu.memory_space<vmem>>, vector<1x416x16xbf16>
    %93 = vector.shape_cast %92 : vector<1x416x16xbf16> to vector<416x16xbf16>
    %cst_46 = arith.constant dense<0.000000e+00> : vector<4x16xf32>
    %94 = tpu.matmul %91, %93, %cst_46 {dimension_numbers = #tpu.dot_dimension_numbers<[1], [0], [0], [1], [0, 0, 1, 1], [], []>} : vector<4x416xbf16>, vector<416x16xbf16>, vector<4x16xf32> -> vector<4x16xf32>
    %95 = arith.addf %80, %94 : vector<4x16xf32>
    %c48 = arith.constant 48 : index
    %c0_47 = arith.constant 0 : index
    %96 = vector.load %arg7[%c48, %c0_47] : memref<104x832xf32, #tpu.memory_space<vmem>>, vector<4x832xf32>
    %c52 = arith.constant 52 : index
    %c0_48 = arith.constant 0 : index
    %97 = vector.load %arg7[%c52, %c0_48] : memref<104x832xf32, #tpu.memory_space<vmem>>, vector<4x832xf32>
    %98 = arith.maximumf %96, %97 : vector<4x832xf32>
    %99 = vector.extract_strided_slice %98 {offsets = [0, 0], sizes = [4, 416], strides = [1, 1]} : vector<4x832xf32> to vector<4x416xf32>
    %100 = vector.extract_strided_slice %98 {offsets = [0, 416], sizes = [4, 416], strides = [1, 1]} : vector<4x832xf32> to vector<4x416xf32>
    %101 = arith.maximumf %99, %100 : vector<4x416xf32>
    %102 = vector.broadcast %4 : vector<1x416xf32> to vector<4x416xf32>
    %103 = arith.addf %101, %102 : vector<4x416xf32>
    %cst_49 = arith.constant 0.000000e+00 : f32
    %104 = vector.broadcast %cst_49 : f32 to vector<4x416xf32>
    %105 = arith.maximumf %103, %104 : vector<4x416xf32>
    %106 = arith.truncf %105 : vector<4x416xf32> to vector<4x416xbf16>
    %c6 = arith.constant 6 : index
    %c0_50 = arith.constant 0 : index
    %c0_51 = arith.constant 0 : index
    %107 = vector.load %arg4[%c6, %c0_50, %c0_51] : memref<13x416x16xbf16, #tpu.memory_space<vmem>>, vector<1x416x16xbf16>
    %108 = vector.shape_cast %107 : vector<1x416x16xbf16> to vector<416x16xbf16>
    %cst_52 = arith.constant dense<0.000000e+00> : vector<4x16xf32>
    %109 = tpu.matmul %106, %108, %cst_52 {dimension_numbers = #tpu.dot_dimension_numbers<[1], [0], [0], [1], [0, 0, 1, 1], [], []>} : vector<4x416xbf16>, vector<416x16xbf16>, vector<4x16xf32> -> vector<4x16xf32>
    %110 = arith.addf %95, %109 : vector<4x16xf32>
    %c56 = arith.constant 56 : index
    %c0_53 = arith.constant 0 : index
    %111 = vector.load %arg7[%c56, %c0_53] : memref<104x832xf32, #tpu.memory_space<vmem>>, vector<4x832xf32>
    %c60 = arith.constant 60 : index
    %c0_54 = arith.constant 0 : index
    %112 = vector.load %arg7[%c60, %c0_54] : memref<104x832xf32, #tpu.memory_space<vmem>>, vector<4x832xf32>
    %113 = arith.maximumf %111, %112 : vector<4x832xf32>
    %114 = vector.extract_strided_slice %113 {offsets = [0, 0], sizes = [4, 416], strides = [1, 1]} : vector<4x832xf32> to vector<4x416xf32>
    %115 = vector.extract_strided_slice %113 {offsets = [0, 416], sizes = [4, 416], strides = [1, 1]} : vector<4x832xf32> to vector<4x416xf32>
    %116 = arith.maximumf %114, %115 : vector<4x416xf32>
    %117 = vector.broadcast %4 : vector<1x416xf32> to vector<4x416xf32>
    %118 = arith.addf %116, %117 : vector<4x416xf32>
    %cst_55 = arith.constant 0.000000e+00 : f32
    %119 = vector.broadcast %cst_55 : f32 to vector<4x416xf32>
    %120 = arith.maximumf %118, %119 : vector<4x416xf32>
    %121 = arith.truncf %120 : vector<4x416xf32> to vector<4x416xbf16>
    %c7 = arith.constant 7 : index
    %c0_56 = arith.constant 0 : index
    %c0_57 = arith.constant 0 : index
    %122 = vector.load %arg4[%c7, %c0_56, %c0_57] : memref<13x416x16xbf16, #tpu.memory_space<vmem>>, vector<1x416x16xbf16>
    %123 = vector.shape_cast %122 : vector<1x416x16xbf16> to vector<416x16xbf16>
    %cst_58 = arith.constant dense<0.000000e+00> : vector<4x16xf32>
    %124 = tpu.matmul %121, %123, %cst_58 {dimension_numbers = #tpu.dot_dimension_numbers<[1], [0], [0], [1], [0, 0, 1, 1], [], []>} : vector<4x416xbf16>, vector<416x16xbf16>, vector<4x16xf32> -> vector<4x16xf32>
    %125 = arith.addf %110, %124 : vector<4x16xf32>
    %c64 = arith.constant 64 : index
    %c0_59 = arith.constant 0 : index
    %126 = vector.load %arg7[%c64, %c0_59] : memref<104x832xf32, #tpu.memory_space<vmem>>, vector<4x832xf32>
    %c68 = arith.constant 68 : index
    %c0_60 = arith.constant 0 : index
    %127 = vector.load %arg7[%c68, %c0_60] : memref<104x832xf32, #tpu.memory_space<vmem>>, vector<4x832xf32>
    %128 = arith.maximumf %126, %127 : vector<4x832xf32>
    %129 = vector.extract_strided_slice %128 {offsets = [0, 0], sizes = [4, 416], strides = [1, 1]} : vector<4x832xf32> to vector<4x416xf32>
    %130 = vector.extract_strided_slice %128 {offsets = [0, 416], sizes = [4, 416], strides = [1, 1]} : vector<4x832xf32> to vector<4x416xf32>
    %131 = arith.maximumf %129, %130 : vector<4x416xf32>
    %132 = vector.broadcast %4 : vector<1x416xf32> to vector<4x416xf32>
    %133 = arith.addf %131, %132 : vector<4x416xf32>
    %cst_61 = arith.constant 0.000000e+00 : f32
    %134 = vector.broadcast %cst_61 : f32 to vector<4x416xf32>
    %135 = arith.maximumf %133, %134 : vector<4x416xf32>
    %136 = arith.truncf %135 : vector<4x416xf32> to vector<4x416xbf16>
    %c8_62 = arith.constant 8 : index
    %c0_63 = arith.constant 0 : index
    %c0_64 = arith.constant 0 : index
    %137 = vector.load %arg4[%c8_62, %c0_63, %c0_64] : memref<13x416x16xbf16, #tpu.memory_space<vmem>>, vector<1x416x16xbf16>
    %138 = vector.shape_cast %137 : vector<1x416x16xbf16> to vector<416x16xbf16>
    %cst_65 = arith.constant dense<0.000000e+00> : vector<4x16xf32>
    %139 = tpu.matmul %136, %138, %cst_65 {dimension_numbers = #tpu.dot_dimension_numbers<[1], [0], [0], [1], [0, 0, 1, 1], [], []>} : vector<4x416xbf16>, vector<416x16xbf16>, vector<4x16xf32> -> vector<4x16xf32>
    %140 = arith.addf %125, %139 : vector<4x16xf32>
    %c72 = arith.constant 72 : index
    %c0_66 = arith.constant 0 : index
    %141 = vector.load %arg7[%c72, %c0_66] : memref<104x832xf32, #tpu.memory_space<vmem>>, vector<4x832xf32>
    %c76 = arith.constant 76 : index
    %c0_67 = arith.constant 0 : index
    %142 = vector.load %arg7[%c76, %c0_67] : memref<104x832xf32, #tpu.memory_space<vmem>>, vector<4x832xf32>
    %143 = arith.maximumf %141, %142 : vector<4x832xf32>
    %144 = vector.extract_strided_slice %143 {offsets = [0, 0], sizes = [4, 416], strides = [1, 1]} : vector<4x832xf32> to vector<4x416xf32>
    %145 = vector.extract_strided_slice %143 {offsets = [0, 416], sizes = [4, 416], strides = [1, 1]} : vector<4x832xf32> to vector<4x416xf32>
    %146 = arith.maximumf %144, %145 : vector<4x416xf32>
    %147 = vector.broadcast %4 : vector<1x416xf32> to vector<4x416xf32>
    %148 = arith.addf %146, %147 : vector<4x416xf32>
    %cst_68 = arith.constant 0.000000e+00 : f32
    %149 = vector.broadcast %cst_68 : f32 to vector<4x416xf32>
    %150 = arith.maximumf %148, %149 : vector<4x416xf32>
    %151 = arith.truncf %150 : vector<4x416xf32> to vector<4x416xbf16>
    %c9 = arith.constant 9 : index
    %c0_69 = arith.constant 0 : index
    %c0_70 = arith.constant 0 : index
    %152 = vector.load %arg4[%c9, %c0_69, %c0_70] : memref<13x416x16xbf16, #tpu.memory_space<vmem>>, vector<1x416x16xbf16>
    %153 = vector.shape_cast %152 : vector<1x416x16xbf16> to vector<416x16xbf16>
    %cst_71 = arith.constant dense<0.000000e+00> : vector<4x16xf32>
    %154 = tpu.matmul %151, %153, %cst_71 {dimension_numbers = #tpu.dot_dimension_numbers<[1], [0], [0], [1], [0, 0, 1, 1], [], []>} : vector<4x416xbf16>, vector<416x16xbf16>, vector<4x16xf32> -> vector<4x16xf32>
    %155 = arith.addf %140, %154 : vector<4x16xf32>
    %c80 = arith.constant 80 : index
    %c0_72 = arith.constant 0 : index
    %156 = vector.load %arg7[%c80, %c0_72] : memref<104x832xf32, #tpu.memory_space<vmem>>, vector<4x832xf32>
    %c84 = arith.constant 84 : index
    %c0_73 = arith.constant 0 : index
    %157 = vector.load %arg7[%c84, %c0_73] : memref<104x832xf32, #tpu.memory_space<vmem>>, vector<4x832xf32>
    %158 = arith.maximumf %156, %157 : vector<4x832xf32>
    %159 = vector.extract_strided_slice %158 {offsets = [0, 0], sizes = [4, 416], strides = [1, 1]} : vector<4x832xf32> to vector<4x416xf32>
    %160 = vector.extract_strided_slice %158 {offsets = [0, 416], sizes = [4, 416], strides = [1, 1]} : vector<4x832xf32> to vector<4x416xf32>
    %161 = arith.maximumf %159, %160 : vector<4x416xf32>
    %162 = vector.broadcast %4 : vector<1x416xf32> to vector<4x416xf32>
    %163 = arith.addf %161, %162 : vector<4x416xf32>
    %cst_74 = arith.constant 0.000000e+00 : f32
    %164 = vector.broadcast %cst_74 : f32 to vector<4x416xf32>
    %165 = arith.maximumf %163, %164 : vector<4x416xf32>
    %166 = arith.truncf %165 : vector<4x416xf32> to vector<4x416xbf16>
    %c10 = arith.constant 10 : index
    %c0_75 = arith.constant 0 : index
    %c0_76 = arith.constant 0 : index
    %167 = vector.load %arg4[%c10, %c0_75, %c0_76] : memref<13x416x16xbf16, #tpu.memory_space<vmem>>, vector<1x416x16xbf16>
    %168 = vector.shape_cast %167 : vector<1x416x16xbf16> to vector<416x16xbf16>
    %cst_77 = arith.constant dense<0.000000e+00> : vector<4x16xf32>
    %169 = tpu.matmul %166, %168, %cst_77 {dimension_numbers = #tpu.dot_dimension_numbers<[1], [0], [0], [1], [0, 0, 1, 1], [], []>} : vector<4x416xbf16>, vector<416x16xbf16>, vector<4x16xf32> -> vector<4x16xf32>
    %170 = arith.addf %155, %169 : vector<4x16xf32>
    %c88 = arith.constant 88 : index
    %c0_78 = arith.constant 0 : index
    %171 = vector.load %arg7[%c88, %c0_78] : memref<104x832xf32, #tpu.memory_space<vmem>>, vector<4x832xf32>
    %c92 = arith.constant 92 : index
    %c0_79 = arith.constant 0 : index
    %172 = vector.load %arg7[%c92, %c0_79] : memref<104x832xf32, #tpu.memory_space<vmem>>, vector<4x832xf32>
    %173 = arith.maximumf %171, %172 : vector<4x832xf32>
    %174 = vector.extract_strided_slice %173 {offsets = [0, 0], sizes = [4, 416], strides = [1, 1]} : vector<4x832xf32> to vector<4x416xf32>
    %175 = vector.extract_strided_slice %173 {offsets = [0, 416], sizes = [4, 416], strides = [1, 1]} : vector<4x832xf32> to vector<4x416xf32>
    %176 = arith.maximumf %174, %175 : vector<4x416xf32>
    %177 = vector.broadcast %4 : vector<1x416xf32> to vector<4x416xf32>
    %178 = arith.addf %176, %177 : vector<4x416xf32>
    %cst_80 = arith.constant 0.000000e+00 : f32
    %179 = vector.broadcast %cst_80 : f32 to vector<4x416xf32>
    %180 = arith.maximumf %178, %179 : vector<4x416xf32>
    %181 = arith.truncf %180 : vector<4x416xf32> to vector<4x416xbf16>
    %c11 = arith.constant 11 : index
    %c0_81 = arith.constant 0 : index
    %c0_82 = arith.constant 0 : index
    %182 = vector.load %arg4[%c11, %c0_81, %c0_82] : memref<13x416x16xbf16, #tpu.memory_space<vmem>>, vector<1x416x16xbf16>
    %183 = vector.shape_cast %182 : vector<1x416x16xbf16> to vector<416x16xbf16>
    %cst_83 = arith.constant dense<0.000000e+00> : vector<4x16xf32>
    %184 = tpu.matmul %181, %183, %cst_83 {dimension_numbers = #tpu.dot_dimension_numbers<[1], [0], [0], [1], [0, 0, 1, 1], [], []>} : vector<4x416xbf16>, vector<416x16xbf16>, vector<4x16xf32> -> vector<4x16xf32>
    %185 = arith.addf %170, %184 : vector<4x16xf32>
    %c96 = arith.constant 96 : index
    %c0_84 = arith.constant 0 : index
    %186 = vector.load %arg7[%c96, %c0_84] : memref<104x832xf32, #tpu.memory_space<vmem>>, vector<4x832xf32>
    %c100 = arith.constant 100 : index
    %c0_85 = arith.constant 0 : index
    %187 = vector.load %arg7[%c100, %c0_85] : memref<104x832xf32, #tpu.memory_space<vmem>>, vector<4x832xf32>
    %188 = arith.maximumf %186, %187 : vector<4x832xf32>
    %189 = vector.extract_strided_slice %188 {offsets = [0, 0], sizes = [4, 416], strides = [1, 1]} : vector<4x832xf32> to vector<4x416xf32>
    %190 = vector.extract_strided_slice %188 {offsets = [0, 416], sizes = [4, 416], strides = [1, 1]} : vector<4x832xf32> to vector<4x416xf32>
    %191 = arith.maximumf %189, %190 : vector<4x416xf32>
    %192 = vector.broadcast %4 : vector<1x416xf32> to vector<4x416xf32>
    %193 = arith.addf %191, %192 : vector<4x416xf32>
    %cst_86 = arith.constant 0.000000e+00 : f32
    %194 = vector.broadcast %cst_86 : f32 to vector<4x416xf32>
    %195 = arith.maximumf %193, %194 : vector<4x416xf32>
    %196 = arith.truncf %195 : vector<4x416xf32> to vector<4x416xbf16>
    %c12_87 = arith.constant 12 : index
    %c0_88 = arith.constant 0 : index
    %c0_89 = arith.constant 0 : index
    %197 = vector.load %arg4[%c12_87, %c0_88, %c0_89] : memref<13x416x16xbf16, #tpu.memory_space<vmem>>, vector<1x416x16xbf16>
    %198 = vector.shape_cast %197 : vector<1x416x16xbf16> to vector<416x16xbf16>
    %cst_90 = arith.constant dense<0.000000e+00> : vector<4x16xf32>
    %199 = tpu.matmul %196, %198, %cst_90 {dimension_numbers = #tpu.dot_dimension_numbers<[1], [0], [0], [1], [0, 0, 1, 1], [], []>} : vector<4x416xbf16>, vector<416x16xbf16>, vector<4x16xf32> -> vector<4x16xf32>
    %200 = arith.addf %185, %199 : vector<4x16xf32>
    %c0_91 = arith.constant 0 : index
    %c0_92 = arith.constant 0 : index
    %201 = vector.load %arg5[%c0_91, %c0_92] : memref<1x16xf32, #tpu.memory_space<vmem>>, vector<1x16xf32>
    %202 = vector.broadcast %201 : vector<1x16xf32> to vector<4x16xf32>
    %203 = arith.addf %200, %202 : vector<4x16xf32>
    %c0_93 = arith.constant 0 : index
    %c0_94 = arith.constant 0 : index
    %c0_95 = arith.constant 0 : index
    %204 = vector.load %arg6[%c0_93, %c0_94, %c0_95] : memref<1x4x16xf32, #tpu.memory_space<vmem>>, vector<1x4x16xf32>
    %205 = vector.shape_cast %204 : vector<1x4x16xf32> to vector<4x16xf32>
    %206 = vector.shape_cast %203 : vector<4x16xf32> to vector<1x4x16xf32>
    tpu.vector_store %arg6[%c0_93, %c0_94, %c0_95], %206 {strides = array<i32>} : memref<1x4x16xf32, #tpu.memory_space<vmem>>, vector<1x4x16xf32>,
    return
  }
  func.func @transform_0(%arg0: i32) -> (i32, i32) {
    %c0_i32 = arith.constant 0 : i32
    %c0_i32_0 = arith.constant 0 : i32
    return %arg0, %c0_i32 : i32, i32
  }
  func.func @transform_1(%arg0: i32) -> (i32, i32) {
    %c0_i32 = arith.constant 0 : i32
    %c0_i32_0 = arith.constant 0 : i32
    %c0_i32_1 = arith.constant 0 : i32
    return %c0_i32, %c0_i32_0 : i32, i32
  }
  func.func @transform_2(%arg0: i32) -> (i32, i32) {
    %c0_i32 = arith.constant 0 : i32
    %c0_i32_0 = arith.constant 0 : i32
    %c0_i32_1 = arith.constant 0 : i32
    return %c0_i32, %c0_i32_0 : i32, i32
  }
  func.func @transform_3(%arg0: i32) -> (i32, i32, i32) {
    %c0_i32 = arith.constant 0 : i32
    %c0_i32_0 = arith.constant 0 : i32
    %c0_i32_1 = arith.constant 0 : i32
    %c0_i32_2 = arith.constant 0 : i32
    return %c0_i32, %c0_i32_0, %c0_i32_1 : i32, i32, i32
  }
  func.func @transform_4(%arg0: i32) -> (i32, i32) {
    %c0_i32 = arith.constant 0 : i32
    %c0_i32_0 = arith.constant 0 : i32
    %c0_i32_1 = arith.constant 0 : i32
    return %c0_i32, %c0_i32_0 : i32, i32
  }
  func.func @transform_5(%arg0: i32) -> (i32, i32, i32) {
    %c0_i32 = arith.constant 0 : i32
    %c0_i32_0 = arith.constant 0 : i32
    %c0_i32_1 = arith.constant 0 : i32
    return %arg0, %c0_i32, %c0_i32_0 : i32, i32, i32
  }
}

</mosaic_0001>

<llo_original>
// kernel: vanilla_cnn_forward.1
$region0: #{vanilla_cnn_forward.1}
  #allocation0 [shape = 'u32[]', space=smem, size = 0x4, offset = 0x4, fixed_abs, tag = 'smem constant byte address 0x4 - core index']
  #allocation1 [shape = 'u32[72,128]{1,0:T(1,128)}', space=vmem, size = 0x9000, scoped, tag = 'internal scratch']
  #allocation2 [shape = 'f32[104,832]{1,0:T(8,128)}', space=vmem, size = 0x5b000, scoped, tag = 'scratch operand']
  %s0 = inlined_call_operand.vmem [shape: bf16[104,672], index: 0, kind: input, shape index: {}]
  %s1 = inlined_call_operand.vmem [shape: bf16[672,832], index: 1, kind: input, shape index: {}]
  %s2 = inlined_call_operand.vmem [shape: f32[1,416], index: 2, kind: input, shape index: {}]
  %s3 = inlined_call_operand.vmem [shape: bf16[13,416,16], index: 3, kind: input, shape index: {}]
  %s4 = inlined_call_operand.vmem [shape: f32[1,16], index: 4, kind: input, shape index: {}]
  %s5 = inlined_call_operand.vmem [shape: f32[1,4,16], index: 5, kind: output, shape index: {}]
  %s6 = sld [smem:[#allocation0]]
  $region30: #{vanilla_cnn_forward.1} parent=0
    _
  %s8 = ssub.s32 1, %s6
  %s9 = scalar_select 0, %s8, %s6
  // Predicated region
  $region2: #{vanilla_cnn_forward.1} parent=0 // pred_check
    _
  $region3: #{vanilla_cnn_forward.1} parent=0 // pred_check_branch
    %11 = sbr.rel (0) target = $region5
  $region4: #{vanilla_cnn_forward.1} parent=0 // pred_region
    _
  $region5: #{vanilla_cnn_forward.1} parent=0 // pred_fallthru
    _
  // Predicated region
  $region6: #{vanilla_cnn_forward.1} parent=0 // pred_check
    _
  $region7: #{vanilla_cnn_forward.1} parent=0 // pred_check_branch
    %13 = sbr.rel (0) target = $region9
  $region8: #{vanilla_cnn_forward.1} parent=0 // pred_region
    _
  $region9: #{vanilla_cnn_forward.1} parent=0 // pred_fallthru
    _
  // Predicated region
  $region10: #{vanilla_cnn_forward.1} parent=0 // pred_check
    _
  $region11: #{vanilla_cnn_forward.1} parent=0 // pred_check_branch
    %15 = sbr.rel (0) target = $region13
  $region12: #{vanilla_cnn_forward.1} parent=0 // pred_region
    _
  $region13: #{vanilla_cnn_forward.1} parent=0 // pred_fallthru
    _
  // Predicated region
  $region14: #{vanilla_cnn_forward.1} parent=0 // pred_check
    _
  $region15: #{vanilla_cnn_forward.1} parent=0 // pred_check_branch
    %17 = sbr.rel (0) target = $region17
  $region16: #{vanilla_cnn_forward.1} parent=0 // pred_region
    _
  $region17: #{vanilla_cnn_forward.1} parent=0 // pred_fallthru
    _
  // Predicated region
  $region18: #{vanilla_cnn_forward.1} parent=0 // pred_check
    _
  $region19: #{vanilla_cnn_forward.1} parent=0 // pred_check_branch
    %19 = sbr.rel (0) target = $region21
  $region20: #{vanilla_cnn_forward.1} parent=0 // pred_region
    _
  $region21: #{vanilla_cnn_forward.1} parent=0 // pred_fallthru
    _
  %v21 = vld [vmem:[%s0] sm:$0xff]
  %v22 = vld [vmem:[%s0 + $0x8] sm:$0xff]
  %v23 = vld [vmem:[%s0 + $0x10] sm:$0xff]
  %v24 = vld [vmem:[%s0 + $0x18] sm:$0xff]
  %v25 = vld [vmem:[%s0 + $0x20] sm:$0xff]
  %v26 = vld [vmem:[%s0 + $0x28] sm:$0xff]
  %v27 = vld [vmem:[%s0 + $0x30] sm:$0xff]
  %v28 = vld [vmem:[%s0 + $0x38] sm:$0xff]
  %v29 = vld [vmem:[%s0 + $0x40] sm:$0xff]
  %v30 = vld [vmem:[%s0 + $0x48] sm:$0xff]
  %v31 = vld [vmem:[%s0 + $0x50] sm:$0xff]
  %v32 = vld [vmem:[%s0 + $0x58] sm:$0xff]
  %v33 = vld [vmem:[%s0 + $0x60] sm:$0xff]
  %v34 = vld [vmem:[%s0 + $0x68] sm:$0xff]
  %v35 = vld [vmem:[%s0 + $0x70] sm:$0xff]
  %v36 = vld [vmem:[%s0 + $0x78] sm:$0xff]
  %v37 = vld [vmem:[%s0 + $0x80] sm:$0xff]
  %v38 = vld [vmem:[%s0 + $0x88] sm:$0xff]
  %v39 = vld [vmem:[%s0 + $0x90] sm:$0xff]
  %v40 = vld [vmem:[%s0 + $0x98] sm:$0xff]
  %v41 = vld [vmem:[%s0 + $0xa0] sm:$0xff]
  %v42 = vld [vmem:[%s0 + $0xa8] sm:$0xff]
  %v43 = vld [vmem:[%s0 + $0xb0] sm:$0xff]
  %v44 = vld [vmem:[%s0 + $0xb8] sm:$0xff]
  %v45 = vld [vmem:[%s0 + $0xc0] sm:$0xff]
  %v46 = vld [vmem:[%s0 + $0xc8] sm:$0xff]
  %v47 = vld [vmem:[%s0 + $0xd0] sm:$0xff]
  %v48 = vld [vmem:[%s0 + $0xd8] sm:$0xff]
  %v49 = vld [vmem:[%s0 + $0xe0] sm:$0xff]
  %v50 = vld [vmem:[%s0 + $0xe8] sm:$0xff]
  %v51 = vld [vmem:[%s0 + $0xf0] sm:$0xff]
  %v52 = vld [vmem:[%s0 + $0xf8] sm:$0xff]
  %v53 = vld [vmem:[%s0 + $0x100] sm:$0xff]
  %v54 = vld [vmem:[%s0 + $0x108] sm:$0xff]
  %v55 = vld [vmem:[%s0 + $0x110] sm:$0xff]
  %v56 = vld [vmem:[%s0 + $0x118] sm:$0xff]
  %v57 = vld [vmem:[%s0 + $0x120] sm:$0xff]
  %v58 = vld [vmem:[%s0 + $0x128] sm:$0xff]
  %v59 = vld [vmem:[%s0 + $0x130] sm:$0xff]
  %v60 = vld [vmem:[%s1] sm:$0xff]
  %v61 = vld [vmem:[%s1 + $0x8] sm:$0xff]
  %v62 = vld [vmem:[%s1 + $0x10] sm:$0xff]
  %v63 = vld [vmem:[%s1 + $0x18] sm:$0xf]
  %v64 = vld [vmem:[%s1 + $0x1c] sm:$0xff]
  %v65 = vld [vmem:[%s1 + $0x24] sm:$0xff]
  %v66 = vld [vmem:[%s1 + $0x2c] sm:$0xff]
  %v67 = vld [vmem:[%s1 + $0x34] sm:$0xf]
  %v68 = vld [vmem:[%s1 + $0x38] sm:$0xff]
  %v69 = vld [vmem:[%s1 + $0x40] sm:$0xff]
  %v70 = vld [vmem:[%s1 + $0x48] sm:$0xff]
  %v71 = vld [vmem:[%s1 + $0x50] sm:$0xf]
  %v72 = vld [vmem:[%s1 + $0x54] sm:$0xff]
  %v73 = vld [vmem:[%s1 + $0x5c] sm:$0xff]
  %v74 = vld [vmem:[%s1 + $0x64] sm:$0xff]
  %v75 = vld [vmem:[%s1 + $0x6c] sm:$0xf]
  %v76 = vld [vmem:[%s1 + $0x70] sm:$0xff]
  %v77 = vld [vmem:[%s1 + $0x78] sm:$0xff]
  %v78 = vld [vmem:[%s1 + $0x80] sm:$0xff]
  %v79 = vld [vmem:[%s1 + $0x88] sm:$0xf]
  %v80 = vld [vmem:[%s1 + $0x8c] sm:$0xff]
  %v81 = vld [vmem:[%s1 + $0x94] sm:$0xff]
  %v82 = vld [vmem:[%s1 + $0x9c] sm:$0xff]
  %v83 = vld [vmem:[%s1 + $0xa4] sm:$0xf]
  %v84 = vld [vmem:[%s1 + $0xa8] sm:$0xff]
  %v85 = vld [vmem:[%s1 + $0xb0] sm:$0xff]
  %v86 = vld [vmem:[%s1 + $0xb8] sm:$0xff]
  %v87 = vld [vmem:[%s1 + $0xc0] sm:$0xf]
  %v88 = vld [vmem:[%s1 + $0xc4] sm:$0xff]
  %v89 = vld [vmem:[%s1 + $0xcc] sm:$0xff]
  %v90 = vld [vmem:[%s1 + $0xd4] sm:$0xff]
  %v91 = vld [vmem:[%s1 + $0xdc] sm:$0xf]
  %v92 = vld [vmem:[%s1 + $0xe0] sm:$0xff]
  %v93 = vld [vmem:[%s1 + $0xe8] sm:$0xff]
  %v94 = vld [vmem:[%s1 + $0xf0] sm:$0xff]
  %v95 = vld [vmem:[%s1 + $0xf8] sm:$0xf]
  %v96 = vld [vmem:[%s1 + $0xfc] sm:$0xff]
  %v97 = vld [vmem:[%s1 + $0x104] sm:$0xff]
  %v98 = vld [vmem:[%s1 + $0x10c] sm:$0xff]
  %v99 = vld [vmem:[%s1 + $0x114] sm:$0xf]
  %v100 = vld [vmem:[%s1 + $0x118] sm:$0xff]
  %v101 = vld [vmem:[%s1 + $0x120] sm:$0xff]
  %v102 = vld [vmem:[%s1 + $0x128] sm:$0xff]
  %v103 = vld [vmem:[%s1 + $0x130] sm:$0xf]
  %v104 = vld [vmem:[%s1 + $0x134] sm:$0xff]
  %v105 = vld [vmem:[%s1 + $0x13c] sm:$0xff]
  %v106 = vld [vmem:[%s1 + $0x144] sm:$0xff]
  %v107 = vld [vmem:[%s1 + $0x14c] sm:$0xf]
  %v108 = vld [vmem:[%s1 + $0x150] sm:$0xff]
  %v109 = vld [vmem:[%s1 + $0x158] sm:$0xff]
  %v110 = vld [vmem:[%s1 + $0x160] sm:$0xff]
  %v111 = vld [vmem:[%s1 + $0x168] sm:$0xf]
  %v112 = vld [vmem:[%s1 + $0x16c] sm:$0xff]
  %v113 = vld [vmem:[%s1 + $0x174] sm:$0xff]
  %v114 = vld [vmem:[%s1 + $0x17c] sm:$0xff]
  %v115 = vld [vmem:[%s1 + $0x184] sm:$0xf]
  %v116 = vld [vmem:[%s1 + $0x188] sm:$0xff]
  %v117 = vld [vmem:[%s1 + $0x190] sm:$0xff]
  %v118 = vld [vmem:[%s1 + $0x198] sm:$0xff]
  %v119 = vld [vmem:[%s1 + $0x1a0] sm:$0xf]
  %v120 = vld [vmem:[%s1 + $0x1a4] sm:$0xff]
  %v121 = vld [vmem:[%s1 + $0x1ac] sm:$0xff]
  %v122 = vld [vmem:[%s1 + $0x1b4] sm:$0xff]
  %v123 = vld [vmem:[%s1 + $0x1bc] sm:$0xf]
  %v124 = vld [vmem:[%s1 + $0x1c0] sm:$0xff]
  %v125 = vld [vmem:[%s1 + $0x1c8] sm:$0xff]
  %v126 = vld [vmem:[%s1 + $0x1d0] sm:$0xff]
  %v127 = vld [vmem:[%s1 + $0x1d8] sm:$0xf]
  %v128 = vld [vmem:[%s1 + $0x1dc] sm:$0xff]
  %v129 = vld [vmem:[%s1 + $0x1e4] sm:$0xff]
  %v130 = vld [vmem:[%s1 + $0x1ec] sm:$0xff]
  %v131 = vld [vmem:[%s1 + $0x1f4] sm:$0xf]
  %v132 = vld [vmem:[%s1 + $0x1f8] sm:$0xff]
  %v133 = vld [vmem:[%s1 + $0x200] sm:$0xff]
  %v134 = vld [vmem:[%s1 + $0x208] sm:$0xff]
  %v135 = vld [vmem:[%s1 + $0x210] sm:$0xf]
  %v136 = vld [vmem:[%s1 + $0x214] sm:$0xff]
  %v137 = vld [vmem:[%s1 + $0x21c] sm:$0xff]
  %v138 = vld [vmem:[%s1 + $0x224] sm:$0xff]
  %v139 = vld [vmem:[%s1 + $0x22c] sm:$0xf]
  %v140 = vld [vmem:[%s1 + $0x230] sm:$0xff]
  %v141 = vld [vmem:[%s1 + $0x238] sm:$0xff]
  %v142 = vld [vmem:[%s1 + $0x240] sm:$0xff]
  %v143 = vld [vmem:[%s1 + $0x248] sm:$0xf]
  %v144 = vld [vmem:[%s1 + $0x24c] sm:$0xff]
  %v145 = vld [vmem:[%s1 + $0x254] sm:$0xff]
  %v146 = vld [vmem:[%s1 + $0x25c] sm:$0xff]
  %v147 = vld [vmem:[%s1 + $0x264] sm:$0xf]
  %v148 = vld [vmem:[%s1 + $0x268] sm:$0xff]
  %v149 = vld [vmem:[%s1 + $0x270] sm:$0xff]
  %v150 = vld [vmem:[%s1 + $0x278] sm:$0xff]
  %v151 = vld [vmem:[%s1 + $0x280] sm:$0xf]
  %v152 = vld [vmem:[%s1 + $0x284] sm:$0xff]
  %v153 = vld [vmem:[%s1 + $0x28c] sm:$0xff]
  %v154 = vld [vmem:[%s1 + $0x294] sm:$0xff]
  %v155 = vld [vmem:[%s1 + $0x29c] sm:$0xf]
  %v156 = vld [vmem:[%s1 + $0x2a0] sm:$0xff]
  %v157 = vld [vmem:[%s1 + $0x2a8] sm:$0xff]
  %v158 = vld [vmem:[%s1 + $0x2b0] sm:$0xff]
  %v159 = vld [vmem:[%s1 + $0x2b8] sm:$0xf]
  %v160 = vld [vmem:[%s1 + $0x2bc] sm:$0xff]
  %v161 = vld [vmem:[%s1 + $0x2c4] sm:$0xff]
  %v162 = vld [vmem:[%s1 + $0x2cc] sm:$0xff]
  %v163 = vld [vmem:[%s1 + $0x2d4] sm:$0xf]
  %v164 = vld [vmem:[%s1 + $0x2d8] sm:$0xff]
  %v165 = vld [vmem:[%s1 + $0x2e0] sm:$0xff]
  %v166 = vld [vmem:[%s1 + $0x2e8] sm:$0xff]
  %v167 = vld [vmem:[%s1 + $0x2f0] sm:$0xf]
  %v168 = vld [vmem:[%s1 + $0x2f4] sm:$0xff]
  %v169 = vld [vmem:[%s1 + $0x2fc] sm:$0xff]
  %v170 = vld [vmem:[%s1 + $0x304] sm:$0xff]
  %v171 = vld [vmem:[%s1 + $0x30c] sm:$0xf]
  %v172 = vld [vmem:[%s1 + $0x310] sm:$0xff]
  %v173 = vld [vmem:[%s1 + $0x318] sm:$0xff]
  %v174 = vld [vmem:[%s1 + $0x320] sm:$0xff]
  %v175 = vld [vmem:[%s1 + $0x328] sm:$0xf]
  %v176 = vld [vmem:[%s1 + $0x32c] sm:$0xff]
  %v177 = vld [vmem:[%s1 + $0x334] sm:$0xff]
  %v178 = vld [vmem:[%s1 + $0x33c] sm:$0xff]
  %v179 = vld [vmem:[%s1 + $0x344] sm:$0xf]
  %v180 = vld [vmem:[%s1 + $0x348] sm:$0xff]
  %v181 = vld [vmem:[%s1 + $0x350] sm:$0xff]
  %v182 = vld [vmem:[%s1 + $0x358] sm:$0xff]
  %v183 = vld [vmem:[%s1 + $0x360] sm:$0xf]
  %v184 = vld [vmem:[%s1 + $0x364] sm:$0xff]
  %v185 = vld [vmem:[%s1 + $0x36c] sm:$0xff]
  %v186 = vld [vmem:[%s1 + $0x374] sm:$0xff]
  %v187 = vld [vmem:[%s1 + $0x37c] sm:$0xf]
  %v188 = vld [vmem:[%s1 + $0x380] sm:$0xff]
  %v189 = vld [vmem:[%s1 + $0x388] sm:$0xff]
  %v190 = vld [vmem:[%s1 + $0x390] sm:$0xff]
  %v191 = vld [vmem:[%s1 + $0x398] sm:$0xf]
  %v192 = vld [vmem:[%s1 + $0x39c] sm:$0xff]
  %v193 = vld [vmem:[%s1 + $0x3a4] sm:$0xff]
  %v194 = vld [vmem:[%s1 + $0x3ac] sm:$0xff]
  %v195 = vld [vmem:[%s1 + $0x3b4] sm:$0xf]
  %v196 = vld [vmem:[%s1 + $0x3b8] sm:$0xff]
  %v197 = vld [vmem:[%s1 + $0x3c0] sm:$0xff]
  %v198 = vld [vmem:[%s1 + $0x3c8] sm:$0xff]
  %v199 = vld [vmem:[%s1 + $0x3d0] sm:$0xf]
  %v200 = vld [vmem:[%s1 + $0x3d4] sm:$0xff]
  %v201 = vld [vmem:[%s1 + $0x3dc] sm:$0xff]
  %v202 = vld [vmem:[%s1 + $0x3e4] sm:$0xff]
  %v203 = vld [vmem:[%s1 + $0x3ec] sm:$0xf]
  %v204 = vld [vmem:[%s1 + $0x3f0] sm:$0xff]
  %v205 = vld [vmem:[%s1 + $0x3f8] sm:$0xff]
  %v206 = vld [vmem:[%s1 + $0x400] sm:$0xff]
  %v207 = vld [vmem:[%s1 + $0x408] sm:$0xf]
  %v208 = vld [vmem:[%s1 + $0x40c] sm:$0xff]
  %v209 = vld [vmem:[%s1 + $0x414] sm:$0xff]
  %v210 = vld [vmem:[%s1 + $0x41c] sm:$0xff]
  %v211 = vld [vmem:[%s1 + $0x424] sm:$0xf]
  %v212 = vld [vmem:[%s1 + $0x428] sm:$0xff]
  %v213 = vld [vmem:[%s1 + $0x430] sm:$0xff]
  %v214 = vld [vmem:[%s1 + $0x438] sm:$0xff]
  %v215 = vld [vmem:[%s1 + $0x440] sm:$0xf]
  %v216 = vld [vmem:[%s1 + $0x444] sm:$0xff]
  %v217 = vld [vmem:[%s1 + $0x44c] sm:$0xff]
  %v218 = vld [vmem:[%s1 + $0x454] sm:$0xff]
  %v219 = vld [vmem:[%s1 + $0x45c] sm:$0xf]
  %v220 = vld [vmem:[%s1 + $0x460] sm:$0xff]
  %v221 = vld [vmem:[%s1 + $0x468] sm:$0xff]
  %v222 = vld [vmem:[%s1 + $0x470] sm:$0xff]
  %v223 = vld [vmem:[%s1 + $0x478] sm:$0xf]
  %v224 = vld [vmem:[%s1 + $0x47c] sm:$0xff]
  %v225 = vld [vmem:[%s1 + $0x484] sm:$0xff]
  %v226 = vld [vmem:[%s1 + $0x48c] sm:$0xff]
  %v227 = vld [vmem:[%s1 + $0x494] sm:$0xf]
  %v228 = vld [vmem:[%s1 + $0x498] sm:$0xff]
  %v229 = vld [vmem:[%s1 + $0x4a0] sm:$0xff]
  %v230 = vld [vmem:[%s1 + $0x4a8] sm:$0xff]
  %v231 = vld [vmem:[%s1 + $0x4b0] sm:$0xf]
  %v232 = vld [vmem:[%s1 + $0x4b4] sm:$0xff]
  %v233 = vld [vmem:[%s1 + $0x4bc] sm:$0xff]
  %v234 = vld [vmem:[%s1 + $0x4c4] sm:$0xff]
  %v235 = vld [vmem:[%s1 + $0x4cc] sm:$0xf]
  %v236 = vld [vmem:[%s1 + $0x4d0] sm:$0xff]
  %v237 = vld [vmem:[%s1 + $0x4d8] sm:$0xff]
  %v238 = vld [vmem:[%s1 + $0x4e0] sm:$0xff]
  %v239 = vld [vmem:[%s1 + $0x4e8] sm:$0xf]
  %v240 = vld [vmem:[%s1 + $0x4ec] sm:$0xff]
  %v241 = vld [vmem:[%s1 + $0x4f4] sm:$0xff]
  %v242 = vld [vmem:[%s1 + $0x4fc] sm:$0xff]
  %v243 = vld [vmem:[%s1 + $0x504] sm:$0xf]
  %v244 = vld [vmem:[%s1 + $0x508] sm:$0xff]
  %v245 = vld [vmem:[%s1 + $0x510] sm:$0xff]
  %v246 = vld [vmem:[%s1 + $0x518] sm:$0xff]
  %v247 = vld [vmem:[%s1 + $0x520] sm:$0xf]
  %v248 = vld [vmem:[%s1 + $0x524] sm:$0xff]
  %v249 = vld [vmem:[%s1 + $0x52c] sm:$0xff]
  %v250 = vld [vmem:[%s1 + $0x534] sm:$0xff]
  %v251 = vld [vmem:[%s1 + $0x53c] sm:$0xf]
  %v252 = vld [vmem:[%s1 + $0x540] sm:$0xff]
  %v253 = vld [vmem:[%s1 + $0x548] sm:$0xff]
  %v254 = vld [vmem:[%s1 + $0x550] sm:$0xff]
  %v255 = vld [vmem:[%s1 + $0x558] sm:$0xf]
  %v256 = vld [vmem:[%s1 + $0x55c] sm:$0xff]
  %v257 = vld [vmem:[%s1 + $0x564] sm:$0xff]
  %v258 = vld [vmem:[%s1 + $0x56c] sm:$0xff]
  %v259 = vld [vmem:[%s1 + $0x574] sm:$0xf]
  %v260 = vld [vmem:[%s1 + $0x578] sm:$0xff]
  %v261 = vld [vmem:[%s1 + $0x580] sm:$0xff]
  %v262 = vld [vmem:[%s1 + $0x588] sm:$0xff]
  %v263 = vld [vmem:[%s1 + $0x590] sm:$0xf]
  %v264 = vld [vmem:[%s1 + $0x594] sm:$0xff]
  %v265 = vld [vmem:[%s1 + $0x59c] sm:$0xff]
  %v266 = vld [vmem:[%s1 + $0x5a4] sm:$0xff]
  %v267 = vld [vmem:[%s1 + $0x5ac] sm:$0xf]
  %v268 = vld [vmem:[%s1 + $0x5b0] sm:$0xff]
  %v269 = vld [vmem:[%s1 + $0x5b8] sm:$0xff]
  %v270 = vld [vmem:[%s1 + $0x5c0] sm:$0xff]
  %v271 = vld [vmem:[%s1 + $0x5c8] sm:$0xf]
  %v272 = vld [vmem:[%s1 + $0x5cc] sm:$0xff]
  %v273 = vld [vmem:[%s1 + $0x5d4] sm:$0xff]
  %v274 = vld [vmem:[%s1 + $0x5dc] sm:$0xff]
  %v275 = vld [vmem:[%s1 + $0x5e4] sm:$0xf]
  %v276 = vld [vmem:[%s1 + $0x5e8] sm:$0xff]
  %v277 = vld [vmem:[%s1 + $0x5f0] sm:$0xff]
  %v278 = vld [vmem:[%s1 + $0x5f8] sm:$0xff]
  %v279 = vld [vmem:[%s1 + $0x600] sm:$0xf]
  %v280 = vld [vmem:[%s1 + $0x604] sm:$0xff]
  %v281 = vld [vmem:[%s1 + $0x60c] sm:$0xff]
  %v282 = vld [vmem:[%s1 + $0x614] sm:$0xff]
  %v283 = vld [vmem:[%s1 + $0x61c] sm:$0xf]
  %v284 = vld [vmem:[%s1 + $0x620] sm:$0xff]
  %v285 = vld [vmem:[%s1 + $0x628] sm:$0xff]
  %v286 = vld [vmem:[%s1 + $0x630] sm:$0xff]
  %v287 = vld [vmem:[%s1 + $0x638] sm:$0xf]
  %v288 = vld [vmem:[%s1 + $0x63c] sm:$0xff]
  %v289 = vld [vmem:[%s1 + $0x644] sm:$0xff]
  %v290 = vld [vmem:[%s1 + $0x64c] sm:$0xff]
  %v291 = vld [vmem:[%s1 + $0x654] sm:$0xf]
  %v292 = vld [vmem:[%s1 + $0x658] sm:$0xff]
  %v293 = vld [vmem:[%s1 + $0x660] sm:$0xff]
  %v294 = vld [vmem:[%s1 + $0x668] sm:$0xff]
  %v295 = vld [vmem:[%s1 + $0x670] sm:$0xf]
  %v296 = vld [vmem:[%s1 + $0x674] sm:$0xff]
  %v297 = vld [vmem:[%s1 + $0x67c] sm:$0xff]
  %v298 = vld [vmem:[%s1 + $0x684] sm:$0xff]
  %v299 = vld [vmem:[%s1 + $0x68c] sm:$0xf]
  %v300 = vld [vmem:[%s1 + $0x690] sm:$0xff]
  %v301 = vld [vmem:[%s1 + $0x698] sm:$0xff]
  %v302 = vld [vmem:[%s1 + $0x6a0] sm:$0xff]
  %v303 = vld [vmem:[%s1 + $0x6a8] sm:$0xf]
  %v304 = vld [vmem:[%s1 + $0x6ac] sm:$0xff]
  %v305 = vld [vmem:[%s1 + $0x6b4] sm:$0xff]
  %v306 = vld [vmem:[%s1 + $0x6bc] sm:$0xff]
  %v307 = vld [vmem:[%s1 + $0x6c4] sm:$0xf]
  %v308 = vld [vmem:[%s1 + $0x6c8] sm:$0xff]
  %v309 = vld [vmem:[%s1 + $0x6d0] sm:$0xff]
  %v310 = vld [vmem:[%s1 + $0x6d8] sm:$0xff]
  %v311 = vld [vmem:[%s1 + $0x6e0] sm:$0xf]
  %v312 = vld [vmem:[%s1 + $0x6e4] sm:$0xff]
  %v313 = vld [vmem:[%s1 + $0x6ec] sm:$0xff]
  %v314 = vld [vmem:[%s1 + $0x6f4] sm:$0xff]
  %v315 = vld [vmem:[%s1 + $0x6fc] sm:$0xf]
  %v316 = vld [vmem:[%s1 + $0x700] sm:$0xff]
  %v317 = vld [vmem:[%s1 + $0x708] sm:$0xff]
  %v318 = vld [vmem:[%s1 + $0x710] sm:$0xff]
  %v319 = vld [vmem:[%s1 + $0x718] sm:$0xf]
  %v320 = vld [vmem:[%s1 + $0x71c] sm:$0xff]
  %v321 = vld [vmem:[%s1 + $0x724] sm:$0xff]
  %v322 = vld [vmem:[%s1 + $0x72c] sm:$0xff]
  %v323 = vld [vmem:[%s1 + $0x734] sm:$0xf]
  %v324 = vld [vmem:[%s1 + $0x738] sm:$0xff]
  %v325 = vld [vmem:[%s1 + $0x740] sm:$0xff]
  %v326 = vld [vmem:[%s1 + $0x748] sm:$0xff]
  %v327 = vld [vmem:[%s1 + $0x750] sm:$0xf]
  %v328 = vld [vmem:[%s1 + $0x754] sm:$0xff]
  %v329 = vld [vmem:[%s1 + $0x75c] sm:$0xff]
  %v330 = vld [vmem:[%s1 + $0x764] sm:$0xff]
  %v331 = vld [vmem:[%s1 + $0x76c] sm:$0xf]
  %v332 = vld [vmem:[%s1 + $0x770] sm:$0xff]
  %v333 = vld [vmem:[%s1 + $0x778] sm:$0xff]
  %v334 = vld [vmem:[%s1 + $0x780] sm:$0xff]
  %v335 = vld [vmem:[%s1 + $0x788] sm:$0xf]
  %v336 = vld [vmem:[%s1 + $0x78c] sm:$0xff]
  %v337 = vld [vmem:[%s1 + $0x794] sm:$0xff]
  %v338 = vld [vmem:[%s1 + $0x79c] sm:$0xff]
  %v339 = vld [vmem:[%s1 + $0x7a4] sm:$0xf]
  %v340 = vld [vmem:[%s1 + $0x7a8] sm:$0xff]
  %v341 = vld [vmem:[%s1 + $0x7b0] sm:$0xff]
  %v342 = vld [vmem:[%s1 + $0x7b8] sm:$0xff]
  %v343 = vld [vmem:[%s1 + $0x7c0] sm:$0xf]
  %v344 = vld [vmem:[%s1 + $0x7c4] sm:$0xff]
  %v345 = vld [vmem:[%s1 + $0x7cc] sm:$0xff]
  %v346 = vld [vmem:[%s1 + $0x7d4] sm:$0xff]
  %v347 = vld [vmem:[%s1 + $0x7dc] sm:$0xf]
  %v348 = vld [vmem:[%s1 + $0x7e0] sm:$0xff]
  %v349 = vld [vmem:[%s1 + $0x7e8] sm:$0xff]
  %v350 = vld [vmem:[%s1 + $0x7f0] sm:$0xff]
  %v351 = vld [vmem:[%s1 + $0x7f8] sm:$0xf]
  %v352 = vld [vmem:[%s1 + $0x7fc] sm:$0xff]
  %v353 = vld [vmem:[%s1 + $0x804] sm:$0xff]
  %v354 = vld [vmem:[%s1 + $0x80c] sm:$0xff]
  %v355 = vld [vmem:[%s1 + $0x814] sm:$0xf]
  %v356 = vld [vmem:[%s1 + $0x818] sm:$0xff]
  %v357 = vld [vmem:[%s1 + $0x820] sm:$0xff]
  %v358 = vld [vmem:[%s1 + $0x828] sm:$0xff]
  %v359 = vld [vmem:[%s1 + $0x830] sm:$0xf]
  %v360 = vld [vmem:[%s1 + $0x834] sm:$0xff]
  %v361 = vld [vmem:[%s1 + $0x83c] sm:$0xff]
  %v362 = vld [vmem:[%s1 + $0x844] sm:$0xff]
  %v363 = vld [vmem:[%s1 + $0x84c] sm:$0xf]
  %v364 = vld [vmem:[%s1 + $0x850] sm:$0xff]
  %v365 = vld [vmem:[%s1 + $0x858] sm:$0xff]
  %v366 = vld [vmem:[%s1 + $0x860] sm:$0xff]
  %v367 = vld [vmem:[%s1 + $0x868] sm:$0xf]
  %v368 = vld [vmem:[%s1 + $0x86c] sm:$0xff]
  %v369 = vld [vmem:[%s1 + $0x874] sm:$0xff]
  %v370 = vld [vmem:[%s1 + $0x87c] sm:$0xff]
  %v371 = vld [vmem:[%s1 + $0x884] sm:$0xf]
  %v372 = vld [vmem:[%s1 + $0x888] sm:$0xff]
  %v373 = vld [vmem:[%s1 + $0x890] sm:$0xff]
  %v374 = vld [vmem:[%s1 + $0x898] sm:$0xff]
  %v375 = vld [vmem:[%s1 + $0x8a0] sm:$0xf]
  %v376 = vld [vmem:[%s1 + $0x8a4] sm:$0xff]
  %v377 = vld [vmem:[%s1 + $0x8ac] sm:$0xff]
  %v378 = vld [vmem:[%s1 + $0x8b4] sm:$0xff]
  %v379 = vld [vmem:[%s1 + $0x8bc] sm:$0xf]
  %v380 = vld [vmem:[%s1 + $0x8c0] sm:$0xff]
  %v381 = vld [vmem:[%s1 + $0x8c8] sm:$0xff]
  %v382 = vld [vmem:[%s1 + $0x8d0] sm:$0xff]
  %v383 = vld [vmem:[%s1 + $0x8d8] sm:$0xf]
  %v384 = vld [vmem:[%s1 + $0x8dc] sm:$0xff]
  %v385 = vld [vmem:[%s1 + $0x8e4] sm:$0xff]
  %v386 = vld [vmem:[%s1 + $0x8ec] sm:$0xff]
  %v387 = vld [vmem:[%s1 + $0x8f4] sm:$0xf]
  %v388 = vld [vmem:[%s1 + $0x8f8] sm:$0xff]
  %v389 = vld [vmem:[%s1 + $0x900] sm:$0xff]
  %v390 = vld [vmem:[%s1 + $0x908] sm:$0xff]
  %v391 = vld [vmem:[%s1 + $0x910] sm:$0xf]
  %v392 = vld [vmem:[%s1 + $0x914] sm:$0xff]
  %v393 = vld [vmem:[%s1 + $0x91c] sm:$0xff]
  %v394 = vld [vmem:[%s1 + $0x924] sm:$0xff]
  %v395 = vld [vmem:[%s1 + $0x92c] sm:$0xf]
  %v435 = vunpack.c.l.b16 %v21
  %v436 = vunpack.c.h.b16 %v21
  %v437 = vunpack.c.l.b16 %v22
  %v438 = vunpack.c.h.b16 %v22
  %v439 = vunpack.c.l.b16 %v23
  %v440 = vunpack.c.h.b16 %v23
  %v441 = vunpack.c.l.b16 %v24
  %v442 = vunpack.c.h.b16 %v24
  %v443 = vunpack.c.l.b16 %v25
  %v444 = vunpack.c.h.b16 %v25
  %v445 = vunpack.c.l.b16 %v26
  %v446 = vunpack.c.h.b16 %v26
  %v447 = vunpack.c.l.b16 %v27
  %v448 = vunpack.c.h.b16 %v27
  %v449 = vunpack.c.l.b16 %v28
  %v450 = vunpack.c.h.b16 %v28
  %v451 = vunpack.c.l.b16 %v29
  %v452 = vunpack.c.h.b16 %v29
  %v453 = vunpack.c.l.b16 %v30
  %v454 = vunpack.c.h.b16 %v30
  %v455 = vunpack.c.l.b16 %v31
  %v456 = vunpack.c.h.b16 %v31
  %v457 = vunpack.c.l.b16 %v32
  %v458 = vunpack.c.h.b16 %v32
  %v459 = vunpack.c.l.b16 %v33
  %v460 = vunpack.c.h.b16 %v33
  %v461 = vunpack.c.l.b16 %v34
  %v462 = vunpack.c.h.b16 %v34
  %v463 = vunpack.c.l.b16 %v35
  %v464 = vunpack.c.h.b16 %v35
  %v465 = vunpack.c.l.b16 %v36
  %v466 = vunpack.c.h.b16 %v36
  %v467 = vunpack.c.l.b16 %v37
  %v468 = vunpack.c.h.b16 %v37
  %v469 = vunpack.c.l.b16 %v38
  %v470 = vunpack.c.h.b16 %v38
  %v471 = vunpack.c.l.b16 %v39
  %v472 = vunpack.c.h.b16 %v39
  %v473 = vunpack.c.l.b16 %v40
  %v474 = vunpack.c.h.b16 %v40
  %v475 = vunpack.c.l.b16 %v41
  %v476 = vunpack.c.h.b16 %v41
  %v477 = vunpack.c.l.b16 %v42
  %v478 = vunpack.c.h.b16 %v42
  %v479 = vunpack.c.l.b16 %v43
  %v480 = vunpack.c.h.b16 %v43
  %v481 = vunpack.c.l.b16 %v44
  %v482 = vunpack.c.h.b16 %v44
  %v483 = vunpack.c.l.b16 %v45
  %v484 = vunpack.c.h.b16 %v45
  %v485 = vunpack.c.l.b16 %v46
  %v486 = vunpack.c.h.b16 %v46
  %v487 = vunpack.c.l.b16 %v47
  %v488 = vunpack.c.h.b16 %v47
  %v489 = vunpack.c.l.b16 %v48
  %v490 = vunpack.c.h.b16 %v48
  %v491 = vunpack.c.l.b16 %v49
  %v492 = vunpack.c.h.b16 %v49
  %v493 = vunpack.c.l.b16 %v50
  %v494 = vunpack.c.h.b16 %v50
  %v495 = vunpack.c.l.b16 %v51
  %v496 = vunpack.c.h.b16 %v51
  %v497 = vunpack.c.l.b16 %v52
  %v498 = vunpack.c.h.b16 %v52
  %v499 = vunpack.c.l.b16 %v53
  %v500 = vunpack.c.h.b16 %v53
  %v501 = vunpack.c.l.b16 %v54
  %v502 = vunpack.c.h.b16 %v54
  %v503 = vunpack.c.l.b16 %v55
  %v504 = vunpack.c.h.b16 %v55
  %v505 = vunpack.c.l.b16 %v56
  %v506 = vunpack.c.h.b16 %v56
  %v507 = vunpack.c.l.b16 %v57
  %v508 = vunpack.c.h.b16 %v57
  %v509 = vunpack.c.l.b16 %v58
  %v510 = vunpack.c.h.b16 %v58
  %v511 = vunpack.c.l.b16 %v59
  %v512 = vunpack.c.h.b16 %v59
  %v513 = vpack.c.b16 %v441, %v435
  %v514 = vpack.c.b16 %v442, %v436
  %v515 = vpack.c.b16 %v443, %v437
  %v516 = vpack.c.b16 %v444, %v438
  %v517 = vpack.c.b16 %v445, %v439
  %v518 = vpack.c.b16 %v446, %v440
  %v519 = vpack.c.b16 %v453, %v447
  %v520 = vpack.c.b16 %v454, %v448
  %v521 = vpack.c.b16 %v455, %v449
  %v522 = vpack.c.b16 %v456, %v450
  %v523 = vpack.c.b16 %v457, %v451
  %v524 = vpack.c.b16 %v458, %v452
  %v525 = vpack.c.b16 %v465, %v459
  %v526 = vpack.c.b16 %v466, %v460
  %v527 = vpack.c.b16 %v467, %v461
  %v528 = vpack.c.b16 %v468, %v462
  %v529 = vpack.c.b16 %v469, %v463
  %v530 = vpack.c.b16 %v470, %v464
  %v531 = vpack.c.b16 %v477, %v471
  %v532 = vpack.c.b16 %v478, %v472
  %v533 = vpack.c.b16 %v479, %v473
  %v534 = vpack.c.b16 %v480, %v474
  %v535 = vpack.c.b16 %v481, %v475
  %v536 = vpack.c.b16 %v482, %v476
  %v537 = vpack.c.b16 %v489, %v483
  %v538 = vpack.c.b16 %v490, %v484
  %v539 = vpack.c.b16 %v491, %v485
  %v540 = vpack.c.b16 %v492, %v486
  %v541 = vpack.c.b16 %v493, %v487
  %v542 = vpack.c.b16 %v494, %v488
  %v543 = vpack.c.b16 %v501, %v495
  %v544 = vpack.c.b16 %v502, %v496
  %v545 = vpack.c.b16 %v503, %v497
  %v546 = vpack.c.b16 %v504, %v498
  %v547 = vpack.c.b16 %v505, %v499
  %v548 = vpack.c.b16 %v506, %v500
  %v549 = vpack.c.b16 %v507, %v507
  %v550 = vpack.c.b16 %v508, %v508
  %v551 = vpack.c.b16 %v509, %v509
  %v552 = vpack.c.b16 %v510, %v510
  %v553 = vpack.c.b16 %v511, %v511
  %v554 = vpack.c.b16 %v512, %v512
  %v926 = vunpack.c.l.b16 %v60
  %v927 = vunpack.c.h.b16 %v60
  %v928 = vunpack.c.l.b16 %v61
  %v929 = vunpack.c.h.b16 %v61
  %v930 = vunpack.c.l.b16 %v62
  %v931 = vunpack.c.h.b16 %v62
  %v932 = vunpack.c.l.b16 %v63
  %v933 = vunpack.c.l.b16 %v64
  %v934 = vunpack.c.h.b16 %v64
  %v935 = vunpack.c.l.b16 %v65
  %v936 = vunpack.c.h.b16 %v65
  %v937 = vunpack.c.l.b16 %v66
  %v938 = vunpack.c.h.b16 %v66
  %v939 = vunpack.c.l.b16 %v67
  %v940 = vunpack.c.l.b16 %v68
  %v941 = vunpack.c.h.b16 %v68
  %v942 = vunpack.c.l.b16 %v69
  %v943 = vunpack.c.h.b16 %v69
  %v944 = vunpack.c.l.b16 %v70
  %v945 = vunpack.c.h.b16 %v70
  %v946 = vunpack.c.l.b16 %v71
  %v947 = vunpack.c.l.b16 %v72
  %v948 = vunpack.c.h.b16 %v72
  %v949 = vunpack.c.l.b16 %v73
  %v950 = vunpack.c.h.b16 %v73
  %v951 = vunpack.c.l.b16 %v74
  %v952 = vunpack.c.h.b16 %v74
  %v953 = vunpack.c.l.b16 %v75
  %v954 = vunpack.c.l.b16 %v76
  %v955 = vunpack.c.h.b16 %v76
  %v956 = vunpack.c.l.b16 %v77
  %v957 = vunpack.c.h.b16 %v77
  %v958 = vunpack.c.l.b16 %v78
  %v959 = vunpack.c.h.b16 %v78
  %v960 = vunpack.c.l.b16 %v79
  %v961 = vunpack.c.l.b16 %v80
  %v962 = vunpack.c.h.b16 %v80
  %v963 = vunpack.c.l.b16 %v81
  %v964 = vunpack.c.h.b16 %v81
  %v965 = vunpack.c.l.b16 %v82
  %v966 = vunpack.c.h.b16 %v82
  %v967 = vunpack.c.l.b16 %v83
  %v968 = vunpack.c.l.b16 %v84
  %v969 = vunpack.c.h.b16 %v84
  %v970 = vunpack.c.l.b16 %v85
  %v971 = vunpack.c.h.b16 %v85
  %v972 = vunpack.c.l.b16 %v86
  %v973 = vunpack.c.h.b16 %v86
  %v974 = vunpack.c.l.b16 %v87
  %v975 = vunpack.c.l.b16 %v88
  %v976 = vunpack.c.h.b16 %v88
  %v977 = vunpack.c.l.b16 %v89
  %v978 = vunpack.c.h.b16 %v89
  %v979 = vunpack.c.l.b16 %v90
  %v980 = vunpack.c.h.b16 %v90
  %v981 = vunpack.c.l.b16 %v91
  %v982 = vunpack.c.l.b16 %v92
  %v983 = vunpack.c.h.b16 %v92
  %v984 = vunpack.c.l.b16 %v93
  %v985 = vunpack.c.h.b16 %v93
  %v986 = vunpack.c.l.b16 %v94
  %v987 = vunpack.c.h.b16 %v94
  %v988 = vunpack.c.l.b16 %v95
  %v989 = vunpack.c.l.b16 %v96
  %v990 = vunpack.c.h.b16 %v96
  %v991 = vunpack.c.l.b16 %v97
  %v992 = vunpack.c.h.b16 %v97
  %v993 = vunpack.c.l.b16 %v98
  %v994 = vunpack.c.h.b16 %v98
  %v995 = vunpack.c.l.b16 %v99
  %v996 = vunpack.c.l.b16 %v100
  %v997 = vunpack.c.h.b16 %v100
  %v998 = vunpack.c.l.b16 %v101
  %v999 = vunpack.c.h.b16 %v101
  %v1000 = vunpack.c.l.b16 %v102
  %v1001 = vunpack.c.h.b16 %v102
  %v1002 = vunpack.c.l.b16 %v103
  %v1003 = vunpack.c.l.b16 %v104
  %v1004 = vunpack.c.h.b16 %v104
  %v1005 = vunpack.c.l.b16 %v105
  %v1006 = vunpack.c.h.b16 %v105
  %v1007 = vunpack.c.l.b16 %v106
  %v1008 = vunpack.c.h.b16 %v106
  %v1009 = vunpack.c.l.b16 %v107
  %v1010 = vunpack.c.l.b16 %v108
  %v1011 = vunpack.c.h.b16 %v108
  %v1012 = vunpack.c.l.b16 %v109
  %v1013 = vunpack.c.h.b16 %v109
  %v1014 = vunpack.c.l.b16 %v110
  %v1015 = vunpack.c.h.b16 %v110
  %v1016 = vunpack.c.l.b16 %v111
  %v1017 = vunpack.c.l.b16 %v112
  %v1018 = vunpack.c.h.b16 %v112
  %v1019 = vunpack.c.l.b16 %v113
  %v1020 = vunpack.c.h.b16 %v113
  %v1021 = vunpack.c.l.b16 %v114
  %v1022 = vunpack.c.h.b16 %v114
  %v1023 = vunpack.c.l.b16 %v115
  %v1024 = vunpack.c.l.b16 %v116
  %v1025 = vunpack.c.h.b16 %v116
  %v1026 = vunpack.c.l.b16 %v117
  %v1027 = vunpack.c.h.b16 %v117
  %v1028 = vunpack.c.l.b16 %v118
  %v1029 = vunpack.c.h.b16 %v118
  %v1030 = vunpack.c.l.b16 %v119
  %v1031 = vunpack.c.l.b16 %v120
  %v1032 = vunpack.c.h.b16 %v120
  %v1033 = vunpack.c.l.b16 %v121
  %v1034 = vunpack.c.h.b16 %v121
  %v1035 = vunpack.c.l.b16 %v122
  %v1036 = vunpack.c.h.b16 %v122
  %v1037 = vunpack.c.l.b16 %v123
  %v1038 = vunpack.c.l.b16 %v124
  %v1039 = vunpack.c.h.b16 %v124
  %v1040 = vunpack.c.l.b16 %v125
  %v1041 = vunpack.c.h.b16 %v125
  %v1042 = vunpack.c.l.b16 %v126
  %v1043 = vunpack.c.h.b16 %v126
  %v1044 = vunpack.c.l.b16 %v127
  %v1045 = vunpack.c.l.b16 %v128
  %v1046 = vunpack.c.h.b16 %v128
  %v1047 = vunpack.c.l.b16 %v129
  %v1048 = vunpack.c.h.b16 %v129
  %v1049 = vunpack.c.l.b16 %v130
  %v1050 = vunpack.c.h.b16 %v130
  %v1051 = vunpack.c.l.b16 %v131
  %v1052 = vunpack.c.l.b16 %v132
  %v1053 = vunpack.c.h.b16 %v132
  %v1054 = vunpack.c.l.b16 %v133
  %v1055 = vunpack.c.h.b16 %v133
  %v1056 = vunpack.c.l.b16 %v134
  %v1057 = vunpack.c.h.b16 %v134
  %v1058 = vunpack.c.l.b16 %v135
  %v1059 = vunpack.c.l.b16 %v136
  %v1060 = vunpack.c.h.b16 %v136
  %v1061 = vunpack.c.l.b16 %v137
  %v1062 = vunpack.c.h.b16 %v137
  %v1063 = vunpack.c.l.b16 %v138
  %v1064 = vunpack.c.h.b16 %v138
  %v1065 = vunpack.c.l.b16 %v139
  %v1066 = vunpack.c.l.b16 %v140
  %v1067 = vunpack.c.h.b16 %v140
  %v1068 = vunpack.c.l.b16 %v141
  %v1069 = vunpack.c.h.b16 %v141
  %v1070 = vunpack.c.l.b16 %v142
  %v1071 = vunpack.c.h.b16 %v142
  %v1072 = vunpack.c.l.b16 %v143
  %v1073 = vunpack.c.l.b16 %v144
  %v1074 = vunpack.c.h.b16 %v144
  %v1075 = vunpack.c.l.b16 %v145
  %v1076 = vunpack.c.h.b16 %v145
  %v1077 = vunpack.c.l.b16 %v146
  %v1078 = vunpack.c.h.b16 %v146
  %v1079 = vunpack.c.l.b16 %v147
  %v1080 = vunpack.c.l.b16 %v148
  %v1081 = vunpack.c.h.b16 %v148
  %v1082 = vunpack.c.l.b16 %v149
  %v1083 = vunpack.c.h.b16 %v149
  %v1084 = vunpack.c.l.b16 %v150
  %v1085 = vunpack.c.h.b16 %v150
  %v1086 = vunpack.c.l.b16 %v151
  %v1087 = vunpack.c.l.b16 %v152
  %v1088 = vunpack.c.h.b16 %v152
  %v1089 = vunpack.c.l.b16 %v153
  %v1090 = vunpack.c.h.b16 %v153
  %v1091 = vunpack.c.l.b16 %v154
  %v1092 = vunpack.c.h.b16 %v154
  %v1093 = vunpack.c.l.b16 %v155
  %v1094 = vunpack.c.l.b16 %v156
  %v1095 = vunpack.c.h.b16 %v156
  %v1096 = vunpack.c.l.b16 %v157
  %v1097 = vunpack.c.h.b16 %v157
  %v1098 = vunpack.c.l.b16 %v158
  %v1099 = vunpack.c.h.b16 %v158
  %v1100 = vunpack.c.l.b16 %v159
  %v1101 = vunpack.c.l.b16 %v160
  %v1102 = vunpack.c.h.b16 %v160
  %v1103 = vunpack.c.l.b16 %v161
  %v1104 = vunpack.c.h.b16 %v161
  %v1105 = vunpack.c.l.b16 %v162
  %v1106 = vunpack.c.h.b16 %v162
  %v1107 = vunpack.c.l.b16 %v163
  %v1108 = vunpack.c.l.b16 %v164
  %v1109 = vunpack.c.h.b16 %v164
  %v1110 = vunpack.c.l.b16 %v165
  %v1111 = vunpack.c.h.b16 %v165
  %v1112 = vunpack.c.l.b16 %v166
  %v1113 = vunpack.c.h.b16 %v166
  %v1114 = vunpack.c.l.b16 %v167
  %v1115 = vunpack.c.l.b16 %v168
  %v1116 = vunpack.c.h.b16 %v168
  %v1117 = vunpack.c.l.b16 %v169
  %v1118 = vunpack.c.h.b16 %v169
  %v1119 = vunpack.c.l.b16 %v170
  %v1120 = vunpack.c.h.b16 %v170
  %v1121 = vunpack.c.l.b16 %v171
  %v1122 = vunpack.c.l.b16 %v172
  %v1123 = vunpack.c.h.b16 %v172
  %v1124 = vunpack.c.l.b16 %v173
  %v1125 = vunpack.c.h.b16 %v173
  %v1126 = vunpack.c.l.b16 %v174
  %v1127 = vunpack.c.h.b16 %v174
  %v1128 = vunpack.c.l.b16 %v175
  %v1129 = vunpack.c.l.b16 %v176
  %v1130 = vunpack.c.h.b16 %v176
  %v1131 = vunpack.c.l.b16 %v177
  %v1132 = vunpack.c.h.b16 %v177
  %v1133 = vunpack.c.l.b16 %v178
  %v1134 = vunpack.c.h.b16 %v178
  %v1135 = vunpack.c.l.b16 %v179
  %v1136 = vunpack.c.l.b16 %v180
  %v1137 = vunpack.c.h.b16 %v180
  %v1138 = vunpack.c.l.b16 %v181
  %v1139 = vunpack.c.h.b16 %v181
  %v1140 = vunpack.c.l.b16 %v182
  %v1141 = vunpack.c.h.b16 %v182
  %v1142 = vunpack.c.l.b16 %v183
  %v1143 = vunpack.c.l.b16 %v184
  %v1144 = vunpack.c.h.b16 %v184
  %v1145 = vunpack.c.l.b16 %v185
  %v1146 = vunpack.c.h.b16 %v185
  %v1147 = vunpack.c.l.b16 %v186
  %v1148 = vunpack.c.h.b16 %v186
  %v1149 = vunpack.c.l.b16 %v187
  %v1150 = vunpack.c.l.b16 %v188
  %v1151 = vunpack.c.h.b16 %v188
  %v1152 = vunpack.c.l.b16 %v189
  %v1153 = vunpack.c.h.b16 %v189
  %v1154 = vunpack.c.l.b16 %v190
  %v1155 = vunpack.c.h.b16 %v190
  %v1156 = vunpack.c.l.b16 %v191
  %v1157 = vunpack.c.l.b16 %v192
  %v1158 = vunpack.c.h.b16 %v192
  %v1159 = vunpack.c.l.b16 %v193
  %v1160 = vunpack.c.h.b16 %v193
  %v1161 = vunpack.c.l.b16 %v194
  %v1162 = vunpack.c.h.b16 %v194
  %v1163 = vunpack.c.l.b16 %v195
  %v1164 = vunpack.c.l.b16 %v196
  %v1165 = vunpack.c.h.b16 %v196
  %v1166 = vunpack.c.l.b16 %v197
  %v1167 = vunpack.c.h.b16 %v197
  %v1168 = vunpack.c.l.b16 %v198
  %v1169 = vunpack.c.h.b16 %v198
  %v1170 = vunpack.c.l.b16 %v199
  %v1171 = vunpack.c.l.b16 %v200
  %v1172 = vunpack.c.h.b16 %v200
  %v1173 = vunpack.c.l.b16 %v201
  %v1174 = vunpack.c.h.b16 %v201
  %v1175 = vunpack.c.l.b16 %v202
  %v1176 = vunpack.c.h.b16 %v202
  %v1177 = vunpack.c.l.b16 %v203
  %v1178 = vunpack.c.l.b16 %v204
  %v1179 = vunpack.c.h.b16 %v204
  %v1180 = vunpack.c.l.b16 %v205
  %v1181 = vunpack.c.h.b16 %v205
  %v1182 = vunpack.c.l.b16 %v206
  %v1183 = vunpack.c.h.b16 %v206
  %v1184 = vunpack.c.l.b16 %v207
  %v1185 = vunpack.c.l.b16 %v208
  %v1186 = vunpack.c.h.b16 %v208
  %v1187 = vunpack.c.l.b16 %v209
  %v1188 = vunpack.c.h.b16 %v209
  %v1189 = vunpack.c.l.b16 %v210
  %v1190 = vunpack.c.h.b16 %v210
  %v1191 = vunpack.c.l.b16 %v211
  %v1192 = vunpack.c.l.b16 %v212
  %v1193 = vunpack.c.h.b16 %v212
  %v1194 = vunpack.c.l.b16 %v213
  %v1195 = vunpack.c.h.b16 %v213
  %v1196 = vunpack.c.l.b16 %v214
  %v1197 = vunpack.c.h.b16 %v214
  %v1198 = vunpack.c.l.b16 %v215
  %v1199 = vunpack.c.l.b16 %v216
  %v1200 = vunpack.c.h.b16 %v216
  %v1201 = vunpack.c.l.b16 %v217
  %v1202 = vunpack.c.h.b16 %v217
  %v1203 = vunpack.c.l.b16 %v218
  %v1204 = vunpack.c.h.b16 %v218
  %v1205 = vunpack.c.l.b16 %v219
  %v1206 = vunpack.c.l.b16 %v220
  %v1207 = vunpack.c.h.b16 %v220
  %v1208 = vunpack.c.l.b16 %v221
  %v1209 = vunpack.c.h.b16 %v221
  %v1210 = vunpack.c.l.b16 %v222
  %v1211 = vunpack.c.h.b16 %v222
  %v1212 = vunpack.c.l.b16 %v223
  %v1213 = vunpack.c.l.b16 %v224
  %v1214 = vunpack.c.h.b16 %v224
  %v1215 = vunpack.c.l.b16 %v225
  %v1216 = vunpack.c.h.b16 %v225
  %v1217 = vunpack.c.l.b16 %v226
  %v1218 = vunpack.c.h.b16 %v226
  %v1219 = vunpack.c.l.b16 %v227
  %v1220 = vunpack.c.l.b16 %v228
  %v1221 = vunpack.c.h.b16 %v228
  %v1222 = vunpack.c.l.b16 %v229
  %v1223 = vunpack.c.h.b16 %v229
  %v1224 = vunpack.c.l.b16 %v230
  %v1225 = vunpack.c.h.b16 %v230
  %v1226 = vunpack.c.l.b16 %v231
  %v1227 = vunpack.c.l.b16 %v232
  %v1228 = vunpack.c.h.b16 %v232
  %v1229 = vunpack.c.l.b16 %v233
  %v1230 = vunpack.c.h.b16 %v233
  %v1231 = vunpack.c.l.b16 %v234
  %v1232 = vunpack.c.h.b16 %v234
  %v1233 = vunpack.c.l.b16 %v235
  %v1234 = vunpack.c.l.b16 %v236
  %v1235 = vunpack.c.h.b16 %v236
  %v1236 = vunpack.c.l.b16 %v237
  %v1237 = vunpack.c.h.b16 %v237
  %v1238 = vunpack.c.l.b16 %v238
  %v1239 = vunpack.c.h.b16 %v238
  %v1240 = vunpack.c.l.b16 %v239
  %v1241 = vunpack.c.l.b16 %v240
  %v1242 = vunpack.c.h.b16 %v240
  %v1243 = vunpack.c.l.b16 %v241
  %v1244 = vunpack.c.h.b16 %v241
  %v1245 = vunpack.c.l.b16 %v242
  %v1246 = vunpack.c.h.b16 %v242
  %v1247 = vunpack.c.l.b16 %v243
  %v1248 = vunpack.c.l.b16 %v244
  %v1249 = vunpack.c.h.b16 %v244
  %v1250 = vunpack.c.l.b16 %v245
  %v1251 = vunpack.c.h.b16 %v245
  %v1252 = vunpack.c.l.b16 %v246
  %v1253 = vunpack.c.h.b16 %v246
  %v1254 = vunpack.c.l.b16 %v247
  %v1255 = vunpack.c.l.b16 %v248
  %v1256 = vunpack.c.h.b16 %v248
  %v1257 = vunpack.c.l.b16 %v249
  %v1258 = vunpack.c.h.b16 %v249
  %v1259 = vunpack.c.l.b16 %v250
  %v1260 = vunpack.c.h.b16 %v250
  %v1261 = vunpack.c.l.b16 %v251
  %v1262 = vunpack.c.l.b16 %v252
  %v1263 = vunpack.c.h.b16 %v252
  %v1264 = vunpack.c.l.b16 %v253
  %v1265 = vunpack.c.h.b16 %v253
  %v1266 = vunpack.c.l.b16 %v254
  %v1267 = vunpack.c.h.b16 %v254
  %v1268 = vunpack.c.l.b16 %v255
  %v1269 = vunpack.c.l.b16 %v256
  %v1270 = vunpack.c.h.b16 %v256
  %v1271 = vunpack.c.l.b16 %v257
  %v1272 = vunpack.c.h.b16 %v257
  %v1273 = vunpack.c.l.b16 %v258
  %v1274 = vunpack.c.h.b16 %v258
  %v1275 = vunpack.c.l.b16 %v259
  %v1276 = vunpack.c.l.b16 %v260
  %v1277 = vunpack.c.h.b16 %v260
  %v1278 = vunpack.c.l.b16 %v261
  %v1279 = vunpack.c.h.b16 %v261
  %v1280 = vunpack.c.l.b16 %v262
  %v1281 = vunpack.c.h.b16 %v262
  %v1282 = vunpack.c.l.b16 %v263
  %v1283 = vunpack.c.l.b16 %v264
  %v1284 = vunpack.c.h.b16 %v264
  %v1285 = vunpack.c.l.b16 %v265
  %v1286 = vunpack.c.h.b16 %v265
  %v1287 = vunpack.c.l.b16 %v266
  %v1288 = vunpack.c.h.b16 %v266
  %v1289 = vunpack.c.l.b16 %v267
  %v1290 = vunpack.c.l.b16 %v268
  %v1291 = vunpack.c.h.b16 %v268
  %v1292 = vunpack.c.l.b16 %v269
  %v1293 = vunpack.c.h.b16 %v269
  %v1294 = vunpack.c.l.b16 %v270
  %v1295 = vunpack.c.h.b16 %v270
  %v1296 = vunpack.c.l.b16 %v271
  %v1297 = vunpack.c.l.b16 %v272
  %v1298 = vunpack.c.h.b16 %v272
  %v1299 = vunpack.c.l.b16 %v273
  %v1300 = vunpack.c.h.b16 %v273
  %v1301 = vunpack.c.l.b16 %v274
  %v1302 = vunpack.c.h.b16 %v274
  %v1303 = vunpack.c.l.b16 %v275
  %v1304 = vunpack.c.l.b16 %v276
  %v1305 = vunpack.c.h.b16 %v276
  %v1306 = vunpack.c.l.b16 %v277
  %v1307 = vunpack.c.h.b16 %v277
  %v1308 = vunpack.c.l.b16 %v278
  %v1309 = vunpack.c.h.b16 %v278
  %v1310 = vunpack.c.l.b16 %v279
  %v1311 = vunpack.c.l.b16 %v280
  %v1312 = vunpack.c.h.b16 %v280
  %v1313 = vunpack.c.l.b16 %v281
  %v1314 = vunpack.c.h.b16 %v281
  %v1315 = vunpack.c.l.b16 %v282
  %v1316 = vunpack.c.h.b16 %v282
  %v1317 = vunpack.c.l.b16 %v283
  %v1318 = vunpack.c.l.b16 %v284
  %v1319 = vunpack.c.h.b16 %v284
  %v1320 = vunpack.c.l.b16 %v285
  %v1321 = vunpack.c.h.b16 %v285
  %v1322 = vunpack.c.l.b16 %v286
  %v1323 = vunpack.c.h.b16 %v286
  %v1324 = vunpack.c.l.b16 %v287
  %v1325 = vunpack.c.l.b16 %v288
  %v1326 = vunpack.c.h.b16 %v288
  %v1327 = vunpack.c.l.b16 %v289
  %v1328 = vunpack.c.h.b16 %v289
  %v1329 = vunpack.c.l.b16 %v290
  %v1330 = vunpack.c.h.b16 %v290
  %v1331 = vunpack.c.l.b16 %v291
  %v1332 = vunpack.c.l.b16 %v292
  %v1333 = vunpack.c.h.b16 %v292
  %v1334 = vunpack.c.l.b16 %v293
  %v1335 = vunpack.c.h.b16 %v293
  %v1336 = vunpack.c.l.b16 %v294
  %v1337 = vunpack.c.h.b16 %v294
  %v1338 = vunpack.c.l.b16 %v295
  %v1339 = vunpack.c.l.b16 %v296
  %v1340 = vunpack.c.h.b16 %v296
  %v1341 = vunpack.c.l.b16 %v297
  %v1342 = vunpack.c.h.b16 %v297
  %v1343 = vunpack.c.l.b16 %v298
  %v1344 = vunpack.c.h.b16 %v298
  %v1345 = vunpack.c.l.b16 %v299
  %v1346 = vunpack.c.l.b16 %v300
  %v1347 = vunpack.c.h.b16 %v300
  %v1348 = vunpack.c.l.b16 %v301
  %v1349 = vunpack.c.h.b16 %v301
  %v1350 = vunpack.c.l.b16 %v302
  %v1351 = vunpack.c.h.b16 %v302
  %v1352 = vunpack.c.l.b16 %v303
  %v1353 = vunpack.c.l.b16 %v304
  %v1354 = vunpack.c.h.b16 %v304
  %v1355 = vunpack.c.l.b16 %v305
  %v1356 = vunpack.c.h.b16 %v305
  %v1357 = vunpack.c.l.b16 %v306
  %v1358 = vunpack.c.h.b16 %v306
  %v1359 = vunpack.c.l.b16 %v307
  %v1360 = vunpack.c.l.b16 %v308
  %v1361 = vunpack.c.h.b16 %v308
  %v1362 = vunpack.c.l.b16 %v309
  %v1363 = vunpack.c.h.b16 %v309
  %v1364 = vunpack.c.l.b16 %v310
  %v1365 = vunpack.c.h.b16 %v310
  %v1366 = vunpack.c.l.b16 %v311
  %v1367 = vunpack.c.l.b16 %v312
  %v1368 = vunpack.c.h.b16 %v312
  %v1369 = vunpack.c.l.b16 %v313
  %v1370 = vunpack.c.h.b16 %v313
  %v1371 = vunpack.c.l.b16 %v314
  %v1372 = vunpack.c.h.b16 %v314
  %v1373 = vunpack.c.l.b16 %v315
  %v1374 = vunpack.c.l.b16 %v316
  %v1375 = vunpack.c.h.b16 %v316
  %v1376 = vunpack.c.l.b16 %v317
  %v1377 = vunpack.c.h.b16 %v317
  %v1378 = vunpack.c.l.b16 %v318
  %v1379 = vunpack.c.h.b16 %v318
  %v1380 = vunpack.c.l.b16 %v319
  %v1381 = vunpack.c.l.b16 %v320
  %v1382 = vunpack.c.h.b16 %v320
  %v1383 = vunpack.c.l.b16 %v321
  %v1384 = vunpack.c.h.b16 %v321
  %v1385 = vunpack.c.l.b16 %v322
  %v1386 = vunpack.c.h.b16 %v322
  %v1387 = vunpack.c.l.b16 %v323
  %v1388 = vunpack.c.l.b16 %v324
  %v1389 = vunpack.c.h.b16 %v324
  %v1390 = vunpack.c.l.b16 %v325
  %v1391 = vunpack.c.h.b16 %v325
  %v1392 = vunpack.c.l.b16 %v326
  %v1393 = vunpack.c.h.b16 %v326
  %v1394 = vunpack.c.l.b16 %v327
  %v1395 = vunpack.c.l.b16 %v328
  %v1396 = vunpack.c.h.b16 %v328
  %v1397 = vunpack.c.l.b16 %v329
  %v1398 = vunpack.c.h.b16 %v329
  %v1399 = vunpack.c.l.b16 %v330
  %v1400 = vunpack.c.h.b16 %v330
  %v1401 = vunpack.c.l.b16 %v331
  %v1402 = vunpack.c.l.b16 %v332
  %v1403 = vunpack.c.h.b16 %v332
  %v1404 = vunpack.c.l.b16 %v333
  %v1405 = vunpack.c.h.b16 %v333
  %v1406 = vunpack.c.l.b16 %v334
  %v1407 = vunpack.c.h.b16 %v334
  %v1408 = vunpack.c.l.b16 %v335
  %v1409 = vunpack.c.l.b16 %v336
  %v1410 = vunpack.c.h.b16 %v336
  %v1411 = vunpack.c.l.b16 %v337
  %v1412 = vunpack.c.h.b16 %v337
  %v1413 = vunpack.c.l.b16 %v338
  %v1414 = vunpack.c.h.b16 %v338
  %v1415 = vunpack.c.l.b16 %v339
  %v1416 = vunpack.c.l.b16 %v340
  %v1417 = vunpack.c.h.b16 %v340
  %v1418 = vunpack.c.l.b16 %v341
  %v1419 = vunpack.c.h.b16 %v341
  %v1420 = vunpack.c.l.b16 %v342
  %v1421 = vunpack.c.h.b16 %v342
  %v1422 = vunpack.c.l.b16 %v343
  %v1423 = vunpack.c.l.b16 %v344
  %v1424 = vunpack.c.h.b16 %v344
  %v1425 = vunpack.c.l.b16 %v345
  %v1426 = vunpack.c.h.b16 %v345
  %v1427 = vunpack.c.l.b16 %v346
  %v1428 = vunpack.c.h.b16 %v346
  %v1429 = vunpack.c.l.b16 %v347
  %v1430 = vunpack.c.l.b16 %v348
  %v1431 = vunpack.c.h.b16 %v348
  %v1432 = vunpack.c.l.b16 %v349
  %v1433 = vunpack.c.h.b16 %v349
  %v1434 = vunpack.c.l.b16 %v350
  %v1435 = vunpack.c.h.b16 %v350
  %v1436 = vunpack.c.l.b16 %v351
  %v1437 = vunpack.c.l.b16 %v352
  %v1438 = vunpack.c.h.b16 %v352
  %v1439 = vunpack.c.l.b16 %v353
  %v1440 = vunpack.c.h.b16 %v353
  %v1441 = vunpack.c.l.b16 %v354
  %v1442 = vunpack.c.h.b16 %v354
  %v1443 = vunpack.c.l.b16 %v355
  %v1444 = vunpack.c.l.b16 %v356
  %v1445 = vunpack.c.h.b16 %v356
  %v1446 = vunpack.c.l.b16 %v357
  %v1447 = vunpack.c.h.b16 %v357
  %v1448 = vunpack.c.l.b16 %v358
  %v1449 = vunpack.c.h.b16 %v358
  %v1450 = vunpack.c.l.b16 %v359
  %v1451 = vunpack.c.l.b16 %v360
  %v1452 = vunpack.c.h.b16 %v360
  %v1453 = vunpack.c.l.b16 %v361
  %v1454 = vunpack.c.h.b16 %v361
  %v1455 = vunpack.c.l.b16 %v362
  %v1456 = vunpack.c.h.b16 %v362
  %v1457 = vunpack.c.l.b16 %v363
  %v1458 = vunpack.c.l.b16 %v364
  %v1459 = vunpack.c.h.b16 %v364
  %v1460 = vunpack.c.l.b16 %v365
  %v1461 = vunpack.c.h.b16 %v365
  %v1462 = vunpack.c.l.b16 %v366
  %v1463 = vunpack.c.h.b16 %v366
  %v1464 = vunpack.c.l.b16 %v367
  %v1465 = vunpack.c.l.b16 %v368
  %v1466 = vunpack.c.h.b16 %v368
  %v1467 = vunpack.c.l.b16 %v369
  %v1468 = vunpack.c.h.b16 %v369
  %v1469 = vunpack.c.l.b16 %v370
  %v1470 = vunpack.c.h.b16 %v370
  %v1471 = vunpack.c.l.b16 %v371
  %v1472 = vunpack.c.l.b16 %v372
  %v1473 = vunpack.c.h.b16 %v372
  %v1474 = vunpack.c.l.b16 %v373
  %v1475 = vunpack.c.h.b16 %v373
  %v1476 = vunpack.c.l.b16 %v374
  %v1477 = vunpack.c.h.b16 %v374
  %v1478 = vunpack.c.l.b16 %v375
  %v1479 = vunpack.c.l.b16 %v376
  %v1480 = vunpack.c.h.b16 %v376
  %v1481 = vunpack.c.l.b16 %v377
  %v1482 = vunpack.c.h.b16 %v377
  %v1483 = vunpack.c.l.b16 %v378
  %v1484 = vunpack.c.h.b16 %v378
  %v1485 = vunpack.c.l.b16 %v379
  %v1486 = vunpack.c.l.b16 %v380
  %v1487 = vunpack.c.h.b16 %v380
  %v1488 = vunpack.c.l.b16 %v381
  %v1489 = vunpack.c.h.b16 %v381
  %v1490 = vunpack.c.l.b16 %v382
  %v1491 = vunpack.c.h.b16 %v382
  %v1492 = vunpack.c.l.b16 %v383
  %v1493 = vunpack.c.l.b16 %v384
  %v1494 = vunpack.c.h.b16 %v384
  %v1495 = vunpack.c.l.b16 %v385
  %v1496 = vunpack.c.h.b16 %v385
  %v1497 = vunpack.c.l.b16 %v386
  %v1498 = vunpack.c.h.b16 %v386
  %v1499 = vunpack.c.l.b16 %v387
  %v1500 = vunpack.c.l.b16 %v388
  %v1501 = vunpack.c.h.b16 %v388
  %v1502 = vunpack.c.l.b16 %v389
  %v1503 = vunpack.c.h.b16 %v389
  %v1504 = vunpack.c.l.b16 %v390
  %v1505 = vunpack.c.h.b16 %v390
  %v1506 = vunpack.c.l.b16 %v391
  %v1507 = vunpack.c.l.b16 %v392
  %v1508 = vunpack.c.h.b16 %v392
  %v1509 = vunpack.c.l.b16 %v393
  %v1510 = vunpack.c.h.b16 %v393
  %v1511 = vunpack.c.l.b16 %v394
  %v1512 = vunpack.c.h.b16 %v394
  %v1513 = vunpack.c.l.b16 %v395
  %v1514 = vpack.c.b16 %v933, %v926
  %v1515 = vpack.c.b16 %v934, %v927
  %v1516 = vpack.c.b16 %v935, %v928
  %v1517 = vpack.c.b16 %v936, %v929
  %v1518 = vpack.c.b16 %v937, %v930
  %v1519 = vpack.c.b16 %v938, %v931
  %v1520 = vpack.c.b16 %v939, %v932
  %v1521 = vpack.c.b16 %v947, %v940
  %v1522 = vpack.c.b16 %v948, %v941
  %v1523 = vpack.c.b16 %v949, %v942
  %v1524 = vpack.c.b16 %v950, %v943
  %v1525 = vpack.c.b16 %v951, %v944
  %v1526 = vpack.c.b16 %v952, %v945
  %v1527 = vpack.c.b16 %v953, %v946
  %v1528 = vpack.c.b16 %v961, %v954
  %v1529 = vpack.c.b16 %v962, %v955
  %v1530 = vpack.c.b16 %v963, %v956
  %v1531 = vpack.c.b16 %v964, %v957
  %v1532 = vpack.c.b16 %v965, %v958
  %v1533 = vpack.c.b16 %v966, %v959
  %v1534 = vpack.c.b16 %v967, %v960
  %v1535 = vpack.c.b16 %v975, %v968
  %v1536 = vpack.c.b16 %v976, %v969
  %v1537 = vpack.c.b16 %v977, %v970
  %v1538 = vpack.c.b16 %v978, %v971
  %v1539 = vpack.c.b16 %v979, %v972
  %v1540 = vpack.c.b16 %v980, %v973
  %v1541 = vpack.c.b16 %v981, %v974
  %v1542 = vpack.c.b16 %v989, %v982
  %v1543 = vpack.c.b16 %v990, %v983
  %v1544 = vpack.c.b16 %v991, %v984
  %v1545 = vpack.c.b16 %v992, %v985
  %v1546 = vpack.c.b16 %v993, %v986
  %v1547 = vpack.c.b16 %v994, %v987
  %v1548 = vpack.c.b16 %v995, %v988
  %v1549 = vpack.c.b16 %v1003, %v996
  %v1550 = vpack.c.b16 %v1004, %v997
  %v1551 = vpack.c.b16 %v1005, %v998
  %v1552 = vpack.c.b16 %v1006, %v999
  %v1553 = vpack.c.b16 %v1007, %v1000
  %v1554 = vpack.c.b16 %v1008, %v1001
  %v1555 = vpack.c.b16 %v1009, %v1002
  %v1556 = vpack.c.b16 %v1017, %v1010
  %v1557 = vpack.c.b16 %v1018, %v1011
  %v1558 = vpack.c.b16 %v1019, %v1012
  %v1559 = vpack.c.b16 %v1020, %v1013
  %v1560 = vpack.c.b16 %v1021, %v1014
  %v1561 = vpack.c.b16 %v1022, %v1015
  %v1562 = vpack.c.b16 %v1023, %v1016
  %v1563 = vpack.c.b16 %v1031, %v1024
  %v1564 = vpack.c.b16 %v1032, %v1025
  %v1565 = vpack.c.b16 %v1033, %v1026
  %v1566 = vpack.c.b16 %v1034, %v1027
  %v1567 = vpack.c.b16 %v1035, %v1028
  %v1568 = vpack.c.b16 %v1036, %v1029
  %v1569 = vpack.c.b16 %v1037, %v1030
  %v1570 = vpack.c.b16 %v1045, %v1038
  %v1571 = vpack.c.b16 %v1046, %v1039
  %v1572 = vpack.c.b16 %v1047, %v1040
  %v1573 = vpack.c.b16 %v1048, %v1041
  %v1574 = vpack.c.b16 %v1049, %v1042
  %v1575 = vpack.c.b16 %v1050, %v1043
  %v1576 = vpack.c.b16 %v1051, %v1044
  %v1577 = vpack.c.b16 %v1059, %v1052
  %v1578 = vpack.c.b16 %v1060, %v1053
  %v1579 = vpack.c.b16 %v1061, %v1054
  %v1580 = vpack.c.b16 %v1062, %v1055
  %v1581 = vpack.c.b16 %v1063, %v1056
  %v1582 = vpack.c.b16 %v1064, %v1057
  %v1583 = vpack.c.b16 %v1065, %v1058
  %v1584 = vpack.c.b16 %v1073, %v1066
  %v1585 = vpack.c.b16 %v1074, %v1067
  %v1586 = vpack.c.b16 %v1075, %v1068
  %v1587 = vpack.c.b16 %v1076, %v1069
  %v1588 = vpack.c.b16 %v1077, %v1070
  %v1589 = vpack.c.b16 %v1078, %v1071
  %v1590 = vpack.c.b16 %v1079, %v1072
  %v1591 = vpack.c.b16 %v1087, %v1080
  %v1592 = vpack.c.b16 %v1088, %v1081
  %v1593 = vpack.c.b16 %v1089, %v1082
  %v1594 = vpack.c.b16 %v1090, %v1083
  %v1595 = vpack.c.b16 %v1091, %v1084
  %v1596 = vpack.c.b16 %v1092, %v1085
  %v1597 = vpack.c.b16 %v1093, %v1086
  %v1598 = vpack.c.b16 %v1101, %v1094
  %v1599 = vpack.c.b16 %v1102, %v1095
  %v1600 = vpack.c.b16 %v1103, %v1096
  %v1601 = vpack.c.b16 %v1104, %v1097
  %v1602 = vpack.c.b16 %v1105, %v1098
  %v1603 = vpack.c.b16 %v1106, %v1099
  %v1604 = vpack.c.b16 %v1107, %v1100
  %v1605 = vpack.c.b16 %v1115, %v1108
  %v1606 = vpack.c.b16 %v1116, %v1109
  %v1607 = vpack.c.b16 %v1117, %v1110
  %v1608 = vpack.c.b16 %v1118, %v1111
  %v1609 = vpack.c.b16 %v1119, %v1112
  %v1610 = vpack.c.b16 %v1120, %v1113
  %v1611 = vpack.c.b16 %v1121, %v1114
  %v1612 = vpack.c.b16 %v1129, %v1122
  %v1613 = vpack.c.b16 %v1130, %v1123
  %v1614 = vpack.c.b16 %v1131, %v1124
  %v1615 = vpack.c.b16 %v1132, %v1125
  %v1616 = vpack.c.b16 %v1133, %v1126
  %v1617 = vpack.c.b16 %v1134, %v1127
  %v1618 = vpack.c.b16 %v1135, %v1128
  %v1619 = vpack.c.b16 %v1143, %v1136
  %v1620 = vpack.c.b16 %v1144, %v1137
  %v1621 = vpack.c.b16 %v1145, %v1138
  %v1622 = vpack.c.b16 %v1146, %v1139
  %v1623 = vpack.c.b16 %v1147, %v1140
  %v1624 = vpack.c.b16 %v1148, %v1141
  %v1625 = vpack.c.b16 %v1149, %v1142
  %v1626 = vpack.c.b16 %v1157, %v1150
  %v1627 = vpack.c.b16 %v1158, %v1151
  %v1628 = vpack.c.b16 %v1159, %v1152
  %v1629 = vpack.c.b16 %v1160, %v1153
  %v1630 = vpack.c.b16 %v1161, %v1154
  %v1631 = vpack.c.b16 %v1162, %v1155
  %v1632 = vpack.c.b16 %v1163, %v1156
  %v1633 = vpack.c.b16 %v1171, %v1164
  %v1634 = vpack.c.b16 %v1172, %v1165
  %v1635 = vpack.c.b16 %v1173, %v1166
  %v1636 = vpack.c.b16 %v1174, %v1167
  %v1637 = vpack.c.b16 %v1175, %v1168
  %v1638 = vpack.c.b16 %v1176, %v1169
  %v1639 = vpack.c.b16 %v1177, %v1170
  %v1640 = vpack.c.b16 %v1185, %v1178
  %v1641 = vpack.c.b16 %v1186, %v1179
  %v1642 = vpack.c.b16 %v1187, %v1180
  %v1643 = vpack.c.b16 %v1188, %v1181
  %v1644 = vpack.c.b16 %v1189, %v1182
  %v1645 = vpack.c.b16 %v1190, %v1183
  %v1646 = vpack.c.b16 %v1191, %v1184
  %v1647 = vpack.c.b16 %v1199, %v1192
  %v1648 = vpack.c.b16 %v1200, %v1193
  %v1649 = vpack.c.b16 %v1201, %v1194
  %v1650 = vpack.c.b16 %v1202, %v1195
  %v1651 = vpack.c.b16 %v1203, %v1196
  %v1652 = vpack.c.b16 %v1204, %v1197
  %v1653 = vpack.c.b16 %v1205, %v1198
  %v1654 = vpack.c.b16 %v1213, %v1206
  %v1655 = vpack.c.b16 %v1214, %v1207
  %v1656 = vpack.c.b16 %v1215, %v1208
  %v1657 = vpack.c.b16 %v1216, %v1209
  %v1658 = vpack.c.b16 %v1217, %v1210
  %v1659 = vpack.c.b16 %v1218, %v1211
  %v1660 = vpack.c.b16 %v1219, %v1212
  %v1661 = vpack.c.b16 %v1227, %v1220
  %v1662 = vpack.c.b16 %v1228, %v1221
  %v1663 = vpack.c.b16 %v1229, %v1222
  %v1664 = vpack.c.b16 %v1230, %v1223
  %v1665 = vpack.c.b16 %v1231, %v1224
  %v1666 = vpack.c.b16 %v1232, %v1225
  %v1667 = vpack.c.b16 %v1233, %v1226
  %v1668 = vpack.c.b16 %v1241, %v1234
  %v1669 = vpack.c.b16 %v1242, %v1235
  %v1670 = vpack.c.b16 %v1243, %v1236
  %v1671 = vpack.c.b16 %v1244, %v1237
  %v1672 = vpack.c.b16 %v1245, %v1238
  %v1673 = vpack.c.b16 %v1246, %v1239
  %v1674 = vpack.c.b16 %v1247, %v1240
  %v1675 = vpack.c.b16 %v1255, %v1248
  %v1676 = vpack.c.b16 %v1256, %v1249
  %v1677 = vpack.c.b16 %v1257, %v1250
  %v1678 = vpack.c.b16 %v1258, %v1251
  %v1679 = vpack.c.b16 %v1259, %v1252
  %v1680 = vpack.c.b16 %v1260, %v1253
  %v1681 = vpack.c.b16 %v1261, %v1254
  %v1682 = vpack.c.b16 %v1269, %v1262
  %v1683 = vpack.c.b16 %v1270, %v1263
  %v1684 = vpack.c.b16 %v1271, %v1264
  %v1685 = vpack.c.b16 %v1272, %v1265
  %v1686 = vpack.c.b16 %v1273, %v1266
  %v1687 = vpack.c.b16 %v1274, %v1267
  %v1688 = vpack.c.b16 %v1275, %v1268
  %v1689 = vpack.c.b16 %v1283, %v1276
  %v1690 = vpack.c.b16 %v1284, %v1277
  %v1691 = vpack.c.b16 %v1285, %v1278
  %v1692 = vpack.c.b16 %v1286, %v1279
  %v1693 = vpack.c.b16 %v1287, %v1280
  %v1694 = vpack.c.b16 %v1288, %v1281
  %v1695 = vpack.c.b16 %v1289, %v1282
  %v1696 = vpack.c.b16 %v1297, %v1290
  %v1697 = vpack.c.b16 %v1298, %v1291
  %v1698 = vpack.c.b16 %v1299, %v1292
  %v1699 = vpack.c.b16 %v1300, %v1293
  %v1700 = vpack.c.b16 %v1301, %v1294
  %v1701 = vpack.c.b16 %v1302, %v1295
  %v1702 = vpack.c.b16 %v1303, %v1296
  %v1703 = vpack.c.b16 %v1311, %v1304
  %v1704 = vpack.c.b16 %v1312, %v1305
  %v1705 = vpack.c.b16 %v1313, %v1306
  %v1706 = vpack.c.b16 %v1314, %v1307
  %v1707 = vpack.c.b16 %v1315, %v1308
  %v1708 = vpack.c.b16 %v1316, %v1309
  %v1709 = vpack.c.b16 %v1317, %v1310
  %v1710 = vpack.c.b16 %v1325, %v1318
  %v1711 = vpack.c.b16 %v1326, %v1319
  %v1712 = vpack.c.b16 %v1327, %v1320
  %v1713 = vpack.c.b16 %v1328, %v1321
  %v1714 = vpack.c.b16 %v1329, %v1322
  %v1715 = vpack.c.b16 %v1330, %v1323
  %v1716 = vpack.c.b16 %v1331, %v1324
  %v1717 = vpack.c.b16 %v1339, %v1332
  %v1718 = vpack.c.b16 %v1340, %v1333
  %v1719 = vpack.c.b16 %v1341, %v1334
  %v1720 = vpack.c.b16 %v1342, %v1335
  %v1721 = vpack.c.b16 %v1343, %v1336
  %v1722 = vpack.c.b16 %v1344, %v1337
  %v1723 = vpack.c.b16 %v1345, %v1338
  %v1724 = vpack.c.b16 %v1353, %v1346
  %v1725 = vpack.c.b16 %v1354, %v1347
  %v1726 = vpack.c.b16 %v1355, %v1348
  %v1727 = vpack.c.b16 %v1356, %v1349
  %v1728 = vpack.c.b16 %v1357, %v1350
  %v1729 = vpack.c.b16 %v1358, %v1351
  %v1730 = vpack.c.b16 %v1359, %v1352
  %v1731 = vpack.c.b16 %v1367, %v1360
  %v1732 = vpack.c.b16 %v1368, %v1361
  %v1733 = vpack.c.b16 %v1369, %v1362
  %v1734 = vpack.c.b16 %v1370, %v1363
  %v1735 = vpack.c.b16 %v1371, %v1364
  %v1736 = vpack.c.b16 %v1372, %v1365
  %v1737 = vpack.c.b16 %v1373, %v1366
  %v1738 = vpack.c.b16 %v1381, %v1374
  %v1739 = vpack.c.b16 %v1382, %v1375
  %v1740 = vpack.c.b16 %v1383, %v1376
  %v1741 = vpack.c.b16 %v1384, %v1377
  %v1742 = vpack.c.b16 %v1385, %v1378
  %v1743 = vpack.c.b16 %v1386, %v1379
  %v1744 = vpack.c.b16 %v1387, %v1380
  %v1745 = vpack.c.b16 %v1395, %v1388
  %v1746 = vpack.c.b16 %v1396, %v1389
  %v1747 = vpack.c.b16 %v1397, %v1390
  %v1748 = vpack.c.b16 %v1398, %v1391
  %v1749 = vpack.c.b16 %v1399, %v1392
  %v1750 = vpack.c.b16 %v1400, %v1393
  %v1751 = vpack.c.b16 %v1401, %v1394
  %v1752 = vpack.c.b16 %v1409, %v1402
  %v1753 = vpack.c.b16 %v1410, %v1403
  %v1754 = vpack.c.b16 %v1411, %v1404
  %v1755 = vpack.c.b16 %v1412, %v1405
  %v1756 = vpack.c.b16 %v1413, %v1406
  %v1757 = vpack.c.b16 %v1414, %v1407
  %v1758 = vpack.c.b16 %v1415, %v1408
  %v1759 = vpack.c.b16 %v1423, %v1416
  %v1760 = vpack.c.b16 %v1424, %v1417
  %v1761 = vpack.c.b16 %v1425, %v1418
  %v1762 = vpack.c.b16 %v1426, %v1419
  %v1763 = vpack.c.b16 %v1427, %v1420
  %v1764 = vpack.c.b16 %v1428, %v1421
  %v1765 = vpack.c.b16 %v1429, %v1422
  %v1766 = vpack.c.b16 %v1437, %v1430
  %v1767 = vpack.c.b16 %v1438, %v1431
  %v1768 = vpack.c.b16 %v1439, %v1432
  %v1769 = vpack.c.b16 %v1440, %v1433
  %v1770 = vpack.c.b16 %v1441, %v1434
  %v1771 = vpack.c.b16 %v1442, %v1435
  %v1772 = vpack.c.b16 %v1443, %v1436
  %v1773 = vpack.c.b16 %v1451, %v1444
  %v1774 = vpack.c.b16 %v1452, %v1445
  %v1775 = vpack.c.b16 %v1453, %v1446
  %v1776 = vpack.c.b16 %v1454, %v1447
  %v1777 = vpack.c.b16 %v1455, %v1448
  %v1778 = vpack.c.b16 %v1456, %v1449
  %v1779 = vpack.c.b16 %v1457, %v1450
  %v1780 = vpack.c.b16 %v1465, %v1458
  %v1781 = vpack.c.b16 %v1466, %v1459
  %v1782 = vpack.c.b16 %v1467, %v1460
  %v1783 = vpack.c.b16 %v1468, %v1461
  %v1784 = vpack.c.b16 %v1469, %v1462
  %v1785 = vpack.c.b16 %v1470, %v1463
  %v1786 = vpack.c.b16 %v1471, %v1464
  %v1787 = vpack.c.b16 %v1479, %v1472
  %v1788 = vpack.c.b16 %v1480, %v1473
  %v1789 = vpack.c.b16 %v1481, %v1474
  %v1790 = vpack.c.b16 %v1482, %v1475
  %v1791 = vpack.c.b16 %v1483, %v1476
  %v1792 = vpack.c.b16 %v1484, %v1477
  %v1793 = vpack.c.b16 %v1485, %v1478
  %v1794 = vpack.c.b16 %v1493, %v1486
  %v1795 = vpack.c.b16 %v1494, %v1487
  %v1796 = vpack.c.b16 %v1495, %v1488
  %v1797 = vpack.c.b16 %v1496, %v1489
  %v1798 = vpack.c.b16 %v1497, %v1490
  %v1799 = vpack.c.b16 %v1498, %v1491
  %v1800 = vpack.c.b16 %v1499, %v1492
  %v1801 = vpack.c.b16 %v1507, %v1500
  %v1802 = vpack.c.b16 %v1508, %v1501
  %v1803 = vpack.c.b16 %v1509, %v1502
  %v1804 = vpack.c.b16 %v1510, %v1503
  %v1805 = vpack.c.b16 %v1511, %v1504
  %v1806 = vpack.c.b16 %v1512, %v1505
  %v1807 = vpack.c.b16 %v1513, %v1506
  %vm2102 = vcmask 261120
  %v2104 = vsel %vm2102, %v518, 0
  %v2107 = vsel %vm2102, %v524, 0
  %v2110 = vsel %vm2102, %v530, 0
  %v2113 = vsel %vm2102, %v536, 0
  %v2116 = vsel %vm2102, %v542, 0
  %v2119 = vsel %vm2102, %v548, 0
  %v2122 = vsel %vm2102, %v554, 0
  %2124 = vmatpush.bf16.msra.mxu0 %v1563
  %2125 = vmatpush.bf16.msra.mxu0 %v1556
  %2126 = vmatpush.bf16.msra.mxu0 %v1549
  %2127 = vmatpush.bf16.msra.mxu0 %v1542
  %2128 = vmatpush.bf16.msra.mxu0 %v1535
  %2129 = vmatpush.bf16.msra.mxu0 %v1528
  %2130 = vmatpush.bf16.msra.mxu0 %v1521
  %2131 = vmatpush.bf16.msra.mxu0 %v1514
  %2132 = vmatmul.bf16.gmra.mxu0 %v513
  %v2133 = vpop.f32.mrf.mxu0
  %v2134 = vadd.f32 0.0, %v2133
  %v2135 = vpop.f32.mrf.mxu0
  %v2136 = vadd.f32 0.0, %v2135
  %2137 = vmatmul.bf16.gmra.mxu0 %v519
  %v2138 = vpop.f32.mrf.mxu0
  %v2139 = vadd.f32 0.0, %v2138
  %v2140 = vpop.f32.mrf.mxu0
  %v2141 = vadd.f32 0.0, %v2140
  %2142 = vmatmul.bf16.gmra.mxu0 %v525
  %v2143 = vpop.f32.mrf.mxu0
  %v2144 = vadd.f32 0.0, %v2143
  %v2145 = vpop.f32.mrf.mxu0
  %v2146 = vadd.f32 0.0, %v2145
  %2147 = vmatmul.bf16.gmra.mxu0 %v531
  %v2148 = vpop.f32.mrf.mxu0
  %v2149 = vadd.f32 0.0, %v2148
  %v2150 = vpop.f32.mrf.mxu0
  %v2151 = vadd.f32 0.0, %v2150
  %2152 = vmatmul.bf16.gmra.mxu0 %v537
  %v2153 = vpop.f32.mrf.mxu0
  %v2154 = vadd.f32 0.0, %v2153
  %v2155 = vpop.f32.mrf.mxu0
  %v2156 = vadd.f32 0.0, %v2155
  %2157 = vmatmul.bf16.gmra.mxu0 %v543
  %v2158 = vpop.f32.mrf.mxu0
  %v2159 = vadd.f32 0.0, %v2158
  %v2160 = vpop.f32.mrf.mxu0
  %v2161 = vadd.f32 0.0, %v2160
  %2162 = vmatmul.bf16.gmra.mxu0 %v549
  %v2163 = vpop.f32.mrf.mxu0
  %v2164 = vadd.f32 0.0, %v2163
  %v2165 = vpop.f32.mrf.mxu0
  %2166 = vdwg.mxu0
  %2167 = vmatpush.bf16.msra.mxu0 %v1619
  %2168 = vmatpush.bf16.msra.mxu0 %v1612
  %2169 = vmatpush.bf16.msra.mxu0 %v1605
  %2170 = vmatpush.bf16.msra.mxu0 %v1598
  %2171 = vmatpush.bf16.msra.mxu0 %v1591
  %2172 = vmatpush.bf16.msra.mxu0 %v1584
  %2173 = vmatpush.bf16.msra.mxu0 %v1577
  %2174 = vmatpush.bf16.msra.mxu0 %v1570
  %2175 = vmatmul.bf16.gmra.mxu0 %v514
  %v2176 = vpop.f32.mrf.mxu0
  %v2177 = vadd.f32 %v2134, %v2176
  %v2178 = vpop.f32.mrf.mxu0
  %v2179 = vadd.f32 %v2136, %v2178
  %2180 = vmatmul.bf16.gmra.mxu0 %v520
  %v2181 = vpop.f32.mrf.mxu0
  %v2182 = vadd.f32 %v2139, %v2181
  %v2183 = vpop.f32.mrf.mxu0
  %v2184 = vadd.f32 %v2141, %v2183
  %2185 = vmatmul.bf16.gmra.mxu0 %v526
  %v2186 = vpop.f32.mrf.mxu0
  %v2187 = vadd.f32 %v2144, %v2186
  %v2188 = vpop.f32.mrf.mxu0
  %v2189 = vadd.f32 %v2146, %v2188
  %2190 = vmatmul.bf16.gmra.mxu0 %v532
  %v2191 = vpop.f32.mrf.mxu0
  %v2192 = vadd.f32 %v2149, %v2191
  %v2193 = vpop.f32.mrf.mxu0
  %v2194 = vadd.f32 %v2151, %v2193
  %2195 = vmatmul.bf16.gmra.mxu0 %v538
  %v2196 = vpop.f32.mrf.mxu0
  %v2197 = vadd.f32 %v2154, %v2196
  %v2198 = vpop.f32.mrf.mxu0
  %v2199 = vadd.f32 %v2156, %v2198
  %2200 = vmatmul.bf16.gmra.mxu0 %v544
  %v2201 = vpop.f32.mrf.mxu0
  %v2202 = vadd.f32 %v2159, %v2201
  %v2203 = vpop.f32.mrf.mxu0
  %v2204 = vadd.f32 %v2161, %v2203
  %2205 = vmatmul.bf16.gmra.mxu0 %v550
  %v2206 = vpop.f32.mrf.mxu0
  %v2207 = vadd.f32 %v2164, %v2206
  %v2208 = vpop.f32.mrf.mxu0
  %2209 = vdwg.mxu0
  %2210 = vmatpush.bf16.msra.mxu0 %v1675
  %2211 = vmatpush.bf16.msra.mxu0 %v1668
  %2212 = vmatpush.bf16.msra.mxu0 %v1661
  %2213 = vmatpush.bf16.msra.mxu0 %v1654
  %2214 = vmatpush.bf16.msra.mxu0 %v1647
  %2215 = vmatpush.bf16.msra.mxu0 %v1640
  %2216 = vmatpush.bf16.msra.mxu0 %v1633
  %2217 = vmatpush.bf16.msra.mxu0 %v1626
  %2218 = vmatmul.bf16.gmra.mxu0 %v515
  %v2219 = vpop.f32.mrf.mxu0
  %v2220 = vadd.f32 %v2177, %v2219
  %v2221 = vpop.f32.mrf.mxu0
  %v2222 = vadd.f32 %v2179, %v2221
  %2223 = vmatmul.bf16.gmra.mxu0 %v521
  %v2224 = vpop.f32.mrf.mxu0
  %v2225 = vadd.f32 %v2182, %v2224
  %v2226 = vpop.f32.mrf.mxu0
  %v2227 = vadd.f32 %v2184, %v2226
  %2228 = vmatmul.bf16.gmra.mxu0 %v527
  %v2229 = vpop.f32.mrf.mxu0
  %v2230 = vadd.f32 %v2187, %v2229
  %v2231 = vpop.f32.mrf.mxu0
  %v2232 = vadd.f32 %v2189, %v2231
  %2233 = vmatmul.bf16.gmra.mxu0 %v533
  %v2234 = vpop.f32.mrf.mxu0
  %v2235 = vadd.f32 %v2192, %v2234
  %v2236 = vpop.f32.mrf.mxu0
  %v2237 = vadd.f32 %v2194, %v2236
  %2238 = vmatmul.bf16.gmra.mxu0 %v539
  %v2239 = vpop.f32.mrf.mxu0
  %v2240 = vadd.f32 %v2197, %v2239
  %v2241 = vpop.f32.mrf.mxu0
  %v2242 = vadd.f32 %v2199, %v2241
  %2243 = vmatmul.bf16.gmra.mxu0 %v545
  %v2244 = vpop.f32.mrf.mxu0
  %v2245 = vadd.f32 %v2202, %v2244
  %v2246 = vpop.f32.mrf.mxu0
  %v2247 = vadd.f32 %v2204, %v2246
  %2248 = vmatmul.bf16.gmra.mxu0 %v551
  %v2249 = vpop.f32.mrf.mxu0
  %v2250 = vadd.f32 %v2207, %v2249
  %v2251 = vpop.f32.mrf.mxu0
  %2252 = vdwg.mxu0
  %2253 = vmatpush.bf16.msra.mxu0 %v1731
  %2254 = vmatpush.bf16.msra.mxu0 %v1724
  %2255 = vmatpush.bf16.msra.mxu0 %v1717
  %2256 = vmatpush.bf16.msra.mxu0 %v1710
  %2257 = vmatpush.bf16.msra.mxu0 %v1703
  %2258 = vmatpush.bf16.msra.mxu0 %v1696
  %2259 = vmatpush.bf16.msra.mxu0 %v1689
  %2260 = vmatpush.bf16.msra.mxu0 %v1682
  %2261 = vmatmul.bf16.gmra.mxu0 %v516
  %v2262 = vpop.f32.mrf.mxu0
  %v2263 = vadd.f32 %v2220, %v2262
  %v2264 = vpop.f32.mrf.mxu0
  %v2265 = vadd.f32 %v2222, %v2264
  %2266 = vmatmul.bf16.gmra.mxu0 %v522
  %v2267 = vpop.f32.mrf.mxu0
  %v2268 = vadd.f32 %v2225, %v2267
  %v2269 = vpop.f32.mrf.mxu0
  %v2270 = vadd.f32 %v2227, %v2269
  %2271 = vmatmul.bf16.gmra.mxu0 %v528
  %v2272 = vpop.f32.mrf.mxu0
  %v2273 = vadd.f32 %v2230, %v2272
  %v2274 = vpop.f32.mrf.mxu0
  %v2275 = vadd.f32 %v2232, %v2274
  %2276 = vmatmul.bf16.gmra.mxu0 %v534
  %v2277 = vpop.f32.mrf.mxu0
  %v2278 = vadd.f32 %v2235, %v2277
  %v2279 = vpop.f32.mrf.mxu0
  %v2280 = vadd.f32 %v2237, %v2279
  %2281 = vmatmul.bf16.gmra.mxu0 %v540
  %v2282 = vpop.f32.mrf.mxu0
  %v2283 = vadd.f32 %v2240, %v2282
  %v2284 = vpop.f32.mrf.mxu0
  %v2285 = vadd.f32 %v2242, %v2284
  %2286 = vmatmul.bf16.gmra.mxu0 %v546
  %v2287 = vpop.f32.mrf.mxu0
  %v2288 = vadd.f32 %v2245, %v2287
  %v2289 = vpop.f32.mrf.mxu0
  %v2290 = vadd.f32 %v2247, %v2289
  %2291 = vmatmul.bf16.gmra.mxu0 %v552
  %v2292 = vpop.f32.mrf.mxu0
  %v2293 = vadd.f32 %v2250, %v2292
  %v2294 = vpop.f32.mrf.mxu0
  %2295 = vdwg.mxu0
  %2296 = vmatpush.bf16.msra.mxu0 %v1787
  %2297 = vmatpush.bf16.msra.mxu0 %v1780
  %2298 = vmatpush.bf16.msra.mxu0 %v1773
  %2299 = vmatpush.bf16.msra.mxu0 %v1766
  %2300 = vmatpush.bf16.msra.mxu0 %v1759
  %2301 = vmatpush.bf16.msra.mxu0 %v1752
  %2302 = vmatpush.bf16.msra.mxu0 %v1745
  %2303 = vmatpush.bf16.msra.mxu0 %v1738
  %2304 = vmatmul.bf16.gmra.mxu0 %v517
  %v2305 = vpop.f32.mrf.mxu0
  %v2306 = vadd.f32 %v2263, %v2305
  %v2307 = vpop.f32.mrf.mxu0
  %v2308 = vadd.f32 %v2265, %v2307
  %2309 = vmatmul.bf16.gmra.mxu0 %v523
  %v2310 = vpop.f32.mrf.mxu0
  %v2311 = vadd.f32 %v2268, %v2310
  %v2312 = vpop.f32.mrf.mxu0
  %v2313 = vadd.f32 %v2270, %v2312
  %2314 = vmatmul.bf16.gmra.mxu0 %v529
  %v2315 = vpop.f32.mrf.mxu0
  %v2316 = vadd.f32 %v2273, %v2315
  %v2317 = vpop.f32.mrf.mxu0
  %v2318 = vadd.f32 %v2275, %v2317
  %2319 = vmatmul.bf16.gmra.mxu0 %v535
  %v2320 = vpop.f32.mrf.mxu0
  %v2321 = vadd.f32 %v2278, %v2320
  %v2322 = vpop.f32.mrf.mxu0
  %v2323 = vadd.f32 %v2280, %v2322
  %2324 = vmatmul.bf16.gmra.mxu0 %v541
  %v2325 = vpop.f32.mrf.mxu0
  %v2326 = vadd.f32 %v2283, %v2325
  %v2327 = vpop.f32.mrf.mxu0
  %v2328 = vadd.f32 %v2285, %v2327
  %2329 = vmatmul.bf16.gmra.mxu0 %v547
  %v2330 = vpop.f32.mrf.mxu0
  %v2331 = vadd.f32 %v2288, %v2330
  %v2332 = vpop.f32.mrf.mxu0
  %v2333 = vadd.f32 %v2290, %v2332
  %2334 = vmatmul.bf16.gmra.mxu0 %v553
  %v2335 = vpop.f32.mrf.mxu0
  %v2336 = vadd.f32 %v2293, %v2335
  %v2337 = vpop.f32.mrf.mxu0
  %2338 = vdwg.mxu0
  %2339 = vmatpush.bf16.msra.mxu0 0
  %2340 = vmatpush.bf16.msra.mxu0 0
  %2341 = vmatpush.bf16.msra.mxu0 0
  %2342 = vmatpush.bf16.msra.mxu0 0
  %2343 = vmatpush.bf16.msra.mxu0 0
  %2344 = vmatpush.bf16.msra.mxu0 0
  %2345 = vmatpush.bf16.msra.mxu0 %v1801
  %2346 = vmatpush.bf16.msra.mxu0 %v1794
  %2347 = vmatmul.bf16.gmra.mxu0 %v2104
  %v2348 = vpop.f32.mrf.mxu0
  %v2349 = vadd.f32 %v2306, %v2348
  %v2350 = vpop.f32.mrf.mxu0
  %v2351 = vadd.f32 %v2308, %v2350
  %2352 = vmatmul.bf16.gmra.mxu0 %v2107
  %v2353 = vpop.f32.mrf.mxu0
  %v2354 = vadd.f32 %v2311, %v2353
  %v2355 = vpop.f32.mrf.mxu0
  %v2356 = vadd.f32 %v2313, %v2355
  %2357 = vmatmul.bf16.gmra.mxu0 %v2110
  %v2358 = vpop.f32.mrf.mxu0
  %v2359 = vadd.f32 %v2316, %v2358
  %v2360 = vpop.f32.mrf.mxu0
  %v2361 = vadd.f32 %v2318, %v2360
  %2362 = vmatmul.bf16.gmra.mxu0 %v2113
  %v2363 = vpop.f32.mrf.mxu0
  %v2364 = vadd.f32 %v2321, %v2363
  %v2365 = vpop.f32.mrf.mxu0
  %v2366 = vadd.f32 %v2323, %v2365
  %2367 = vmatmul.bf16.gmra.mxu0 %v2116
  %v2368 = vpop.f32.mrf.mxu0
  %v2369 = vadd.f32 %v2326, %v2368
  %v2370 = vpop.f32.mrf.mxu0
  %v2371 = vadd.f32 %v2328, %v2370
  %2372 = vmatmul.bf16.gmra.mxu0 %v2119
  %v2373 = vpop.f32.mrf.mxu0
  %v2374 = vadd.f32 %v2331, %v2373
  %v2375 = vpop.f32.mrf.mxu0
  %v2376 = vadd.f32 %v2333, %v2375
  %2377 = vmatmul.bf16.gmra.mxu0 %v2122
  %v2378 = vpop.f32.mrf.mxu0
  %v2379 = vadd.f32 %v2336, %v2378
  %v2380 = vpop.f32.mrf.mxu0
  %2381 = vdwg.mxu0
  %2382 = vmatpush.bf16.msra.mxu0 %v1564
  %2383 = vmatpush.bf16.msra.mxu0 %v1557
  %2384 = vmatpush.bf16.msra.mxu0 %v1550
  %2385 = vmatpush.bf16.msra.mxu0 %v1543
  %2386 = vmatpush.bf16.msra.mxu0 %v1536
  %2387 = vmatpush.bf16.msra.mxu0 %v1529
  %2388 = vmatpush.bf16.msra.mxu0 %v1522
  %2389 = vmatpush.bf16.msra.mxu0 %v1515
  %2390 = vmatmul.bf16.gmra.mxu0 %v513
  %v2391 = vpop.f32.mrf.mxu0
  %v2392 = vadd.f32 0.0, %v2391
  %v2393 = vpop.f32.mrf.mxu0
  %v2394 = vadd.f32 0.0, %v2393
  %2395 = vmatmul.bf16.gmra.mxu0 %v519
  %v2396 = vpop.f32.mrf.mxu0
  %v2397 = vadd.f32 0.0, %v2396
  %v2398 = vpop.f32.mrf.mxu0
  %v2399 = vadd.f32 0.0, %v2398
  %2400 = vmatmul.bf16.gmra.mxu0 %v525
  %v2401 = vpop.f32.mrf.mxu0
  %v2402 = vadd.f32 0.0, %v2401
  %v2403 = vpop.f32.mrf.mxu0
  %v2404 = vadd.f32 0.0, %v2403
  %2405 = vmatmul.bf16.gmra.mxu0 %v531
  %v2406 = vpop.f32.mrf.mxu0
  %v2407 = vadd.f32 0.0, %v2406
  %v2408 = vpop.f32.mrf.mxu0
  %v2409 = vadd.f32 0.0, %v2408
  %2410 = vmatmul.bf16.gmra.mxu0 %v537
  %v2411 = vpop.f32.mrf.mxu0
  %v2412 = vadd.f32 0.0, %v2411
  %v2413 = vpop.f32.mrf.mxu0
  %v2414 = vadd.f32 0.0, %v2413
  %2415 = vmatmul.bf16.gmra.mxu0 %v543
  %v2416 = vpop.f32.mrf.mxu0
  %v2417 = vadd.f32 0.0, %v2416
  %v2418 = vpop.f32.mrf.mxu0
  %v2419 = vadd.f32 0.0, %v2418
  %2420 = vmatmul.bf16.gmra.mxu0 %v549
  %v2421 = vpop.f32.mrf.mxu0
  %v2422 = vadd.f32 0.0, %v2421
  %v2423 = vpop.f32.mrf.mxu0
  %2424 = vdwg.mxu0
  %2425 = vmatpush.bf16.msra.mxu0 %v1620
  %2426 = vmatpush.bf16.msra.mxu0 %v1613
  %2427 = vmatpush.bf16.msra.mxu0 %v1606
  %2428 = vmatpush.bf16.msra.mxu0 %v1599
  %2429 = vmatpush.bf16.msra.mxu0 %v1592
  %2430 = vmatpush.bf16.msra.mxu0 %v1585
  %2431 = vmatpush.bf16.msra.mxu0 %v1578
  %2432 = vmatpush.bf16.msra.mxu0 %v1571
  %2433 = vmatmul.bf16.gmra.mxu0 %v514
  %v2434 = vpop.f32.mrf.mxu0
  %v2435 = vadd.f32 %v2392, %v2434
  %v2436 = vpop.f32.mrf.mxu0
  %v2437 = vadd.f32 %v2394, %v2436
  %2438 = vmatmul.bf16.gmra.mxu0 %v520
  %v2439 = vpop.f32.mrf.mxu0
  %v2440 = vadd.f32 %v2397, %v2439
  %v2441 = vpop.f32.mrf.mxu0
  %v2442 = vadd.f32 %v2399, %v2441
  %2443 = vmatmul.bf16.gmra.mxu0 %v526
  %v2444 = vpop.f32.mrf.mxu0
  %v2445 = vadd.f32 %v2402, %v2444
  %v2446 = vpop.f32.mrf.mxu0
  %v2447 = vadd.f32 %v2404, %v2446
  %2448 = vmatmul.bf16.gmra.mxu0 %v532
  %v2449 = vpop.f32.mrf.mxu0
  %v2450 = vadd.f32 %v2407, %v2449
  %v2451 = vpop.f32.mrf.mxu0
  %v2452 = vadd.f32 %v2409, %v2451
  %2453 = vmatmul.bf16.gmra.mxu0 %v538
  %v2454 = vpop.f32.mrf.mxu0
  %v2455 = vadd.f32 %v2412, %v2454
  %v2456 = vpop.f32.mrf.mxu0
  %v2457 = vadd.f32 %v2414, %v2456
  %2458 = vmatmul.bf16.gmra.mxu0 %v544
  %v2459 = vpop.f32.mrf.mxu0
  %v2460 = vadd.f32 %v2417, %v2459
  %v2461 = vpop.f32.mrf.mxu0
  %v2462 = vadd.f32 %v2419, %v2461
  %2463 = vmatmul.bf16.gmra.mxu0 %v550
  %v2464 = vpop.f32.mrf.mxu0
  %v2465 = vadd.f32 %v2422, %v2464
  %v2466 = vpop.f32.mrf.mxu0
  %2467 = vdwg.mxu0
  %2468 = vmatpush.bf16.msra.mxu0 %v1676
  %2469 = vmatpush.bf16.msra.mxu0 %v1669
  %2470 = vmatpush.bf16.msra.mxu0 %v1662
  %2471 = vmatpush.bf16.msra.mxu0 %v1655
  %2472 = vmatpush.bf16.msra.mxu0 %v1648
  %2473 = vmatpush.bf16.msra.mxu0 %v1641
  %2474 = vmatpush.bf16.msra.mxu0 %v1634
  %2475 = vmatpush.bf16.msra.mxu0 %v1627
  %2476 = vmatmul.bf16.gmra.mxu0 %v515
  %v2477 = vpop.f32.mrf.mxu0
  %v2478 = vadd.f32 %v2435, %v2477
  %v2479 = vpop.f32.mrf.mxu0
  %v2480 = vadd.f32 %v2437, %v2479
  %2481 = vmatmul.bf16.gmra.mxu0 %v521
  %v2482 = vpop.f32.mrf.mxu0
  %v2483 = vadd.f32 %v2440, %v2482
  %v2484 = vpop.f32.mrf.mxu0
  %v2485 = vadd.f32 %v2442, %v2484
  %2486 = vmatmul.bf16.gmra.mxu0 %v527
  %v2487 = vpop.f32.mrf.mxu0
  %v2488 = vadd.f32 %v2445, %v2487
  %v2489 = vpop.f32.mrf.mxu0
  %v2490 = vadd.f32 %v2447, %v2489
  %2491 = vmatmul.bf16.gmra.mxu0 %v533
  %v2492 = vpop.f32.mrf.mxu0
  %v2493 = vadd.f32 %v2450, %v2492
  %v2494 = vpop.f32.mrf.mxu0
  %v2495 = vadd.f32 %v2452, %v2494
  %2496 = vmatmul.bf16.gmra.mxu0 %v539
  %v2497 = vpop.f32.mrf.mxu0
  %v2498 = vadd.f32 %v2455, %v2497
  %v2499 = vpop.f32.mrf.mxu0
  %v2500 = vadd.f32 %v2457, %v2499
  %2501 = vmatmul.bf16.gmra.mxu0 %v545
  %v2502 = vpop.f32.mrf.mxu0
  %v2503 = vadd.f32 %v2460, %v2502
  %v2504 = vpop.f32.mrf.mxu0
  %v2505 = vadd.f32 %v2462, %v2504
  %2506 = vmatmul.bf16.gmra.mxu0 %v551
  %v2507 = vpop.f32.mrf.mxu0
  %v2508 = vadd.f32 %v2465, %v2507
  %v2509 = vpop.f32.mrf.mxu0
  %2510 = vdwg.mxu0
  %2511 = vmatpush.bf16.msra.mxu0 %v1732
  %2512 = vmatpush.bf16.msra.mxu0 %v1725
  %2513 = vmatpush.bf16.msra.mxu0 %v1718
  %2514 = vmatpush.bf16.msra.mxu0 %v1711
  %2515 = vmatpush.bf16.msra.mxu0 %v1704
  %2516 = vmatpush.bf16.msra.mxu0 %v1697
  %2517 = vmatpush.bf16.msra.mxu0 %v1690
  %2518 = vmatpush.bf16.msra.mxu0 %v1683
  %2519 = vmatmul.bf16.gmra.mxu0 %v516
  %v2520 = vpop.f32.mrf.mxu0
  %v2521 = vadd.f32 %v2478, %v2520
  %v2522 = vpop.f32.mrf.mxu0
  %v2523 = vadd.f32 %v2480, %v2522
  %2524 = vmatmul.bf16.gmra.mxu0 %v522
  %v2525 = vpop.f32.mrf.mxu0
  %v2526 = vadd.f32 %v2483, %v2525
  %v2527 = vpop.f32.mrf.mxu0
  %v2528 = vadd.f32 %v2485, %v2527
  %2529 = vmatmul.bf16.gmra.mxu0 %v528
  %v2530 = vpop.f32.mrf.mxu0
  %v2531 = vadd.f32 %v2488, %v2530
  %v2532 = vpop.f32.mrf.mxu0
  %v2533 = vadd.f32 %v2490, %v2532
  %2534 = vmatmul.bf16.gmra.mxu0 %v534
  %v2535 = vpop.f32.mrf.mxu0
  %v2536 = vadd.f32 %v2493, %v2535
  %v2537 = vpop.f32.mrf.mxu0
  %v2538 = vadd.f32 %v2495, %v2537
  %2539 = vmatmul.bf16.gmra.mxu0 %v540
  %v2540 = vpop.f32.mrf.mxu0
  %v2541 = vadd.f32 %v2498, %v2540
  %v2542 = vpop.f32.mrf.mxu0
  %v2543 = vadd.f32 %v2500, %v2542
  %2544 = vmatmul.bf16.gmra.mxu0 %v546
  %v2545 = vpop.f32.mrf.mxu0
  %v2546 = vadd.f32 %v2503, %v2545
  %v2547 = vpop.f32.mrf.mxu0
  %v2548 = vadd.f32 %v2505, %v2547
  %2549 = vmatmul.bf16.gmra.mxu0 %v552
  %v2550 = vpop.f32.mrf.mxu0
  %v2551 = vadd.f32 %v2508, %v2550
  %v2552 = vpop.f32.mrf.mxu0
  %2553 = vdwg.mxu0
  %2554 = vmatpush.bf16.msra.mxu0 %v1788
  %2555 = vmatpush.bf16.msra.mxu0 %v1781
  %2556 = vmatpush.bf16.msra.mxu0 %v1774
  %2557 = vmatpush.bf16.msra.mxu0 %v1767
  %2558 = vmatpush.bf16.msra.mxu0 %v1760
  %2559 = vmatpush.bf16.msra.mxu0 %v1753
  %2560 = vmatpush.bf16.msra.mxu0 %v1746
  %2561 = vmatpush.bf16.msra.mxu0 %v1739
  %2562 = vmatmul.bf16.gmra.mxu0 %v517
  %v2563 = vpop.f32.mrf.mxu0
  %v2564 = vadd.f32 %v2521, %v2563
  %v2565 = vpop.f32.mrf.mxu0
  %v2566 = vadd.f32 %v2523, %v2565
  %2567 = vmatmul.bf16.gmra.mxu0 %v523
  %v2568 = vpop.f32.mrf.mxu0
  %v2569 = vadd.f32 %v2526, %v2568
  %v2570 = vpop.f32.mrf.mxu0
  %v2571 = vadd.f32 %v2528, %v2570
  %2572 = vmatmul.bf16.gmra.mxu0 %v529
  %v2573 = vpop.f32.mrf.mxu0
  %v2574 = vadd.f32 %v2531, %v2573
  %v2575 = vpop.f32.mrf.mxu0
  %v2576 = vadd.f32 %v2533, %v2575
  %2577 = vmatmul.bf16.gmra.mxu0 %v535
  %v2578 = vpop.f32.mrf.mxu0
  %v2579 = vadd.f32 %v2536, %v2578
  %v2580 = vpop.f32.mrf.mxu0
  %v2581 = vadd.f32 %v2538, %v2580
  %2582 = vmatmul.bf16.gmra.mxu0 %v541
  %v2583 = vpop.f32.mrf.mxu0
  %v2584 = vadd.f32 %v2541, %v2583
  %v2585 = vpop.f32.mrf.mxu0
  %v2586 = vadd.f32 %v2543, %v2585
  %2587 = vmatmul.bf16.gmra.mxu0 %v547
  %v2588 = vpop.f32.mrf.mxu0
  %v2589 = vadd.f32 %v2546, %v2588
  %v2590 = vpop.f32.mrf.mxu0
  %v2591 = vadd.f32 %v2548, %v2590
  %2592 = vmatmul.bf16.gmra.mxu0 %v553
  %v2593 = vpop.f32.mrf.mxu0
  %v2594 = vadd.f32 %v2551, %v2593
  %v2595 = vpop.f32.mrf.mxu0
  %2596 = vdwg.mxu0
  %2597 = vmatpush.bf16.msra.mxu0 0
  %2598 = vmatpush.bf16.msra.mxu0 0
  %2599 = vmatpush.bf16.msra.mxu0 0
  %2600 = vmatpush.bf16.msra.mxu0 0
  %2601 = vmatpush.bf16.msra.mxu0 0
  %2602 = vmatpush.bf16.msra.mxu0 0
  %2603 = vmatpush.bf16.msra.mxu0 %v1802
  %2604 = vmatpush.bf16.msra.mxu0 %v1795
  %2605 = vmatmul.bf16.gmra.mxu0 %v2104
  %v2606 = vpop.f32.mrf.mxu0
  %v2607 = vadd.f32 %v2564, %v2606
  %v2608 = vpop.f32.mrf.mxu0
  %v2609 = vadd.f32 %v2566, %v2608
  %2610 = vmatmul.bf16.gmra.mxu0 %v2107
  %v2611 = vpop.f32.mrf.mxu0
  %v2612 = vadd.f32 %v2569, %v2611
  %v2613 = vpop.f32.mrf.mxu0
  %v2614 = vadd.f32 %v2571, %v2613
  %2615 = vmatmul.bf16.gmra.mxu0 %v2110
  %v2616 = vpop.f32.mrf.mxu0
  %v2617 = vadd.f32 %v2574, %v2616
  %v2618 = vpop.f32.mrf.mxu0
  %v2619 = vadd.f32 %v2576, %v2618
  %2620 = vmatmul.bf16.gmra.mxu0 %v2113
  %v2621 = vpop.f32.mrf.mxu0
  %v2622 = vadd.f32 %v2579, %v2621
  %v2623 = vpop.f32.mrf.mxu0
  %v2624 = vadd.f32 %v2581, %v2623
  %2625 = vmatmul.bf16.gmra.mxu0 %v2116
  %v2626 = vpop.f32.mrf.mxu0
  %v2627 = vadd.f32 %v2584, %v2626
  %v2628 = vpop.f32.mrf.mxu0
  %v2629 = vadd.f32 %v2586, %v2628
  %2630 = vmatmul.bf16.gmra.mxu0 %v2119
  %v2631 = vpop.f32.mrf.mxu0
  %v2632 = vadd.f32 %v2589, %v2631
  %v2633 = vpop.f32.mrf.mxu0
  %v2634 = vadd.f32 %v2591, %v2633
  %2635 = vmatmul.bf16.gmra.mxu0 %v2122
  %v2636 = vpop.f32.mrf.mxu0
  %v2637 = vadd.f32 %v2594, %v2636
  %v2638 = vpop.f32.mrf.mxu0
  %2639 = vdwg.mxu0
  %2640 = vmatpush.bf16.msra.mxu0 %v1565
  %2641 = vmatpush.bf16.msra.mxu0 %v1558
  %2642 = vmatpush.bf16.msra.mxu0 %v1551
  %2643 = vmatpush.bf16.msra.mxu0 %v1544
  %2644 = vmatpush.bf16.msra.mxu0 %v1537
  %2645 = vmatpush.bf16.msra.mxu0 %v1530
  %2646 = vmatpush.bf16.msra.mxu0 %v1523
  %2647 = vmatpush.bf16.msra.mxu0 %v1516
  %2648 = vmatmul.bf16.gmra.mxu0 %v513
  %v2649 = vpop.f32.mrf.mxu0
  %v2650 = vadd.f32 0.0, %v2649
  %v2651 = vpop.f32.mrf.mxu0
  %v2652 = vadd.f32 0.0, %v2651
  %2653 = vmatmul.bf16.gmra.mxu0 %v519
  %v2654 = vpop.f32.mrf.mxu0
  %v2655 = vadd.f32 0.0, %v2654
  %v2656 = vpop.f32.mrf.mxu0
  %v2657 = vadd.f32 0.0, %v2656
  %2658 = vmatmul.bf16.gmra.mxu0 %v525
  %v2659 = vpop.f32.mrf.mxu0
  %v2660 = vadd.f32 0.0, %v2659
  %v2661 = vpop.f32.mrf.mxu0
  %v2662 = vadd.f32 0.0, %v2661
  %2663 = vmatmul.bf16.gmra.mxu0 %v531
  %v2664 = vpop.f32.mrf.mxu0
  %v2665 = vadd.f32 0.0, %v2664
  %v2666 = vpop.f32.mrf.mxu0
  %v2667 = vadd.f32 0.0, %v2666
  %2668 = vmatmul.bf16.gmra.mxu0 %v537
  %v2669 = vpop.f32.mrf.mxu0
  %v2670 = vadd.f32 0.0, %v2669
  %v2671 = vpop.f32.mrf.mxu0
  %v2672 = vadd.f32 0.0, %v2671
  %2673 = vmatmul.bf16.gmra.mxu0 %v543
  %v2674 = vpop.f32.mrf.mxu0
  %v2675 = vadd.f32 0.0, %v2674
  %v2676 = vpop.f32.mrf.mxu0
  %v2677 = vadd.f32 0.0, %v2676
  %2678 = vmatmul.bf16.gmra.mxu0 %v549
  %v2679 = vpop.f32.mrf.mxu0
  %v2680 = vadd.f32 0.0, %v2679
  %v2681 = vpop.f32.mrf.mxu0
  %2682 = vdwg.mxu0
  %2683 = vmatpush.bf16.msra.mxu0 %v1621
  %2684 = vmatpush.bf16.msra.mxu0 %v1614
  %2685 = vmatpush.bf16.msra.mxu0 %v1607
  %2686 = vmatpush.bf16.msra.mxu0 %v1600
  %2687 = vmatpush.bf16.msra.mxu0 %v1593
  %2688 = vmatpush.bf16.msra.mxu0 %v1586
  %2689 = vmatpush.bf16.msra.mxu0 %v1579
  %2690 = vmatpush.bf16.msra.mxu0 %v1572
  %2691 = vmatmul.bf16.gmra.mxu0 %v514
  %v2692 = vpop.f32.mrf.mxu0
  %v2693 = vadd.f32 %v2650, %v2692
  %v2694 = vpop.f32.mrf.mxu0
  %v2695 = vadd.f32 %v2652, %v2694
  %2696 = vmatmul.bf16.gmra.mxu0 %v520
  %v2697 = vpop.f32.mrf.mxu0
  %v2698 = vadd.f32 %v2655, %v2697
  %v2699 = vpop.f32.mrf.mxu0
  %v2700 = vadd.f32 %v2657, %v2699
  %2701 = vmatmul.bf16.gmra.mxu0 %v526
  %v2702 = vpop.f32.mrf.mxu0
  %v2703 = vadd.f32 %v2660, %v2702
  %v2704 = vpop.f32.mrf.mxu0
  %v2705 = vadd.f32 %v2662, %v2704
  %2706 = vmatmul.bf16.gmra.mxu0 %v532
  %v2707 = vpop.f32.mrf.mxu0
  %v2708 = vadd.f32 %v2665, %v2707
  %v2709 = vpop.f32.mrf.mxu0
  %v2710 = vadd.f32 %v2667, %v2709
  %2711 = vmatmul.bf16.gmra.mxu0 %v538
  %v2712 = vpop.f32.mrf.mxu0
  %v2713 = vadd.f32 %v2670, %v2712
  %v2714 = vpop.f32.mrf.mxu0
  %v2715 = vadd.f32 %v2672, %v2714
  %2716 = vmatmul.bf16.gmra.mxu0 %v544
  %v2717 = vpop.f32.mrf.mxu0
  %v2718 = vadd.f32 %v2675, %v2717
  %v2719 = vpop.f32.mrf.mxu0
  %v2720 = vadd.f32 %v2677, %v2719
  %2721 = vmatmul.bf16.gmra.mxu0 %v550
  %v2722 = vpop.f32.mrf.mxu0
  %v2723 = vadd.f32 %v2680, %v2722
  %v2724 = vpop.f32.mrf.mxu0
  %2725 = vdwg.mxu0
  %2726 = vmatpush.bf16.msra.mxu0 %v1677
  %2727 = vmatpush.bf16.msra.mxu0 %v1670
  %2728 = vmatpush.bf16.msra.mxu0 %v1663
  %2729 = vmatpush.bf16.msra.mxu0 %v1656
  %2730 = vmatpush.bf16.msra.mxu0 %v1649
  %2731 = vmatpush.bf16.msra.mxu0 %v1642
  %2732 = vmatpush.bf16.msra.mxu0 %v1635
  %2733 = vmatpush.bf16.msra.mxu0 %v1628
  %2734 = vmatmul.bf16.gmra.mxu0 %v515
  %v2735 = vpop.f32.mrf.mxu0
  %v2736 = vadd.f32 %v2693, %v2735
  %v2737 = vpop.f32.mrf.mxu0
  %v2738 = vadd.f32 %v2695, %v2737
  %2739 = vmatmul.bf16.gmra.mxu0 %v521
  %v2740 = vpop.f32.mrf.mxu0
  %v2741 = vadd.f32 %v2698, %v2740
  %v2742 = vpop.f32.mrf.mxu0
  %v2743 = vadd.f32 %v2700, %v2742
  %2744 = vmatmul.bf16.gmra.mxu0 %v527
  %v2745 = vpop.f32.mrf.mxu0
  %v2746 = vadd.f32 %v2703, %v2745
  %v2747 = vpop.f32.mrf.mxu0
  %v2748 = vadd.f32 %v2705, %v2747
  %2749 = vmatmul.bf16.gmra.mxu0 %v533
  %v2750 = vpop.f32.mrf.mxu0
  %v2751 = vadd.f32 %v2708, %v2750
  %v2752 = vpop.f32.mrf.mxu0
  %v2753 = vadd.f32 %v2710, %v2752
  %2754 = vmatmul.bf16.gmra.mxu0 %v539
  %v2755 = vpop.f32.mrf.mxu0
  %v2756 = vadd.f32 %v2713, %v2755
  %v2757 = vpop.f32.mrf.mxu0
  %v2758 = vadd.f32 %v2715, %v2757
  %2759 = vmatmul.bf16.gmra.mxu0 %v545
  %v2760 = vpop.f32.mrf.mxu0
  %v2761 = vadd.f32 %v2718, %v2760
  %v2762 = vpop.f32.mrf.mxu0
  %v2763 = vadd.f32 %v2720, %v2762
  %2764 = vmatmul.bf16.gmra.mxu0 %v551
  %v2765 = vpop.f32.mrf.mxu0
  %v2766 = vadd.f32 %v2723, %v2765
  %v2767 = vpop.f32.mrf.mxu0
  %2768 = vdwg.mxu0
  %2769 = vmatpush.bf16.msra.mxu0 %v1733
  %2770 = vmatpush.bf16.msra.mxu0 %v1726
  %2771 = vmatpush.bf16.msra.mxu0 %v1719
  %2772 = vmatpush.bf16.msra.mxu0 %v1712
  %2773 = vmatpush.bf16.msra.mxu0 %v1705
  %2774 = vmatpush.bf16.msra.mxu0 %v1698
  %2775 = vmatpush.bf16.msra.mxu0 %v1691
  %2776 = vmatpush.bf16.msra.mxu0 %v1684
  %2777 = vmatmul.bf16.gmra.mxu0 %v516
  %v2778 = vpop.f32.mrf.mxu0
  %v2779 = vadd.f32 %v2736, %v2778
  %v2780 = vpop.f32.mrf.mxu0
  %v2781 = vadd.f32 %v2738, %v2780
  %2782 = vmatmul.bf16.gmra.mxu0 %v522
  %v2783 = vpop.f32.mrf.mxu0
  %v2784 = vadd.f32 %v2741, %v2783
  %v2785 = vpop.f32.mrf.mxu0
  %v2786 = vadd.f32 %v2743, %v2785
  %2787 = vmatmul.bf16.gmra.mxu0 %v528
  %v2788 = vpop.f32.mrf.mxu0
  %v2789 = vadd.f32 %v2746, %v2788
  %v2790 = vpop.f32.mrf.mxu0
  %v2791 = vadd.f32 %v2748, %v2790
  %2792 = vmatmul.bf16.gmra.mxu0 %v534
  %v2793 = vpop.f32.mrf.mxu0
  %v2794 = vadd.f32 %v2751, %v2793
  %v2795 = vpop.f32.mrf.mxu0
  %v2796 = vadd.f32 %v2753, %v2795
  %2797 = vmatmul.bf16.gmra.mxu0 %v540
  %v2798 = vpop.f32.mrf.mxu0
  %v2799 = vadd.f32 %v2756, %v2798
  %v2800 = vpop.f32.mrf.mxu0
  %v2801 = vadd.f32 %v2758, %v2800
  %2802 = vmatmul.bf16.gmra.mxu0 %v546
  %v2803 = vpop.f32.mrf.mxu0
  %v2804 = vadd.f32 %v2761, %v2803
  %v2805 = vpop.f32.mrf.mxu0
  %v2806 = vadd.f32 %v2763, %v2805
  %2807 = vmatmul.bf16.gmra.mxu0 %v552
  %v2808 = vpop.f32.mrf.mxu0
  %v2809 = vadd.f32 %v2766, %v2808
  %v2810 = vpop.f32.mrf.mxu0
  %2811 = vdwg.mxu0
  %2812 = vmatpush.bf16.msra.mxu0 %v1789
  %2813 = vmatpush.bf16.msra.mxu0 %v1782
  %2814 = vmatpush.bf16.msra.mxu0 %v1775
  %2815 = vmatpush.bf16.msra.mxu0 %v1768
  %2816 = vmatpush.bf16.msra.mxu0 %v1761
  %2817 = vmatpush.bf16.msra.mxu0 %v1754
  %2818 = vmatpush.bf16.msra.mxu0 %v1747
  %2819 = vmatpush.bf16.msra.mxu0 %v1740
  %2820 = vmatmul.bf16.gmra.mxu0 %v517
  %v2821 = vpop.f32.mrf.mxu0
  %v2822 = vadd.f32 %v2779, %v2821
  %v2823 = vpop.f32.mrf.mxu0
  %v2824 = vadd.f32 %v2781, %v2823
  %2825 = vmatmul.bf16.gmra.mxu0 %v523
  %v2826 = vpop.f32.mrf.mxu0
  %v2827 = vadd.f32 %v2784, %v2826
  %v2828 = vpop.f32.mrf.mxu0
  %v2829 = vadd.f32 %v2786, %v2828
  %2830 = vmatmul.bf16.gmra.mxu0 %v529
  %v2831 = vpop.f32.mrf.mxu0
  %v2832 = vadd.f32 %v2789, %v2831
  %v2833 = vpop.f32.mrf.mxu0
  %v2834 = vadd.f32 %v2791, %v2833
  %2835 = vmatmul.bf16.gmra.mxu0 %v535
  %v2836 = vpop.f32.mrf.mxu0
  %v2837 = vadd.f32 %v2794, %v2836
  %v2838 = vpop.f32.mrf.mxu0
  %v2839 = vadd.f32 %v2796, %v2838
  %2840 = vmatmul.bf16.gmra.mxu0 %v541
  %v2841 = vpop.f32.mrf.mxu0
  %v2842 = vadd.f32 %v2799, %v2841
  %v2843 = vpop.f32.mrf.mxu0
  %v2844 = vadd.f32 %v2801, %v2843
  %2845 = vmatmul.bf16.gmra.mxu0 %v547
  %v2846 = vpop.f32.mrf.mxu0
  %v2847 = vadd.f32 %v2804, %v2846
  %v2848 = vpop.f32.mrf.mxu0
  %v2849 = vadd.f32 %v2806, %v2848
  %2850 = vmatmul.bf16.gmra.mxu0 %v553
  %v2851 = vpop.f32.mrf.mxu0
  %v2852 = vadd.f32 %v2809, %v2851
  %v2853 = vpop.f32.mrf.mxu0
  %2854 = vdwg.mxu0
  %2855 = vmatpush.bf16.msra.mxu0 0
  %2856 = vmatpush.bf16.msra.mxu0 0
  %2857 = vmatpush.bf16.msra.mxu0 0
  %2858 = vmatpush.bf16.msra.mxu0 0
  %2859 = vmatpush.bf16.msra.mxu0 0
  %2860 = vmatpush.bf16.msra.mxu0 0
  %2861 = vmatpush.bf16.msra.mxu0 %v1803
  %2862 = vmatpush.bf16.msra.mxu0 %v1796
  %2863 = vmatmul.bf16.gmra.mxu0 %v2104
  %v2864 = vpop.f32.mrf.mxu0
  %v2865 = vadd.f32 %v2822, %v2864
  %v2866 = vpop.f32.mrf.mxu0
  %v2867 = vadd.f32 %v2824, %v2866
  %2868 = vmatmul.bf16.gmra.mxu0 %v2107
  %v2869 = vpop.f32.mrf.mxu0
  %v2870 = vadd.f32 %v2827, %v2869
  %v2871 = vpop.f32.mrf.mxu0
  %v2872 = vadd.f32 %v2829, %v2871
  %2873 = vmatmul.bf16.gmra.mxu0 %v2110
  %v2874 = vpop.f32.mrf.mxu0
  %v2875 = vadd.f32 %v2832, %v2874
  %v2876 = vpop.f32.mrf.mxu0
  %v2877 = vadd.f32 %v2834, %v2876
  %2878 = vmatmul.bf16.gmra.mxu0 %v2113
  %v2879 = vpop.f32.mrf.mxu0
  %v2880 = vadd.f32 %v2837, %v2879
  %v2881 = vpop.f32.mrf.mxu0
  %v2882 = vadd.f32 %v2839, %v2881
  %2883 = vmatmul.bf16.gmra.mxu0 %v2116
  %v2884 = vpop.f32.mrf.mxu0
  %v2885 = vadd.f32 %v2842, %v2884
  %v2886 = vpop.f32.mrf.mxu0
  %v2887 = vadd.f32 %v2844, %v2886
  %2888 = vmatmul.bf16.gmra.mxu0 %v2119
  %v2889 = vpop.f32.mrf.mxu0
  %v2890 = vadd.f32 %v2847, %v2889
  %v2891 = vpop.f32.mrf.mxu0
  %v2892 = vadd.f32 %v2849, %v2891
  %2893 = vmatmul.bf16.gmra.mxu0 %v2122
  %v2894 = vpop.f32.mrf.mxu0
  %v2895 = vadd.f32 %v2852, %v2894
  %v2896 = vpop.f32.mrf.mxu0
  %2897 = vdwg.mxu0
  %2898 = vmatpush.bf16.msra.mxu0 %v1566
  %2899 = vmatpush.bf16.msra.mxu0 %v1559
  %2900 = vmatpush.bf16.msra.mxu0 %v1552
  %2901 = vmatpush.bf16.msra.mxu0 %v1545
  %2902 = vmatpush.bf16.msra.mxu0 %v1538
  %2903 = vmatpush.bf16.msra.mxu0 %v1531
  %2904 = vmatpush.bf16.msra.mxu0 %v1524
  %2905 = vmatpush.bf16.msra.mxu0 %v1517
  %2906 = vmatmul.bf16.gmra.mxu0 %v513
  %v2907 = vpop.f32.mrf.mxu0
  %v2908 = vadd.f32 0.0, %v2907
  %v2909 = vpop.f32.mrf.mxu0
  %v2910 = vadd.f32 0.0, %v2909
  %2911 = vmatmul.bf16.gmra.mxu0 %v519
  %v2912 = vpop.f32.mrf.mxu0
  %v2913 = vadd.f32 0.0, %v2912
  %v2914 = vpop.f32.mrf.mxu0
  %v2915 = vadd.f32 0.0, %v2914
  %2916 = vmatmul.bf16.gmra.mxu0 %v525
  %v2917 = vpop.f32.mrf.mxu0
  %v2918 = vadd.f32 0.0, %v2917
  %v2919 = vpop.f32.mrf.mxu0
  %v2920 = vadd.f32 0.0, %v2919
  %2921 = vmatmul.bf16.gmra.mxu0 %v531
  %v2922 = vpop.f32.mrf.mxu0
  %v2923 = vadd.f32 0.0, %v2922
  %v2924 = vpop.f32.mrf.mxu0
  %v2925 = vadd.f32 0.0, %v2924
  %2926 = vmatmul.bf16.gmra.mxu0 %v537
  %v2927 = vpop.f32.mrf.mxu0
  %v2928 = vadd.f32 0.0, %v2927
  %v2929 = vpop.f32.mrf.mxu0
  %v2930 = vadd.f32 0.0, %v2929
  %2931 = vmatmul.bf16.gmra.mxu0 %v543
  %v2932 = vpop.f32.mrf.mxu0
  %v2933 = vadd.f32 0.0, %v2932
  %v2934 = vpop.f32.mrf.mxu0
  %v2935 = vadd.f32 0.0, %v2934
  %2936 = vmatmul.bf16.gmra.mxu0 %v549
  %v2937 = vpop.f32.mrf.mxu0
  %v2938 = vadd.f32 0.0, %v2937
  %v2939 = vpop.f32.mrf.mxu0
  %2940 = vdwg.mxu0
  %2941 = vmatpush.bf16.msra.mxu0 %v1622
  %2942 = vmatpush.bf16.msra.mxu0 %v1615
  %2943 = vmatpush.bf16.msra.mxu0 %v1608
  %2944 = vmatpush.bf16.msra.mxu0 %v1601
  %2945 = vmatpush.bf16.msra.mxu0 %v1594
  %2946 = vmatpush.bf16.msra.mxu0 %v1587
  %2947 = vmatpush.bf16.msra.mxu0 %v1580
  %2948 = vmatpush.bf16.msra.mxu0 %v1573
  %2949 = vmatmul.bf16.gmra.mxu0 %v514
  %v2950 = vpop.f32.mrf.mxu0
  %v2951 = vadd.f32 %v2908, %v2950
  %v2952 = vpop.f32.mrf.mxu0
  %v2953 = vadd.f32 %v2910, %v2952
  %2954 = vmatmul.bf16.gmra.mxu0 %v520
  %v2955 = vpop.f32.mrf.mxu0
  %v2956 = vadd.f32 %v2913, %v2955
  %v2957 = vpop.f32.mrf.mxu0
  %v2958 = vadd.f32 %v2915, %v2957
  %2959 = vmatmul.bf16.gmra.mxu0 %v526
  %v2960 = vpop.f32.mrf.mxu0
  %v2961 = vadd.f32 %v2918, %v2960
  %v2962 = vpop.f32.mrf.mxu0
  %v2963 = vadd.f32 %v2920, %v2962
  %2964 = vmatmul.bf16.gmra.mxu0 %v532
  %v2965 = vpop.f32.mrf.mxu0
  %v2966 = vadd.f32 %v2923, %v2965
  %v2967 = vpop.f32.mrf.mxu0
  %v2968 = vadd.f32 %v2925, %v2967
  %2969 = vmatmul.bf16.gmra.mxu0 %v538
  %v2970 = vpop.f32.mrf.mxu0
  %v2971 = vadd.f32 %v2928, %v2970
  %v2972 = vpop.f32.mrf.mxu0
  %v2973 = vadd.f32 %v2930, %v2972
  %2974 = vmatmul.bf16.gmra.mxu0 %v544
  %v2975 = vpop.f32.mrf.mxu0
  %v2976 = vadd.f32 %v2933, %v2975
  %v2977 = vpop.f32.mrf.mxu0
  %v2978 = vadd.f32 %v2935, %v2977
  %2979 = vmatmul.bf16.gmra.mxu0 %v550
  %v2980 = vpop.f32.mrf.mxu0
  %v2981 = vadd.f32 %v2938, %v2980
  %v2982 = vpop.f32.mrf.mxu0
  %2983 = vdwg.mxu0
  %2984 = vmatpush.bf16.msra.mxu0 %v1678
  %2985 = vmatpush.bf16.msra.mxu0 %v1671
  %2986 = vmatpush.bf16.msra.mxu0 %v1664
  %2987 = vmatpush.bf16.msra.mxu0 %v1657
  %2988 = vmatpush.bf16.msra.mxu0 %v1650
  %2989 = vmatpush.bf16.msra.mxu0 %v1643
  %2990 = vmatpush.bf16.msra.mxu0 %v1636
  %2991 = vmatpush.bf16.msra.mxu0 %v1629
  %2992 = vmatmul.bf16.gmra.mxu0 %v515
  %v2993 = vpop.f32.mrf.mxu0
  %v2994 = vadd.f32 %v2951, %v2993
  %v2995 = vpop.f32.mrf.mxu0
  %v2996 = vadd.f32 %v2953, %v2995
  %2997 = vmatmul.bf16.gmra.mxu0 %v521
  %v2998 = vpop.f32.mrf.mxu0
  %v2999 = vadd.f32 %v2956, %v2998
  %v3000 = vpop.f32.mrf.mxu0
  %v3001 = vadd.f32 %v2958, %v3000
  %3002 = vmatmul.bf16.gmra.mxu0 %v527
  %v3003 = vpop.f32.mrf.mxu0
  %v3004 = vadd.f32 %v2961, %v3003
  %v3005 = vpop.f32.mrf.mxu0
  %v3006 = vadd.f32 %v2963, %v3005
  %3007 = vmatmul.bf16.gmra.mxu0 %v533
  %v3008 = vpop.f32.mrf.mxu0
  %v3009 = vadd.f32 %v2966, %v3008
  %v3010 = vpop.f32.mrf.mxu0
  %v3011 = vadd.f32 %v2968, %v3010
  %3012 = vmatmul.bf16.gmra.mxu0 %v539
  %v3013 = vpop.f32.mrf.mxu0
  %v3014 = vadd.f32 %v2971, %v3013
  %v3015 = vpop.f32.mrf.mxu0
  %v3016 = vadd.f32 %v2973, %v3015
  %3017 = vmatmul.bf16.gmra.mxu0 %v545
  %v3018 = vpop.f32.mrf.mxu0
  %v3019 = vadd.f32 %v2976, %v3018
  %v3020 = vpop.f32.mrf.mxu0
  %v3021 = vadd.f32 %v2978, %v3020
  %3022 = vmatmul.bf16.gmra.mxu0 %v551
  %v3023 = vpop.f32.mrf.mxu0
  %v3024 = vadd.f32 %v2981, %v3023
  %v3025 = vpop.f32.mrf.mxu0
  %3026 = vdwg.mxu0
  %3027 = vmatpush.bf16.msra.mxu0 %v1734
  %3028 = vmatpush.bf16.msra.mxu0 %v1727
  %3029 = vmatpush.bf16.msra.mxu0 %v1720
  %3030 = vmatpush.bf16.msra.mxu0 %v1713
  %3031 = vmatpush.bf16.msra.mxu0 %v1706
  %3032 = vmatpush.bf16.msra.mxu0 %v1699
  %3033 = vmatpush.bf16.msra.mxu0 %v1692
  %3034 = vmatpush.bf16.msra.mxu0 %v1685
  %3035 = vmatmul.bf16.gmra.mxu0 %v516
  %v3036 = vpop.f32.mrf.mxu0
  %v3037 = vadd.f32 %v2994, %v3036
  %v3038 = vpop.f32.mrf.mxu0
  %v3039 = vadd.f32 %v2996, %v3038
  %3040 = vmatmul.bf16.gmra.mxu0 %v522
  %v3041 = vpop.f32.mrf.mxu0
  %v3042 = vadd.f32 %v2999, %v3041
  %v3043 = vpop.f32.mrf.mxu0
  %v3044 = vadd.f32 %v3001, %v3043
  %3045 = vmatmul.bf16.gmra.mxu0 %v528
  %v3046 = vpop.f32.mrf.mxu0
  %v3047 = vadd.f32 %v3004, %v3046
  %v3048 = vpop.f32.mrf.mxu0
  %v3049 = vadd.f32 %v3006, %v3048
  %3050 = vmatmul.bf16.gmra.mxu0 %v534
  %v3051 = vpop.f32.mrf.mxu0
  %v3052 = vadd.f32 %v3009, %v3051
  %v3053 = vpop.f32.mrf.mxu0
  %v3054 = vadd.f32 %v3011, %v3053
  %3055 = vmatmul.bf16.gmra.mxu0 %v540
  %v3056 = vpop.f32.mrf.mxu0
  %v3057 = vadd.f32 %v3014, %v3056
  %v3058 = vpop.f32.mrf.mxu0
  %v3059 = vadd.f32 %v3016, %v3058
  %3060 = vmatmul.bf16.gmra.mxu0 %v546
  %v3061 = vpop.f32.mrf.mxu0
  %v3062 = vadd.f32 %v3019, %v3061
  %v3063 = vpop.f32.mrf.mxu0
  %v3064 = vadd.f32 %v3021, %v3063
  %3065 = vmatmul.bf16.gmra.mxu0 %v552
  %v3066 = vpop.f32.mrf.mxu0
  %v3067 = vadd.f32 %v3024, %v3066
  %v3068 = vpop.f32.mrf.mxu0
  %3069 = vdwg.mxu0
  %3070 = vmatpush.bf16.msra.mxu0 %v1790
  %3071 = vmatpush.bf16.msra.mxu0 %v1783
  %3072 = vmatpush.bf16.msra.mxu0 %v1776
  %3073 = vmatpush.bf16.msra.mxu0 %v1769
  %3074 = vmatpush.bf16.msra.mxu0 %v1762
  %3075 = vmatpush.bf16.msra.mxu0 %v1755
  %3076 = vmatpush.bf16.msra.mxu0 %v1748
  %3077 = vmatpush.bf16.msra.mxu0 %v1741
  %3078 = vmatmul.bf16.gmra.mxu0 %v517
  %v3079 = vpop.f32.mrf.mxu0
  %v3080 = vadd.f32 %v3037, %v3079
  %v3081 = vpop.f32.mrf.mxu0
  %v3082 = vadd.f32 %v3039, %v3081
  %3083 = vmatmul.bf16.gmra.mxu0 %v523
  %v3084 = vpop.f32.mrf.mxu0
  %v3085 = vadd.f32 %v3042, %v3084
  %v3086 = vpop.f32.mrf.mxu0
  %v3087 = vadd.f32 %v3044, %v3086
  %3088 = vmatmul.bf16.gmra.mxu0 %v529
  %v3089 = vpop.f32.mrf.mxu0
  %v3090 = vadd.f32 %v3047, %v3089
  %v3091 = vpop.f32.mrf.mxu0
  %v3092 = vadd.f32 %v3049, %v3091
  %3093 = vmatmul.bf16.gmra.mxu0 %v535
  %v3094 = vpop.f32.mrf.mxu0
  %v3095 = vadd.f32 %v3052, %v3094
  %v3096 = vpop.f32.mrf.mxu0
  %v3097 = vadd.f32 %v3054, %v3096
  %3098 = vmatmul.bf16.gmra.mxu0 %v541
  %v3099 = vpop.f32.mrf.mxu0
  %v3100 = vadd.f32 %v3057, %v3099
  %v3101 = vpop.f32.mrf.mxu0
  %v3102 = vadd.f32 %v3059, %v3101
  %3103 = vmatmul.bf16.gmra.mxu0 %v547
  %v3104 = vpop.f32.mrf.mxu0
  %v3105 = vadd.f32 %v3062, %v3104
  %v3106 = vpop.f32.mrf.mxu0
  %v3107 = vadd.f32 %v3064, %v3106
  %3108 = vmatmul.bf16.gmra.mxu0 %v553
  %v3109 = vpop.f32.mrf.mxu0
  %v3110 = vadd.f32 %v3067, %v3109
  %v3111 = vpop.f32.mrf.mxu0
  %3112 = vdwg.mxu0
  %3113 = vmatpush.bf16.msra.mxu0 0
  %3114 = vmatpush.bf16.msra.mxu0 0
  %3115 = vmatpush.bf16.msra.mxu0 0
  %3116 = vmatpush.bf16.msra.mxu0 0
  %3117 = vmatpush.bf16.msra.mxu0 0
  %3118 = vmatpush.bf16.msra.mxu0 0
  %3119 = vmatpush.bf16.msra.mxu0 %v1804
  %3120 = vmatpush.bf16.msra.mxu0 %v1797
  %3121 = vmatmul.bf16.gmra.mxu0 %v2104
  %v3122 = vpop.f32.mrf.mxu0
  %v3123 = vadd.f32 %v3080, %v3122
  %v3124 = vpop.f32.mrf.mxu0
  %v3125 = vadd.f32 %v3082, %v3124
  %3126 = vmatmul.bf16.gmra.mxu0 %v2107
  %v3127 = vpop.f32.mrf.mxu0
  %v3128 = vadd.f32 %v3085, %v3127
  %v3129 = vpop.f32.mrf.mxu0
  %v3130 = vadd.f32 %v3087, %v3129
  %3131 = vmatmul.bf16.gmra.mxu0 %v2110
  %v3132 = vpop.f32.mrf.mxu0
  %v3133 = vadd.f32 %v3090, %v3132
  %v3134 = vpop.f32.mrf.mxu0
  %v3135 = vadd.f32 %v3092, %v3134
  %3136 = vmatmul.bf16.gmra.mxu0 %v2113
  %v3137 = vpop.f32.mrf.mxu0
  %v3138 = vadd.f32 %v3095, %v3137
  %v3139 = vpop.f32.mrf.mxu0
  %v3140 = vadd.f32 %v3097, %v3139
  %3141 = vmatmul.bf16.gmra.mxu0 %v2116
  %v3142 = vpop.f32.mrf.mxu0
  %v3143 = vadd.f32 %v3100, %v3142
  %v3144 = vpop.f32.mrf.mxu0
  %v3145 = vadd.f32 %v3102, %v3144
  %3146 = vmatmul.bf16.gmra.mxu0 %v2119
  %v3147 = vpop.f32.mrf.mxu0
  %v3148 = vadd.f32 %v3105, %v3147
  %v3149 = vpop.f32.mrf.mxu0
  %v3150 = vadd.f32 %v3107, %v3149
  %3151 = vmatmul.bf16.gmra.mxu0 %v2122
  %v3152 = vpop.f32.mrf.mxu0
  %v3153 = vadd.f32 %v3110, %v3152
  %v3154 = vpop.f32.mrf.mxu0
  %3155 = vdwg.mxu0
  %3156 = vmatpush.bf16.msra.mxu0 %v1567
  %3157 = vmatpush.bf16.msra.mxu0 %v1560
  %3158 = vmatpush.bf16.msra.mxu0 %v1553
  %3159 = vmatpush.bf16.msra.mxu0 %v1546
  %3160 = vmatpush.bf16.msra.mxu0 %v1539
  %3161 = vmatpush.bf16.msra.mxu0 %v1532
  %3162 = vmatpush.bf16.msra.mxu0 %v1525
  %3163 = vmatpush.bf16.msra.mxu0 %v1518
  %3164 = vmatmul.bf16.gmra.mxu0 %v513
  %v3165 = vpop.f32.mrf.mxu0
  %v3166 = vadd.f32 0.0, %v3165
  %v3167 = vpop.f32.mrf.mxu0
  %v3168 = vadd.f32 0.0, %v3167
  %3169 = vmatmul.bf16.gmra.mxu0 %v519
  %v3170 = vpop.f32.mrf.mxu0
  %v3171 = vadd.f32 0.0, %v3170
  %v3172 = vpop.f32.mrf.mxu0
  %v3173 = vadd.f32 0.0, %v3172
  %3174 = vmatmul.bf16.gmra.mxu0 %v525
  %v3175 = vpop.f32.mrf.mxu0
  %v3176 = vadd.f32 0.0, %v3175
  %v3177 = vpop.f32.mrf.mxu0
  %v3178 = vadd.f32 0.0, %v3177
  %3179 = vmatmul.bf16.gmra.mxu0 %v531
  %v3180 = vpop.f32.mrf.mxu0
  %v3181 = vadd.f32 0.0, %v3180
  %v3182 = vpop.f32.mrf.mxu0
  %v3183 = vadd.f32 0.0, %v3182
  %3184 = vmatmul.bf16.gmra.mxu0 %v537
  %v3185 = vpop.f32.mrf.mxu0
  %v3186 = vadd.f32 0.0, %v3185
  %v3187 = vpop.f32.mrf.mxu0
  %v3188 = vadd.f32 0.0, %v3187
  %3189 = vmatmul.bf16.gmra.mxu0 %v543
  %v3190 = vpop.f32.mrf.mxu0
  %v3191 = vadd.f32 0.0, %v3190
  %v3192 = vpop.f32.mrf.mxu0
  %v3193 = vadd.f32 0.0, %v3192
  %3194 = vmatmul.bf16.gmra.mxu0 %v549
  %v3195 = vpop.f32.mrf.mxu0
  %v3196 = vadd.f32 0.0, %v3195
  %v3197 = vpop.f32.mrf.mxu0
  %3198 = vdwg.mxu0
  %3199 = vmatpush.bf16.msra.mxu0 %v1623
  %3200 = vmatpush.bf16.msra.mxu0 %v1616
  %3201 = vmatpush.bf16.msra.mxu0 %v1609
  %3202 = vmatpush.bf16.msra.mxu0 %v1602
  %3203 = vmatpush.bf16.msra.mxu0 %v1595
  %3204 = vmatpush.bf16.msra.mxu0 %v1588
  %3205 = vmatpush.bf16.msra.mxu0 %v1581
  %3206 = vmatpush.bf16.msra.mxu0 %v1574
  %3207 = vmatmul.bf16.gmra.mxu0 %v514
  %v3208 = vpop.f32.mrf.mxu0
  %v3209 = vadd.f32 %v3166, %v3208
  %v3210 = vpop.f32.mrf.mxu0
  %v3211 = vadd.f32 %v3168, %v3210
  %3212 = vmatmul.bf16.gmra.mxu0 %v520
  %v3213 = vpop.f32.mrf.mxu0
  %v3214 = vadd.f32 %v3171, %v3213
  %v3215 = vpop.f32.mrf.mxu0
  %v3216 = vadd.f32 %v3173, %v3215
  %3217 = vmatmul.bf16.gmra.mxu0 %v526
  %v3218 = vpop.f32.mrf.mxu0
  %v3219 = vadd.f32 %v3176, %v3218
  %v3220 = vpop.f32.mrf.mxu0
  %v3221 = vadd.f32 %v3178, %v3220
  %3222 = vmatmul.bf16.gmra.mxu0 %v532
  %v3223 = vpop.f32.mrf.mxu0
  %v3224 = vadd.f32 %v3181, %v3223
  %v3225 = vpop.f32.mrf.mxu0
  %v3226 = vadd.f32 %v3183, %v3225
  %3227 = vmatmul.bf16.gmra.mxu0 %v538
  %v3228 = vpop.f32.mrf.mxu0
  %v3229 = vadd.f32 %v3186, %v3228
  %v3230 = vpop.f32.mrf.mxu0
  %v3231 = vadd.f32 %v3188, %v3230
  %3232 = vmatmul.bf16.gmra.mxu0 %v544
  %v3233 = vpop.f32.mrf.mxu0
  %v3234 = vadd.f32 %v3191, %v3233
  %v3235 = vpop.f32.mrf.mxu0
  %v3236 = vadd.f32 %v3193, %v3235
  %3237 = vmatmul.bf16.gmra.mxu0 %v550
  %v3238 = vpop.f32.mrf.mxu0
  %v3239 = vadd.f32 %v3196, %v3238
  %v3240 = vpop.f32.mrf.mxu0
  %3241 = vdwg.mxu0
  %3242 = vmatpush.bf16.msra.mxu0 %v1679
  %3243 = vmatpush.bf16.msra.mxu0 %v1672
  %3244 = vmatpush.bf16.msra.mxu0 %v1665
  %3245 = vmatpush.bf16.msra.mxu0 %v1658
  %3246 = vmatpush.bf16.msra.mxu0 %v1651
  %3247 = vmatpush.bf16.msra.mxu0 %v1644
  %3248 = vmatpush.bf16.msra.mxu0 %v1637
  %3249 = vmatpush.bf16.msra.mxu0 %v1630
  %3250 = vmatmul.bf16.gmra.mxu0 %v515
  %v3251 = vpop.f32.mrf.mxu0
  %v3252 = vadd.f32 %v3209, %v3251
  %v3253 = vpop.f32.mrf.mxu0
  %v3254 = vadd.f32 %v3211, %v3253
  %3255 = vmatmul.bf16.gmra.mxu0 %v521
  %v3256 = vpop.f32.mrf.mxu0
  %v3257 = vadd.f32 %v3214, %v3256
  %v3258 = vpop.f32.mrf.mxu0
  %v3259 = vadd.f32 %v3216, %v3258
  %3260 = vmatmul.bf16.gmra.mxu0 %v527
  %v3261 = vpop.f32.mrf.mxu0
  %v3262 = vadd.f32 %v3219, %v3261
  %v3263 = vpop.f32.mrf.mxu0
  %v3264 = vadd.f32 %v3221, %v3263
  %3265 = vmatmul.bf16.gmra.mxu0 %v533
  %v3266 = vpop.f32.mrf.mxu0
  %v3267 = vadd.f32 %v3224, %v3266
  %v3268 = vpop.f32.mrf.mxu0
  %v3269 = vadd.f32 %v3226, %v3268
  %3270 = vmatmul.bf16.gmra.mxu0 %v539
  %v3271 = vpop.f32.mrf.mxu0
  %v3272 = vadd.f32 %v3229, %v3271
  %v3273 = vpop.f32.mrf.mxu0
  %v3274 = vadd.f32 %v3231, %v3273
  %3275 = vmatmul.bf16.gmra.mxu0 %v545
  %v3276 = vpop.f32.mrf.mxu0
  %v3277 = vadd.f32 %v3234, %v3276
  %v3278 = vpop.f32.mrf.mxu0
  %v3279 = vadd.f32 %v3236, %v3278
  %3280 = vmatmul.bf16.gmra.mxu0 %v551
  %v3281 = vpop.f32.mrf.mxu0
  %v3282 = vadd.f32 %v3239, %v3281
  %v3283 = vpop.f32.mrf.mxu0
  %3284 = vdwg.mxu0
  %3285 = vmatpush.bf16.msra.mxu0 %v1735
  %3286 = vmatpush.bf16.msra.mxu0 %v1728
  %3287 = vmatpush.bf16.msra.mxu0 %v1721
  %3288 = vmatpush.bf16.msra.mxu0 %v1714
  %3289 = vmatpush.bf16.msra.mxu0 %v1707
  %3290 = vmatpush.bf16.msra.mxu0 %v1700
  %3291 = vmatpush.bf16.msra.mxu0 %v1693
  %3292 = vmatpush.bf16.msra.mxu0 %v1686
  %3293 = vmatmul.bf16.gmra.mxu0 %v516
  %v3294 = vpop.f32.mrf.mxu0
  %v3295 = vadd.f32 %v3252, %v3294
  %v3296 = vpop.f32.mrf.mxu0
  %v3297 = vadd.f32 %v3254, %v3296
  %3298 = vmatmul.bf16.gmra.mxu0 %v522
  %v3299 = vpop.f32.mrf.mxu0
  %v3300 = vadd.f32 %v3257, %v3299
  %v3301 = vpop.f32.mrf.mxu0
  %v3302 = vadd.f32 %v3259, %v3301
  %3303 = vmatmul.bf16.gmra.mxu0 %v528
  %v3304 = vpop.f32.mrf.mxu0
  %v3305 = vadd.f32 %v3262, %v3304
  %v3306 = vpop.f32.mrf.mxu0
  %v3307 = vadd.f32 %v3264, %v3306
  %3308 = vmatmul.bf16.gmra.mxu0 %v534
  %v3309 = vpop.f32.mrf.mxu0
  %v3310 = vadd.f32 %v3267, %v3309
  %v3311 = vpop.f32.mrf.mxu0
  %v3312 = vadd.f32 %v3269, %v3311
  %3313 = vmatmul.bf16.gmra.mxu0 %v540
  %v3314 = vpop.f32.mrf.mxu0
  %v3315 = vadd.f32 %v3272, %v3314
  %v3316 = vpop.f32.mrf.mxu0
  %v3317 = vadd.f32 %v3274, %v3316
  %3318 = vmatmul.bf16.gmra.mxu0 %v546
  %v3319 = vpop.f32.mrf.mxu0
  %v3320 = vadd.f32 %v3277, %v3319
  %v3321 = vpop.f32.mrf.mxu0
  %v3322 = vadd.f32 %v3279, %v3321
  %3323 = vmatmul.bf16.gmra.mxu0 %v552
  %v3324 = vpop.f32.mrf.mxu0
  %v3325 = vadd.f32 %v3282, %v3324
  %v3326 = vpop.f32.mrf.mxu0
  %3327 = vdwg.mxu0
  %3328 = vmatpush.bf16.msra.mxu0 %v1791
  %3329 = vmatpush.bf16.msra.mxu0 %v1784
  %3330 = vmatpush.bf16.msra.mxu0 %v1777
  %3331 = vmatpush.bf16.msra.mxu0 %v1770
  %3332 = vmatpush.bf16.msra.mxu0 %v1763
  %3333 = vmatpush.bf16.msra.mxu0 %v1756
  %3334 = vmatpush.bf16.msra.mxu0 %v1749
  %3335 = vmatpush.bf16.msra.mxu0 %v1742
  %3336 = vmatmul.bf16.gmra.mxu0 %v517
  %v3337 = vpop.f32.mrf.mxu0
  %v3338 = vadd.f32 %v3295, %v3337
  %v3339 = vpop.f32.mrf.mxu0
  %v3340 = vadd.f32 %v3297, %v3339
  %3341 = vmatmul.bf16.gmra.mxu0 %v523
  %v3342 = vpop.f32.mrf.mxu0
  %v3343 = vadd.f32 %v3300, %v3342
  %v3344 = vpop.f32.mrf.mxu0
  %v3345 = vadd.f32 %v3302, %v3344
  %3346 = vmatmul.bf16.gmra.mxu0 %v529
  %v3347 = vpop.f32.mrf.mxu0
  %v3348 = vadd.f32 %v3305, %v3347
  %v3349 = vpop.f32.mrf.mxu0
  %v3350 = vadd.f32 %v3307, %v3349
  %3351 = vmatmul.bf16.gmra.mxu0 %v535
  %v3352 = vpop.f32.mrf.mxu0
  %v3353 = vadd.f32 %v3310, %v3352
  %v3354 = vpop.f32.mrf.mxu0
  %v3355 = vadd.f32 %v3312, %v3354
  %3356 = vmatmul.bf16.gmra.mxu0 %v541
  %v3357 = vpop.f32.mrf.mxu0
  %v3358 = vadd.f32 %v3315, %v3357
  %v3359 = vpop.f32.mrf.mxu0
  %v3360 = vadd.f32 %v3317, %v3359
  %3361 = vmatmul.bf16.gmra.mxu0 %v547
  %v3362 = vpop.f32.mrf.mxu0
  %v3363 = vadd.f32 %v3320, %v3362
  %v3364 = vpop.f32.mrf.mxu0
  %v3365 = vadd.f32 %v3322, %v3364
  %3366 = vmatmul.bf16.gmra.mxu0 %v553
  %v3367 = vpop.f32.mrf.mxu0
  %v3368 = vadd.f32 %v3325, %v3367
  %v3369 = vpop.f32.mrf.mxu0
  %3370 = vdwg.mxu0
  %3371 = vmatpush.bf16.msra.mxu0 0
  %3372 = vmatpush.bf16.msra.mxu0 0
  %3373 = vmatpush.bf16.msra.mxu0 0
  %3374 = vmatpush.bf16.msra.mxu0 0
  %3375 = vmatpush.bf16.msra.mxu0 0
  %3376 = vmatpush.bf16.msra.mxu0 0
  %3377 = vmatpush.bf16.msra.mxu0 %v1805
  %3378 = vmatpush.bf16.msra.mxu0 %v1798
  %3379 = vmatmul.bf16.gmra.mxu0 %v2104
  %v3380 = vpop.f32.mrf.mxu0
  %v3381 = vadd.f32 %v3338, %v3380
  %v3382 = vpop.f32.mrf.mxu0
  %v3383 = vadd.f32 %v3340, %v3382
  %3384 = vmatmul.bf16.gmra.mxu0 %v2107
  %v3385 = vpop.f32.mrf.mxu0
  %v3386 = vadd.f32 %v3343, %v3385
  %v3387 = vpop.f32.mrf.mxu0
  %v3388 = vadd.f32 %v3345, %v3387
  %3389 = vmatmul.bf16.gmra.mxu0 %v2110
  %v3390 = vpop.f32.mrf.mxu0
  %v3391 = vadd.f32 %v3348, %v3390
  %v3392 = vpop.f32.mrf.mxu0
  %v3393 = vadd.f32 %v3350, %v3392
  %3394 = vmatmul.bf16.gmra.mxu0 %v2113
  %v3395 = vpop.f32.mrf.mxu0
  %v3396 = vadd.f32 %v3353, %v3395
  %v3397 = vpop.f32.mrf.mxu0
  %v3398 = vadd.f32 %v3355, %v3397
  %3399 = vmatmul.bf16.gmra.mxu0 %v2116
  %v3400 = vpop.f32.mrf.mxu0
  %v3401 = vadd.f32 %v3358, %v3400
  %v3402 = vpop.f32.mrf.mxu0
  %v3403 = vadd.f32 %v3360, %v3402
  %3404 = vmatmul.bf16.gmra.mxu0 %v2119
  %v3405 = vpop.f32.mrf.mxu0
  %v3406 = vadd.f32 %v3363, %v3405
  %v3407 = vpop.f32.mrf.mxu0
  %v3408 = vadd.f32 %v3365, %v3407
  %3409 = vmatmul.bf16.gmra.mxu0 %v2122
  %v3410 = vpop.f32.mrf.mxu0
  %v3411 = vadd.f32 %v3368, %v3410
  %v3412 = vpop.f32.mrf.mxu0
  %3413 = vdwg.mxu0
  %3414 = vmatpush.bf16.msra.mxu0 %v1568
  %3415 = vmatpush.bf16.msra.mxu0 %v1561
  %3416 = vmatpush.bf16.msra.mxu0 %v1554
  %3417 = vmatpush.bf16.msra.mxu0 %v1547
  %3418 = vmatpush.bf16.msra.mxu0 %v1540
  %3419 = vmatpush.bf16.msra.mxu0 %v1533
  %3420 = vmatpush.bf16.msra.mxu0 %v1526
  %3421 = vmatpush.bf16.msra.mxu0 %v1519
  %3422 = vmatmul.bf16.gmra.mxu0 %v513
  %v3423 = vpop.f32.mrf.mxu0
  %v3424 = vadd.f32 0.0, %v3423
  %v3425 = vpop.f32.mrf.mxu0
  %v3426 = vadd.f32 0.0, %v3425
  %3427 = vmatmul.bf16.gmra.mxu0 %v519
  %v3428 = vpop.f32.mrf.mxu0
  %v3429 = vadd.f32 0.0, %v3428
  %v3430 = vpop.f32.mrf.mxu0
  %v3431 = vadd.f32 0.0, %v3430
  %3432 = vmatmul.bf16.gmra.mxu0 %v525
  %v3433 = vpop.f32.mrf.mxu0
  %v3434 = vadd.f32 0.0, %v3433
  %v3435 = vpop.f32.mrf.mxu0
  %v3436 = vadd.f32 0.0, %v3435
  %3437 = vmatmul.bf16.gmra.mxu0 %v531
  %v3438 = vpop.f32.mrf.mxu0
  %v3439 = vadd.f32 0.0, %v3438
  %v3440 = vpop.f32.mrf.mxu0
  %v3441 = vadd.f32 0.0, %v3440
  %3442 = vmatmul.bf16.gmra.mxu0 %v537
  %v3443 = vpop.f32.mrf.mxu0
  %v3444 = vadd.f32 0.0, %v3443
  %v3445 = vpop.f32.mrf.mxu0
  %v3446 = vadd.f32 0.0, %v3445
  %3447 = vmatmul.bf16.gmra.mxu0 %v543
  %v3448 = vpop.f32.mrf.mxu0
  %v3449 = vadd.f32 0.0, %v3448
  %v3450 = vpop.f32.mrf.mxu0
  %v3451 = vadd.f32 0.0, %v3450
  %3452 = vmatmul.bf16.gmra.mxu0 %v549
  %v3453 = vpop.f32.mrf.mxu0
  %v3454 = vadd.f32 0.0, %v3453
  %v3455 = vpop.f32.mrf.mxu0
  %3456 = vdwg.mxu0
  %3457 = vmatpush.bf16.msra.mxu0 %v1624
  %3458 = vmatpush.bf16.msra.mxu0 %v1617
  %3459 = vmatpush.bf16.msra.mxu0 %v1610
  %3460 = vmatpush.bf16.msra.mxu0 %v1603
  %3461 = vmatpush.bf16.msra.mxu0 %v1596
  %3462 = vmatpush.bf16.msra.mxu0 %v1589
  %3463 = vmatpush.bf16.msra.mxu0 %v1582
  %3464 = vmatpush.bf16.msra.mxu0 %v1575
  %3465 = vmatmul.bf16.gmra.mxu0 %v514
  %v3466 = vpop.f32.mrf.mxu0
  %v3467 = vadd.f32 %v3424, %v3466
  %v3468 = vpop.f32.mrf.mxu0
  %v3469 = vadd.f32 %v3426, %v3468
  %3470 = vmatmul.bf16.gmra.mxu0 %v520
  %v3471 = vpop.f32.mrf.mxu0
  %v3472 = vadd.f32 %v3429, %v3471
  %v3473 = vpop.f32.mrf.mxu0
  %v3474 = vadd.f32 %v3431, %v3473
  %3475 = vmatmul.bf16.gmra.mxu0 %v526
  %v3476 = vpop.f32.mrf.mxu0
  %v3477 = vadd.f32 %v3434, %v3476
  %v3478 = vpop.f32.mrf.mxu0
  %v3479 = vadd.f32 %v3436, %v3478
  %3480 = vmatmul.bf16.gmra.mxu0 %v532
  %v3481 = vpop.f32.mrf.mxu0
  %v3482 = vadd.f32 %v3439, %v3481
  %v3483 = vpop.f32.mrf.mxu0
  %v3484 = vadd.f32 %v3441, %v3483
  %3485 = vmatmul.bf16.gmra.mxu0 %v538
  %v3486 = vpop.f32.mrf.mxu0
  %v3487 = vadd.f32 %v3444, %v3486
  %v3488 = vpop.f32.mrf.mxu0
  %v3489 = vadd.f32 %v3446, %v3488
  %3490 = vmatmul.bf16.gmra.mxu0 %v544
  %v3491 = vpop.f32.mrf.mxu0
  %v3492 = vadd.f32 %v3449, %v3491
  %v3493 = vpop.f32.mrf.mxu0
  %v3494 = vadd.f32 %v3451, %v3493
  %3495 = vmatmul.bf16.gmra.mxu0 %v550
  %v3496 = vpop.f32.mrf.mxu0
  %v3497 = vadd.f32 %v3454, %v3496
  %v3498 = vpop.f32.mrf.mxu0
  %3499 = vdwg.mxu0
  %3500 = vmatpush.bf16.msra.mxu0 %v1680
  %3501 = vmatpush.bf16.msra.mxu0 %v1673
  %3502 = vmatpush.bf16.msra.mxu0 %v1666
  %3503 = vmatpush.bf16.msra.mxu0 %v1659
  %3504 = vmatpush.bf16.msra.mxu0 %v1652
  %3505 = vmatpush.bf16.msra.mxu0 %v1645
  %3506 = vmatpush.bf16.msra.mxu0 %v1638
  %3507 = vmatpush.bf16.msra.mxu0 %v1631
  %3508 = vmatmul.bf16.gmra.mxu0 %v515
  %v3509 = vpop.f32.mrf.mxu0
  %v3510 = vadd.f32 %v3467, %v3509
  %v3511 = vpop.f32.mrf.mxu0
  %v3512 = vadd.f32 %v3469, %v3511
  %3513 = vmatmul.bf16.gmra.mxu0 %v521
  %v3514 = vpop.f32.mrf.mxu0
  %v3515 = vadd.f32 %v3472, %v3514
  %v3516 = vpop.f32.mrf.mxu0
  %v3517 = vadd.f32 %v3474, %v3516
  %3518 = vmatmul.bf16.gmra.mxu0 %v527
  %v3519 = vpop.f32.mrf.mxu0
  %v3520 = vadd.f32 %v3477, %v3519
  %v3521 = vpop.f32.mrf.mxu0
  %v3522 = vadd.f32 %v3479, %v3521
  %3523 = vmatmul.bf16.gmra.mxu0 %v533
  %v3524 = vpop.f32.mrf.mxu0
  %v3525 = vadd.f32 %v3482, %v3524
  %v3526 = vpop.f32.mrf.mxu0
  %v3527 = vadd.f32 %v3484, %v3526
  %3528 = vmatmul.bf16.gmra.mxu0 %v539
  %v3529 = vpop.f32.mrf.mxu0
  %v3530 = vadd.f32 %v3487, %v3529
  %v3531 = vpop.f32.mrf.mxu0
  %v3532 = vadd.f32 %v3489, %v3531
  %3533 = vmatmul.bf16.gmra.mxu0 %v545
  %v3534 = vpop.f32.mrf.mxu0
  %v3535 = vadd.f32 %v3492, %v3534
  %v3536 = vpop.f32.mrf.mxu0
  %v3537 = vadd.f32 %v3494, %v3536
  %3538 = vmatmul.bf16.gmra.mxu0 %v551
  %v3539 = vpop.f32.mrf.mxu0
  %v3540 = vadd.f32 %v3497, %v3539
  %v3541 = vpop.f32.mrf.mxu0
  %3542 = vdwg.mxu0
  %3543 = vmatpush.bf16.msra.mxu0 %v1736
  %3544 = vmatpush.bf16.msra.mxu0 %v1729
  %3545 = vmatpush.bf16.msra.mxu0 %v1722
  %3546 = vmatpush.bf16.msra.mxu0 %v1715
  %3547 = vmatpush.bf16.msra.mxu0 %v1708
  %3548 = vmatpush.bf16.msra.mxu0 %v1701
  %3549 = vmatpush.bf16.msra.mxu0 %v1694
  %3550 = vmatpush.bf16.msra.mxu0 %v1687
  %3551 = vmatmul.bf16.gmra.mxu0 %v516
  %v3552 = vpop.f32.mrf.mxu0
  %v3553 = vadd.f32 %v3510, %v3552
  %v3554 = vpop.f32.mrf.mxu0
  %v3555 = vadd.f32 %v3512, %v3554
  %3556 = vmatmul.bf16.gmra.mxu0 %v522
  %v3557 = vpop.f32.mrf.mxu0
  %v3558 = vadd.f32 %v3515, %v3557
  %v3559 = vpop.f32.mrf.mxu0
  %v3560 = vadd.f32 %v3517, %v3559
  %3561 = vmatmul.bf16.gmra.mxu0 %v528
  %v3562 = vpop.f32.mrf.mxu0
  %v3563 = vadd.f32 %v3520, %v3562
  %v3564 = vpop.f32.mrf.mxu0
  %v3565 = vadd.f32 %v3522, %v3564
  %3566 = vmatmul.bf16.gmra.mxu0 %v534
  %v3567 = vpop.f32.mrf.mxu0
  %v3568 = vadd.f32 %v3525, %v3567
  %v3569 = vpop.f32.mrf.mxu0
  %v3570 = vadd.f32 %v3527, %v3569
  %3571 = vmatmul.bf16.gmra.mxu0 %v540
  %v3572 = vpop.f32.mrf.mxu0
  %v3573 = vadd.f32 %v3530, %v3572
  %v3574 = vpop.f32.mrf.mxu0
  %v3575 = vadd.f32 %v3532, %v3574
  %3576 = vmatmul.bf16.gmra.mxu0 %v546
  %v3577 = vpop.f32.mrf.mxu0
  %v3578 = vadd.f32 %v3535, %v3577
  %v3579 = vpop.f32.mrf.mxu0
  %v3580 = vadd.f32 %v3537, %v3579
  %3581 = vmatmul.bf16.gmra.mxu0 %v552
  %v3582 = vpop.f32.mrf.mxu0
  %v3583 = vadd.f32 %v3540, %v3582
  %v3584 = vpop.f32.mrf.mxu0
  %3585 = vdwg.mxu0
  %3586 = vmatpush.bf16.msra.mxu0 %v1792
  %3587 = vmatpush.bf16.msra.mxu0 %v1785
  %3588 = vmatpush.bf16.msra.mxu0 %v1778
  %3589 = vmatpush.bf16.msra.mxu0 %v1771
  %3590 = vmatpush.bf16.msra.mxu0 %v1764
  %3591 = vmatpush.bf16.msra.mxu0 %v1757
  %3592 = vmatpush.bf16.msra.mxu0 %v1750
  %3593 = vmatpush.bf16.msra.mxu0 %v1743
  %3594 = vmatmul.bf16.gmra.mxu0 %v517
  %v3595 = vpop.f32.mrf.mxu0
  %v3596 = vadd.f32 %v3553, %v3595
  %v3597 = vpop.f32.mrf.mxu0
  %v3598 = vadd.f32 %v3555, %v3597
  %3599 = vmatmul.bf16.gmra.mxu0 %v523
  %v3600 = vpop.f32.mrf.mxu0
  %v3601 = vadd.f32 %v3558, %v3600
  %v3602 = vpop.f32.mrf.mxu0
  %v3603 = vadd.f32 %v3560, %v3602
  %3604 = vmatmul.bf16.gmra.mxu0 %v529
  %v3605 = vpop.f32.mrf.mxu0
  %v3606 = vadd.f32 %v3563, %v3605
  %v3607 = vpop.f32.mrf.mxu0
  %v3608 = vadd.f32 %v3565, %v3607
  %3609 = vmatmul.bf16.gmra.mxu0 %v535
  %v3610 = vpop.f32.mrf.mxu0
  %v3611 = vadd.f32 %v3568, %v3610
  %v3612 = vpop.f32.mrf.mxu0
  %v3613 = vadd.f32 %v3570, %v3612
  %3614 = vmatmul.bf16.gmra.mxu0 %v541
  %v3615 = vpop.f32.mrf.mxu0
  %v3616 = vadd.f32 %v3573, %v3615
  %v3617 = vpop.f32.mrf.mxu0
  %v3618 = vadd.f32 %v3575, %v3617
  %3619 = vmatmul.bf16.gmra.mxu0 %v547
  %v3620 = vpop.f32.mrf.mxu0
  %v3621 = vadd.f32 %v3578, %v3620
  %v3622 = vpop.f32.mrf.mxu0
  %v3623 = vadd.f32 %v3580, %v3622
  %3624 = vmatmul.bf16.gmra.mxu0 %v553
  %v3625 = vpop.f32.mrf.mxu0
  %v3626 = vadd.f32 %v3583, %v3625
  %v3627 = vpop.f32.mrf.mxu0
  %3628 = vdwg.mxu0
  %3629 = vmatpush.bf16.msra.mxu0 0
  %3630 = vmatpush.bf16.msra.mxu0 0
  %3631 = vmatpush.bf16.msra.mxu0 0
  %3632 = vmatpush.bf16.msra.mxu0 0
  %3633 = vmatpush.bf16.msra.mxu0 0
  %3634 = vmatpush.bf16.msra.mxu0 0
  %3635 = vmatpush.bf16.msra.mxu0 %v1806
  %3636 = vmatpush.bf16.msra.mxu0 %v1799
  %3637 = vmatmul.bf16.gmra.mxu0 %v2104
  %v3638 = vpop.f32.mrf.mxu0
  %v3639 = vadd.f32 %v3596, %v3638
  %v3640 = vpop.f32.mrf.mxu0
  %v3641 = vadd.f32 %v3598, %v3640
  %3642 = vmatmul.bf16.gmra.mxu0 %v2107
  %v3643 = vpop.f32.mrf.mxu0
  %v3644 = vadd.f32 %v3601, %v3643
  %v3645 = vpop.f32.mrf.mxu0
  %v3646 = vadd.f32 %v3603, %v3645
  %3647 = vmatmul.bf16.gmra.mxu0 %v2110
  %v3648 = vpop.f32.mrf.mxu0
  %v3649 = vadd.f32 %v3606, %v3648
  %v3650 = vpop.f32.mrf.mxu0
  %v3651 = vadd.f32 %v3608, %v3650
  %3652 = vmatmul.bf16.gmra.mxu0 %v2113
  %v3653 = vpop.f32.mrf.mxu0
  %v3654 = vadd.f32 %v3611, %v3653
  %v3655 = vpop.f32.mrf.mxu0
  %v3656 = vadd.f32 %v3613, %v3655
  %3657 = vmatmul.bf16.gmra.mxu0 %v2116
  %v3658 = vpop.f32.mrf.mxu0
  %v3659 = vadd.f32 %v3616, %v3658
  %v3660 = vpop.f32.mrf.mxu0
  %v3661 = vadd.f32 %v3618, %v3660
  %3662 = vmatmul.bf16.gmra.mxu0 %v2119
  %v3663 = vpop.f32.mrf.mxu0
  %v3664 = vadd.f32 %v3621, %v3663
  %v3665 = vpop.f32.mrf.mxu0
  %v3666 = vadd.f32 %v3623, %v3665
  %3667 = vmatmul.bf16.gmra.mxu0 %v2122
  %v3668 = vpop.f32.mrf.mxu0
  %v3669 = vadd.f32 %v3626, %v3668
  %v3670 = vpop.f32.mrf.mxu0
  %3671 = vdwg.mxu0
  %3672 = vmatpush.bf16.msra.mxu0 %v1569
  %3673 = vmatpush.bf16.msra.mxu0 %v1562
  %3674 = vmatpush.bf16.msra.mxu0 %v1555
  %3675 = vmatpush.bf16.msra.mxu0 %v1548
  %3676 = vmatpush.bf16.msra.mxu0 %v1541
  %3677 = vmatpush.bf16.msra.mxu0 %v1534
  %3678 = vmatpush.bf16.msra.mxu0 %v1527
  %3679 = vmatpush.bf16.msra.mxu0 %v1520
  %3680 = vmatmul.bf16.gmra.mxu0 %v513
  %v3681 = vpop.f32.mrf.mxu0
  %v3682 = vadd.f32 0.0, %v3681
  %v3683 = vpop.f32.mrf.mxu0
  %v3684 = vadd.f32 0.0, %v3683
  %3685 = vmatmul.bf16.gmra.mxu0 %v519
  %v3686 = vpop.f32.mrf.mxu0
  %v3687 = vadd.f32 0.0, %v3686
  %v3688 = vpop.f32.mrf.mxu0
  %v3689 = vadd.f32 0.0, %v3688
  %3690 = vmatmul.bf16.gmra.mxu0 %v525
  %v3691 = vpop.f32.mrf.mxu0
  %v3692 = vadd.f32 0.0, %v3691
  %v3693 = vpop.f32.mrf.mxu0
  %v3694 = vadd.f32 0.0, %v3693
  %3695 = vmatmul.bf16.gmra.mxu0 %v531
  %v3696 = vpop.f32.mrf.mxu0
  %v3697 = vadd.f32 0.0, %v3696
  %v3698 = vpop.f32.mrf.mxu0
  %v3699 = vadd.f32 0.0, %v3698
  %3700 = vmatmul.bf16.gmra.mxu0 %v537
  %v3701 = vpop.f32.mrf.mxu0
  %v3702 = vadd.f32 0.0, %v3701
  %v3703 = vpop.f32.mrf.mxu0
  %v3704 = vadd.f32 0.0, %v3703
  %3705 = vmatmul.bf16.gmra.mxu0 %v543
  %v3706 = vpop.f32.mrf.mxu0
  %v3707 = vadd.f32 0.0, %v3706
  %v3708 = vpop.f32.mrf.mxu0
  %v3709 = vadd.f32 0.0, %v3708
  %3710 = vmatmul.bf16.gmra.mxu0 %v549
  %v3711 = vpop.f32.mrf.mxu0
  %v3712 = vadd.f32 0.0, %v3711
  %v3713 = vpop.f32.mrf.mxu0
  %3714 = vdwg.mxu0
  %3715 = vmatpush.bf16.msra.mxu0 %v1625
  %3716 = vmatpush.bf16.msra.mxu0 %v1618
  %3717 = vmatpush.bf16.msra.mxu0 %v1611
  %3718 = vmatpush.bf16.msra.mxu0 %v1604
  %3719 = vmatpush.bf16.msra.mxu0 %v1597
  %3720 = vmatpush.bf16.msra.mxu0 %v1590
  %3721 = vmatpush.bf16.msra.mxu0 %v1583
  %3722 = vmatpush.bf16.msra.mxu0 %v1576
  %3723 = vmatmul.bf16.gmra.mxu0 %v514
  %v3724 = vpop.f32.mrf.mxu0
  %v3725 = vadd.f32 %v3682, %v3724
  %v3726 = vpop.f32.mrf.mxu0
  %v3727 = vadd.f32 %v3684, %v3726
  %3728 = vmatmul.bf16.gmra.mxu0 %v520
  %v3729 = vpop.f32.mrf.mxu0
  %v3730 = vadd.f32 %v3687, %v3729
  %v3731 = vpop.f32.mrf.mxu0
  %v3732 = vadd.f32 %v3689, %v3731
  %3733 = vmatmul.bf16.gmra.mxu0 %v526
  %v3734 = vpop.f32.mrf.mxu0
  %v3735 = vadd.f32 %v3692, %v3734
  %v3736 = vpop.f32.mrf.mxu0
  %v3737 = vadd.f32 %v3694, %v3736
  %3738 = vmatmul.bf16.gmra.mxu0 %v532
  %v3739 = vpop.f32.mrf.mxu0
  %v3740 = vadd.f32 %v3697, %v3739
  %v3741 = vpop.f32.mrf.mxu0
  %v3742 = vadd.f32 %v3699, %v3741
  %3743 = vmatmul.bf16.gmra.mxu0 %v538
  %v3744 = vpop.f32.mrf.mxu0
  %v3745 = vadd.f32 %v3702, %v3744
  %v3746 = vpop.f32.mrf.mxu0
  %v3747 = vadd.f32 %v3704, %v3746
  %3748 = vmatmul.bf16.gmra.mxu0 %v544
  %v3749 = vpop.f32.mrf.mxu0
  %v3750 = vadd.f32 %v3707, %v3749
  %v3751 = vpop.f32.mrf.mxu0
  %v3752 = vadd.f32 %v3709, %v3751
  %3753 = vmatmul.bf16.gmra.mxu0 %v550
  %v3754 = vpop.f32.mrf.mxu0
  %v3755 = vadd.f32 %v3712, %v3754
  %v3756 = vpop.f32.mrf.mxu0
  %3757 = vdwg.mxu0
  %3758 = vmatpush.bf16.msra.mxu0 %v1681
  %3759 = vmatpush.bf16.msra.mxu0 %v1674
  %3760 = vmatpush.bf16.msra.mxu0 %v1667
  %3761 = vmatpush.bf16.msra.mxu0 %v1660
  %3762 = vmatpush.bf16.msra.mxu0 %v1653
  %3763 = vmatpush.bf16.msra.mxu0 %v1646
  %3764 = vmatpush.bf16.msra.mxu0 %v1639
  %3765 = vmatpush.bf16.msra.mxu0 %v1632
  %3766 = vmatmul.bf16.gmra.mxu0 %v515
  %v3767 = vpop.f32.mrf.mxu0
  %v3768 = vadd.f32 %v3725, %v3767
  %v3769 = vpop.f32.mrf.mxu0
  %v3770 = vadd.f32 %v3727, %v3769
  %3771 = vmatmul.bf16.gmra.mxu0 %v521
  %v3772 = vpop.f32.mrf.mxu0
  %v3773 = vadd.f32 %v3730, %v3772
  %v3774 = vpop.f32.mrf.mxu0
  %v3775 = vadd.f32 %v3732, %v3774
  %3776 = vmatmul.bf16.gmra.mxu0 %v527
  %v3777 = vpop.f32.mrf.mxu0
  %v3778 = vadd.f32 %v3735, %v3777
  %v3779 = vpop.f32.mrf.mxu0
  %v3780 = vadd.f32 %v3737, %v3779
  %3781 = vmatmul.bf16.gmra.mxu0 %v533
  %v3782 = vpop.f32.mrf.mxu0
  %v3783 = vadd.f32 %v3740, %v3782
  %v3784 = vpop.f32.mrf.mxu0
  %v3785 = vadd.f32 %v3742, %v3784
  %3786 = vmatmul.bf16.gmra.mxu0 %v539
  %v3787 = vpop.f32.mrf.mxu0
  %v3788 = vadd.f32 %v3745, %v3787
  %v3789 = vpop.f32.mrf.mxu0
  %v3790 = vadd.f32 %v3747, %v3789
  %3791 = vmatmul.bf16.gmra.mxu0 %v545
  %v3792 = vpop.f32.mrf.mxu0
  %v3793 = vadd.f32 %v3750, %v3792
  %v3794 = vpop.f32.mrf.mxu0
  %v3795 = vadd.f32 %v3752, %v3794
  %3796 = vmatmul.bf16.gmra.mxu0 %v551
  %v3797 = vpop.f32.mrf.mxu0
  %v3798 = vadd.f32 %v3755, %v3797
  %v3799 = vpop.f32.mrf.mxu0
  %3800 = vdwg.mxu0
  %3801 = vmatpush.bf16.msra.mxu0 %v1737
  %3802 = vmatpush.bf16.msra.mxu0 %v1730
  %3803 = vmatpush.bf16.msra.mxu0 %v1723
  %3804 = vmatpush.bf16.msra.mxu0 %v1716
  %3805 = vmatpush.bf16.msra.mxu0 %v1709
  %3806 = vmatpush.bf16.msra.mxu0 %v1702
  %3807 = vmatpush.bf16.msra.mxu0 %v1695
  %3808 = vmatpush.bf16.msra.mxu0 %v1688
  %3809 = vmatmul.bf16.gmra.mxu0 %v516
  %v3810 = vpop.f32.mrf.mxu0
  %v3811 = vadd.f32 %v3768, %v3810
  %v3812 = vpop.f32.mrf.mxu0
  %v3813 = vadd.f32 %v3770, %v3812
  %3814 = vmatmul.bf16.gmra.mxu0 %v522
  %v3815 = vpop.f32.mrf.mxu0
  %v3816 = vadd.f32 %v3773, %v3815
  %v3817 = vpop.f32.mrf.mxu0
  %v3818 = vadd.f32 %v3775, %v3817
  %3819 = vmatmul.bf16.gmra.mxu0 %v528
  %v3820 = vpop.f32.mrf.mxu0
  %v3821 = vadd.f32 %v3778, %v3820
  %v3822 = vpop.f32.mrf.mxu0
  %v3823 = vadd.f32 %v3780, %v3822
  %3824 = vmatmul.bf16.gmra.mxu0 %v534
  %v3825 = vpop.f32.mrf.mxu0
  %v3826 = vadd.f32 %v3783, %v3825
  %v3827 = vpop.f32.mrf.mxu0
  %v3828 = vadd.f32 %v3785, %v3827
  %3829 = vmatmul.bf16.gmra.mxu0 %v540
  %v3830 = vpop.f32.mrf.mxu0
  %v3831 = vadd.f32 %v3788, %v3830
  %v3832 = vpop.f32.mrf.mxu0
  %v3833 = vadd.f32 %v3790, %v3832
  %3834 = vmatmul.bf16.gmra.mxu0 %v546
  %v3835 = vpop.f32.mrf.mxu0
  %v3836 = vadd.f32 %v3793, %v3835
  %v3837 = vpop.f32.mrf.mxu0
  %v3838 = vadd.f32 %v3795, %v3837
  %3839 = vmatmul.bf16.gmra.mxu0 %v552
  %v3840 = vpop.f32.mrf.mxu0
  %v3841 = vadd.f32 %v3798, %v3840
  %v3842 = vpop.f32.mrf.mxu0
  %3843 = vdwg.mxu0
  %3844 = vmatpush.bf16.msra.mxu0 %v1793
  %3845 = vmatpush.bf16.msra.mxu0 %v1786
  %3846 = vmatpush.bf16.msra.mxu0 %v1779
  %3847 = vmatpush.bf16.msra.mxu0 %v1772
  %3848 = vmatpush.bf16.msra.mxu0 %v1765
  %3849 = vmatpush.bf16.msra.mxu0 %v1758
  %3850 = vmatpush.bf16.msra.mxu0 %v1751
  %3851 = vmatpush.bf16.msra.mxu0 %v1744
  %3852 = vmatmul.bf16.gmra.mxu0 %v517
  %v3853 = vpop.f32.mrf.mxu0
  %v3854 = vadd.f32 %v3811, %v3853
  %v3855 = vpop.f32.mrf.mxu0
  %v3856 = vadd.f32 %v3813, %v3855
  %3857 = vmatmul.bf16.gmra.mxu0 %v523
  %v3858 = vpop.f32.mrf.mxu0
  %v3859 = vadd.f32 %v3816, %v3858
  %v3860 = vpop.f32.mrf.mxu0
  %v3861 = vadd.f32 %v3818, %v3860
  %3862 = vmatmul.bf16.gmra.mxu0 %v529
  %v3863 = vpop.f32.mrf.mxu0
  %v3864 = vadd.f32 %v3821, %v3863
  %v3865 = vpop.f32.mrf.mxu0
  %v3866 = vadd.f32 %v3823, %v3865
  %3867 = vmatmul.bf16.gmra.mxu0 %v535
  %v3868 = vpop.f32.mrf.mxu0
  %v3869 = vadd.f32 %v3826, %v3868
  %v3870 = vpop.f32.mrf.mxu0
  %v3871 = vadd.f32 %v3828, %v3870
  %3872 = vmatmul.bf16.gmra.mxu0 %v541
  %v3873 = vpop.f32.mrf.mxu0
  %v3874 = vadd.f32 %v3831, %v3873
  %v3875 = vpop.f32.mrf.mxu0
  %v3876 = vadd.f32 %v3833, %v3875
  %3877 = vmatmul.bf16.gmra.mxu0 %v547
  %v3878 = vpop.f32.mrf.mxu0
  %v3879 = vadd.f32 %v3836, %v3878
  %v3880 = vpop.f32.mrf.mxu0
  %v3881 = vadd.f32 %v3838, %v3880
  %3882 = vmatmul.bf16.gmra.mxu0 %v553
  %v3883 = vpop.f32.mrf.mxu0
  %v3884 = vadd.f32 %v3841, %v3883
  %v3885 = vpop.f32.mrf.mxu0
  %3886 = vdwg.mxu0
  %3887 = vmatpush.bf16.msra.mxu0 0
  %3888 = vmatpush.bf16.msra.mxu0 0
  %3889 = vmatpush.bf16.msra.mxu0 0
  %3890 = vmatpush.bf16.msra.mxu0 0
  %3891 = vmatpush.bf16.msra.mxu0 0
  %3892 = vmatpush.bf16.msra.mxu0 0
  %3893 = vmatpush.bf16.msra.mxu0 %v1807
  %3894 = vmatpush.bf16.msra.mxu0 %v1800
  %3895 = vmatmul.bf16.gmra.mxu0 %v2104
  %v3896 = vpop.f32.mrf.mxu0
  %v3897 = vadd.f32 %v3854, %v3896
  %v3898 = vpop.f32.mrf.mxu0
  %v3899 = vadd.f32 %v3856, %v3898
  %3900 = vmatmul.bf16.gmra.mxu0 %v2107
  %v3901 = vpop.f32.mrf.mxu0
  %v3902 = vadd.f32 %v3859, %v3901
  %v3903 = vpop.f32.mrf.mxu0
  %v3904 = vadd.f32 %v3861, %v3903
  %3905 = vmatmul.bf16.gmra.mxu0 %v2110
  %v3906 = vpop.f32.mrf.mxu0
  %v3907 = vadd.f32 %v3864, %v3906
  %v3908 = vpop.f32.mrf.mxu0
  %v3909 = vadd.f32 %v3866, %v3908
  %3910 = vmatmul.bf16.gmra.mxu0 %v2113
  %v3911 = vpop.f32.mrf.mxu0
  %v3912 = vadd.f32 %v3869, %v3911
  %v3913 = vpop.f32.mrf.mxu0
  %v3914 = vadd.f32 %v3871, %v3913
  %3915 = vmatmul.bf16.gmra.mxu0 %v2116
  %v3916 = vpop.f32.mrf.mxu0
  %v3917 = vadd.f32 %v3874, %v3916
  %v3918 = vpop.f32.mrf.mxu0
  %v3919 = vadd.f32 %v3876, %v3918
  %3920 = vmatmul.bf16.gmra.mxu0 %v2119
  %v3921 = vpop.f32.mrf.mxu0
  %v3922 = vadd.f32 %v3879, %v3921
  %v3923 = vpop.f32.mrf.mxu0
  %v3924 = vadd.f32 %v3881, %v3923
  %3925 = vmatmul.bf16.gmra.mxu0 %v2122
  %v3926 = vpop.f32.mrf.mxu0
  %v3927 = vadd.f32 %v3884, %v3926
  %v3928 = vpop.f32.mrf.mxu0
  %3929 = vdwg.mxu0
  %3930 = vst [vmem:[#allocation2] sm:$0xff] %v2349
  %3931 = vst [vmem:[#allocation2 + $0x8] sm:$0xff] %v2607
  %3932 = vst [vmem:[#allocation2 + $0x10] sm:$0xff] %v2865
  %3933 = vst [vmem:[#allocation2 + $0x18] sm:$0xff] %v3123
  %3934 = vst [vmem:[#allocation2 + $0x20] sm:$0xff] %v3381
  %3935 = vst [vmem:[#allocation2 + $0x28] sm:$0xff] %v3639
  %vm3936 = vcmask 523264
  %3937 = vst.msk [vmem:[#allocation2 + $0x30] sm:$0xff] %vm3936, %v3897
  %3938 = vst [vmem:[#allocation2 + $0x38] sm:$0xff] %v2351
  %3939 = vst [vmem:[#allocation2 + $0x40] sm:$0xff] %v2609
  %3940 = vst [vmem:[#allocation2 + $0x48] sm:$0xff] %v2867
  %3941 = vst [vmem:[#allocation2 + $0x50] sm:$0xff] %v3125
  %3942 = vst [vmem:[#allocation2 + $0x58] sm:$0xff] %v3383
  %3943 = vst [vmem:[#allocation2 + $0x60] sm:$0xff] %v3641
  %3944 = vst.msk [vmem:[#allocation2 + $0x68] sm:$0xff] %vm3936, %v3899
  %3945 = vst [vmem:[#allocation2 + $0x70] sm:$0xff] %v2354
  %3946 = vst [vmem:[#allocation2 + $0x78] sm:$0xff] %v2612
  %3947 = vst [vmem:[#allocation2 + $0x80] sm:$0xff] %v2870
  %3948 = vst [vmem:[#allocation2 + $0x88] sm:$0xff] %v3128
  %3949 = vst [vmem:[#allocation2 + $0x90] sm:$0xff] %v3386
  %3950 = vst [vmem:[#allocation2 + $0x98] sm:$0xff] %v3644
  %3951 = vst.msk [vmem:[#allocation2 + $0xa0] sm:$0xff] %vm3936, %v3902
  %3952 = vst [vmem:[#allocation2 + $0xa8] sm:$0xff] %v2356
  %3953 = vst [vmem:[#allocation2 + $0xb0] sm:$0xff] %v2614
  %3954 = vst [vmem:[#allocation2 + $0xb8] sm:$0xff] %v2872
  %3955 = vst [vmem:[#allocation2 + $0xc0] sm:$0xff] %v3130
  %3956 = vst [vmem:[#allocation2 + $0xc8] sm:$0xff] %v3388
  %3957 = vst [vmem:[#allocation2 + $0xd0] sm:$0xff] %v3646
  %3958 = vst.msk [vmem:[#allocation2 + $0xd8] sm:$0xff] %vm3936, %v3904
  %3959 = vst [vmem:[#allocation2 + $0xe0] sm:$0xff] %v2359
  %3960 = vst [vmem:[#allocation2 + $0xe8] sm:$0xff] %v2617
  %3961 = vst [vmem:[#allocation2 + $0xf0] sm:$0xff] %v2875
  %3962 = vst [vmem:[#allocation2 + $0xf8] sm:$0xff] %v3133
  %3963 = vst [vmem:[#allocation2 + $0x100] sm:$0xff] %v3391
  %3964 = vst [vmem:[#allocation2 + $0x108] sm:$0xff] %v3649
  %3965 = vst.msk [vmem:[#allocation2 + $0x110] sm:$0xff] %vm3936, %v3907
  %3966 = vst [vmem:[#allocation2 + $0x118] sm:$0xff] %v2361
  %3967 = vst [vmem:[#allocation2 + $0x120] sm:$0xff] %v2619
  %3968 = vst [vmem:[#allocation2 + $0x128] sm:$0xff] %v2877
  %3969 = vst [vmem:[#allocation2 + $0x130] sm:$0xff] %v3135
  %3970 = vst [vmem:[#allocation2 + $0x138] sm:$0xff] %v3393
  %3971 = vst [vmem:[#allocation2 + $0x140] sm:$0xff] %v3651
  %3972 = vst.msk [vmem:[#allocation2 + $0x148] sm:$0xff] %vm3936, %v3909
  %3973 = vst [vmem:[#allocation2 + $0x150] sm:$0xff] %v2364
  %3974 = vst [vmem:[#allocation2 + $0x158] sm:$0xff] %v2622
  %3975 = vst [vmem:[#allocation2 + $0x160] sm:$0xff] %v2880
  %3976 = vst [vmem:[#allocation2 + $0x168] sm:$0xff] %v3138
  %3977 = vst [vmem:[#allocation2 + $0x170] sm:$0xff] %v3396
  %3978 = vst [vmem:[#allocation2 + $0x178] sm:$0xff] %v3654
  %3979 = vst.msk [vmem:[#allocation2 + $0x180] sm:$0xff] %vm3936, %v3912
  %3980 = vst [vmem:[#allocation2 + $0x188] sm:$0xff] %v2366
  %3981 = vst [vmem:[#allocation2 + $0x190] sm:$0xff] %v2624
  %3982 = vst [vmem:[#allocation2 + $0x198] sm:$0xff] %v2882
  %3983 = vst [vmem:[#allocation2 + $0x1a0] sm:$0xff] %v3140
  %3984 = vst [vmem:[#allocation2 + $0x1a8] sm:$0xff] %v3398
  %3985 = vst [vmem:[#allocation2 + $0x1b0] sm:$0xff] %v3656
  %3986 = vst.msk [vmem:[#allocation2 + $0x1b8] sm:$0xff] %vm3936, %v3914
  %3987 = vst [vmem:[#allocation2 + $0x1c0] sm:$0xff] %v2369
  %3988 = vst [vmem:[#allocation2 + $0x1c8] sm:$0xff] %v2627
  %3989 = vst [vmem:[#allocation2 + $0x1d0] sm:$0xff] %v2885
  %3990 = vst [vmem:[#allocation2 + $0x1d8] sm:$0xff] %v3143
  %3991 = vst [vmem:[#allocation2 + $0x1e0] sm:$0xff] %v3401
  %3992 = vst [vmem:[#allocation2 + $0x1e8] sm:$0xff] %v3659
  %3993 = vst.msk [vmem:[#allocation2 + $0x1f0] sm:$0xff] %vm3936, %v3917
  %3994 = vst [vmem:[#allocation2 + $0x1f8] sm:$0xff] %v2371
  %3995 = vst [vmem:[#allocation2 + $0x200] sm:$0xff] %v2629
  %3996 = vst [vmem:[#allocation2 + $0x208] sm:$0xff] %v2887
  %3997 = vst [vmem:[#allocation2 + $0x210] sm:$0xff] %v3145
  %3998 = vst [vmem:[#allocation2 + $0x218] sm:$0xff] %v3403
  %3999 = vst [vmem:[#allocation2 + $0x220] sm:$0xff] %v3661
  %4000 = vst.msk [vmem:[#allocation2 + $0x228] sm:$0xff] %vm3936, %v3919
  %4001 = vst [vmem:[#allocation2 + $0x230] sm:$0xff] %v2374
  %4002 = vst [vmem:[#allocation2 + $0x238] sm:$0xff] %v2632
  %4003 = vst [vmem:[#allocation2 + $0x240] sm:$0xff] %v2890
  %4004 = vst [vmem:[#allocation2 + $0x248] sm:$0xff] %v3148
  %4005 = vst [vmem:[#allocation2 + $0x250] sm:$0xff] %v3406
  %4006 = vst [vmem:[#allocation2 + $0x258] sm:$0xff] %v3664
  %4007 = vst.msk [vmem:[#allocation2 + $0x260] sm:$0xff] %vm3936, %v3922
  %4008 = vst [vmem:[#allocation2 + $0x268] sm:$0xff] %v2376
  %4009 = vst [vmem:[#allocation2 + $0x270] sm:$0xff] %v2634
  %4010 = vst [vmem:[#allocation2 + $0x278] sm:$0xff] %v2892
  %4011 = vst [vmem:[#allocation2 + $0x280] sm:$0xff] %v3150
  %4012 = vst [vmem:[#allocation2 + $0x288] sm:$0xff] %v3408
  %4013 = vst [vmem:[#allocation2 + $0x290] sm:$0xff] %v3666
  %4014 = vst.msk [vmem:[#allocation2 + $0x298] sm:$0xff] %vm3936, %v3924
  %4015 = vst [vmem:[#allocation2 + $0x2a0] sm:$0xff] %v2379
  %4016 = vst [vmem:[#allocation2 + $0x2a8] sm:$0xff] %v2637
  %4017 = vst [vmem:[#allocation2 + $0x2b0] sm:$0xff] %v2895
  %4018 = vst [vmem:[#allocation2 + $0x2b8] sm:$0xff] %v3153
  %4019 = vst [vmem:[#allocation2 + $0x2c0] sm:$0xff] %v3411
  %4020 = vst [vmem:[#allocation2 + $0x2c8] sm:$0xff] %v3669
  %4021 = vst.msk [vmem:[#allocation2 + $0x2d0] sm:$0xff] %vm3936, %v3927
  %v4022 = vld [vmem:[%s2] sm:$0xf]
  %v4023 = vld [vmem:[#allocation2] sm:$0xf]
  %v4024 = vld [vmem:[#allocation2 + $0x8] sm:$0xf]
  %v4025 = vld [vmem:[#allocation2 + $0x10] sm:$0xf]
  %v4026 = vld [vmem:[#allocation2 + $0x18] sm:$0xf]
  %v4027 = vld [vmem:[#allocation2 + $0x20] sm:$0xf]
  %v4028 = vld [vmem:[#allocation2 + $0x28] sm:$0xf]
  %v4029 = vld [vmem:[#allocation2 + $0x30] sm:$0xf]
  %v4030 = vld [vmem:[#allocation2] sm:$0xf0]
  %v4031 = vld [vmem:[#allocation2 + $0x8] sm:$0xf0]
  %v4032 = vld [vmem:[#allocation2 + $0x10] sm:$0xf0]
  %v4033 = vld [vmem:[#allocation2 + $0x18] sm:$0xf0]
  %v4034 = vld [vmem:[#allocation2 + $0x20] sm:$0xf0]
  %v4035 = vld [vmem:[#allocation2 + $0x28] sm:$0xf0]
  %v4036 = vld [vmem:[#allocation2 + $0x30] sm:$0xf0]
  %v4044 = vrot.slane %v4030, 4
  %v4045 = vrot.slane %v4031, 4
  %v4046 = vrot.slane %v4032, 4
  %v4047 = vrot.slane %v4033, 4
  %v4048 = vrot.slane %v4034, 4
  %v4049 = vrot.slane %v4035, 4
  %v4050 = vrot.slane %v4036, 4
  %v4058 = vmax.f32 %v4023, %v4044
  %v4059 = vmax.f32 %v4024, %v4045
  %v4060 = vmax.f32 %v4025, %v4046
  %v4061 = vmax.f32 %v4026, %v4047
  %v4062 = vmax.f32 %v4027, %v4048
  %v4063 = vmax.f32 %v4028, %v4049
  %v4064 = vmax.f32 %v4029, %v4050
  %4069 = vrot.lane.b32.xlu0 %v4061, 96
  %v4070 = vpop.permute.xlu0 %4069
  %4071 = vrot.lane.b32.xlu0 %v4062, 96
  %v4072 = vpop.permute.xlu0 %4071
  %4073 = vrot.lane.b32.xlu0 %v4063, 96
  %v4074 = vpop.permute.xlu0 %4073
  %4075 = vrot.lane.b32.xlu0 %v4064, 96
  %v4076 = vpop.permute.xlu0 %4075
  %vm4077 = vcmask 785408
  %v4078 = vsel %vm4077, %v4070, %v4072
  %v4079 = vsel %vm4077, %v4072, %v4074
  %v4080 = vsel %vm4077, %v4074, %v4076
  %v4085 = vmax.f32 %v4058, %v4078
  %v4086 = vmax.f32 %v4059, %v4079
  %v4087 = vmax.f32 %v4060, %v4080
  %v4088 = vmax.f32 %v4061, %v4076
  %v4090 = vperm.slane %v4022, 0
  %v4091 = vperm.slane %v4022, 1
  %v4092 = vperm.slane %v4022, 2
  %v4093 = vperm.slane %v4022, 3
  %v4098 = vadd.f32 %v4085, %v4090
  %v4099 = vadd.f32 %v4086, %v4091
  %v4100 = vadd.f32 %v4087, %v4092
  %v4101 = vadd.f32 %v4088, %v4093
  %v4102 = vmax.f32 %v4098, 0.0
  %v4103 = vmax.f32 %v4099, 0.0
  %v4104 = vmax.f32 %v4100, 0.0
  %v4105 = vmax.f32 %v4101, 0.0
  %v4106 = vpack.c.bf16 %v4102, %v4102
  %v4107 = vpack.c.bf16 %v4103, %v4103
  %v4108 = vpack.c.bf16 %v4104, %v4104
  %v4109 = vpack.c.bf16 %v4105, %v4105
  %v4110 = vld [vmem:[%s3] sm:$0xf]
  %v4111 = vld [vmem:[%s3 + $0x4] sm:$0xf]
  %v4112 = vld [vmem:[%s3 + $0x8] sm:$0xf]
  %v4113 = vld [vmem:[%s3 + $0xc] sm:$0xf]
  %v4114 = vld [vmem:[%s3 + $0x10] sm:$0xf]
  %v4115 = vld [vmem:[%s3 + $0x14] sm:$0xf]
  %v4116 = vld [vmem:[%s3 + $0x18] sm:$0xf]
  %v4117 = vld [vmem:[%s3 + $0x1c] sm:$0xf]
  %v4118 = vld [vmem:[%s3 + $0x20] sm:$0xf]
  %v4119 = vld [vmem:[%s3 + $0x24] sm:$0xf]
  %v4120 = vld [vmem:[%s3 + $0x28] sm:$0xf]
  %v4121 = vld [vmem:[%s3 + $0x2c] sm:$0xf]
  %v4122 = vld [vmem:[%s3 + $0x30] sm:$0xf]
  %v4123 = vld [vmem:[%s3 + $0x34] sm:$0xf]
  %v4124 = vld [vmem:[%s3 + $0x38] sm:$0xf]
  %v4125 = vld [vmem:[%s3 + $0x3c] sm:$0xf]
  %v4126 = vld [vmem:[%s3 + $0x40] sm:$0xf]
  %v4127 = vld [vmem:[%s3 + $0x44] sm:$0xf]
  %v4128 = vld [vmem:[%s3 + $0x48] sm:$0xf]
  %v4129 = vld [vmem:[%s3 + $0x4c] sm:$0xf]
  %v4130 = vld [vmem:[%s3 + $0x50] sm:$0xf]
  %v4131 = vld [vmem:[%s3 + $0x54] sm:$0xf]
  %v4132 = vld [vmem:[%s3 + $0x58] sm:$0xf]
  %v4133 = vld [vmem:[%s3 + $0x5c] sm:$0xf]
  %v4134 = vld [vmem:[%s3 + $0x60] sm:$0xf]
  %v4135 = vld [vmem:[%s3 + $0x64] sm:$0xf]
  %v4136 = vld [vmem:[%s3 + $0x68] sm:$0xf]
  %v4137 = vld [vmem:[%s3 + $0x6c] sm:$0xf]
  %v4138 = vld [vmem:[%s3 + $0x70] sm:$0xf]
  %v4139 = vld [vmem:[%s3 + $0x74] sm:$0xf]
  %v4140 = vld [vmem:[%s3 + $0x78] sm:$0xf]
  %v4141 = vld [vmem:[%s3 + $0x7c] sm:$0xf]
  %v4142 = vld [vmem:[%s3 + $0x80] sm:$0xf]
  %v4143 = vld [vmem:[%s3 + $0x84] sm:$0xf]
  %v4144 = vld [vmem:[%s3 + $0x88] sm:$0xf]
  %v4145 = vld [vmem:[%s3 + $0x8c] sm:$0xf]
  %v4146 = vld [vmem:[%s3 + $0x90] sm:$0xf]
  %v4147 = vld [vmem:[%s3 + $0x94] sm:$0xf]
  %v4148 = vld [vmem:[%s3 + $0x98] sm:$0xf]
  %v4149 = vld [vmem:[%s3 + $0x9c] sm:$0xf]
  %v4150 = vld [vmem:[%s3 + $0xa0] sm:$0xf]
  %v4151 = vld [vmem:[%s3 + $0xa4] sm:$0xf]
  %v4152 = vld [vmem:[%s3 + $0xa8] sm:$0xf]
  %v4153 = vld [vmem:[%s3 + $0xac] sm:$0xf]
  %v4154 = vld [vmem:[%s3 + $0xb0] sm:$0xf]
  %v4155 = vld [vmem:[%s3 + $0xb4] sm:$0xf]
  %v4156 = vld [vmem:[%s3 + $0xb8] sm:$0xf]
  %v4157 = vld [vmem:[%s3 + $0xbc] sm:$0xf]
  %v4158 = vld [vmem:[%s3 + $0xc0] sm:$0xf]
  %v4159 = vld [vmem:[%s3 + $0xc4] sm:$0xf]
  %v4160 = vld [vmem:[%s3 + $0xc8] sm:$0xf]
  %v4161 = vld [vmem:[%s3 + $0xcc] sm:$0xf]
  %v4162 = vld [vmem:[#allocation2 + $0x38] sm:$0xf]
  %v4163 = vld [vmem:[#allocation2 + $0x40] sm:$0xf]
  %v4164 = vld [vmem:[#allocation2 + $0x48] sm:$0xf]
  %v4165 = vld [vmem:[#allocation2 + $0x50] sm:$0xf]
  %v4166 = vld [vmem:[#allocation2 + $0x58] sm:$0xf]
  %v4167 = vld [vmem:[#allocation2 + $0x60] sm:$0xf]
  %v4168 = vld [vmem:[#allocation2 + $0x68] sm:$0xf]
  %v4169 = vld [vmem:[#allocation2 + $0x38] sm:$0xf0]
  %v4170 = vld [vmem:[#allocation2 + $0x40] sm:$0xf0]
  %v4171 = vld [vmem:[#allocation2 + $0x48] sm:$0xf0]
  %v4172 = vld [vmem:[#allocation2 + $0x50] sm:$0xf0]
  %v4173 = vld [vmem:[#allocation2 + $0x58] sm:$0xf0]
  %v4174 = vld [vmem:[#allocation2 + $0x60] sm:$0xf0]
  %v4175 = vld [vmem:[#allocation2 + $0x68] sm:$0xf0]
  %v4183 = vrot.slane %v4169, 4
  %v4184 = vrot.slane %v4170, 4
  %v4185 = vrot.slane %v4171, 4
  %v4186 = vrot.slane %v4172, 4
  %v4187 = vrot.slane %v4173, 4
  %v4188 = vrot.slane %v4174, 4
  %v4189 = vrot.slane %v4175, 4
  %v4197 = vmax.f32 %v4162, %v4183
  %v4198 = vmax.f32 %v4163, %v4184
  %v4199 = vmax.f32 %v4164, %v4185
  %v4200 = vmax.f32 %v4165, %v4186
  %v4201 = vmax.f32 %v4166, %v4187
  %v4202 = vmax.f32 %v4167, %v4188
  %v4203 = vmax.f32 %v4168, %v4189
  %4208 = vrot.lane.b32.xlu0 %v4200, 96
  %v4209 = vpop.permute.xlu0 %4208
  %4210 = vrot.lane.b32.xlu0 %v4201, 96
  %v4211 = vpop.permute.xlu0 %4210
  %4212 = vrot.lane.b32.xlu0 %v4202, 96
  %v4213 = vpop.permute.xlu0 %4212
  %4214 = vrot.lane.b32.xlu0 %v4203, 96
  %v4215 = vpop.permute.xlu0 %4214
  %v4216 = vsel %vm4077, %v4209, %v4211
  %v4217 = vsel %vm4077, %v4211, %v4213
  %v4218 = vsel %vm4077, %v4213, %v4215
  %v4223 = vmax.f32 %v4197, %v4216
  %v4224 = vmax.f32 %v4198, %v4217
  %v4225 = vmax.f32 %v4199, %v4218
  %v4226 = vmax.f32 %v4200, %v4215
  %v4227 = vadd.f32 %v4223, %v4090
  %v4228 = vadd.f32 %v4224, %v4091
  %v4229 = vadd.f32 %v4225, %v4092
  %v4230 = vadd.f32 %v4226, %v4093
  %v4231 = vmax.f32 %v4227, 0.0
  %v4232 = vmax.f32 %v4228, 0.0
  %v4233 = vmax.f32 %v4229, 0.0
  %v4234 = vmax.f32 %v4230, 0.0
  %v4235 = vpack.c.bf16 %v4231, %v4231
  %v4236 = vpack.c.bf16 %v4232, %v4232
  %v4237 = vpack.c.bf16 %v4233, %v4233
  %v4238 = vpack.c.bf16 %v4234, %v4234
  %s4239 = scalar_lea.vmem %s3, 208
  %v4240 = vld [vmem:[%s4239] sm:$0xf]
  %v4241 = vld [vmem:[%s4239 + $0x4] sm:$0xf]
  %v4242 = vld [vmem:[%s4239 + $0x8] sm:$0xf]
  %v4243 = vld [vmem:[%s4239 + $0xc] sm:$0xf]
  %v4244 = vld [vmem:[%s4239 + $0x10] sm:$0xf]
  %v4245 = vld [vmem:[%s4239 + $0x14] sm:$0xf]
  %v4246 = vld [vmem:[%s4239 + $0x18] sm:$0xf]
  %v4247 = vld [vmem:[%s4239 + $0x1c] sm:$0xf]
  %v4248 = vld [vmem:[%s4239 + $0x20] sm:$0xf]
  %v4249 = vld [vmem:[%s4239 + $0x24] sm:$0xf]
  %v4250 = vld [vmem:[%s4239 + $0x28] sm:$0xf]
  %v4251 = vld [vmem:[%s4239 + $0x2c] sm:$0xf]
  %v4252 = vld [vmem:[%s4239 + $0x30] sm:$0xf]
  %v4253 = vld [vmem:[%s4239 + $0x34] sm:$0xf]
  %v4254 = vld [vmem:[%s4239 + $0x38] sm:$0xf]
  %v4255 = vld [vmem:[%s4239 + $0x3c] sm:$0xf]
  %v4256 = vld [vmem:[%s4239 + $0x40] sm:$0xf]
  %v4257 = vld [vmem:[%s4239 + $0x44] sm:$0xf]
  %v4258 = vld [vmem:[%s4239 + $0x48] sm:$0xf]
  %v4259 = vld [vmem:[%s4239 + $0x4c] sm:$0xf]
  %v4260 = vld [vmem:[%s4239 + $0x50] sm:$0xf]
  %v4261 = vld [vmem:[%s4239 + $0x54] sm:$0xf]
  %v4262 = vld [vmem:[%s4239 + $0x58] sm:$0xf]
  %v4263 = vld [vmem:[%s4239 + $0x5c] sm:$0xf]
  %v4264 = vld [vmem:[%s4239 + $0x60] sm:$0xf]
  %v4265 = vld [vmem:[%s4239 + $0x64] sm:$0xf]
  %v4266 = vld [vmem:[%s4239 + $0x68] sm:$0xf]
  %v4267 = vld [vmem:[%s4239 + $0x6c] sm:$0xf]
  %v4268 = vld [vmem:[%s4239 + $0x70] sm:$0xf]
  %v4269 = vld [vmem:[%s4239 + $0x74] sm:$0xf]
  %v4270 = vld [vmem:[%s4239 + $0x78] sm:$0xf]
  %v4271 = vld [vmem:[%s4239 + $0x7c] sm:$0xf]
  %v4272 = vld [vmem:[%s4239 + $0x80] sm:$0xf]
  %v4273 = vld [vmem:[%s4239 + $0x84] sm:$0xf]
  %v4274 = vld [vmem:[%s4239 + $0x88] sm:$0xf]
  %v4275 = vld [vmem:[%s4239 + $0x8c] sm:$0xf]
  %v4276 = vld [vmem:[%s4239 + $0x90] sm:$0xf]
  %v4277 = vld [vmem:[%s4239 + $0x94] sm:$0xf]
  %v4278 = vld [vmem:[%s4239 + $0x98] sm:$0xf]
  %v4279 = vld [vmem:[%s4239 + $0x9c] sm:$0xf]
  %v4280 = vld [vmem:[%s4239 + $0xa0] sm:$0xf]
  %v4281 = vld [vmem:[%s4239 + $0xa4] sm:$0xf]
  %v4282 = vld [vmem:[%s4239 + $0xa8] sm:$0xf]
  %v4283 = vld [vmem:[%s4239 + $0xac] sm:$0xf]
  %v4284 = vld [vmem:[%s4239 + $0xb0] sm:$0xf]
  %v4285 = vld [vmem:[%s4239 + $0xb4] sm:$0xf]
  %v4286 = vld [vmem:[%s4239 + $0xb8] sm:$0xf]
  %v4287 = vld [vmem:[%s4239 + $0xbc] sm:$0xf]
  %v4288 = vld [vmem:[%s4239 + $0xc0] sm:$0xf]
  %v4289 = vld [vmem:[%s4239 + $0xc4] sm:$0xf]
  %v4290 = vld [vmem:[%s4239 + $0xc8] sm:$0xf]
  %v4291 = vld [vmem:[%s4239 + $0xcc] sm:$0xf]
  %v4344 = vunpack.c.l.b16 %v4240
  %v4345 = vunpack.c.l.b16 %v4241
  %v4346 = vunpack.c.l.b16 %v4242
  %v4347 = vunpack.c.l.b16 %v4243
  %v4348 = vunpack.c.l.b16 %v4244
  %v4349 = vunpack.c.l.b16 %v4245
  %v4350 = vunpack.c.l.b16 %v4246
  %v4351 = vunpack.c.l.b16 %v4247
  %v4352 = vunpack.c.l.b16 %v4248
  %v4353 = vunpack.c.l.b16 %v4249
  %v4354 = vunpack.c.l.b16 %v4250
  %v4355 = vunpack.c.l.b16 %v4251
  %v4356 = vunpack.c.l.b16 %v4252
  %v4357 = vunpack.c.l.b16 %v4253
  %v4358 = vunpack.c.l.b16 %v4254
  %v4359 = vunpack.c.l.b16 %v4255
  %v4360 = vunpack.c.l.b16 %v4256
  %v4361 = vunpack.c.l.b16 %v4257
  %v4362 = vunpack.c.l.b16 %v4258
  %v4363 = vunpack.c.l.b16 %v4259
  %v4364 = vunpack.c.l.b16 %v4260
  %v4365 = vunpack.c.l.b16 %v4261
  %v4366 = vunpack.c.l.b16 %v4262
  %v4367 = vunpack.c.l.b16 %v4263
  %v4368 = vunpack.c.l.b16 %v4264
  %v4369 = vunpack.c.l.b16 %v4265
  %v4370 = vunpack.c.l.b16 %v4266
  %v4371 = vunpack.c.l.b16 %v4267
  %v4372 = vunpack.c.l.b16 %v4268
  %v4373 = vunpack.c.l.b16 %v4269
  %v4374 = vunpack.c.l.b16 %v4270
  %v4375 = vunpack.c.l.b16 %v4271
  %v4376 = vunpack.c.l.b16 %v4272
  %v4377 = vunpack.c.l.b16 %v4273
  %v4378 = vunpack.c.l.b16 %v4274
  %v4379 = vunpack.c.l.b16 %v4275
  %v4380 = vunpack.c.l.b16 %v4276
  %v4381 = vunpack.c.l.b16 %v4277
  %v4382 = vunpack.c.l.b16 %v4278
  %v4383 = vunpack.c.l.b16 %v4279
  %v4384 = vunpack.c.l.b16 %v4280
  %v4385 = vunpack.c.l.b16 %v4281
  %v4386 = vunpack.c.l.b16 %v4282
  %v4387 = vunpack.c.l.b16 %v4283
  %v4388 = vunpack.c.l.b16 %v4284
  %v4389 = vunpack.c.l.b16 %v4285
  %v4390 = vunpack.c.l.b16 %v4286
  %v4391 = vunpack.c.l.b16 %v4287
  %v4392 = vunpack.c.l.b16 %v4288
  %v4393 = vunpack.c.l.b16 %v4289
  %v4394 = vunpack.c.l.b16 %v4290
  %v4395 = vunpack.c.l.b16 %v4291
  %v4396 = vpack.c.b16 %v4345, %v4344
  %v4397 = vpack.c.b16 %v4347, %v4346
  %v4398 = vpack.c.b16 %v4349, %v4348
  %v4399 = vpack.c.b16 %v4351, %v4350
  %v4400 = vpack.c.b16 %v4353, %v4352
  %v4401 = vpack.c.b16 %v4355, %v4354
  %v4402 = vpack.c.b16 %v4357, %v4356
  %v4403 = vpack.c.b16 %v4359, %v4358
  %v4404 = vpack.c.b16 %v4361, %v4360
  %v4405 = vpack.c.b16 %v4363, %v4362
  %v4406 = vpack.c.b16 %v4365, %v4364
  %v4407 = vpack.c.b16 %v4367, %v4366
  %v4408 = vpack.c.b16 %v4369, %v4368
  %v4409 = vpack.c.b16 %v4371, %v4370
  %v4410 = vpack.c.b16 %v4373, %v4372
  %v4411 = vpack.c.b16 %v4375, %v4374
  %v4412 = vpack.c.b16 %v4377, %v4376
  %v4413 = vpack.c.b16 %v4379, %v4378
  %v4414 = vpack.c.b16 %v4381, %v4380
  %v4415 = vpack.c.b16 %v4383, %v4382
  %v4416 = vpack.c.b16 %v4385, %v4384
  %v4417 = vpack.c.b16 %v4387, %v4386
  %v4418 = vpack.c.b16 %v4389, %v4388
  %v4419 = vpack.c.b16 %v4391, %v4390
  %v4420 = vpack.c.b16 %v4393, %v4392
  %v4421 = vpack.c.b16 %v4395, %v4394
  %v4449 = vsel %vm2102, %v4238, 0
  %4451 = vmatpush.bf16.msra.mxu0 %v4403
  %4452 = vmatpush.bf16.msra.mxu0 %v4402
  %4453 = vmatpush.bf16.msra.mxu0 %v4401
  %4454 = vmatpush.bf16.msra.mxu0 %v4400
  %4455 = vmatpush.bf16.msra.mxu0 %v4399
  %4456 = vmatpush.bf16.msra.mxu0 %v4398
  %4457 = vmatpush.bf16.msra.mxu0 %v4397
  %4458 = vmatpush.bf16.msra.mxu0 %v4396
  %4459 = vmatmul.bf16.gmra.mxu0 %v4235
  %v4460 = vpop.f32.mrf.mxu0
  %v4461 = vadd.f32 0.0, %v4460
  %v4462 = vpop.f32.mrf.mxu0
  %4463 = vdwg.mxu0
  %4464 = vmatpush.bf16.msra.mxu0 %v4411
  %4465 = vmatpush.bf16.msra.mxu0 %v4410
  %4466 = vmatpush.bf16.msra.mxu0 %v4409
  %4467 = vmatpush.bf16.msra.mxu0 %v4408
  %4468 = vmatpush.bf16.msra.mxu0 %v4407
  %4469 = vmatpush.bf16.msra.mxu0 %v4406
  %4470 = vmatpush.bf16.msra.mxu0 %v4405
  %4471 = vmatpush.bf16.msra.mxu0 %v4404
  %4472 = vmatmul.bf16.gmra.mxu0 %v4236
  %v4473 = vpop.f32.mrf.mxu0
  %v4474 = vadd.f32 %v4461, %v4473
  %v4475 = vpop.f32.mrf.mxu0
  %4476 = vdwg.mxu0
  %4477 = vmatpush.bf16.msra.mxu0 %v4419
  %4478 = vmatpush.bf16.msra.mxu0 %v4418
  %4479 = vmatpush.bf16.msra.mxu0 %v4417
  %4480 = vmatpush.bf16.msra.mxu0 %v4416
  %4481 = vmatpush.bf16.msra.mxu0 %v4415
  %4482 = vmatpush.bf16.msra.mxu0 %v4414
  %4483 = vmatpush.bf16.msra.mxu0 %v4413
  %4484 = vmatpush.bf16.msra.mxu0 %v4412
  %4485 = vmatmul.bf16.gmra.mxu0 %v4237
  %v4486 = vpop.f32.mrf.mxu0
  %v4487 = vadd.f32 %v4474, %v4486
  %v4488 = vpop.f32.mrf.mxu0
  %4489 = vdwg.mxu0
  %4490 = vmatpush.bf16.msra.mxu0 0
  %4491 = vmatpush.bf16.msra.mxu0 0
  %4492 = vmatpush.bf16.msra.mxu0 0
  %4493 = vmatpush.bf16.msra.mxu0 0
  %4494 = vmatpush.bf16.msra.mxu0 0
  %4495 = vmatpush.bf16.msra.mxu0 0
  %4496 = vmatpush.bf16.msra.mxu0 %v4421
  %4497 = vmatpush.bf16.msra.mxu0 %v4420
  %4498 = vmatmul.bf16.gmra.mxu0 %v4449
  %v4499 = vpop.f32.mrf.mxu0
  %v4500 = vadd.f32 %v4487, %v4499
  %v4501 = vpop.f32.mrf.mxu0
  %4502 = vdwg.mxu0
  %v4555 = vunpack.c.l.b16 %v4110
  %v4556 = vunpack.c.l.b16 %v4111
  %v4557 = vunpack.c.l.b16 %v4112
  %v4558 = vunpack.c.l.b16 %v4113
  %v4559 = vunpack.c.l.b16 %v4114
  %v4560 = vunpack.c.l.b16 %v4115
  %v4561 = vunpack.c.l.b16 %v4116
  %v4562 = vunpack.c.l.b16 %v4117
  %v4563 = vunpack.c.l.b16 %v4118
  %v4564 = vunpack.c.l.b16 %v4119
  %v4565 = vunpack.c.l.b16 %v4120
  %v4566 = vunpack.c.l.b16 %v4121
  %v4567 = vunpack.c.l.b16 %v4122
  %v4568 = vunpack.c.l.b16 %v4123
  %v4569 = vunpack.c.l.b16 %v4124
  %v4570 = vunpack.c.l.b16 %v4125
  %v4571 = vunpack.c.l.b16 %v4126
  %v4572 = vunpack.c.l.b16 %v4127
  %v4573 = vunpack.c.l.b16 %v4128
  %v4574 = vunpack.c.l.b16 %v4129
  %v4575 = vunpack.c.l.b16 %v4130
  %v4576 = vunpack.c.l.b16 %v4131
  %v4577 = vunpack.c.l.b16 %v4132
  %v4578 = vunpack.c.l.b16 %v4133
  %v4579 = vunpack.c.l.b16 %v4134
  %v4580 = vunpack.c.l.b16 %v4135
  %v4581 = vunpack.c.l.b16 %v4136
  %v4582 = vunpack.c.l.b16 %v4137
  %v4583 = vunpack.c.l.b16 %v4138
  %v4584 = vunpack.c.l.b16 %v4139
  %v4585 = vunpack.c.l.b16 %v4140
  %v4586 = vunpack.c.l.b16 %v4141
  %v4587 = vunpack.c.l.b16 %v4142
  %v4588 = vunpack.c.l.b16 %v4143
  %v4589 = vunpack.c.l.b16 %v4144
  %v4590 = vunpack.c.l.b16 %v4145
  %v4591 = vunpack.c.l.b16 %v4146
  %v4592 = vunpack.c.l.b16 %v4147
  %v4593 = vunpack.c.l.b16 %v4148
  %v4594 = vunpack.c.l.b16 %v4149
  %v4595 = vunpack.c.l.b16 %v4150
  %v4596 = vunpack.c.l.b16 %v4151
  %v4597 = vunpack.c.l.b16 %v4152
  %v4598 = vunpack.c.l.b16 %v4153
  %v4599 = vunpack.c.l.b16 %v4154
  %v4600 = vunpack.c.l.b16 %v4155
  %v4601 = vunpack.c.l.b16 %v4156
  %v4602 = vunpack.c.l.b16 %v4157
  %v4603 = vunpack.c.l.b16 %v4158
  %v4604 = vunpack.c.l.b16 %v4159
  %v4605 = vunpack.c.l.b16 %v4160
  %v4606 = vunpack.c.l.b16 %v4161
  %v4607 = vpack.c.b16 %v4556, %v4555
  %v4608 = vpack.c.b16 %v4558, %v4557
  %v4609 = vpack.c.b16 %v4560, %v4559
  %v4610 = vpack.c.b16 %v4562, %v4561
  %v4611 = vpack.c.b16 %v4564, %v4563
  %v4612 = vpack.c.b16 %v4566, %v4565
  %v4613 = vpack.c.b16 %v4568, %v4567
  %v4614 = vpack.c.b16 %v4570, %v4569
  %v4615 = vpack.c.b16 %v4572, %v4571
  %v4616 = vpack.c.b16 %v4574, %v4573
  %v4617 = vpack.c.b16 %v4576, %v4575
  %v4618 = vpack.c.b16 %v4578, %v4577
  %v4619 = vpack.c.b16 %v4580, %v4579
  %v4620 = vpack.c.b16 %v4582, %v4581
  %v4621 = vpack.c.b16 %v4584, %v4583
  %v4622 = vpack.c.b16 %v4586, %v4585
  %v4623 = vpack.c.b16 %v4588, %v4587
  %v4624 = vpack.c.b16 %v4590, %v4589
  %v4625 = vpack.c.b16 %v4592, %v4591
  %v4626 = vpack.c.b16 %v4594, %v4593
  %v4627 = vpack.c.b16 %v4596, %v4595
  %v4628 = vpack.c.b16 %v4598, %v4597
  %v4629 = vpack.c.b16 %v4600, %v4599
  %v4630 = vpack.c.b16 %v4602, %v4601
  %v4631 = vpack.c.b16 %v4604, %v4603
  %v4632 = vpack.c.b16 %v4606, %v4605
  %v4660 = vsel %vm2102, %v4109, 0
  %4662 = vmatpush.bf16.msra.mxu0 %v4614
  %4663 = vmatpush.bf16.msra.mxu0 %v4613
  %4664 = vmatpush.bf16.msra.mxu0 %v4612
  %4665 = vmatpush.bf16.msra.mxu0 %v4611
  %4666 = vmatpush.bf16.msra.mxu0 %v4610
  %4667 = vmatpush.bf16.msra.mxu0 %v4609
  %4668 = vmatpush.bf16.msra.mxu0 %v4608
  %4669 = vmatpush.bf16.msra.mxu0 %v4607
  %4670 = vmatmul.bf16.gmra.mxu0 %v4106
  %v4671 = vpop.f32.mrf.mxu0
  %v4672 = vadd.f32 %v4500, %v4671
  %v4673 = vpop.f32.mrf.mxu0
  %4674 = vdwg.mxu0
  %4675 = vmatpush.bf16.msra.mxu0 %v4622
  %4676 = vmatpush.bf16.msra.mxu0 %v4621
  %4677 = vmatpush.bf16.msra.mxu0 %v4620
  %4678 = vmatpush.bf16.msra.mxu0 %v4619
  %4679 = vmatpush.bf16.msra.mxu0 %v4618
  %4680 = vmatpush.bf16.msra.mxu0 %v4617
  %4681 = vmatpush.bf16.msra.mxu0 %v4616
  %4682 = vmatpush.bf16.msra.mxu0 %v4615
  %4683 = vmatmul.bf16.gmra.mxu0 %v4107
  %v4684 = vpop.f32.mrf.mxu0
  %v4685 = vadd.f32 %v4672, %v4684
  %v4686 = vpop.f32.mrf.mxu0
  %4687 = vdwg.mxu0
  %4688 = vmatpush.bf16.msra.mxu0 %v4630
  %4689 = vmatpush.bf16.msra.mxu0 %v4629
  %4690 = vmatpush.bf16.msra.mxu0 %v4628
  %4691 = vmatpush.bf16.msra.mxu0 %v4627
  %4692 = vmatpush.bf16.msra.mxu0 %v4626
  %4693 = vmatpush.bf16.msra.mxu0 %v4625
  %4694 = vmatpush.bf16.msra.mxu0 %v4624
  %4695 = vmatpush.bf16.msra.mxu0 %v4623
  %4696 = vmatmul.bf16.gmra.mxu0 %v4108
  %v4697 = vpop.f32.mrf.mxu0
  %v4698 = vadd.f32 %v4685, %v4697
  %v4699 = vpop.f32.mrf.mxu0
  %4700 = vdwg.mxu0
  %4701 = vmatpush.bf16.msra.mxu0 0
  %4702 = vmatpush.bf16.msra.mxu0 0
  %4703 = vmatpush.bf16.msra.mxu0 0
  %4704 = vmatpush.bf16.msra.mxu0 0
  %4705 = vmatpush.bf16.msra.mxu0 0
  %4706 = vmatpush.bf16.msra.mxu0 0
  %4707 = vmatpush.bf16.msra.mxu0 %v4632
  %4708 = vmatpush.bf16.msra.mxu0 %v4631
  %4709 = vmatmul.bf16.gmra.mxu0 %v4660
  %v4710 = vpop.f32.mrf.mxu0
  %v4711 = vadd.f32 %v4698, %v4710
  %v4712 = vpop.f32.mrf.mxu0
  %4713 = vdwg.mxu0
  %v4714 = vld [vmem:[#allocation2 + $0x70] sm:$0xf]
  %v4715 = vld [vmem:[#allocation2 + $0x78] sm:$0xf]
  %v4716 = vld [vmem:[#allocation2 + $0x80] sm:$0xf]
  %v4717 = vld [vmem:[#allocation2 + $0x88] sm:$0xf]
  %v4718 = vld [vmem:[#allocation2 + $0x90] sm:$0xf]
  %v4719 = vld [vmem:[#allocation2 + $0x98] sm:$0xf]
  %v4720 = vld [vmem:[#allocation2 + $0xa0] sm:$0xf]
  %v4721 = vld [vmem:[#allocation2 + $0x70] sm:$0xf0]
  %v4722 = vld [vmem:[#allocation2 + $0x78] sm:$0xf0]
  %v4723 = vld [vmem:[#allocation2 + $0x80] sm:$0xf0]
  %v4724 = vld [vmem:[#allocation2 + $0x88] sm:$0xf0]
  %v4725 = vld [vmem:[#allocation2 + $0x90] sm:$0xf0]
  %v4726 = vld [vmem:[#allocation2 + $0x98] sm:$0xf0]
  %v4727 = vld [vmem:[#allocation2 + $0xa0] sm:$0xf0]
  %v4735 = vrot.slane %v4721, 4
  %v4736 = vrot.slane %v4722, 4
  %v4737 = vrot.slane %v4723, 4
  %v4738 = vrot.slane %v4724, 4
  %v4739 = vrot.slane %v4725, 4
  %v4740 = vrot.slane %v4726, 4
  %v4741 = vrot.slane %v4727, 4
  %v4749 = vmax.f32 %v4714, %v4735
  %v4750 = vmax.f32 %v4715, %v4736
  %v4751 = vmax.f32 %v4716, %v4737
  %v4752 = vmax.f32 %v4717, %v4738
  %v4753 = vmax.f32 %v4718, %v4739
  %v4754 = vmax.f32 %v4719, %v4740
  %v4755 = vmax.f32 %v4720, %v4741
  %4760 = vrot.lane.b32.xlu0 %v4752, 96
  %v4761 = vpop.permute.xlu0 %4760
  %4762 = vrot.lane.b32.xlu0 %v4753, 96
  %v4763 = vpop.permute.xlu0 %4762
  %4764 = vrot.lane.b32.xlu0 %v4754, 96
  %v4765 = vpop.permute.xlu0 %4764
  %4766 = vrot.lane.b32.xlu0 %v4755, 96
  %v4767 = vpop.permute.xlu0 %4766
  %v4768 = vsel %vm4077, %v4761, %v4763
  %v4769 = vsel %vm4077, %v4763, %v4765
  %v4770 = vsel %vm4077, %v4765, %v4767
  %v4775 = vmax.f32 %v4749, %v4768
  %v4776 = vmax.f32 %v4750, %v4769
  %v4777 = vmax.f32 %v4751, %v4770
  %v4778 = vmax.f32 %v4752, %v4767
  %v4779 = vadd.f32 %v4775, %v4090
  %v4780 = vadd.f32 %v4776, %v4091
  %v4781 = vadd.f32 %v4777, %v4092
  %v4782 = vadd.f32 %v4778, %v4093
  %v4783 = vmax.f32 %v4779, 0.0
  %v4784 = vmax.f32 %v4780, 0.0
  %v4785 = vmax.f32 %v4781, 0.0
  %v4786 = vmax.f32 %v4782, 0.0
  %v4787 = vpack.c.bf16 %v4783, %v4783
  %v4788 = vpack.c.bf16 %v4784, %v4784
  %v4789 = vpack.c.bf16 %v4785, %v4785
  %v4790 = vpack.c.bf16 %v4786, %v4786
  %s4791 = scalar_lea.vmem %s3, 416
  %v4792 = vld [vmem:[%s4791] sm:$0xf]
  %v4793 = vld [vmem:[%s4791 + $0x4] sm:$0xf]
  %v4794 = vld [vmem:[%s4791 + $0x8] sm:$0xf]
  %v4795 = vld [vmem:[%s4791 + $0xc] sm:$0xf]
  %v4796 = vld [vmem:[%s4791 + $0x10] sm:$0xf]
  %v4797 = vld [vmem:[%s4791 + $0x14] sm:$0xf]
  %v4798 = vld [vmem:[%s4791 + $0x18] sm:$0xf]
  %v4799 = vld [vmem:[%s4791 + $0x1c] sm:$0xf]
  %v4800 = vld [vmem:[%s4791 + $0x20] sm:$0xf]
  %v4801 = vld [vmem:[%s4791 + $0x24] sm:$0xf]
  %v4802 = vld [vmem:[%s4791 + $0x28] sm:$0xf]
  %v4803 = vld [vmem:[%s4791 + $0x2c] sm:$0xf]
  %v4804 = vld [vmem:[%s4791 + $0x30] sm:$0xf]
  %v4805 = vld [vmem:[%s4791 + $0x34] sm:$0xf]
  %v4806 = vld [vmem:[%s4791 + $0x38] sm:$0xf]
  %v4807 = vld [vmem:[%s4791 + $0x3c] sm:$0xf]
  %v4808 = vld [vmem:[%s4791 + $0x40] sm:$0xf]
  %v4809 = vld [vmem:[%s4791 + $0x44] sm:$0xf]
  %v4810 = vld [vmem:[%s4791 + $0x48] sm:$0xf]
  %v4811 = vld [vmem:[%s4791 + $0x4c] sm:$0xf]
  %v4812 = vld [vmem:[%s4791 + $0x50] sm:$0xf]
  %v4813 = vld [vmem:[%s4791 + $0x54] sm:$0xf]
  %v4814 = vld [vmem:[%s4791 + $0x58] sm:$0xf]
  %v4815 = vld [vmem:[%s4791 + $0x5c] sm:$0xf]
  %v4816 = vld [vmem:[%s4791 + $0x60] sm:$0xf]
  %v4817 = vld [vmem:[%s4791 + $0x64] sm:$0xf]
  %v4818 = vld [vmem:[%s4791 + $0x68] sm:$0xf]
  %v4819 = vld [vmem:[%s4791 + $0x6c] sm:$0xf]
  %v4820 = vld [vmem:[%s4791 + $0x70] sm:$0xf]
  %v4821 = vld [vmem:[%s4791 + $0x74] sm:$0xf]
  %v4822 = vld [vmem:[%s4791 + $0x78] sm:$0xf]
  %v4823 = vld [vmem:[%s4791 + $0x7c] sm:$0xf]
  %v4824 = vld [vmem:[%s4791 + $0x80] sm:$0xf]
  %v4825 = vld [vmem:[%s4791 + $0x84] sm:$0xf]
  %v4826 = vld [vmem:[%s4791 + $0x88] sm:$0xf]
  %v4827 = vld [vmem:[%s4791 + $0x8c] sm:$0xf]
  %v4828 = vld [vmem:[%s4791 + $0x90] sm:$0xf]
  %v4829 = vld [vmem:[%s4791 + $0x94] sm:$0xf]
  %v4830 = vld [vmem:[%s4791 + $0x98] sm:$0xf]
  %v4831 = vld [vmem:[%s4791 + $0x9c] sm:$0xf]
  %v4832 = vld [vmem:[%s4791 + $0xa0] sm:$0xf]
  %v4833 = vld [vmem:[%s4791 + $0xa4] sm:$0xf]
  %v4834 = vld [vmem:[%s4791 + $0xa8] sm:$0xf]
  %v4835 = vld [vmem:[%s4791 + $0xac] sm:$0xf]
  %v4836 = vld [vmem:[%s4791 + $0xb0] sm:$0xf]
  %v4837 = vld [vmem:[%s4791 + $0xb4] sm:$0xf]
  %v4838 = vld [vmem:[%s4791 + $0xb8] sm:$0xf]
  %v4839 = vld [vmem:[%s4791 + $0xbc] sm:$0xf]
  %v4840 = vld [vmem:[%s4791 + $0xc0] sm:$0xf]
  %v4841 = vld [vmem:[%s4791 + $0xc4] sm:$0xf]
  %v4842 = vld [vmem:[%s4791 + $0xc8] sm:$0xf]
  %v4843 = vld [vmem:[%s4791 + $0xcc] sm:$0xf]
  %v4896 = vunpack.c.l.b16 %v4792
  %v4897 = vunpack.c.l.b16 %v4793
  %v4898 = vunpack.c.l.b16 %v4794
  %v4899 = vunpack.c.l.b16 %v4795
  %v4900 = vunpack.c.l.b16 %v4796
  %v4901 = vunpack.c.l.b16 %v4797
  %v4902 = vunpack.c.l.b16 %v4798
  %v4903 = vunpack.c.l.b16 %v4799
  %v4904 = vunpack.c.l.b16 %v4800
  %v4905 = vunpack.c.l.b16 %v4801
  %v4906 = vunpack.c.l.b16 %v4802
  %v4907 = vunpack.c.l.b16 %v4803
  %v4908 = vunpack.c.l.b16 %v4804
  %v4909 = vunpack.c.l.b16 %v4805
  %v4910 = vunpack.c.l.b16 %v4806
  %v4911 = vunpack.c.l.b16 %v4807
  %v4912 = vunpack.c.l.b16 %v4808
  %v4913 = vunpack.c.l.b16 %v4809
  %v4914 = vunpack.c.l.b16 %v4810
  %v4915 = vunpack.c.l.b16 %v4811
  %v4916 = vunpack.c.l.b16 %v4812
  %v4917 = vunpack.c.l.b16 %v4813
  %v4918 = vunpack.c.l.b16 %v4814
  %v4919 = vunpack.c.l.b16 %v4815
  %v4920 = vunpack.c.l.b16 %v4816
  %v4921 = vunpack.c.l.b16 %v4817
  %v4922 = vunpack.c.l.b16 %v4818
  %v4923 = vunpack.c.l.b16 %v4819
  %v4924 = vunpack.c.l.b16 %v4820
  %v4925 = vunpack.c.l.b16 %v4821
  %v4926 = vunpack.c.l.b16 %v4822
  %v4927 = vunpack.c.l.b16 %v4823
  %v4928 = vunpack.c.l.b16 %v4824
  %v4929 = vunpack.c.l.b16 %v4825
  %v4930 = vunpack.c.l.b16 %v4826
  %v4931 = vunpack.c.l.b16 %v4827
  %v4932 = vunpack.c.l.b16 %v4828
  %v4933 = vunpack.c.l.b16 %v4829
  %v4934 = vunpack.c.l.b16 %v4830
  %v4935 = vunpack.c.l.b16 %v4831
  %v4936 = vunpack.c.l.b16 %v4832
  %v4937 = vunpack.c.l.b16 %v4833
  %v4938 = vunpack.c.l.b16 %v4834
  %v4939 = vunpack.c.l.b16 %v4835
  %v4940 = vunpack.c.l.b16 %v4836
  %v4941 = vunpack.c.l.b16 %v4837
  %v4942 = vunpack.c.l.b16 %v4838
  %v4943 = vunpack.c.l.b16 %v4839
  %v4944 = vunpack.c.l.b16 %v4840
  %v4945 = vunpack.c.l.b16 %v4841
  %v4946 = vunpack.c.l.b16 %v4842
  %v4947 = vunpack.c.l.b16 %v4843
  %v4948 = vpack.c.b16 %v4897, %v4896
  %v4949 = vpack.c.b16 %v4899, %v4898
  %v4950 = vpack.c.b16 %v4901, %v4900
  %v4951 = vpack.c.b16 %v4903, %v4902
  %v4952 = vpack.c.b16 %v4905, %v4904
  %v4953 = vpack.c.b16 %v4907, %v4906
  %v4954 = vpack.c.b16 %v4909, %v4908
  %v4955 = vpack.c.b16 %v4911, %v4910
  %v4956 = vpack.c.b16 %v4913, %v4912
  %v4957 = vpack.c.b16 %v4915, %v4914
  %v4958 = vpack.c.b16 %v4917, %v4916
  %v4959 = vpack.c.b16 %v4919, %v4918
  %v4960 = vpack.c.b16 %v4921, %v4920
  %v4961 = vpack.c.b16 %v4923, %v4922
  %v4962 = vpack.c.b16 %v4925, %v4924
  %v4963 = vpack.c.b16 %v4927, %v4926
  %v4964 = vpack.c.b16 %v4929, %v4928
  %v4965 = vpack.c.b16 %v4931, %v4930
  %v4966 = vpack.c.b16 %v4933, %v4932
  %v4967 = vpack.c.b16 %v4935, %v4934
  %v4968 = vpack.c.b16 %v4937, %v4936
  %v4969 = vpack.c.b16 %v4939, %v4938
  %v4970 = vpack.c.b16 %v4941, %v4940
  %v4971 = vpack.c.b16 %v4943, %v4942
  %v4972 = vpack.c.b16 %v4945, %v4944
  %v4973 = vpack.c.b16 %v4947, %v4946
  %v5001 = vsel %vm2102, %v4790, 0
  %5003 = vmatpush.bf16.msra.mxu0 %v4955
  %5004 = vmatpush.bf16.msra.mxu0 %v4954
  %5005 = vmatpush.bf16.msra.mxu0 %v4953
  %5006 = vmatpush.bf16.msra.mxu0 %v4952
  %5007 = vmatpush.bf16.msra.mxu0 %v4951
  %5008 = vmatpush.bf16.msra.mxu0 %v4950
  %5009 = vmatpush.bf16.msra.mxu0 %v4949
  %5010 = vmatpush.bf16.msra.mxu0 %v4948
  %5011 = vmatmul.bf16.gmra.mxu0 %v4787
  %v5012 = vpop.f32.mrf.mxu0
  %v5013 = vadd.f32 0.0, %v5012
  %v5014 = vpop.f32.mrf.mxu0
  %5015 = vdwg.mxu0
  %5016 = vmatpush.bf16.msra.mxu0 %v4963
  %5017 = vmatpush.bf16.msra.mxu0 %v4962
  %5018 = vmatpush.bf16.msra.mxu0 %v4961
  %5019 = vmatpush.bf16.msra.mxu0 %v4960
  %5020 = vmatpush.bf16.msra.mxu0 %v4959
  %5021 = vmatpush.bf16.msra.mxu0 %v4958
  %5022 = vmatpush.bf16.msra.mxu0 %v4957
  %5023 = vmatpush.bf16.msra.mxu0 %v4956
  %5024 = vmatmul.bf16.gmra.mxu0 %v4788
  %v5025 = vpop.f32.mrf.mxu0
  %v5026 = vadd.f32 %v5013, %v5025
  %v5027 = vpop.f32.mrf.mxu0
  %5028 = vdwg.mxu0
  %5029 = vmatpush.bf16.msra.mxu0 %v4971
  %5030 = vmatpush.bf16.msra.mxu0 %v4970
  %5031 = vmatpush.bf16.msra.mxu0 %v4969
  %5032 = vmatpush.bf16.msra.mxu0 %v4968
  %5033 = vmatpush.bf16.msra.mxu0 %v4967
  %5034 = vmatpush.bf16.msra.mxu0 %v4966
  %5035 = vmatpush.bf16.msra.mxu0 %v4965
  %5036 = vmatpush.bf16.msra.mxu0 %v4964
  %5037 = vmatmul.bf16.gmra.mxu0 %v4789
  %v5038 = vpop.f32.mrf.mxu0
  %v5039 = vadd.f32 %v5026, %v5038
  %v5040 = vpop.f32.mrf.mxu0
  %5041 = vdwg.mxu0
  %5042 = vmatpush.bf16.msra.mxu0 0
  %5043 = vmatpush.bf16.msra.mxu0 0
  %5044 = vmatpush.bf16.msra.mxu0 0
  %5045 = vmatpush.bf16.msra.mxu0 0
  %5046 = vmatpush.bf16.msra.mxu0 0
  %5047 = vmatpush.bf16.msra.mxu0 0
  %5048 = vmatpush.bf16.msra.mxu0 %v4973
  %5049 = vmatpush.bf16.msra.mxu0 %v4972
  %5050 = vmatmul.bf16.gmra.mxu0 %v5001
  %v5051 = vpop.f32.mrf.mxu0
  %v5052 = vadd.f32 %v5039, %v5051
  %v5053 = vpop.f32.mrf.mxu0
  %5054 = vdwg.mxu0
  %v5055 = vadd.f32 %v4711, %v5052
  %v5056 = vld [vmem:[#allocation2 + $0xa8] sm:$0xf]
  %v5057 = vld [vmem:[#allocation2 + $0xb0] sm:$0xf]
  %v5058 = vld [vmem:[#allocation2 + $0xb8] sm:$0xf]
  %v5059 = vld [vmem:[#allocation2 + $0xc0] sm:$0xf]
  %v5060 = vld [vmem:[#allocation2 + $0xc8] sm:$0xf]
  %v5061 = vld [vmem:[#allocation2 + $0xd0] sm:$0xf]
  %v5062 = vld [vmem:[#allocation2 + $0xd8] sm:$0xf]
  %v5063 = vld [vmem:[#allocation2 + $0xa8] sm:$0xf0]
  %v5064 = vld [vmem:[#allocation2 + $0xb0] sm:$0xf0]
  %v5065 = vld [vmem:[#allocation2 + $0xb8] sm:$0xf0]
  %v5066 = vld [vmem:[#allocation2 + $0xc0] sm:$0xf0]
  %v5067 = vld [vmem:[#allocation2 + $0xc8] sm:$0xf0]
  %v5068 = vld [vmem:[#allocation2 + $0xd0] sm:$0xf0]
  %v5069 = vld [vmem:[#allocation2 + $0xd8] sm:$0xf0]
  %v5077 = vrot.slane %v5063, 4
  %v5078 = vrot.slane %v5064, 4
  %v5079 = vrot.slane %v5065, 4
  %v5080 = vrot.slane %v5066, 4
  %v5081 = vrot.slane %v5067, 4
  %v5082 = vrot.slane %v5068, 4
  %v5083 = vrot.slane %v5069, 4
  %v5091 = vmax.f32 %v5056, %v5077
  %v5092 = vmax.f32 %v5057, %v5078
  %v5093 = vmax.f32 %v5058, %v5079
  %v5094 = vmax.f32 %v5059, %v5080
  %v5095 = vmax.f32 %v5060, %v5081
  %v5096 = vmax.f32 %v5061, %v5082
  %v5097 = vmax.f32 %v5062, %v5083
  %5102 = vrot.lane.b32.xlu0 %v5094, 96
  %v5103 = vpop.permute.xlu0 %5102
  %5104 = vrot.lane.b32.xlu0 %v5095, 96
  %v5105 = vpop.permute.xlu0 %5104
  %5106 = vrot.lane.b32.xlu0 %v5096, 96
  %v5107 = vpop.permute.xlu0 %5106
  %5108 = vrot.lane.b32.xlu0 %v5097, 96
  %v5109 = vpop.permute.xlu0 %5108
  %v5110 = vsel %vm4077, %v5103, %v5105
  %v5111 = vsel %vm4077, %v5105, %v5107
  %v5112 = vsel %vm4077, %v5107, %v5109
  %v5117 = vmax.f32 %v5091, %v5110
  %v5118 = vmax.f32 %v5092, %v5111
  %v5119 = vmax.f32 %v5093, %v5112
  %v5120 = vmax.f32 %v5094, %v5109
  %v5121 = vadd.f32 %v5117, %v4090
  %v5122 = vadd.f32 %v5118, %v4091
  %v5123 = vadd.f32 %v5119, %v4092
  %v5124 = vadd.f32 %v5120, %v4093
  %v5125 = vmax.f32 %v5121, 0.0
  %v5126 = vmax.f32 %v5122, 0.0
  %v5127 = vmax.f32 %v5123, 0.0
  %v5128 = vmax.f32 %v5124, 0.0
  %v5129 = vpack.c.bf16 %v5125, %v5125
  %v5130 = vpack.c.bf16 %v5126, %v5126
  %v5131 = vpack.c.bf16 %v5127, %v5127
  %v5132 = vpack.c.bf16 %v5128, %v5128
  %s5133 = scalar_lea.vmem %s3, 624
  %v5134 = vld [vmem:[%s5133] sm:$0xf]
  %v5135 = vld [vmem:[%s5133 + $0x4] sm:$0xf]
  %v5136 = vld [vmem:[%s5133 + $0x8] sm:$0xf]
  %v5137 = vld [vmem:[%s5133 + $0xc] sm:$0xf]
  %v5138 = vld [vmem:[%s5133 + $0x10] sm:$0xf]
  %v5139 = vld [vmem:[%s5133 + $0x14] sm:$0xf]
  %v5140 = vld [vmem:[%s5133 + $0x18] sm:$0xf]
  %v5141 = vld [vmem:[%s5133 + $0x1c] sm:$0xf]
  %v5142 = vld [vmem:[%s5133 + $0x20] sm:$0xf]
  %v5143 = vld [vmem:[%s5133 + $0x24] sm:$0xf]
  %v5144 = vld [vmem:[%s5133 + $0x28] sm:$0xf]
  %v5145 = vld [vmem:[%s5133 + $0x2c] sm:$0xf]
  %v5146 = vld [vmem:[%s5133 + $0x30] sm:$0xf]
  %v5147 = vld [vmem:[%s5133 + $0x34] sm:$0xf]
  %v5148 = vld [vmem:[%s5133 + $0x38] sm:$0xf]
  %v5149 = vld [vmem:[%s5133 + $0x3c] sm:$0xf]
  %v5150 = vld [vmem:[%s5133 + $0x40] sm:$0xf]
  %v5151 = vld [vmem:[%s5133 + $0x44] sm:$0xf]
  %v5152 = vld [vmem:[%s5133 + $0x48] sm:$0xf]
  %v5153 = vld [vmem:[%s5133 + $0x4c] sm:$0xf]
  %v5154 = vld [vmem:[%s5133 + $0x50] sm:$0xf]
  %v5155 = vld [vmem:[%s5133 + $0x54] sm:$0xf]
  %v5156 = vld [vmem:[%s5133 + $0x58] sm:$0xf]
  %v5157 = vld [vmem:[%s5133 + $0x5c] sm:$0xf]
  %v5158 = vld [vmem:[%s5133 + $0x60] sm:$0xf]
  %v5159 = vld [vmem:[%s5133 + $0x64] sm:$0xf]
  %v5160 = vld [vmem:[%s5133 + $0x68] sm:$0xf]
  %v5161 = vld [vmem:[%s5133 + $0x6c] sm:$0xf]
  %v5162 = vld [vmem:[%s5133 + $0x70] sm:$0xf]
  %v5163 = vld [vmem:[%s5133 + $0x74] sm:$0xf]
  %v5164 = vld [vmem:[%s5133 + $0x78] sm:$0xf]
  %v5165 = vld [vmem:[%s5133 + $0x7c] sm:$0xf]
  %v5166 = vld [vmem:[%s5133 + $0x80] sm:$0xf]
  %v5167 = vld [vmem:[%s5133 + $0x84] sm:$0xf]
  %v5168 = vld [vmem:[%s5133 + $0x88] sm:$0xf]
  %v5169 = vld [vmem:[%s5133 + $0x8c] sm:$0xf]
  %v5170 = vld [vmem:[%s5133 + $0x90] sm:$0xf]
  %v5171 = vld [vmem:[%s5133 + $0x94] sm:$0xf]
  %v5172 = vld [vmem:[%s5133 + $0x98] sm:$0xf]
  %v5173 = vld [vmem:[%s5133 + $0x9c] sm:$0xf]
  %v5174 = vld [vmem:[%s5133 + $0xa0] sm:$0xf]
  %v5175 = vld [vmem:[%s5133 + $0xa4] sm:$0xf]
  %v5176 = vld [vmem:[%s5133 + $0xa8] sm:$0xf]
  %v5177 = vld [vmem:[%s5133 + $0xac] sm:$0xf]
  %v5178 = vld [vmem:[%s5133 + $0xb0] sm:$0xf]
  %v5179 = vld [vmem:[%s5133 + $0xb4] sm:$0xf]
  %v5180 = vld [vmem:[%s5133 + $0xb8] sm:$0xf]
  %v5181 = vld [vmem:[%s5133 + $0xbc] sm:$0xf]
  %v5182 = vld [vmem:[%s5133 + $0xc0] sm:$0xf]
  %v5183 = vld [vmem:[%s5133 + $0xc4] sm:$0xf]
  %v5184 = vld [vmem:[%s5133 + $0xc8] sm:$0xf]
  %v5185 = vld [vmem:[%s5133 + $0xcc] sm:$0xf]
  %v5238 = vunpack.c.l.b16 %v5134
  %v5239 = vunpack.c.l.b16 %v5135
  %v5240 = vunpack.c.l.b16 %v5136
  %v5241 = vunpack.c.l.b16 %v5137
  %v5242 = vunpack.c.l.b16 %v5138
  %v5243 = vunpack.c.l.b16 %v5139
  %v5244 = vunpack.c.l.b16 %v5140
  %v5245 = vunpack.c.l.b16 %v5141
  %v5246 = vunpack.c.l.b16 %v5142
  %v5247 = vunpack.c.l.b16 %v5143
  %v5248 = vunpack.c.l.b16 %v5144
  %v5249 = vunpack.c.l.b16 %v5145
  %v5250 = vunpack.c.l.b16 %v5146
  %v5251 = vunpack.c.l.b16 %v5147
  %v5252 = vunpack.c.l.b16 %v5148
  %v5253 = vunpack.c.l.b16 %v5149
  %v5254 = vunpack.c.l.b16 %v5150
  %v5255 = vunpack.c.l.b16 %v5151
  %v5256 = vunpack.c.l.b16 %v5152
  %v5257 = vunpack.c.l.b16 %v5153
  %v5258 = vunpack.c.l.b16 %v5154
  %v5259 = vunpack.c.l.b16 %v5155
  %v5260 = vunpack.c.l.b16 %v5156
  %v5261 = vunpack.c.l.b16 %v5157
  %v5262 = vunpack.c.l.b16 %v5158
  %v5263 = vunpack.c.l.b16 %v5159
  %v5264 = vunpack.c.l.b16 %v5160
  %v5265 = vunpack.c.l.b16 %v5161
  %v5266 = vunpack.c.l.b16 %v5162
  %v5267 = vunpack.c.l.b16 %v5163
  %v5268 = vunpack.c.l.b16 %v5164
  %v5269 = vunpack.c.l.b16 %v5165
  %v5270 = vunpack.c.l.b16 %v5166
  %v5271 = vunpack.c.l.b16 %v5167
  %v5272 = vunpack.c.l.b16 %v5168
  %v5273 = vunpack.c.l.b16 %v5169
  %v5274 = vunpack.c.l.b16 %v5170
  %v5275 = vunpack.c.l.b16 %v5171
  %v5276 = vunpack.c.l.b16 %v5172
  %v5277 = vunpack.c.l.b16 %v5173
  %v5278 = vunpack.c.l.b16 %v5174
  %v5279 = vunpack.c.l.b16 %v5175
  %v5280 = vunpack.c.l.b16 %v5176
  %v5281 = vunpack.c.l.b16 %v5177
  %v5282 = vunpack.c.l.b16 %v5178
  %v5283 = vunpack.c.l.b16 %v5179
  %v5284 = vunpack.c.l.b16 %v5180
  %v5285 = vunpack.c.l.b16 %v5181
  %v5286 = vunpack.c.l.b16 %v5182
  %v5287 = vunpack.c.l.b16 %v5183
  %v5288 = vunpack.c.l.b16 %v5184
  %v5289 = vunpack.c.l.b16 %v5185
  %v5290 = vpack.c.b16 %v5239, %v5238
  %v5291 = vpack.c.b16 %v5241, %v5240
  %v5292 = vpack.c.b16 %v5243, %v5242
  %v5293 = vpack.c.b16 %v5245, %v5244
  %v5294 = vpack.c.b16 %v5247, %v5246
  %v5295 = vpack.c.b16 %v5249, %v5248
  %v5296 = vpack.c.b16 %v5251, %v5250
  %v5297 = vpack.c.b16 %v5253, %v5252
  %v5298 = vpack.c.b16 %v5255, %v5254
  %v5299 = vpack.c.b16 %v5257, %v5256
  %v5300 = vpack.c.b16 %v5259, %v5258
  %v5301 = vpack.c.b16 %v5261, %v5260
  %v5302 = vpack.c.b16 %v5263, %v5262
  %v5303 = vpack.c.b16 %v5265, %v5264
  %v5304 = vpack.c.b16 %v5267, %v5266
  %v5305 = vpack.c.b16 %v5269, %v5268
  %v5306 = vpack.c.b16 %v5271, %v5270
  %v5307 = vpack.c.b16 %v5273, %v5272
  %v5308 = vpack.c.b16 %v5275, %v5274
  %v5309 = vpack.c.b16 %v5277, %v5276
  %v5310 = vpack.c.b16 %v5279, %v5278
  %v5311 = vpack.c.b16 %v5281, %v5280
  %v5312 = vpack.c.b16 %v5283, %v5282
  %v5313 = vpack.c.b16 %v5285, %v5284
  %v5314 = vpack.c.b16 %v5287, %v5286
  %v5315 = vpack.c.b16 %v5289, %v5288
  %v5343 = vsel %vm2102, %v5132, 0
  %5345 = vmatpush.bf16.msra.mxu0 %v5297
  %5346 = vmatpush.bf16.msra.mxu0 %v5296
  %5347 = vmatpush.bf16.msra.mxu0 %v5295
  %5348 = vmatpush.bf16.msra.mxu0 %v5294
  %5349 = vmatpush.bf16.msra.mxu0 %v5293
  %5350 = vmatpush.bf16.msra.mxu0 %v5292
  %5351 = vmatpush.bf16.msra.mxu0 %v5291
  %5352 = vmatpush.bf16.msra.mxu0 %v5290
  %5353 = vmatmul.bf16.gmra.mxu0 %v5129
  %v5354 = vpop.f32.mrf.mxu0
  %v5355 = vadd.f32 0.0, %v5354
  %v5356 = vpop.f32.mrf.mxu0
  %5357 = vdwg.mxu0
  %5358 = vmatpush.bf16.msra.mxu0 %v5305
  %5359 = vmatpush.bf16.msra.mxu0 %v5304
  %5360 = vmatpush.bf16.msra.mxu0 %v5303
  %5361 = vmatpush.bf16.msra.mxu0 %v5302
  %5362 = vmatpush.bf16.msra.mxu0 %v5301
  %5363 = vmatpush.bf16.msra.mxu0 %v5300
  %5364 = vmatpush.bf16.msra.mxu0 %v5299
  %5365 = vmatpush.bf16.msra.mxu0 %v5298
  %5366 = vmatmul.bf16.gmra.mxu0 %v5130
  %v5367 = vpop.f32.mrf.mxu0
  %v5368 = vadd.f32 %v5355, %v5367
  %v5369 = vpop.f32.mrf.mxu0
  %5370 = vdwg.mxu0
  %5371 = vmatpush.bf16.msra.mxu0 %v5313
  %5372 = vmatpush.bf16.msra.mxu0 %v5312
  %5373 = vmatpush.bf16.msra.mxu0 %v5311
  %5374 = vmatpush.bf16.msra.mxu0 %v5310
  %5375 = vmatpush.bf16.msra.mxu0 %v5309
  %5376 = vmatpush.bf16.msra.mxu0 %v5308
  %5377 = vmatpush.bf16.msra.mxu0 %v5307
  %5378 = vmatpush.bf16.msra.mxu0 %v5306
  %5379 = vmatmul.bf16.gmra.mxu0 %v5131
  %v5380 = vpop.f32.mrf.mxu0
  %v5381 = vadd.f32 %v5368, %v5380
  %v5382 = vpop.f32.mrf.mxu0
  %5383 = vdwg.mxu0
  %5384 = vmatpush.bf16.msra.mxu0 0
  %5385 = vmatpush.bf16.msra.mxu0 0
  %5386 = vmatpush.bf16.msra.mxu0 0
  %5387 = vmatpush.bf16.msra.mxu0 0
  %5388 = vmatpush.bf16.msra.mxu0 0
  %5389 = vmatpush.bf16.msra.mxu0 0
  %5390 = vmatpush.bf16.msra.mxu0 %v5315
  %5391 = vmatpush.bf16.msra.mxu0 %v5314
  %5392 = vmatmul.bf16.gmra.mxu0 %v5343
  %v5393 = vpop.f32.mrf.mxu0
  %v5394 = vadd.f32 %v5381, %v5393
  %v5395 = vpop.f32.mrf.mxu0
  %5396 = vdwg.mxu0
  %v5397 = vadd.f32 %v5055, %v5394
  %v5398 = vld [vmem:[#allocation2 + $0xe0] sm:$0xf]
  %v5399 = vld [vmem:[#allocation2 + $0xe8] sm:$0xf]
  %v5400 = vld [vmem:[#allocation2 + $0xf0] sm:$0xf]
  %v5401 = vld [vmem:[#allocation2 + $0xf8] sm:$0xf]
  %v5402 = vld [vmem:[#allocation2 + $0x100] sm:$0xf]
  %v5403 = vld [vmem:[#allocation2 + $0x108] sm:$0xf]
  %v5404 = vld [vmem:[#allocation2 + $0x110] sm:$0xf]
  %v5405 = vld [vmem:[#allocation2 + $0xe0] sm:$0xf0]
  %v5406 = vld [vmem:[#allocation2 + $0xe8] sm:$0xf0]
  %v5407 = vld [vmem:[#allocation2 + $0xf0] sm:$0xf0]
  %v5408 = vld [vmem:[#allocation2 + $0xf8] sm:$0xf0]
  %v5409 = vld [vmem:[#allocation2 + $0x100] sm:$0xf0]
  %v5410 = vld [vmem:[#allocation2 + $0x108] sm:$0xf0]
  %v5411 = vld [vmem:[#allocation2 + $0x110] sm:$0xf0]
  %v5419 = vrot.slane %v5405, 4
  %v5420 = vrot.slane %v5406, 4
  %v5421 = vrot.slane %v5407, 4
  %v5422 = vrot.slane %v5408, 4
  %v5423 = vrot.slane %v5409, 4
  %v5424 = vrot.slane %v5410, 4
  %v5425 = vrot.slane %v5411, 4
  %v5433 = vmax.f32 %v5398, %v5419
  %v5434 = vmax.f32 %v5399, %v5420
  %v5435 = vmax.f32 %v5400, %v5421
  %v5436 = vmax.f32 %v5401, %v5422
  %v5437 = vmax.f32 %v5402, %v5423
  %v5438 = vmax.f32 %v5403, %v5424
  %v5439 = vmax.f32 %v5404, %v5425
  %5444 = vrot.lane.b32.xlu0 %v5436, 96
  %v5445 = vpop.permute.xlu0 %5444
  %5446 = vrot.lane.b32.xlu0 %v5437, 96
  %v5447 = vpop.permute.xlu0 %5446
  %5448 = vrot.lane.b32.xlu0 %v5438, 96
  %v5449 = vpop.permute.xlu0 %5448
  %5450 = vrot.lane.b32.xlu0 %v5439, 96
  %v5451 = vpop.permute.xlu0 %5450
  %v5452 = vsel %vm4077, %v5445, %v5447
  %v5453 = vsel %vm4077, %v5447, %v5449
  %v5454 = vsel %vm4077, %v5449, %v5451
  %v5459 = vmax.f32 %v5433, %v5452
  %v5460 = vmax.f32 %v5434, %v5453
  %v5461 = vmax.f32 %v5435, %v5454
  %v5462 = vmax.f32 %v5436, %v5451
  %v5463 = vadd.f32 %v5459, %v4090
  %v5464 = vadd.f32 %v5460, %v4091
  %v5465 = vadd.f32 %v5461, %v4092
  %v5466 = vadd.f32 %v5462, %v4093
  %v5467 = vmax.f32 %v5463, 0.0
  %v5468 = vmax.f32 %v5464, 0.0
  %v5469 = vmax.f32 %v5465, 0.0
  %v5470 = vmax.f32 %v5466, 0.0
  %v5471 = vpack.c.bf16 %v5467, %v5467
  %v5472 = vpack.c.bf16 %v5468, %v5468
  %v5473 = vpack.c.bf16 %v5469, %v5469
  %v5474 = vpack.c.bf16 %v5470, %v5470
  %s5475 = scalar_lea.vmem %s3, 832
  %v5476 = vld [vmem:[%s5475] sm:$0xf]
  %v5477 = vld [vmem:[%s5475 + $0x4] sm:$0xf]
  %v5478 = vld [vmem:[%s5475 + $0x8] sm:$0xf]
  %v5479 = vld [vmem:[%s5475 + $0xc] sm:$0xf]
  %v5480 = vld [vmem:[%s5475 + $0x10] sm:$0xf]
  %v5481 = vld [vmem:[%s5475 + $0x14] sm:$0xf]
  %v5482 = vld [vmem:[%s5475 + $0x18] sm:$0xf]
  %v5483 = vld [vmem:[%s5475 + $0x1c] sm:$0xf]
  %v5484 = vld [vmem:[%s5475 + $0x20] sm:$0xf]
  %v5485 = vld [vmem:[%s5475 + $0x24] sm:$0xf]
  %v5486 = vld [vmem:[%s5475 + $0x28] sm:$0xf]
  %v5487 = vld [vmem:[%s5475 + $0x2c] sm:$0xf]
  %v5488 = vld [vmem:[%s5475 + $0x30] sm:$0xf]
  %v5489 = vld [vmem:[%s5475 + $0x34] sm:$0xf]
  %v5490 = vld [vmem:[%s5475 + $0x38] sm:$0xf]
  %v5491 = vld [vmem:[%s5475 + $0x3c] sm:$0xf]
  %v5492 = vld [vmem:[%s5475 + $0x40] sm:$0xf]
  %v5493 = vld [vmem:[%s5475 + $0x44] sm:$0xf]
  %v5494 = vld [vmem:[%s5475 + $0x48] sm:$0xf]
  %v5495 = vld [vmem:[%s5475 + $0x4c] sm:$0xf]
  %v5496 = vld [vmem:[%s5475 + $0x50] sm:$0xf]
  %v5497 = vld [vmem:[%s5475 + $0x54] sm:$0xf]
  %v5498 = vld [vmem:[%s5475 + $0x58] sm:$0xf]
  %v5499 = vld [vmem:[%s5475 + $0x5c] sm:$0xf]
  %v5500 = vld [vmem:[%s5475 + $0x60] sm:$0xf]
  %v5501 = vld [vmem:[%s5475 + $0x64] sm:$0xf]
  %v5502 = vld [vmem:[%s5475 + $0x68] sm:$0xf]
  %v5503 = vld [vmem:[%s5475 + $0x6c] sm:$0xf]
  %v5504 = vld [vmem:[%s5475 + $0x70] sm:$0xf]
  %v5505 = vld [vmem:[%s5475 + $0x74] sm:$0xf]
  %v5506 = vld [vmem:[%s5475 + $0x78] sm:$0xf]
  %v5507 = vld [vmem:[%s5475 + $0x7c] sm:$0xf]
  %v5508 = vld [vmem:[%s5475 + $0x80] sm:$0xf]
  %v5509 = vld [vmem:[%s5475 + $0x84] sm:$0xf]
  %v5510 = vld [vmem:[%s5475 + $0x88] sm:$0xf]
  %v5511 = vld [vmem:[%s5475 + $0x8c] sm:$0xf]
  %v5512 = vld [vmem:[%s5475 + $0x90] sm:$0xf]
  %v5513 = vld [vmem:[%s5475 + $0x94] sm:$0xf]
  %v5514 = vld [vmem:[%s5475 + $0x98] sm:$0xf]
  %v5515 = vld [vmem:[%s5475 + $0x9c] sm:$0xf]
  %v5516 = vld [vmem:[%s5475 + $0xa0] sm:$0xf]
  %v5517 = vld [vmem:[%s5475 + $0xa4] sm:$0xf]
  %v5518 = vld [vmem:[%s5475 + $0xa8] sm:$0xf]
  %v5519 = vld [vmem:[%s5475 + $0xac] sm:$0xf]
  %v5520 = vld [vmem:[%s5475 + $0xb0] sm:$0xf]
  %v5521 = vld [vmem:[%s5475 + $0xb4] sm:$0xf]
  %v5522 = vld [vmem:[%s5475 + $0xb8] sm:$0xf]
  %v5523 = vld [vmem:[%s5475 + $0xbc] sm:$0xf]
  %v5524 = vld [vmem:[%s5475 + $0xc0] sm:$0xf]
  %v5525 = vld [vmem:[%s5475 + $0xc4] sm:$0xf]
  %v5526 = vld [vmem:[%s5475 + $0xc8] sm:$0xf]
  %v5527 = vld [vmem:[%s5475 + $0xcc] sm:$0xf]
  %v5580 = vunpack.c.l.b16 %v5476
  %v5581 = vunpack.c.l.b16 %v5477
  %v5582 = vunpack.c.l.b16 %v5478
  %v5583 = vunpack.c.l.b16 %v5479
  %v5584 = vunpack.c.l.b16 %v5480
  %v5585 = vunpack.c.l.b16 %v5481
  %v5586 = vunpack.c.l.b16 %v5482
  %v5587 = vunpack.c.l.b16 %v5483
  %v5588 = vunpack.c.l.b16 %v5484
  %v5589 = vunpack.c.l.b16 %v5485
  %v5590 = vunpack.c.l.b16 %v5486
  %v5591 = vunpack.c.l.b16 %v5487
  %v5592 = vunpack.c.l.b16 %v5488
  %v5593 = vunpack.c.l.b16 %v5489
  %v5594 = vunpack.c.l.b16 %v5490
  %v5595 = vunpack.c.l.b16 %v5491
  %v5596 = vunpack.c.l.b16 %v5492
  %v5597 = vunpack.c.l.b16 %v5493
  %v5598 = vunpack.c.l.b16 %v5494
  %v5599 = vunpack.c.l.b16 %v5495
  %v5600 = vunpack.c.l.b16 %v5496
  %v5601 = vunpack.c.l.b16 %v5497
  %v5602 = vunpack.c.l.b16 %v5498
  %v5603 = vunpack.c.l.b16 %v5499
  %v5604 = vunpack.c.l.b16 %v5500
  %v5605 = vunpack.c.l.b16 %v5501
  %v5606 = vunpack.c.l.b16 %v5502
  %v5607 = vunpack.c.l.b16 %v5503
  %v5608 = vunpack.c.l.b16 %v5504
  %v5609 = vunpack.c.l.b16 %v5505
  %v5610 = vunpack.c.l.b16 %v5506
  %v5611 = vunpack.c.l.b16 %v5507
  %v5612 = vunpack.c.l.b16 %v5508
  %v5613 = vunpack.c.l.b16 %v5509
  %v5614 = vunpack.c.l.b16 %v5510
  %v5615 = vunpack.c.l.b16 %v5511
  %v5616 = vunpack.c.l.b16 %v5512
  %v5617 = vunpack.c.l.b16 %v5513
  %v5618 = vunpack.c.l.b16 %v5514
  %v5619 = vunpack.c.l.b16 %v5515
  %v5620 = vunpack.c.l.b16 %v5516
  %v5621 = vunpack.c.l.b16 %v5517
  %v5622 = vunpack.c.l.b16 %v5518
  %v5623 = vunpack.c.l.b16 %v5519
  %v5624 = vunpack.c.l.b16 %v5520
  %v5625 = vunpack.c.l.b16 %v5521
  %v5626 = vunpack.c.l.b16 %v5522
  %v5627 = vunpack.c.l.b16 %v5523
  %v5628 = vunpack.c.l.b16 %v5524
  %v5629 = vunpack.c.l.b16 %v5525
  %v5630 = vunpack.c.l.b16 %v5526
  %v5631 = vunpack.c.l.b16 %v5527
  %v5632 = vpack.c.b16 %v5581, %v5580
  %v5633 = vpack.c.b16 %v5583, %v5582
  %v5634 = vpack.c.b16 %v5585, %v5584
  %v5635 = vpack.c.b16 %v5587, %v5586
  %v5636 = vpack.c.b16 %v5589, %v5588
  %v5637 = vpack.c.b16 %v5591, %v5590
  %v5638 = vpack.c.b16 %v5593, %v5592
  %v5639 = vpack.c.b16 %v5595, %v5594
  %v5640 = vpack.c.b16 %v5597, %v5596
  %v5641 = vpack.c.b16 %v5599, %v5598
  %v5642 = vpack.c.b16 %v5601, %v5600
  %v5643 = vpack.c.b16 %v5603, %v5602
  %v5644 = vpack.c.b16 %v5605, %v5604
  %v5645 = vpack.c.b16 %v5607, %v5606
  %v5646 = vpack.c.b16 %v5609, %v5608
  %v5647 = vpack.c.b16 %v5611, %v5610
  %v5648 = vpack.c.b16 %v5613, %v5612
  %v5649 = vpack.c.b16 %v5615, %v5614
  %v5650 = vpack.c.b16 %v5617, %v5616
  %v5651 = vpack.c.b16 %v5619, %v5618
  %v5652 = vpack.c.b16 %v5621, %v5620
  %v5653 = vpack.c.b16 %v5623, %v5622
  %v5654 = vpack.c.b16 %v5625, %v5624
  %v5655 = vpack.c.b16 %v5627, %v5626
  %v5656 = vpack.c.b16 %v5629, %v5628
  %v5657 = vpack.c.b16 %v5631, %v5630
  %v5685 = vsel %vm2102, %v5474, 0
  %5687 = vmatpush.bf16.msra.mxu0 %v5639
  %5688 = vmatpush.bf16.msra.mxu0 %v5638
  %5689 = vmatpush.bf16.msra.mxu0 %v5637
  %5690 = vmatpush.bf16.msra.mxu0 %v5636
  %5691 = vmatpush.bf16.msra.mxu0 %v5635
  %5692 = vmatpush.bf16.msra.mxu0 %v5634
  %5693 = vmatpush.bf16.msra.mxu0 %v5633
  %5694 = vmatpush.bf16.msra.mxu0 %v5632
  %5695 = vmatmul.bf16.gmra.mxu0 %v5471
  %v5696 = vpop.f32.mrf.mxu0
  %v5697 = vadd.f32 0.0, %v5696
  %v5698 = vpop.f32.mrf.mxu0
  %5699 = vdwg.mxu0
  %5700 = vmatpush.bf16.msra.mxu0 %v5647
  %5701 = vmatpush.bf16.msra.mxu0 %v5646
  %5702 = vmatpush.bf16.msra.mxu0 %v5645
  %5703 = vmatpush.bf16.msra.mxu0 %v5644
  %5704 = vmatpush.bf16.msra.mxu0 %v5643
  %5705 = vmatpush.bf16.msra.mxu0 %v5642
  %5706 = vmatpush.bf16.msra.mxu0 %v5641
  %5707 = vmatpush.bf16.msra.mxu0 %v5640
  %5708 = vmatmul.bf16.gmra.mxu0 %v5472
  %v5709 = vpop.f32.mrf.mxu0
  %v5710 = vadd.f32 %v5697, %v5709
  %v5711 = vpop.f32.mrf.mxu0
  %5712 = vdwg.mxu0
  %5713 = vmatpush.bf16.msra.mxu0 %v5655
  %5714 = vmatpush.bf16.msra.mxu0 %v5654
  %5715 = vmatpush.bf16.msra.mxu0 %v5653
  %5716 = vmatpush.bf16.msra.mxu0 %v5652
  %5717 = vmatpush.bf16.msra.mxu0 %v5651
  %5718 = vmatpush.bf16.msra.mxu0 %v5650
  %5719 = vmatpush.bf16.msra.mxu0 %v5649
  %5720 = vmatpush.bf16.msra.mxu0 %v5648
  %5721 = vmatmul.bf16.gmra.mxu0 %v5473
  %v5722 = vpop.f32.mrf.mxu0
  %v5723 = vadd.f32 %v5710, %v5722
  %v5724 = vpop.f32.mrf.mxu0
  %5725 = vdwg.mxu0
  %5726 = vmatpush.bf16.msra.mxu0 0
  %5727 = vmatpush.bf16.msra.mxu0 0
  %5728 = vmatpush.bf16.msra.mxu0 0
  %5729 = vmatpush.bf16.msra.mxu0 0
  %5730 = vmatpush.bf16.msra.mxu0 0
  %5731 = vmatpush.bf16.msra.mxu0 0
  %5732 = vmatpush.bf16.msra.mxu0 %v5657
  %5733 = vmatpush.bf16.msra.mxu0 %v5656
  %5734 = vmatmul.bf16.gmra.mxu0 %v5685
  %v5735 = vpop.f32.mrf.mxu0
  %v5736 = vadd.f32 %v5723, %v5735
  %v5737 = vpop.f32.mrf.mxu0
  %5738 = vdwg.mxu0
  %v5739 = vadd.f32 %v5397, %v5736
  %v5740 = vld [vmem:[#allocation2 + $0x118] sm:$0xf]
  %v5741 = vld [vmem:[#allocation2 + $0x120] sm:$0xf]
  %v5742 = vld [vmem:[#allocation2 + $0x128] sm:$0xf]
  %v5743 = vld [vmem:[#allocation2 + $0x130] sm:$0xf]
  %v5744 = vld [vmem:[#allocation2 + $0x138] sm:$0xf]
  %v5745 = vld [vmem:[#allocation2 + $0x140] sm:$0xf]
  %v5746 = vld [vmem:[#allocation2 + $0x148] sm:$0xf]
  %v5747 = vld [vmem:[#allocation2 + $0x118] sm:$0xf0]
  %v5748 = vld [vmem:[#allocation2 + $0x120] sm:$0xf0]
  %v5749 = vld [vmem:[#allocation2 + $0x128] sm:$0xf0]
  %v5750 = vld [vmem:[#allocation2 + $0x130] sm:$0xf0]
  %v5751 = vld [vmem:[#allocation2 + $0x138] sm:$0xf0]
  %v5752 = vld [vmem:[#allocation2 + $0x140] sm:$0xf0]
  %v5753 = vld [vmem:[#allocation2 + $0x148] sm:$0xf0]
  %v5761 = vrot.slane %v5747, 4
  %v5762 = vrot.slane %v5748, 4
  %v5763 = vrot.slane %v5749, 4
  %v5764 = vrot.slane %v5750, 4
  %v5765 = vrot.slane %v5751, 4
  %v5766 = vrot.slane %v5752, 4
  %v5767 = vrot.slane %v5753, 4
  %v5775 = vmax.f32 %v5740, %v5761
  %v5776 = vmax.f32 %v5741, %v5762
  %v5777 = vmax.f32 %v5742, %v5763
  %v5778 = vmax.f32 %v5743, %v5764
  %v5779 = vmax.f32 %v5744, %v5765
  %v5780 = vmax.f32 %v5745, %v5766
  %v5781 = vmax.f32 %v5746, %v5767
  %5786 = vrot.lane.b32.xlu0 %v5778, 96
  %v5787 = vpop.permute.xlu0 %5786
  %5788 = vrot.lane.b32.xlu0 %v5779, 96
  %v5789 = vpop.permute.xlu0 %5788
  %5790 = vrot.lane.b32.xlu0 %v5780, 96
  %v5791 = vpop.permute.xlu0 %5790
  %5792 = vrot.lane.b32.xlu0 %v5781, 96
  %v5793 = vpop.permute.xlu0 %5792
  %v5794 = vsel %vm4077, %v5787, %v5789
  %v5795 = vsel %vm4077, %v5789, %v5791
  %v5796 = vsel %vm4077, %v5791, %v5793
  %v5801 = vmax.f32 %v5775, %v5794
  %v5802 = vmax.f32 %v5776, %v5795
  %v5803 = vmax.f32 %v5777, %v5796
  %v5804 = vmax.f32 %v5778, %v5793
  %v5805 = vadd.f32 %v5801, %v4090
  %v5806 = vadd.f32 %v5802, %v4091
  %v5807 = vadd.f32 %v5803, %v4092
  %v5808 = vadd.f32 %v5804, %v4093
  %v5809 = vmax.f32 %v5805, 0.0
  %v5810 = vmax.f32 %v5806, 0.0
  %v5811 = vmax.f32 %v5807, 0.0
  %v5812 = vmax.f32 %v5808, 0.0
  %v5813 = vpack.c.bf16 %v5809, %v5809
  %v5814 = vpack.c.bf16 %v5810, %v5810
  %v5815 = vpack.c.bf16 %v5811, %v5811
  %v5816 = vpack.c.bf16 %v5812, %v5812
  %s5817 = scalar_lea.vmem %s3, 1040
  %v5818 = vld [vmem:[%s5817] sm:$0xf]
  %v5819 = vld [vmem:[%s5817 + $0x4] sm:$0xf]
  %v5820 = vld [vmem:[%s5817 + $0x8] sm:$0xf]
  %v5821 = vld [vmem:[%s5817 + $0xc] sm:$0xf]
  %v5822 = vld [vmem:[%s5817 + $0x10] sm:$0xf]
  %v5823 = vld [vmem:[%s5817 + $0x14] sm:$0xf]
  %v5824 = vld [vmem:[%s5817 + $0x18] sm:$0xf]
  %v5825 = vld [vmem:[%s5817 + $0x1c] sm:$0xf]
  %v5826 = vld [vmem:[%s5817 + $0x20] sm:$0xf]
  %v5827 = vld [vmem:[%s5817 + $0x24] sm:$0xf]
  %v5828 = vld [vmem:[%s5817 + $0x28] sm:$0xf]
  %v5829 = vld [vmem:[%s5817 + $0x2c] sm:$0xf]
  %v5830 = vld [vmem:[%s5817 + $0x30] sm:$0xf]
  %v5831 = vld [vmem:[%s5817 + $0x34] sm:$0xf]
  %v5832 = vld [vmem:[%s5817 + $0x38] sm:$0xf]
  %v5833 = vld [vmem:[%s5817 + $0x3c] sm:$0xf]
  %v5834 = vld [vmem:[%s5817 + $0x40] sm:$0xf]
  %v5835 = vld [vmem:[%s5817 + $0x44] sm:$0xf]
  %v5836 = vld [vmem:[%s5817 + $0x48] sm:$0xf]
  %v5837 = vld [vmem:[%s5817 + $0x4c] sm:$0xf]
  %v5838 = vld [vmem:[%s5817 + $0x50] sm:$0xf]
  %v5839 = vld [vmem:[%s5817 + $0x54] sm:$0xf]
  %v5840 = vld [vmem:[%s5817 + $0x58] sm:$0xf]
  %v5841 = vld [vmem:[%s5817 + $0x5c] sm:$0xf]
  %v5842 = vld [vmem:[%s5817 + $0x60] sm:$0xf]
  %v5843 = vld [vmem:[%s5817 + $0x64] sm:$0xf]
  %v5844 = vld [vmem:[%s5817 + $0x68] sm:$0xf]
  %v5845 = vld [vmem:[%s5817 + $0x6c] sm:$0xf]
  %v5846 = vld [vmem:[%s5817 + $0x70] sm:$0xf]
  %v5847 = vld [vmem:[%s5817 + $0x74] sm:$0xf]
  %v5848 = vld [vmem:[%s5817 + $0x78] sm:$0xf]
  %v5849 = vld [vmem:[%s5817 + $0x7c] sm:$0xf]
  %v5850 = vld [vmem:[%s5817 + $0x80] sm:$0xf]
  %v5851 = vld [vmem:[%s5817 + $0x84] sm:$0xf]
  %v5852 = vld [vmem:[%s5817 + $0x88] sm:$0xf]
  %v5853 = vld [vmem:[%s5817 + $0x8c] sm:$0xf]
  %v5854 = vld [vmem:[%s5817 + $0x90] sm:$0xf]
  %v5855 = vld [vmem:[%s5817 + $0x94] sm:$0xf]
  %v5856 = vld [vmem:[%s5817 + $0x98] sm:$0xf]
  %v5857 = vld [vmem:[%s5817 + $0x9c] sm:$0xf]
  %v5858 = vld [vmem:[%s5817 + $0xa0] sm:$0xf]
  %v5859 = vld [vmem:[%s5817 + $0xa4] sm:$0xf]
  %v5860 = vld [vmem:[%s5817 + $0xa8] sm:$0xf]
  %v5861 = vld [vmem:[%s5817 + $0xac] sm:$0xf]
  %v5862 = vld [vmem:[%s5817 + $0xb0] sm:$0xf]
  %v5863 = vld [vmem:[%s5817 + $0xb4] sm:$0xf]
  %v5864 = vld [vmem:[%s5817 + $0xb8] sm:$0xf]
  %v5865 = vld [vmem:[%s5817 + $0xbc] sm:$0xf]
  %v5866 = vld [vmem:[%s5817 + $0xc0] sm:$0xf]
  %v5867 = vld [vmem:[%s5817 + $0xc4] sm:$0xf]
  %v5868 = vld [vmem:[%s5817 + $0xc8] sm:$0xf]
  %v5869 = vld [vmem:[%s5817 + $0xcc] sm:$0xf]
  %v5922 = vunpack.c.l.b16 %v5818
  %v5923 = vunpack.c.l.b16 %v5819
  %v5924 = vunpack.c.l.b16 %v5820
  %v5925 = vunpack.c.l.b16 %v5821
  %v5926 = vunpack.c.l.b16 %v5822
  %v5927 = vunpack.c.l.b16 %v5823
  %v5928 = vunpack.c.l.b16 %v5824
  %v5929 = vunpack.c.l.b16 %v5825
  %v5930 = vunpack.c.l.b16 %v5826
  %v5931 = vunpack.c.l.b16 %v5827
  %v5932 = vunpack.c.l.b16 %v5828
  %v5933 = vunpack.c.l.b16 %v5829
  %v5934 = vunpack.c.l.b16 %v5830
  %v5935 = vunpack.c.l.b16 %v5831
  %v5936 = vunpack.c.l.b16 %v5832
  %v5937 = vunpack.c.l.b16 %v5833
  %v5938 = vunpack.c.l.b16 %v5834
  %v5939 = vunpack.c.l.b16 %v5835
  %v5940 = vunpack.c.l.b16 %v5836
  %v5941 = vunpack.c.l.b16 %v5837
  %v5942 = vunpack.c.l.b16 %v5838
  %v5943 = vunpack.c.l.b16 %v5839
  %v5944 = vunpack.c.l.b16 %v5840
  %v5945 = vunpack.c.l.b16 %v5841
  %v5946 = vunpack.c.l.b16 %v5842
  %v5947 = vunpack.c.l.b16 %v5843
  %v5948 = vunpack.c.l.b16 %v5844
  %v5949 = vunpack.c.l.b16 %v5845
  %v5950 = vunpack.c.l.b16 %v5846
  %v5951 = vunpack.c.l.b16 %v5847
  %v5952 = vunpack.c.l.b16 %v5848
  %v5953 = vunpack.c.l.b16 %v5849
  %v5954 = vunpack.c.l.b16 %v5850
  %v5955 = vunpack.c.l.b16 %v5851
  %v5956 = vunpack.c.l.b16 %v5852
  %v5957 = vunpack.c.l.b16 %v5853
  %v5958 = vunpack.c.l.b16 %v5854
  %v5959 = vunpack.c.l.b16 %v5855
  %v5960 = vunpack.c.l.b16 %v5856
  %v5961 = vunpack.c.l.b16 %v5857
  %v5962 = vunpack.c.l.b16 %v5858
  %v5963 = vunpack.c.l.b16 %v5859
  %v5964 = vunpack.c.l.b16 %v5860
  %v5965 = vunpack.c.l.b16 %v5861
  %v5966 = vunpack.c.l.b16 %v5862
  %v5967 = vunpack.c.l.b16 %v5863
  %v5968 = vunpack.c.l.b16 %v5864
  %v5969 = vunpack.c.l.b16 %v5865
  %v5970 = vunpack.c.l.b16 %v5866
  %v5971 = vunpack.c.l.b16 %v5867
  %v5972 = vunpack.c.l.b16 %v5868
  %v5973 = vunpack.c.l.b16 %v5869
  %v5974 = vpack.c.b16 %v5923, %v5922
  %v5975 = vpack.c.b16 %v5925, %v5924
  %v5976 = vpack.c.b16 %v5927, %v5926
  %v5977 = vpack.c.b16 %v5929, %v5928
  %v5978 = vpack.c.b16 %v5931, %v5930
  %v5979 = vpack.c.b16 %v5933, %v5932
  %v5980 = vpack.c.b16 %v5935, %v5934
  %v5981 = vpack.c.b16 %v5937, %v5936
  %v5982 = vpack.c.b16 %v5939, %v5938
  %v5983 = vpack.c.b16 %v5941, %v5940
  %v5984 = vpack.c.b16 %v5943, %v5942
  %v5985 = vpack.c.b16 %v5945, %v5944
  %v5986 = vpack.c.b16 %v5947, %v5946
  %v5987 = vpack.c.b16 %v5949, %v5948
  %v5988 = vpack.c.b16 %v5951, %v5950
  %v5989 = vpack.c.b16 %v5953, %v5952
  %v5990 = vpack.c.b16 %v5955, %v5954
  %v5991 = vpack.c.b16 %v5957, %v5956
  %v5992 = vpack.c.b16 %v5959, %v5958
  %v5993 = vpack.c.b16 %v5961, %v5960
  %v5994 = vpack.c.b16 %v5963, %v5962
  %v5995 = vpack.c.b16 %v5965, %v5964
  %v5996 = vpack.c.b16 %v5967, %v5966
  %v5997 = vpack.c.b16 %v5969, %v5968
  %v5998 = vpack.c.b16 %v5971, %v5970
  %v5999 = vpack.c.b16 %v5973, %v5972
  %v6027 = vsel %vm2102, %v5816, 0
  %6029 = vmatpush.bf16.msra.mxu0 %v5981
  %6030 = vmatpush.bf16.msra.mxu0 %v5980
  %6031 = vmatpush.bf16.msra.mxu0 %v5979
  %6032 = vmatpush.bf16.msra.mxu0 %v5978
  %6033 = vmatpush.bf16.msra.mxu0 %v5977
  %6034 = vmatpush.bf16.msra.mxu0 %v5976
  %6035 = vmatpush.bf16.msra.mxu0 %v5975
  %6036 = vmatpush.bf16.msra.mxu0 %v5974
  %6037 = vmatmul.bf16.gmra.mxu0 %v5813
  %v6038 = vpop.f32.mrf.mxu0
  %v6039 = vadd.f32 0.0, %v6038
  %v6040 = vpop.f32.mrf.mxu0
  %6041 = vdwg.mxu0
  %6042 = vmatpush.bf16.msra.mxu0 %v5989
  %6043 = vmatpush.bf16.msra.mxu0 %v5988
  %6044 = vmatpush.bf16.msra.mxu0 %v5987
  %6045 = vmatpush.bf16.msra.mxu0 %v5986
  %6046 = vmatpush.bf16.msra.mxu0 %v5985
  %6047 = vmatpush.bf16.msra.mxu0 %v5984
  %6048 = vmatpush.bf16.msra.mxu0 %v5983
  %6049 = vmatpush.bf16.msra.mxu0 %v5982
  %6050 = vmatmul.bf16.gmra.mxu0 %v5814
  %v6051 = vpop.f32.mrf.mxu0
  %v6052 = vadd.f32 %v6039, %v6051
  %v6053 = vpop.f32.mrf.mxu0
  %6054 = vdwg.mxu0
  %6055 = vmatpush.bf16.msra.mxu0 %v5997
  %6056 = vmatpush.bf16.msra.mxu0 %v5996
  %6057 = vmatpush.bf16.msra.mxu0 %v5995
  %6058 = vmatpush.bf16.msra.mxu0 %v5994
  %6059 = vmatpush.bf16.msra.mxu0 %v5993
  %6060 = vmatpush.bf16.msra.mxu0 %v5992
  %6061 = vmatpush.bf16.msra.mxu0 %v5991
  %6062 = vmatpush.bf16.msra.mxu0 %v5990
  %6063 = vmatmul.bf16.gmra.mxu0 %v5815
  %v6064 = vpop.f32.mrf.mxu0
  %v6065 = vadd.f32 %v6052, %v6064
  %v6066 = vpop.f32.mrf.mxu0
  %6067 = vdwg.mxu0
  %6068 = vmatpush.bf16.msra.mxu0 0
  %6069 = vmatpush.bf16.msra.mxu0 0
  %6070 = vmatpush.bf16.msra.mxu0 0
  %6071 = vmatpush.bf16.msra.mxu0 0
  %6072 = vmatpush.bf16.msra.mxu0 0
  %6073 = vmatpush.bf16.msra.mxu0 0
  %6074 = vmatpush.bf16.msra.mxu0 %v5999
  %6075 = vmatpush.bf16.msra.mxu0 %v5998
  %6076 = vmatmul.bf16.gmra.mxu0 %v6027
  %v6077 = vpop.f32.mrf.mxu0
  %v6078 = vadd.f32 %v6065, %v6077
  %v6079 = vpop.f32.mrf.mxu0
  %6080 = vdwg.mxu0
  %v6081 = vadd.f32 %v5739, %v6078
  %v6082 = vld [vmem:[#allocation2 + $0x150] sm:$0xf]
  %v6083 = vld [vmem:[#allocation2 + $0x158] sm:$0xf]
  %v6084 = vld [vmem:[#allocation2 + $0x160] sm:$0xf]
  %v6085 = vld [vmem:[#allocation2 + $0x168] sm:$0xf]
  %v6086 = vld [vmem:[#allocation2 + $0x170] sm:$0xf]
  %v6087 = vld [vmem:[#allocation2 + $0x178] sm:$0xf]
  %v6088 = vld [vmem:[#allocation2 + $0x180] sm:$0xf]
  %v6089 = vld [vmem:[#allocation2 + $0x150] sm:$0xf0]
  %v6090 = vld [vmem:[#allocation2 + $0x158] sm:$0xf0]
  %v6091 = vld [vmem:[#allocation2 + $0x160] sm:$0xf0]
  %v6092 = vld [vmem:[#allocation2 + $0x168] sm:$0xf0]
  %v6093 = vld [vmem:[#allocation2 + $0x170] sm:$0xf0]
  %v6094 = vld [vmem:[#allocation2 + $0x178] sm:$0xf0]
  %v6095 = vld [vmem:[#allocation2 + $0x180] sm:$0xf0]
  %v6103 = vrot.slane %v6089, 4
  %v6104 = vrot.slane %v6090, 4
  %v6105 = vrot.slane %v6091, 4
  %v6106 = vrot.slane %v6092, 4
  %v6107 = vrot.slane %v6093, 4
  %v6108 = vrot.slane %v6094, 4
  %v6109 = vrot.slane %v6095, 4
  %v6117 = vmax.f32 %v6082, %v6103
  %v6118 = vmax.f32 %v6083, %v6104
  %v6119 = vmax.f32 %v6084, %v6105
  %v6120 = vmax.f32 %v6085, %v6106
  %v6121 = vmax.f32 %v6086, %v6107
  %v6122 = vmax.f32 %v6087, %v6108
  %v6123 = vmax.f32 %v6088, %v6109
  %6128 = vrot.lane.b32.xlu0 %v6120, 96
  %v6129 = vpop.permute.xlu0 %6128
  %6130 = vrot.lane.b32.xlu0 %v6121, 96
  %v6131 = vpop.permute.xlu0 %6130
  %6132 = vrot.lane.b32.xlu0 %v6122, 96
  %v6133 = vpop.permute.xlu0 %6132
  %6134 = vrot.lane.b32.xlu0 %v6123, 96
  %v6135 = vpop.permute.xlu0 %6134
  %v6136 = vsel %vm4077, %v6129, %v6131
  %v6137 = vsel %vm4077, %v6131, %v6133
  %v6138 = vsel %vm4077, %v6133, %v6135
  %v6143 = vmax.f32 %v6117, %v6136
  %v6144 = vmax.f32 %v6118, %v6137
  %v6145 = vmax.f32 %v6119, %v6138
  %v6146 = vmax.f32 %v6120, %v6135
  %v6147 = vadd.f32 %v6143, %v4090
  %v6148 = vadd.f32 %v6144, %v4091
  %v6149 = vadd.f32 %v6145, %v4092
  %v6150 = vadd.f32 %v6146, %v4093
  %v6151 = vmax.f32 %v6147, 0.0
  %v6152 = vmax.f32 %v6148, 0.0
  %v6153 = vmax.f32 %v6149, 0.0
  %v6154 = vmax.f32 %v6150, 0.0
  %v6155 = vpack.c.bf16 %v6151, %v6151
  %v6156 = vpack.c.bf16 %v6152, %v6152
  %v6157 = vpack.c.bf16 %v6153, %v6153
  %v6158 = vpack.c.bf16 %v6154, %v6154
  %s6159 = scalar_lea.vmem %s3, 1248
  %v6160 = vld [vmem:[%s6159] sm:$0xf]
  %v6161 = vld [vmem:[%s6159 + $0x4] sm:$0xf]
  %v6162 = vld [vmem:[%s6159 + $0x8] sm:$0xf]
  %v6163 = vld [vmem:[%s6159 + $0xc] sm:$0xf]
  %v6164 = vld [vmem:[%s6159 + $0x10] sm:$0xf]
  %v6165 = vld [vmem:[%s6159 + $0x14] sm:$0xf]
  %v6166 = vld [vmem:[%s6159 + $0x18] sm:$0xf]
  %v6167 = vld [vmem:[%s6159 + $0x1c] sm:$0xf]
  %v6168 = vld [vmem:[%s6159 + $0x20] sm:$0xf]
  %v6169 = vld [vmem:[%s6159 + $0x24] sm:$0xf]
  %v6170 = vld [vmem:[%s6159 + $0x28] sm:$0xf]
  %v6171 = vld [vmem:[%s6159 + $0x2c] sm:$0xf]
  %v6172 = vld [vmem:[%s6159 + $0x30] sm:$0xf]
  %v6173 = vld [vmem:[%s6159 + $0x34] sm:$0xf]
  %v6174 = vld [vmem:[%s6159 + $0x38] sm:$0xf]
  %v6175 = vld [vmem:[%s6159 + $0x3c] sm:$0xf]
  %v6176 = vld [vmem:[%s6159 + $0x40] sm:$0xf]
  %v6177 = vld [vmem:[%s6159 + $0x44] sm:$0xf]
  %v6178 = vld [vmem:[%s6159 + $0x48] sm:$0xf]
  %v6179 = vld [vmem:[%s6159 + $0x4c] sm:$0xf]
  %v6180 = vld [vmem:[%s6159 + $0x50] sm:$0xf]
  %v6181 = vld [vmem:[%s6159 + $0x54] sm:$0xf]
  %v6182 = vld [vmem:[%s6159 + $0x58] sm:$0xf]
  %v6183 = vld [vmem:[%s6159 + $0x5c] sm:$0xf]
  %v6184 = vld [vmem:[%s6159 + $0x60] sm:$0xf]
  %v6185 = vld [vmem:[%s6159 + $0x64] sm:$0xf]
  %v6186 = vld [vmem:[%s6159 + $0x68] sm:$0xf]
  %v6187 = vld [vmem:[%s6159 + $0x6c] sm:$0xf]
  %v6188 = vld [vmem:[%s6159 + $0x70] sm:$0xf]
  %v6189 = vld [vmem:[%s6159 + $0x74] sm:$0xf]
  %v6190 = vld [vmem:[%s6159 + $0x78] sm:$0xf]
  %v6191 = vld [vmem:[%s6159 + $0x7c] sm:$0xf]
  %v6192 = vld [vmem:[%s6159 + $0x80] sm:$0xf]
  %v6193 = vld [vmem:[%s6159 + $0x84] sm:$0xf]
  %v6194 = vld [vmem:[%s6159 + $0x88] sm:$0xf]
  %v6195 = vld [vmem:[%s6159 + $0x8c] sm:$0xf]
  %v6196 = vld [vmem:[%s6159 + $0x90] sm:$0xf]
  %v6197 = vld [vmem:[%s6159 + $0x94] sm:$0xf]
  %v6198 = vld [vmem:[%s6159 + $0x98] sm:$0xf]
  %v6199 = vld [vmem:[%s6159 + $0x9c] sm:$0xf]
  %v6200 = vld [vmem:[%s6159 + $0xa0] sm:$0xf]
  %v6201 = vld [vmem:[%s6159 + $0xa4] sm:$0xf]
  %v6202 = vld [vmem:[%s6159 + $0xa8] sm:$0xf]
  %v6203 = vld [vmem:[%s6159 + $0xac] sm:$0xf]
  %v6204 = vld [vmem:[%s6159 + $0xb0] sm:$0xf]
  %v6205 = vld [vmem:[%s6159 + $0xb4] sm:$0xf]
  %v6206 = vld [vmem:[%s6159 + $0xb8] sm:$0xf]
  %v6207 = vld [vmem:[%s6159 + $0xbc] sm:$0xf]
  %v6208 = vld [vmem:[%s6159 + $0xc0] sm:$0xf]
  %v6209 = vld [vmem:[%s6159 + $0xc4] sm:$0xf]
  %v6210 = vld [vmem:[%s6159 + $0xc8] sm:$0xf]
  %v6211 = vld [vmem:[%s6159 + $0xcc] sm:$0xf]
  %v6264 = vunpack.c.l.b16 %v6160
  %v6265 = vunpack.c.l.b16 %v6161
  %v6266 = vunpack.c.l.b16 %v6162
  %v6267 = vunpack.c.l.b16 %v6163
  %v6268 = vunpack.c.l.b16 %v6164
  %v6269 = vunpack.c.l.b16 %v6165
  %v6270 = vunpack.c.l.b16 %v6166
  %v6271 = vunpack.c.l.b16 %v6167
  %v6272 = vunpack.c.l.b16 %v6168
  %v6273 = vunpack.c.l.b16 %v6169
  %v6274 = vunpack.c.l.b16 %v6170
  %v6275 = vunpack.c.l.b16 %v6171
  %v6276 = vunpack.c.l.b16 %v6172
  %v6277 = vunpack.c.l.b16 %v6173
  %v6278 = vunpack.c.l.b16 %v6174
  %v6279 = vunpack.c.l.b16 %v6175
  %v6280 = vunpack.c.l.b16 %v6176
  %v6281 = vunpack.c.l.b16 %v6177
  %v6282 = vunpack.c.l.b16 %v6178
  %v6283 = vunpack.c.l.b16 %v6179
  %v6284 = vunpack.c.l.b16 %v6180
  %v6285 = vunpack.c.l.b16 %v6181
  %v6286 = vunpack.c.l.b16 %v6182
  %v6287 = vunpack.c.l.b16 %v6183
  %v6288 = vunpack.c.l.b16 %v6184
  %v6289 = vunpack.c.l.b16 %v6185
  %v6290 = vunpack.c.l.b16 %v6186
  %v6291 = vunpack.c.l.b16 %v6187
  %v6292 = vunpack.c.l.b16 %v6188
  %v6293 = vunpack.c.l.b16 %v6189
  %v6294 = vunpack.c.l.b16 %v6190
  %v6295 = vunpack.c.l.b16 %v6191
  %v6296 = vunpack.c.l.b16 %v6192
  %v6297 = vunpack.c.l.b16 %v6193
  %v6298 = vunpack.c.l.b16 %v6194
  %v6299 = vunpack.c.l.b16 %v6195
  %v6300 = vunpack.c.l.b16 %v6196
  %v6301 = vunpack.c.l.b16 %v6197
  %v6302 = vunpack.c.l.b16 %v6198
  %v6303 = vunpack.c.l.b16 %v6199
  %v6304 = vunpack.c.l.b16 %v6200
  %v6305 = vunpack.c.l.b16 %v6201
  %v6306 = vunpack.c.l.b16 %v6202
  %v6307 = vunpack.c.l.b16 %v6203
  %v6308 = vunpack.c.l.b16 %v6204
  %v6309 = vunpack.c.l.b16 %v6205
  %v6310 = vunpack.c.l.b16 %v6206
  %v6311 = vunpack.c.l.b16 %v6207
  %v6312 = vunpack.c.l.b16 %v6208
  %v6313 = vunpack.c.l.b16 %v6209
  %v6314 = vunpack.c.l.b16 %v6210
  %v6315 = vunpack.c.l.b16 %v6211
  %v6316 = vpack.c.b16 %v6265, %v6264
  %v6317 = vpack.c.b16 %v6267, %v6266
  %v6318 = vpack.c.b16 %v6269, %v6268
  %v6319 = vpack.c.b16 %v6271, %v6270
  %v6320 = vpack.c.b16 %v6273, %v6272
  %v6321 = vpack.c.b16 %v6275, %v6274
  %v6322 = vpack.c.b16 %v6277, %v6276
  %v6323 = vpack.c.b16 %v6279, %v6278
  %v6324 = vpack.c.b16 %v6281, %v6280
  %v6325 = vpack.c.b16 %v6283, %v6282
  %v6326 = vpack.c.b16 %v6285, %v6284
  %v6327 = vpack.c.b16 %v6287, %v6286
  %v6328 = vpack.c.b16 %v6289, %v6288
  %v6329 = vpack.c.b16 %v6291, %v6290
  %v6330 = vpack.c.b16 %v6293, %v6292
  %v6331 = vpack.c.b16 %v6295, %v6294
  %v6332 = vpack.c.b16 %v6297, %v6296
  %v6333 = vpack.c.b16 %v6299, %v6298
  %v6334 = vpack.c.b16 %v6301, %v6300
  %v6335 = vpack.c.b16 %v6303, %v6302
  %v6336 = vpack.c.b16 %v6305, %v6304
  %v6337 = vpack.c.b16 %v6307, %v6306
  %v6338 = vpack.c.b16 %v6309, %v6308
  %v6339 = vpack.c.b16 %v6311, %v6310
  %v6340 = vpack.c.b16 %v6313, %v6312
  %v6341 = vpack.c.b16 %v6315, %v6314
  %v6369 = vsel %vm2102, %v6158, 0
  %6371 = vmatpush.bf16.msra.mxu0 %v6323
  %6372 = vmatpush.bf16.msra.mxu0 %v6322
  %6373 = vmatpush.bf16.msra.mxu0 %v6321
  %6374 = vmatpush.bf16.msra.mxu0 %v6320
  %6375 = vmatpush.bf16.msra.mxu0 %v6319
  %6376 = vmatpush.bf16.msra.mxu0 %v6318
  %6377 = vmatpush.bf16.msra.mxu0 %v6317
  %6378 = vmatpush.bf16.msra.mxu0 %v6316
  %6379 = vmatmul.bf16.gmra.mxu0 %v6155
  %v6380 = vpop.f32.mrf.mxu0
  %v6381 = vadd.f32 0.0, %v6380
  %v6382 = vpop.f32.mrf.mxu0
  %6383 = vdwg.mxu0
  %6384 = vmatpush.bf16.msra.mxu0 %v6331
  %6385 = vmatpush.bf16.msra.mxu0 %v6330
  %6386 = vmatpush.bf16.msra.mxu0 %v6329
  %6387 = vmatpush.bf16.msra.mxu0 %v6328
  %6388 = vmatpush.bf16.msra.mxu0 %v6327
  %6389 = vmatpush.bf16.msra.mxu0 %v6326
  %6390 = vmatpush.bf16.msra.mxu0 %v6325
  %6391 = vmatpush.bf16.msra.mxu0 %v6324
  %6392 = vmatmul.bf16.gmra.mxu0 %v6156
  %v6393 = vpop.f32.mrf.mxu0
  %v6394 = vadd.f32 %v6381, %v6393
  %v6395 = vpop.f32.mrf.mxu0
  %6396 = vdwg.mxu0
  %6397 = vmatpush.bf16.msra.mxu0 %v6339
  %6398 = vmatpush.bf16.msra.mxu0 %v6338
  %6399 = vmatpush.bf16.msra.mxu0 %v6337
  %6400 = vmatpush.bf16.msra.mxu0 %v6336
  %6401 = vmatpush.bf16.msra.mxu0 %v6335
  %6402 = vmatpush.bf16.msra.mxu0 %v6334
  %6403 = vmatpush.bf16.msra.mxu0 %v6333
  %6404 = vmatpush.bf16.msra.mxu0 %v6332
  %6405 = vmatmul.bf16.gmra.mxu0 %v6157
  %v6406 = vpop.f32.mrf.mxu0
  %v6407 = vadd.f32 %v6394, %v6406
  %v6408 = vpop.f32.mrf.mxu0
  %6409 = vdwg.mxu0
  %6410 = vmatpush.bf16.msra.mxu0 0
  %6411 = vmatpush.bf16.msra.mxu0 0
  %6412 = vmatpush.bf16.msra.mxu0 0
  %6413 = vmatpush.bf16.msra.mxu0 0
  %6414 = vmatpush.bf16.msra.mxu0 0
  %6415 = vmatpush.bf16.msra.mxu0 0
  %6416 = vmatpush.bf16.msra.mxu0 %v6341
  %6417 = vmatpush.bf16.msra.mxu0 %v6340
  %6418 = vmatmul.bf16.gmra.mxu0 %v6369
  %v6419 = vpop.f32.mrf.mxu0
  %v6420 = vadd.f32 %v6407, %v6419
  %v6421 = vpop.f32.mrf.mxu0
  %6422 = vdwg.mxu0
  %v6423 = vadd.f32 %v6081, %v6420
  %v6424 = vld [vmem:[#allocation2 + $0x188] sm:$0xf]
  %v6425 = vld [vmem:[#allocation2 + $0x190] sm:$0xf]
  %v6426 = vld [vmem:[#allocation2 + $0x198] sm:$0xf]
  %v6427 = vld [vmem:[#allocation2 + $0x1a0] sm:$0xf]
  %v6428 = vld [vmem:[#allocation2 + $0x1a8] sm:$0xf]
  %v6429 = vld [vmem:[#allocation2 + $0x1b0] sm:$0xf]
  %v6430 = vld [vmem:[#allocation2 + $0x1b8] sm:$0xf]
  %v6431 = vld [vmem:[#allocation2 + $0x188] sm:$0xf0]
  %v6432 = vld [vmem:[#allocation2 + $0x190] sm:$0xf0]
  %v6433 = vld [vmem:[#allocation2 + $0x198] sm:$0xf0]
  %v6434 = vld [vmem:[#allocation2 + $0x1a0] sm:$0xf0]
  %v6435 = vld [vmem:[#allocation2 + $0x1a8] sm:$0xf0]
  %v6436 = vld [vmem:[#allocation2 + $0x1b0] sm:$0xf0]
  %v6437 = vld [vmem:[#allocation2 + $0x1b8] sm:$0xf0]
  %v6445 = vrot.slane %v6431, 4
  %v6446 = vrot.slane %v6432, 4
  %v6447 = vrot.slane %v6433, 4
  %v6448 = vrot.slane %v6434, 4
  %v6449 = vrot.slane %v6435, 4
  %v6450 = vrot.slane %v6436, 4
  %v6451 = vrot.slane %v6437, 4
  %v6459 = vmax.f32 %v6424, %v6445
  %v6460 = vmax.f32 %v6425, %v6446
  %v6461 = vmax.f32 %v6426, %v6447
  %v6462 = vmax.f32 %v6427, %v6448
  %v6463 = vmax.f32 %v6428, %v6449
  %v6464 = vmax.f32 %v6429, %v6450
  %v6465 = vmax.f32 %v6430, %v6451
  %6470 = vrot.lane.b32.xlu0 %v6462, 96
  %v6471 = vpop.permute.xlu0 %6470
  %6472 = vrot.lane.b32.xlu0 %v6463, 96
  %v6473 = vpop.permute.xlu0 %6472
  %6474 = vrot.lane.b32.xlu0 %v6464, 96
  %v6475 = vpop.permute.xlu0 %6474
  %6476 = vrot.lane.b32.xlu0 %v6465, 96
  %v6477 = vpop.permute.xlu0 %6476
  %v6478 = vsel %vm4077, %v6471, %v6473
  %v6479 = vsel %vm4077, %v6473, %v6475
  %v6480 = vsel %vm4077, %v6475, %v6477
  %v6485 = vmax.f32 %v6459, %v6478
  %v6486 = vmax.f32 %v6460, %v6479
  %v6487 = vmax.f32 %v6461, %v6480
  %v6488 = vmax.f32 %v6462, %v6477
  %v6489 = vadd.f32 %v6485, %v4090
  %v6490 = vadd.f32 %v6486, %v4091
  %v6491 = vadd.f32 %v6487, %v4092
  %v6492 = vadd.f32 %v6488, %v4093
  %v6493 = vmax.f32 %v6489, 0.0
  %v6494 = vmax.f32 %v6490, 0.0
  %v6495 = vmax.f32 %v6491, 0.0
  %v6496 = vmax.f32 %v6492, 0.0
  %v6497 = vpack.c.bf16 %v6493, %v6493
  %v6498 = vpack.c.bf16 %v6494, %v6494
  %v6499 = vpack.c.bf16 %v6495, %v6495
  %v6500 = vpack.c.bf16 %v6496, %v6496
  %s6501 = scalar_lea.vmem %s3, 1456
  %v6502 = vld [vmem:[%s6501] sm:$0xf]
  %v6503 = vld [vmem:[%s6501 + $0x4] sm:$0xf]
  %v6504 = vld [vmem:[%s6501 + $0x8] sm:$0xf]
  %v6505 = vld [vmem:[%s6501 + $0xc] sm:$0xf]
  %v6506 = vld [vmem:[%s6501 + $0x10] sm:$0xf]
  %v6507 = vld [vmem:[%s6501 + $0x14] sm:$0xf]
  %v6508 = vld [vmem:[%s6501 + $0x18] sm:$0xf]
  %v6509 = vld [vmem:[%s6501 + $0x1c] sm:$0xf]
  %v6510 = vld [vmem:[%s6501 + $0x20] sm:$0xf]
  %v6511 = vld [vmem:[%s6501 + $0x24] sm:$0xf]
  %v6512 = vld [vmem:[%s6501 + $0x28] sm:$0xf]
  %v6513 = vld [vmem:[%s6501 + $0x2c] sm:$0xf]
  %v6514 = vld [vmem:[%s6501 + $0x30] sm:$0xf]
  %v6515 = vld [vmem:[%s6501 + $0x34] sm:$0xf]
  %v6516 = vld [vmem:[%s6501 + $0x38] sm:$0xf]
  %v6517 = vld [vmem:[%s6501 + $0x3c] sm:$0xf]
  %v6518 = vld [vmem:[%s6501 + $0x40] sm:$0xf]
  %v6519 = vld [vmem:[%s6501 + $0x44] sm:$0xf]
  %v6520 = vld [vmem:[%s6501 + $0x48] sm:$0xf]
  %v6521 = vld [vmem:[%s6501 + $0x4c] sm:$0xf]
  %v6522 = vld [vmem:[%s6501 + $0x50] sm:$0xf]
  %v6523 = vld [vmem:[%s6501 + $0x54] sm:$0xf]
  %v6524 = vld [vmem:[%s6501 + $0x58] sm:$0xf]
  %v6525 = vld [vmem:[%s6501 + $0x5c] sm:$0xf]
  %v6526 = vld [vmem:[%s6501 + $0x60] sm:$0xf]
  %v6527 = vld [vmem:[%s6501 + $0x64] sm:$0xf]
  %v6528 = vld [vmem:[%s6501 + $0x68] sm:$0xf]
  %v6529 = vld [vmem:[%s6501 + $0x6c] sm:$0xf]
  %v6530 = vld [vmem:[%s6501 + $0x70] sm:$0xf]
  %v6531 = vld [vmem:[%s6501 + $0x74] sm:$0xf]
  %v6532 = vld [vmem:[%s6501 + $0x78] sm:$0xf]
  %v6533 = vld [vmem:[%s6501 + $0x7c] sm:$0xf]
  %v6534 = vld [vmem:[%s6501 + $0x80] sm:$0xf]
  %v6535 = vld [vmem:[%s6501 + $0x84] sm:$0xf]
  %v6536 = vld [vmem:[%s6501 + $0x88] sm:$0xf]
  %v6537 = vld [vmem:[%s6501 + $0x8c] sm:$0xf]
  %v6538 = vld [vmem:[%s6501 + $0x90] sm:$0xf]
  %v6539 = vld [vmem:[%s6501 + $0x94] sm:$0xf]
  %v6540 = vld [vmem:[%s6501 + $0x98] sm:$0xf]
  %v6541 = vld [vmem:[%s6501 + $0x9c] sm:$0xf]
  %v6542 = vld [vmem:[%s6501 + $0xa0] sm:$0xf]
  %v6543 = vld [vmem:[%s6501 + $0xa4] sm:$0xf]
  %v6544 = vld [vmem:[%s6501 + $0xa8] sm:$0xf]
  %v6545 = vld [vmem:[%s6501 + $0xac] sm:$0xf]
  %v6546 = vld [vmem:[%s6501 + $0xb0] sm:$0xf]
  %v6547 = vld [vmem:[%s6501 + $0xb4] sm:$0xf]
  %v6548 = vld [vmem:[%s6501 + $0xb8] sm:$0xf]
  %v6549 = vld [vmem:[%s6501 + $0xbc] sm:$0xf]
  %v6550 = vld [vmem:[%s6501 + $0xc0] sm:$0xf]
  %v6551 = vld [vmem:[%s6501 + $0xc4] sm:$0xf]
  %v6552 = vld [vmem:[%s6501 + $0xc8] sm:$0xf]
  %v6553 = vld [vmem:[%s6501 + $0xcc] sm:$0xf]
  %v6606 = vunpack.c.l.b16 %v6502
  %v6607 = vunpack.c.l.b16 %v6503
  %v6608 = vunpack.c.l.b16 %v6504
  %v6609 = vunpack.c.l.b16 %v6505
  %v6610 = vunpack.c.l.b16 %v6506
  %v6611 = vunpack.c.l.b16 %v6507
  %v6612 = vunpack.c.l.b16 %v6508
  %v6613 = vunpack.c.l.b16 %v6509
  %v6614 = vunpack.c.l.b16 %v6510
  %v6615 = vunpack.c.l.b16 %v6511
  %v6616 = vunpack.c.l.b16 %v6512
  %v6617 = vunpack.c.l.b16 %v6513
  %v6618 = vunpack.c.l.b16 %v6514
  %v6619 = vunpack.c.l.b16 %v6515
  %v6620 = vunpack.c.l.b16 %v6516
  %v6621 = vunpack.c.l.b16 %v6517
  %v6622 = vunpack.c.l.b16 %v6518
  %v6623 = vunpack.c.l.b16 %v6519
  %v6624 = vunpack.c.l.b16 %v6520
  %v6625 = vunpack.c.l.b16 %v6521
  %v6626 = vunpack.c.l.b16 %v6522
  %v6627 = vunpack.c.l.b16 %v6523
  %v6628 = vunpack.c.l.b16 %v6524
  %v6629 = vunpack.c.l.b16 %v6525
  %v6630 = vunpack.c.l.b16 %v6526
  %v6631 = vunpack.c.l.b16 %v6527
  %v6632 = vunpack.c.l.b16 %v6528
  %v6633 = vunpack.c.l.b16 %v6529
  %v6634 = vunpack.c.l.b16 %v6530
  %v6635 = vunpack.c.l.b16 %v6531
  %v6636 = vunpack.c.l.b16 %v6532
  %v6637 = vunpack.c.l.b16 %v6533
  %v6638 = vunpack.c.l.b16 %v6534
  %v6639 = vunpack.c.l.b16 %v6535
  %v6640 = vunpack.c.l.b16 %v6536
  %v6641 = vunpack.c.l.b16 %v6537
  %v6642 = vunpack.c.l.b16 %v6538
  %v6643 = vunpack.c.l.b16 %v6539
  %v6644 = vunpack.c.l.b16 %v6540
  %v6645 = vunpack.c.l.b16 %v6541
  %v6646 = vunpack.c.l.b16 %v6542
  %v6647 = vunpack.c.l.b16 %v6543
  %v6648 = vunpack.c.l.b16 %v6544
  %v6649 = vunpack.c.l.b16 %v6545
  %v6650 = vunpack.c.l.b16 %v6546
  %v6651 = vunpack.c.l.b16 %v6547
  %v6652 = vunpack.c.l.b16 %v6548
  %v6653 = vunpack.c.l.b16 %v6549
  %v6654 = vunpack.c.l.b16 %v6550
  %v6655 = vunpack.c.l.b16 %v6551
  %v6656 = vunpack.c.l.b16 %v6552
  %v6657 = vunpack.c.l.b16 %v6553
  %v6658 = vpack.c.b16 %v6607, %v6606
  %v6659 = vpack.c.b16 %v6609, %v6608
  %v6660 = vpack.c.b16 %v6611, %v6610
  %v6661 = vpack.c.b16 %v6613, %v6612
  %v6662 = vpack.c.b16 %v6615, %v6614
  %v6663 = vpack.c.b16 %v6617, %v6616
  %v6664 = vpack.c.b16 %v6619, %v6618
  %v6665 = vpack.c.b16 %v6621, %v6620
  %v6666 = vpack.c.b16 %v6623, %v6622
  %v6667 = vpack.c.b16 %v6625, %v6624
  %v6668 = vpack.c.b16 %v6627, %v6626
  %v6669 = vpack.c.b16 %v6629, %v6628
  %v6670 = vpack.c.b16 %v6631, %v6630
  %v6671 = vpack.c.b16 %v6633, %v6632
  %v6672 = vpack.c.b16 %v6635, %v6634
  %v6673 = vpack.c.b16 %v6637, %v6636
  %v6674 = vpack.c.b16 %v6639, %v6638
  %v6675 = vpack.c.b16 %v6641, %v6640
  %v6676 = vpack.c.b16 %v6643, %v6642
  %v6677 = vpack.c.b16 %v6645, %v6644
  %v6678 = vpack.c.b16 %v6647, %v6646
  %v6679 = vpack.c.b16 %v6649, %v6648
  %v6680 = vpack.c.b16 %v6651, %v6650
  %v6681 = vpack.c.b16 %v6653, %v6652
  %v6682 = vpack.c.b16 %v6655, %v6654
  %v6683 = vpack.c.b16 %v6657, %v6656
  %v6711 = vsel %vm2102, %v6500, 0
  %6713 = vmatpush.bf16.msra.mxu0 %v6665
  %6714 = vmatpush.bf16.msra.mxu0 %v6664
  %6715 = vmatpush.bf16.msra.mxu0 %v6663
  %6716 = vmatpush.bf16.msra.mxu0 %v6662
  %6717 = vmatpush.bf16.msra.mxu0 %v6661
  %6718 = vmatpush.bf16.msra.mxu0 %v6660
  %6719 = vmatpush.bf16.msra.mxu0 %v6659
  %6720 = vmatpush.bf16.msra.mxu0 %v6658
  %6721 = vmatmul.bf16.gmra.mxu0 %v6497
  %v6722 = vpop.f32.mrf.mxu0
  %v6723 = vadd.f32 0.0, %v6722
  %v6724 = vpop.f32.mrf.mxu0
  %6725 = vdwg.mxu0
  %6726 = vmatpush.bf16.msra.mxu0 %v6673
  %6727 = vmatpush.bf16.msra.mxu0 %v6672
  %6728 = vmatpush.bf16.msra.mxu0 %v6671
  %6729 = vmatpush.bf16.msra.mxu0 %v6670
  %6730 = vmatpush.bf16.msra.mxu0 %v6669
  %6731 = vmatpush.bf16.msra.mxu0 %v6668
  %6732 = vmatpush.bf16.msra.mxu0 %v6667
  %6733 = vmatpush.bf16.msra.mxu0 %v6666
  %6734 = vmatmul.bf16.gmra.mxu0 %v6498
  %v6735 = vpop.f32.mrf.mxu0
  %v6736 = vadd.f32 %v6723, %v6735
  %v6737 = vpop.f32.mrf.mxu0
  %6738 = vdwg.mxu0
  %6739 = vmatpush.bf16.msra.mxu0 %v6681
  %6740 = vmatpush.bf16.msra.mxu0 %v6680
  %6741 = vmatpush.bf16.msra.mxu0 %v6679
  %6742 = vmatpush.bf16.msra.mxu0 %v6678
  %6743 = vmatpush.bf16.msra.mxu0 %v6677
  %6744 = vmatpush.bf16.msra.mxu0 %v6676
  %6745 = vmatpush.bf16.msra.mxu0 %v6675
  %6746 = vmatpush.bf16.msra.mxu0 %v6674
  %6747 = vmatmul.bf16.gmra.mxu0 %v6499
  %v6748 = vpop.f32.mrf.mxu0
  %v6749 = vadd.f32 %v6736, %v6748
  %v6750 = vpop.f32.mrf.mxu0
  %6751 = vdwg.mxu0
  %6752 = vmatpush.bf16.msra.mxu0 0
  %6753 = vmatpush.bf16.msra.mxu0 0
  %6754 = vmatpush.bf16.msra.mxu0 0
  %6755 = vmatpush.bf16.msra.mxu0 0
  %6756 = vmatpush.bf16.msra.mxu0 0
  %6757 = vmatpush.bf16.msra.mxu0 0
  %6758 = vmatpush.bf16.msra.mxu0 %v6683
  %6759 = vmatpush.bf16.msra.mxu0 %v6682
  %6760 = vmatmul.bf16.gmra.mxu0 %v6711
  %v6761 = vpop.f32.mrf.mxu0
  %v6762 = vadd.f32 %v6749, %v6761
  %v6763 = vpop.f32.mrf.mxu0
  %6764 = vdwg.mxu0
  %v6765 = vadd.f32 %v6423, %v6762
  %v6766 = vld [vmem:[#allocation2 + $0x1c0] sm:$0xf]
  %v6767 = vld [vmem:[#allocation2 + $0x1c8] sm:$0xf]
  %v6768 = vld [vmem:[#allocation2 + $0x1d0] sm:$0xf]
  %v6769 = vld [vmem:[#allocation2 + $0x1d8] sm:$0xf]
  %v6770 = vld [vmem:[#allocation2 + $0x1e0] sm:$0xf]
  %v6771 = vld [vmem:[#allocation2 + $0x1e8] sm:$0xf]
  %v6772 = vld [vmem:[#allocation2 + $0x1f0] sm:$0xf]
  %v6773 = vld [vmem:[#allocation2 + $0x1c0] sm:$0xf0]
  %v6774 = vld [vmem:[#allocation2 + $0x1c8] sm:$0xf0]
  %v6775 = vld [vmem:[#allocation2 + $0x1d0] sm:$0xf0]
  %v6776 = vld [vmem:[#allocation2 + $0x1d8] sm:$0xf0]
  %v6777 = vld [vmem:[#allocation2 + $0x1e0] sm:$0xf0]
  %v6778 = vld [vmem:[#allocation2 + $0x1e8] sm:$0xf0]
  %v6779 = vld [vmem:[#allocation2 + $0x1f0] sm:$0xf0]
  %v6787 = vrot.slane %v6773, 4
  %v6788 = vrot.slane %v6774, 4
  %v6789 = vrot.slane %v6775, 4
  %v6790 = vrot.slane %v6776, 4
  %v6791 = vrot.slane %v6777, 4
  %v6792 = vrot.slane %v6778, 4
  %v6793 = vrot.slane %v6779, 4
  %v6801 = vmax.f32 %v6766, %v6787
  %v6802 = vmax.f32 %v6767, %v6788
  %v6803 = vmax.f32 %v6768, %v6789
  %v6804 = vmax.f32 %v6769, %v6790
  %v6805 = vmax.f32 %v6770, %v6791
  %v6806 = vmax.f32 %v6771, %v6792
  %v6807 = vmax.f32 %v6772, %v6793
  %6812 = vrot.lane.b32.xlu0 %v6804, 96
  %v6813 = vpop.permute.xlu0 %6812
  %6814 = vrot.lane.b32.xlu0 %v6805, 96
  %v6815 = vpop.permute.xlu0 %6814
  %6816 = vrot.lane.b32.xlu0 %v6806, 96
  %v6817 = vpop.permute.xlu0 %6816
  %6818 = vrot.lane.b32.xlu0 %v6807, 96
  %v6819 = vpop.permute.xlu0 %6818
  %v6820 = vsel %vm4077, %v6813, %v6815
  %v6821 = vsel %vm4077, %v6815, %v6817
  %v6822 = vsel %vm4077, %v6817, %v6819
  %v6827 = vmax.f32 %v6801, %v6820
  %v6828 = vmax.f32 %v6802, %v6821
  %v6829 = vmax.f32 %v6803, %v6822
  %v6830 = vmax.f32 %v6804, %v6819
  %v6831 = vadd.f32 %v6827, %v4090
  %v6832 = vadd.f32 %v6828, %v4091
  %v6833 = vadd.f32 %v6829, %v4092
  %v6834 = vadd.f32 %v6830, %v4093
  %v6835 = vmax.f32 %v6831, 0.0
  %v6836 = vmax.f32 %v6832, 0.0
  %v6837 = vmax.f32 %v6833, 0.0
  %v6838 = vmax.f32 %v6834, 0.0
  %v6839 = vpack.c.bf16 %v6835, %v6835
  %v6840 = vpack.c.bf16 %v6836, %v6836
  %v6841 = vpack.c.bf16 %v6837, %v6837
  %v6842 = vpack.c.bf16 %v6838, %v6838
  %s6843 = scalar_lea.vmem %s3, 1664
  %v6844 = vld [vmem:[%s6843] sm:$0xf]
  %v6845 = vld [vmem:[%s6843 + $0x4] sm:$0xf]
  %v6846 = vld [vmem:[%s6843 + $0x8] sm:$0xf]
  %v6847 = vld [vmem:[%s6843 + $0xc] sm:$0xf]
  %v6848 = vld [vmem:[%s6843 + $0x10] sm:$0xf]
  %v6849 = vld [vmem:[%s6843 + $0x14] sm:$0xf]
  %v6850 = vld [vmem:[%s6843 + $0x18] sm:$0xf]
  %v6851 = vld [vmem:[%s6843 + $0x1c] sm:$0xf]
  %v6852 = vld [vmem:[%s6843 + $0x20] sm:$0xf]
  %v6853 = vld [vmem:[%s6843 + $0x24] sm:$0xf]
  %v6854 = vld [vmem:[%s6843 + $0x28] sm:$0xf]
  %v6855 = vld [vmem:[%s6843 + $0x2c] sm:$0xf]
  %v6856 = vld [vmem:[%s6843 + $0x30] sm:$0xf]
  %v6857 = vld [vmem:[%s6843 + $0x34] sm:$0xf]
  %v6858 = vld [vmem:[%s6843 + $0x38] sm:$0xf]
  %v6859 = vld [vmem:[%s6843 + $0x3c] sm:$0xf]
  %v6860 = vld [vmem:[%s6843 + $0x40] sm:$0xf]
  %v6861 = vld [vmem:[%s6843 + $0x44] sm:$0xf]
  %v6862 = vld [vmem:[%s6843 + $0x48] sm:$0xf]
  %v6863 = vld [vmem:[%s6843 + $0x4c] sm:$0xf]
  %v6864 = vld [vmem:[%s6843 + $0x50] sm:$0xf]
  %v6865 = vld [vmem:[%s6843 + $0x54] sm:$0xf]
  %v6866 = vld [vmem:[%s6843 + $0x58] sm:$0xf]
  %v6867 = vld [vmem:[%s6843 + $0x5c] sm:$0xf]
  %v6868 = vld [vmem:[%s6843 + $0x60] sm:$0xf]
  %v6869 = vld [vmem:[%s6843 + $0x64] sm:$0xf]
  %v6870 = vld [vmem:[%s6843 + $0x68] sm:$0xf]
  %v6871 = vld [vmem:[%s6843 + $0x6c] sm:$0xf]
  %v6872 = vld [vmem:[%s6843 + $0x70] sm:$0xf]
  %v6873 = vld [vmem:[%s6843 + $0x74] sm:$0xf]
  %v6874 = vld [vmem:[%s6843 + $0x78] sm:$0xf]
  %v6875 = vld [vmem:[%s6843 + $0x7c] sm:$0xf]
  %v6876 = vld [vmem:[%s6843 + $0x80] sm:$0xf]
  %v6877 = vld [vmem:[%s6843 + $0x84] sm:$0xf]
  %v6878 = vld [vmem:[%s6843 + $0x88] sm:$0xf]
  %v6879 = vld [vmem:[%s6843 + $0x8c] sm:$0xf]
  %v6880 = vld [vmem:[%s6843 + $0x90] sm:$0xf]
  %v6881 = vld [vmem:[%s6843 + $0x94] sm:$0xf]
  %v6882 = vld [vmem:[%s6843 + $0x98] sm:$0xf]
  %v6883 = vld [vmem:[%s6843 + $0x9c] sm:$0xf]
  %v6884 = vld [vmem:[%s6843 + $0xa0] sm:$0xf]
  %v6885 = vld [vmem:[%s6843 + $0xa4] sm:$0xf]
  %v6886 = vld [vmem:[%s6843 + $0xa8] sm:$0xf]
  %v6887 = vld [vmem:[%s6843 + $0xac] sm:$0xf]
  %v6888 = vld [vmem:[%s6843 + $0xb0] sm:$0xf]
  %v6889 = vld [vmem:[%s6843 + $0xb4] sm:$0xf]
  %v6890 = vld [vmem:[%s6843 + $0xb8] sm:$0xf]
  %v6891 = vld [vmem:[%s6843 + $0xbc] sm:$0xf]
  %v6892 = vld [vmem:[%s6843 + $0xc0] sm:$0xf]
  %v6893 = vld [vmem:[%s6843 + $0xc4] sm:$0xf]
  %v6894 = vld [vmem:[%s6843 + $0xc8] sm:$0xf]
  %v6895 = vld [vmem:[%s6843 + $0xcc] sm:$0xf]
  %v6948 = vunpack.c.l.b16 %v6844
  %v6949 = vunpack.c.l.b16 %v6845
  %v6950 = vunpack.c.l.b16 %v6846
  %v6951 = vunpack.c.l.b16 %v6847
  %v6952 = vunpack.c.l.b16 %v6848
  %v6953 = vunpack.c.l.b16 %v6849
  %v6954 = vunpack.c.l.b16 %v6850
  %v6955 = vunpack.c.l.b16 %v6851
  %v6956 = vunpack.c.l.b16 %v6852
  %v6957 = vunpack.c.l.b16 %v6853
  %v6958 = vunpack.c.l.b16 %v6854
  %v6959 = vunpack.c.l.b16 %v6855
  %v6960 = vunpack.c.l.b16 %v6856
  %v6961 = vunpack.c.l.b16 %v6857
  %v6962 = vunpack.c.l.b16 %v6858
  %v6963 = vunpack.c.l.b16 %v6859
  %v6964 = vunpack.c.l.b16 %v6860
  %v6965 = vunpack.c.l.b16 %v6861
  %v6966 = vunpack.c.l.b16 %v6862
  %v6967 = vunpack.c.l.b16 %v6863
  %v6968 = vunpack.c.l.b16 %v6864
  %v6969 = vunpack.c.l.b16 %v6865
  %v6970 = vunpack.c.l.b16 %v6866
  %v6971 = vunpack.c.l.b16 %v6867
  %v6972 = vunpack.c.l.b16 %v6868
  %v6973 = vunpack.c.l.b16 %v6869
  %v6974 = vunpack.c.l.b16 %v6870
  %v6975 = vunpack.c.l.b16 %v6871
  %v6976 = vunpack.c.l.b16 %v6872
  %v6977 = vunpack.c.l.b16 %v6873
  %v6978 = vunpack.c.l.b16 %v6874
  %v6979 = vunpack.c.l.b16 %v6875
  %v6980 = vunpack.c.l.b16 %v6876
  %v6981 = vunpack.c.l.b16 %v6877
  %v6982 = vunpack.c.l.b16 %v6878
  %v6983 = vunpack.c.l.b16 %v6879
  %v6984 = vunpack.c.l.b16 %v6880
  %v6985 = vunpack.c.l.b16 %v6881
  %v6986 = vunpack.c.l.b16 %v6882
  %v6987 = vunpack.c.l.b16 %v6883
  %v6988 = vunpack.c.l.b16 %v6884
  %v6989 = vunpack.c.l.b16 %v6885
  %v6990 = vunpack.c.l.b16 %v6886
  %v6991 = vunpack.c.l.b16 %v6887
  %v6992 = vunpack.c.l.b16 %v6888
  %v6993 = vunpack.c.l.b16 %v6889
  %v6994 = vunpack.c.l.b16 %v6890
  %v6995 = vunpack.c.l.b16 %v6891
  %v6996 = vunpack.c.l.b16 %v6892
  %v6997 = vunpack.c.l.b16 %v6893
  %v6998 = vunpack.c.l.b16 %v6894
  %v6999 = vunpack.c.l.b16 %v6895
  %v7000 = vpack.c.b16 %v6949, %v6948
  %v7001 = vpack.c.b16 %v6951, %v6950
  %v7002 = vpack.c.b16 %v6953, %v6952
  %v7003 = vpack.c.b16 %v6955, %v6954
  %v7004 = vpack.c.b16 %v6957, %v6956
  %v7005 = vpack.c.b16 %v6959, %v6958
  %v7006 = vpack.c.b16 %v6961, %v6960
  %v7007 = vpack.c.b16 %v6963, %v6962
  %v7008 = vpack.c.b16 %v6965, %v6964
  %v7009 = vpack.c.b16 %v6967, %v6966
  %v7010 = vpack.c.b16 %v6969, %v6968
  %v7011 = vpack.c.b16 %v6971, %v6970
  %v7012 = vpack.c.b16 %v6973, %v6972
  %v7013 = vpack.c.b16 %v6975, %v6974
  %v7014 = vpack.c.b16 %v6977, %v6976
  %v7015 = vpack.c.b16 %v6979, %v6978
  %v7016 = vpack.c.b16 %v6981, %v6980
  %v7017 = vpack.c.b16 %v6983, %v6982
  %v7018 = vpack.c.b16 %v6985, %v6984
  %v7019 = vpack.c.b16 %v6987, %v6986
  %v7020 = vpack.c.b16 %v6989, %v6988
  %v7021 = vpack.c.b16 %v6991, %v6990
  %v7022 = vpack.c.b16 %v6993, %v6992
  %v7023 = vpack.c.b16 %v6995, %v6994
  %v7024 = vpack.c.b16 %v6997, %v6996
  %v7025 = vpack.c.b16 %v6999, %v6998
  %v7053 = vsel %vm2102, %v6842, 0
  %7055 = vmatpush.bf16.msra.mxu0 %v7007
  %7056 = vmatpush.bf16.msra.mxu0 %v7006
  %7057 = vmatpush.bf16.msra.mxu0 %v7005
  %7058 = vmatpush.bf16.msra.mxu0 %v7004
  %7059 = vmatpush.bf16.msra.mxu0 %v7003
  %7060 = vmatpush.bf16.msra.mxu0 %v7002
  %7061 = vmatpush.bf16.msra.mxu0 %v7001
  %7062 = vmatpush.bf16.msra.mxu0 %v7000
  %7063 = vmatmul.bf16.gmra.mxu0 %v6839
  %v7064 = vpop.f32.mrf.mxu0
  %v7065 = vadd.f32 0.0, %v7064
  %v7066 = vpop.f32.mrf.mxu0
  %7067 = vdwg.mxu0
  %7068 = vmatpush.bf16.msra.mxu0 %v7015
  %7069 = vmatpush.bf16.msra.mxu0 %v7014
  %7070 = vmatpush.bf16.msra.mxu0 %v7013
  %7071 = vmatpush.bf16.msra.mxu0 %v7012
  %7072 = vmatpush.bf16.msra.mxu0 %v7011
  %7073 = vmatpush.bf16.msra.mxu0 %v7010
  %7074 = vmatpush.bf16.msra.mxu0 %v7009
  %7075 = vmatpush.bf16.msra.mxu0 %v7008
  %7076 = vmatmul.bf16.gmra.mxu0 %v6840
  %v7077 = vpop.f32.mrf.mxu0
  %v7078 = vadd.f32 %v7065, %v7077
  %v7079 = vpop.f32.mrf.mxu0
  %7080 = vdwg.mxu0
  %7081 = vmatpush.bf16.msra.mxu0 %v7023
  %7082 = vmatpush.bf16.msra.mxu0 %v7022
  %7083 = vmatpush.bf16.msra.mxu0 %v7021
  %7084 = vmatpush.bf16.msra.mxu0 %v7020
  %7085 = vmatpush.bf16.msra.mxu0 %v7019
  %7086 = vmatpush.bf16.msra.mxu0 %v7018
  %7087 = vmatpush.bf16.msra.mxu0 %v7017
  %7088 = vmatpush.bf16.msra.mxu0 %v7016
  %7089 = vmatmul.bf16.gmra.mxu0 %v6841
  %v7090 = vpop.f32.mrf.mxu0
  %v7091 = vadd.f32 %v7078, %v7090
  %v7092 = vpop.f32.mrf.mxu0
  %7093 = vdwg.mxu0
  %7094 = vmatpush.bf16.msra.mxu0 0
  %7095 = vmatpush.bf16.msra.mxu0 0
  %7096 = vmatpush.bf16.msra.mxu0 0
  %7097 = vmatpush.bf16.msra.mxu0 0
  %7098 = vmatpush.bf16.msra.mxu0 0
  %7099 = vmatpush.bf16.msra.mxu0 0
  %7100 = vmatpush.bf16.msra.mxu0 %v7025
  %7101 = vmatpush.bf16.msra.mxu0 %v7024
  %7102 = vmatmul.bf16.gmra.mxu0 %v7053
  %v7103 = vpop.f32.mrf.mxu0
  %v7104 = vadd.f32 %v7091, %v7103
  %v7105 = vpop.f32.mrf.mxu0
  %7106 = vdwg.mxu0
  %v7107 = vadd.f32 %v6765, %v7104
  %v7108 = vld [vmem:[#allocation2 + $0x1f8] sm:$0xf]
  %v7109 = vld [vmem:[#allocation2 + $0x200] sm:$0xf]
  %v7110 = vld [vmem:[#allocation2 + $0x208] sm:$0xf]
  %v7111 = vld [vmem:[#allocation2 + $0x210] sm:$0xf]
  %v7112 = vld [vmem:[#allocation2 + $0x218] sm:$0xf]
  %v7113 = vld [vmem:[#allocation2 + $0x220] sm:$0xf]
  %v7114 = vld [vmem:[#allocation2 + $0x228] sm:$0xf]
  %v7115 = vld [vmem:[#allocation2 + $0x1f8] sm:$0xf0]
  %v7116 = vld [vmem:[#allocation2 + $0x200] sm:$0xf0]
  %v7117 = vld [vmem:[#allocation2 + $0x208] sm:$0xf0]
  %v7118 = vld [vmem:[#allocation2 + $0x210] sm:$0xf0]
  %v7119 = vld [vmem:[#allocation2 + $0x218] sm:$0xf0]
  %v7120 = vld [vmem:[#allocation2 + $0x220] sm:$0xf0]
  %v7121 = vld [vmem:[#allocation2 + $0x228] sm:$0xf0]
  %v7129 = vrot.slane %v7115, 4
  %v7130 = vrot.slane %v7116, 4
  %v7131 = vrot.slane %v7117, 4
  %v7132 = vrot.slane %v7118, 4
  %v7133 = vrot.slane %v7119, 4
  %v7134 = vrot.slane %v7120, 4
  %v7135 = vrot.slane %v7121, 4
  %v7143 = vmax.f32 %v7108, %v7129
  %v7144 = vmax.f32 %v7109, %v7130
  %v7145 = vmax.f32 %v7110, %v7131
  %v7146 = vmax.f32 %v7111, %v7132
  %v7147 = vmax.f32 %v7112, %v7133
  %v7148 = vmax.f32 %v7113, %v7134
  %v7149 = vmax.f32 %v7114, %v7135
  %7154 = vrot.lane.b32.xlu0 %v7146, 96
  %v7155 = vpop.permute.xlu0 %7154
  %7156 = vrot.lane.b32.xlu0 %v7147, 96
  %v7157 = vpop.permute.xlu0 %7156
  %7158 = vrot.lane.b32.xlu0 %v7148, 96
  %v7159 = vpop.permute.xlu0 %7158
  %7160 = vrot.lane.b32.xlu0 %v7149, 96
  %v7161 = vpop.permute.xlu0 %7160
  %v7162 = vsel %vm4077, %v7155, %v7157
  %v7163 = vsel %vm4077, %v7157, %v7159
  %v7164 = vsel %vm4077, %v7159, %v7161
  %v7169 = vmax.f32 %v7143, %v7162
  %v7170 = vmax.f32 %v7144, %v7163
  %v7171 = vmax.f32 %v7145, %v7164
  %v7172 = vmax.f32 %v7146, %v7161
  %v7173 = vadd.f32 %v7169, %v4090
  %v7174 = vadd.f32 %v7170, %v4091
  %v7175 = vadd.f32 %v7171, %v4092
  %v7176 = vadd.f32 %v7172, %v4093
  %v7177 = vmax.f32 %v7173, 0.0
  %v7178 = vmax.f32 %v7174, 0.0
  %v7179 = vmax.f32 %v7175, 0.0
  %v7180 = vmax.f32 %v7176, 0.0
  %v7181 = vpack.c.bf16 %v7177, %v7177
  %v7182 = vpack.c.bf16 %v7178, %v7178
  %v7183 = vpack.c.bf16 %v7179, %v7179
  %v7184 = vpack.c.bf16 %v7180, %v7180
  %s7185 = scalar_lea.vmem %s3, 1872
  %v7186 = vld [vmem:[%s7185] sm:$0xf]
  %v7187 = vld [vmem:[%s7185 + $0x4] sm:$0xf]
  %v7188 = vld [vmem:[%s7185 + $0x8] sm:$0xf]
  %v7189 = vld [vmem:[%s7185 + $0xc] sm:$0xf]
  %v7190 = vld [vmem:[%s7185 + $0x10] sm:$0xf]
  %v7191 = vld [vmem:[%s7185 + $0x14] sm:$0xf]
  %v7192 = vld [vmem:[%s7185 + $0x18] sm:$0xf]
  %v7193 = vld [vmem:[%s7185 + $0x1c] sm:$0xf]
  %v7194 = vld [vmem:[%s7185 + $0x20] sm:$0xf]
  %v7195 = vld [vmem:[%s7185 + $0x24] sm:$0xf]
  %v7196 = vld [vmem:[%s7185 + $0x28] sm:$0xf]
  %v7197 = vld [vmem:[%s7185 + $0x2c] sm:$0xf]
  %v7198 = vld [vmem:[%s7185 + $0x30] sm:$0xf]
  %v7199 = vld [vmem:[%s7185 + $0x34] sm:$0xf]
  %v7200 = vld [vmem:[%s7185 + $0x38] sm:$0xf]
  %v7201 = vld [vmem:[%s7185 + $0x3c] sm:$0xf]
  %v7202 = vld [vmem:[%s7185 + $0x40] sm:$0xf]
  %v7203 = vld [vmem:[%s7185 + $0x44] sm:$0xf]
  %v7204 = vld [vmem:[%s7185 + $0x48] sm:$0xf]
  %v7205 = vld [vmem:[%s7185 + $0x4c] sm:$0xf]
  %v7206 = vld [vmem:[%s7185 + $0x50] sm:$0xf]
  %v7207 = vld [vmem:[%s7185 + $0x54] sm:$0xf]
  %v7208 = vld [vmem:[%s7185 + $0x58] sm:$0xf]
  %v7209 = vld [vmem:[%s7185 + $0x5c] sm:$0xf]
  %v7210 = vld [vmem:[%s7185 + $0x60] sm:$0xf]
  %v7211 = vld [vmem:[%s7185 + $0x64] sm:$0xf]
  %v7212 = vld [vmem:[%s7185 + $0x68] sm:$0xf]
  %v7213 = vld [vmem:[%s7185 + $0x6c] sm:$0xf]
  %v7214 = vld [vmem:[%s7185 + $0x70] sm:$0xf]
  %v7215 = vld [vmem:[%s7185 + $0x74] sm:$0xf]
  %v7216 = vld [vmem:[%s7185 + $0x78] sm:$0xf]
  %v7217 = vld [vmem:[%s7185 + $0x7c] sm:$0xf]
  %v7218 = vld [vmem:[%s7185 + $0x80] sm:$0xf]
  %v7219 = vld [vmem:[%s7185 + $0x84] sm:$0xf]
  %v7220 = vld [vmem:[%s7185 + $0x88] sm:$0xf]
  %v7221 = vld [vmem:[%s7185 + $0x8c] sm:$0xf]
  %v7222 = vld [vmem:[%s7185 + $0x90] sm:$0xf]
  %v7223 = vld [vmem:[%s7185 + $0x94] sm:$0xf]
  %v7224 = vld [vmem:[%s7185 + $0x98] sm:$0xf]
  %v7225 = vld [vmem:[%s7185 + $0x9c] sm:$0xf]
  %v7226 = vld [vmem:[%s7185 + $0xa0] sm:$0xf]
  %v7227 = vld [vmem:[%s7185 + $0xa4] sm:$0xf]
  %v7228 = vld [vmem:[%s7185 + $0xa8] sm:$0xf]
  %v7229 = vld [vmem:[%s7185 + $0xac] sm:$0xf]
  %v7230 = vld [vmem:[%s7185 + $0xb0] sm:$0xf]
  %v7231 = vld [vmem:[%s7185 + $0xb4] sm:$0xf]
  %v7232 = vld [vmem:[%s7185 + $0xb8] sm:$0xf]
  %v7233 = vld [vmem:[%s7185 + $0xbc] sm:$0xf]
  %v7234 = vld [vmem:[%s7185 + $0xc0] sm:$0xf]
  %v7235 = vld [vmem:[%s7185 + $0xc4] sm:$0xf]
  %v7236 = vld [vmem:[%s7185 + $0xc8] sm:$0xf]
  %v7237 = vld [vmem:[%s7185 + $0xcc] sm:$0xf]
  %v7290 = vunpack.c.l.b16 %v7186
  %v7291 = vunpack.c.l.b16 %v7187
  %v7292 = vunpack.c.l.b16 %v7188
  %v7293 = vunpack.c.l.b16 %v7189
  %v7294 = vunpack.c.l.b16 %v7190
  %v7295 = vunpack.c.l.b16 %v7191
  %v7296 = vunpack.c.l.b16 %v7192
  %v7297 = vunpack.c.l.b16 %v7193
  %v7298 = vunpack.c.l.b16 %v7194
  %v7299 = vunpack.c.l.b16 %v7195
  %v7300 = vunpack.c.l.b16 %v7196
  %v7301 = vunpack.c.l.b16 %v7197
  %v7302 = vunpack.c.l.b16 %v7198
  %v7303 = vunpack.c.l.b16 %v7199
  %v7304 = vunpack.c.l.b16 %v7200
  %v7305 = vunpack.c.l.b16 %v7201
  %v7306 = vunpack.c.l.b16 %v7202
  %v7307 = vunpack.c.l.b16 %v7203
  %v7308 = vunpack.c.l.b16 %v7204
  %v7309 = vunpack.c.l.b16 %v7205
  %v7310 = vunpack.c.l.b16 %v7206
  %v7311 = vunpack.c.l.b16 %v7207
  %v7312 = vunpack.c.l.b16 %v7208
  %v7313 = vunpack.c.l.b16 %v7209
  %v7314 = vunpack.c.l.b16 %v7210
  %v7315 = vunpack.c.l.b16 %v7211
  %v7316 = vunpack.c.l.b16 %v7212
  %v7317 = vunpack.c.l.b16 %v7213
  %v7318 = vunpack.c.l.b16 %v7214
  %v7319 = vunpack.c.l.b16 %v7215
  %v7320 = vunpack.c.l.b16 %v7216
  %v7321 = vunpack.c.l.b16 %v7217
  %v7322 = vunpack.c.l.b16 %v7218
  %v7323 = vunpack.c.l.b16 %v7219
  %v7324 = vunpack.c.l.b16 %v7220
  %v7325 = vunpack.c.l.b16 %v7221
  %v7326 = vunpack.c.l.b16 %v7222
  %v7327 = vunpack.c.l.b16 %v7223
  %v7328 = vunpack.c.l.b16 %v7224
  %v7329 = vunpack.c.l.b16 %v7225
  %v7330 = vunpack.c.l.b16 %v7226
  %v7331 = vunpack.c.l.b16 %v7227
  %v7332 = vunpack.c.l.b16 %v7228
  %v7333 = vunpack.c.l.b16 %v7229
  %v7334 = vunpack.c.l.b16 %v7230
  %v7335 = vunpack.c.l.b16 %v7231
  %v7336 = vunpack.c.l.b16 %v7232
  %v7337 = vunpack.c.l.b16 %v7233
  %v7338 = vunpack.c.l.b16 %v7234
  %v7339 = vunpack.c.l.b16 %v7235
  %v7340 = vunpack.c.l.b16 %v7236
  %v7341 = vunpack.c.l.b16 %v7237
  %v7342 = vpack.c.b16 %v7291, %v7290
  %v7343 = vpack.c.b16 %v7293, %v7292
  %v7344 = vpack.c.b16 %v7295, %v7294
  %v7345 = vpack.c.b16 %v7297, %v7296
  %v7346 = vpack.c.b16 %v7299, %v7298
  %v7347 = vpack.c.b16 %v7301, %v7300
  %v7348 = vpack.c.b16 %v7303, %v7302
  %v7349 = vpack.c.b16 %v7305, %v7304
  %v7350 = vpack.c.b16 %v7307, %v7306
  %v7351 = vpack.c.b16 %v7309, %v7308
  %v7352 = vpack.c.b16 %v7311, %v7310
  %v7353 = vpack.c.b16 %v7313, %v7312
  %v7354 = vpack.c.b16 %v7315, %v7314
  %v7355 = vpack.c.b16 %v7317, %v7316
  %v7356 = vpack.c.b16 %v7319, %v7318
  %v7357 = vpack.c.b16 %v7321, %v7320
  %v7358 = vpack.c.b16 %v7323, %v7322
  %v7359 = vpack.c.b16 %v7325, %v7324
  %v7360 = vpack.c.b16 %v7327, %v7326
  %v7361 = vpack.c.b16 %v7329, %v7328
  %v7362 = vpack.c.b16 %v7331, %v7330
  %v7363 = vpack.c.b16 %v7333, %v7332
  %v7364 = vpack.c.b16 %v7335, %v7334
  %v7365 = vpack.c.b16 %v7337, %v7336
  %v7366 = vpack.c.b16 %v7339, %v7338
  %v7367 = vpack.c.b16 %v7341, %v7340
  %v7395 = vsel %vm2102, %v7184, 0
  %7397 = vmatpush.bf16.msra.mxu0 %v7349
  %7398 = vmatpush.bf16.msra.mxu0 %v7348
  %7399 = vmatpush.bf16.msra.mxu0 %v7347
  %7400 = vmatpush.bf16.msra.mxu0 %v7346
  %7401 = vmatpush.bf16.msra.mxu0 %v7345
  %7402 = vmatpush.bf16.msra.mxu0 %v7344
  %7403 = vmatpush.bf16.msra.mxu0 %v7343
  %7404 = vmatpush.bf16.msra.mxu0 %v7342
  %7405 = vmatmul.bf16.gmra.mxu0 %v7181
  %v7406 = vpop.f32.mrf.mxu0
  %v7407 = vadd.f32 0.0, %v7406
  %v7408 = vpop.f32.mrf.mxu0
  %7409 = vdwg.mxu0
  %7410 = vmatpush.bf16.msra.mxu0 %v7357
  %7411 = vmatpush.bf16.msra.mxu0 %v7356
  %7412 = vmatpush.bf16.msra.mxu0 %v7355
  %7413 = vmatpush.bf16.msra.mxu0 %v7354
  %7414 = vmatpush.bf16.msra.mxu0 %v7353
  %7415 = vmatpush.bf16.msra.mxu0 %v7352
  %7416 = vmatpush.bf16.msra.mxu0 %v7351
  %7417 = vmatpush.bf16.msra.mxu0 %v7350
  %7418 = vmatmul.bf16.gmra.mxu0 %v7182
  %v7419 = vpop.f32.mrf.mxu0
  %v7420 = vadd.f32 %v7407, %v7419
  %v7421 = vpop.f32.mrf.mxu0
  %7422 = vdwg.mxu0
  %7423 = vmatpush.bf16.msra.mxu0 %v7365
  %7424 = vmatpush.bf16.msra.mxu0 %v7364
  %7425 = vmatpush.bf16.msra.mxu0 %v7363
  %7426 = vmatpush.bf16.msra.mxu0 %v7362
  %7427 = vmatpush.bf16.msra.mxu0 %v7361
  %7428 = vmatpush.bf16.msra.mxu0 %v7360
  %7429 = vmatpush.bf16.msra.mxu0 %v7359
  %7430 = vmatpush.bf16.msra.mxu0 %v7358
  %7431 = vmatmul.bf16.gmra.mxu0 %v7183
  %v7432 = vpop.f32.mrf.mxu0
  %v7433 = vadd.f32 %v7420, %v7432
  %v7434 = vpop.f32.mrf.mxu0
  %7435 = vdwg.mxu0
  %7436 = vmatpush.bf16.msra.mxu0 0
  %7437 = vmatpush.bf16.msra.mxu0 0
  %7438 = vmatpush.bf16.msra.mxu0 0
  %7439 = vmatpush.bf16.msra.mxu0 0
  %7440 = vmatpush.bf16.msra.mxu0 0
  %7441 = vmatpush.bf16.msra.mxu0 0
  %7442 = vmatpush.bf16.msra.mxu0 %v7367
  %7443 = vmatpush.bf16.msra.mxu0 %v7366
  %7444 = vmatmul.bf16.gmra.mxu0 %v7395
  %v7445 = vpop.f32.mrf.mxu0
  %v7446 = vadd.f32 %v7433, %v7445
  %v7447 = vpop.f32.mrf.mxu0
  %7448 = vdwg.mxu0
  %v7449 = vadd.f32 %v7107, %v7446
  %v7450 = vld [vmem:[#allocation2 + $0x230] sm:$0xf]
  %v7451 = vld [vmem:[#allocation2 + $0x238] sm:$0xf]
  %v7452 = vld [vmem:[#allocation2 + $0x240] sm:$0xf]
  %v7453 = vld [vmem:[#allocation2 + $0x248] sm:$0xf]
  %v7454 = vld [vmem:[#allocation2 + $0x250] sm:$0xf]
  %v7455 = vld [vmem:[#allocation2 + $0x258] sm:$0xf]
  %v7456 = vld [vmem:[#allocation2 + $0x260] sm:$0xf]
  %v7457 = vld [vmem:[#allocation2 + $0x230] sm:$0xf0]
  %v7458 = vld [vmem:[#allocation2 + $0x238] sm:$0xf0]
  %v7459 = vld [vmem:[#allocation2 + $0x240] sm:$0xf0]
  %v7460 = vld [vmem:[#allocation2 + $0x248] sm:$0xf0]
  %v7461 = vld [vmem:[#allocation2 + $0x250] sm:$0xf0]
  %v7462 = vld [vmem:[#allocation2 + $0x258] sm:$0xf0]
  %v7463 = vld [vmem:[#allocation2 + $0x260] sm:$0xf0]
  %v7471 = vrot.slane %v7457, 4
  %v7472 = vrot.slane %v7458, 4
  %v7473 = vrot.slane %v7459, 4
  %v7474 = vrot.slane %v7460, 4
  %v7475 = vrot.slane %v7461, 4
  %v7476 = vrot.slane %v7462, 4
  %v7477 = vrot.slane %v7463, 4
  %v7485 = vmax.f32 %v7450, %v7471
  %v7486 = vmax.f32 %v7451, %v7472
  %v7487 = vmax.f32 %v7452, %v7473
  %v7488 = vmax.f32 %v7453, %v7474
  %v7489 = vmax.f32 %v7454, %v7475
  %v7490 = vmax.f32 %v7455, %v7476
  %v7491 = vmax.f32 %v7456, %v7477
  %7496 = vrot.lane.b32.xlu0 %v7488, 96
  %v7497 = vpop.permute.xlu0 %7496
  %7498 = vrot.lane.b32.xlu0 %v7489, 96
  %v7499 = vpop.permute.xlu0 %7498
  %7500 = vrot.lane.b32.xlu0 %v7490, 96
  %v7501 = vpop.permute.xlu0 %7500
  %7502 = vrot.lane.b32.xlu0 %v7491, 96
  %v7503 = vpop.permute.xlu0 %7502
  %v7504 = vsel %vm4077, %v7497, %v7499
  %v7505 = vsel %vm4077, %v7499, %v7501
  %v7506 = vsel %vm4077, %v7501, %v7503
  %v7511 = vmax.f32 %v7485, %v7504
  %v7512 = vmax.f32 %v7486, %v7505
  %v7513 = vmax.f32 %v7487, %v7506
  %v7514 = vmax.f32 %v7488, %v7503
  %v7515 = vadd.f32 %v7511, %v4090
  %v7516 = vadd.f32 %v7512, %v4091
  %v7517 = vadd.f32 %v7513, %v4092
  %v7518 = vadd.f32 %v7514, %v4093
  %v7519 = vmax.f32 %v7515, 0.0
  %v7520 = vmax.f32 %v7516, 0.0
  %v7521 = vmax.f32 %v7517, 0.0
  %v7522 = vmax.f32 %v7518, 0.0
  %v7523 = vpack.c.bf16 %v7519, %v7519
  %v7524 = vpack.c.bf16 %v7520, %v7520
  %v7525 = vpack.c.bf16 %v7521, %v7521
  %v7526 = vpack.c.bf16 %v7522, %v7522
  %s7527 = scalar_lea.vmem %s3, 2080
  %v7528 = vld [vmem:[%s7527] sm:$0xf]
  %v7529 = vld [vmem:[%s7527 + $0x4] sm:$0xf]
  %v7530 = vld [vmem:[%s7527 + $0x8] sm:$0xf]
  %v7531 = vld [vmem:[%s7527 + $0xc] sm:$0xf]
  %v7532 = vld [vmem:[%s7527 + $0x10] sm:$0xf]
  %v7533 = vld [vmem:[%s7527 + $0x14] sm:$0xf]
  %v7534 = vld [vmem:[%s7527 + $0x18] sm:$0xf]
  %v7535 = vld [vmem:[%s7527 + $0x1c] sm:$0xf]
  %v7536 = vld [vmem:[%s7527 + $0x20] sm:$0xf]
  %v7537 = vld [vmem:[%s7527 + $0x24] sm:$0xf]
  %v7538 = vld [vmem:[%s7527 + $0x28] sm:$0xf]
  %v7539 = vld [vmem:[%s7527 + $0x2c] sm:$0xf]
  %v7540 = vld [vmem:[%s7527 + $0x30] sm:$0xf]
  %v7541 = vld [vmem:[%s7527 + $0x34] sm:$0xf]
  %v7542 = vld [vmem:[%s7527 + $0x38] sm:$0xf]
  %v7543 = vld [vmem:[%s7527 + $0x3c] sm:$0xf]
  %v7544 = vld [vmem:[%s7527 + $0x40] sm:$0xf]
  %v7545 = vld [vmem:[%s7527 + $0x44] sm:$0xf]
  %v7546 = vld [vmem:[%s7527 + $0x48] sm:$0xf]
  %v7547 = vld [vmem:[%s7527 + $0x4c] sm:$0xf]
  %v7548 = vld [vmem:[%s7527 + $0x50] sm:$0xf]
  %v7549 = vld [vmem:[%s7527 + $0x54] sm:$0xf]
  %v7550 = vld [vmem:[%s7527 + $0x58] sm:$0xf]
  %v7551 = vld [vmem:[%s7527 + $0x5c] sm:$0xf]
  %v7552 = vld [vmem:[%s7527 + $0x60] sm:$0xf]
  %v7553 = vld [vmem:[%s7527 + $0x64] sm:$0xf]
  %v7554 = vld [vmem:[%s7527 + $0x68] sm:$0xf]
  %v7555 = vld [vmem:[%s7527 + $0x6c] sm:$0xf]
  %v7556 = vld [vmem:[%s7527 + $0x70] sm:$0xf]
  %v7557 = vld [vmem:[%s7527 + $0x74] sm:$0xf]
  %v7558 = vld [vmem:[%s7527 + $0x78] sm:$0xf]
  %v7559 = vld [vmem:[%s7527 + $0x7c] sm:$0xf]
  %v7560 = vld [vmem:[%s7527 + $0x80] sm:$0xf]
  %v7561 = vld [vmem:[%s7527 + $0x84] sm:$0xf]
  %v7562 = vld [vmem:[%s7527 + $0x88] sm:$0xf]
  %v7563 = vld [vmem:[%s7527 + $0x8c] sm:$0xf]
  %v7564 = vld [vmem:[%s7527 + $0x90] sm:$0xf]
  %v7565 = vld [vmem:[%s7527 + $0x94] sm:$0xf]
  %v7566 = vld [vmem:[%s7527 + $0x98] sm:$0xf]
  %v7567 = vld [vmem:[%s7527 + $0x9c] sm:$0xf]
  %v7568 = vld [vmem:[%s7527 + $0xa0] sm:$0xf]
  %v7569 = vld [vmem:[%s7527 + $0xa4] sm:$0xf]
  %v7570 = vld [vmem:[%s7527 + $0xa8] sm:$0xf]
  %v7571 = vld [vmem:[%s7527 + $0xac] sm:$0xf]
  %v7572 = vld [vmem:[%s7527 + $0xb0] sm:$0xf]
  %v7573 = vld [vmem:[%s7527 + $0xb4] sm:$0xf]
  %v7574 = vld [vmem:[%s7527 + $0xb8] sm:$0xf]
  %v7575 = vld [vmem:[%s7527 + $0xbc] sm:$0xf]
  %v7576 = vld [vmem:[%s7527 + $0xc0] sm:$0xf]
  %v7577 = vld [vmem:[%s7527 + $0xc4] sm:$0xf]
  %v7578 = vld [vmem:[%s7527 + $0xc8] sm:$0xf]
  %v7579 = vld [vmem:[%s7527 + $0xcc] sm:$0xf]
  %v7632 = vunpack.c.l.b16 %v7528
  %v7633 = vunpack.c.l.b16 %v7529
  %v7634 = vunpack.c.l.b16 %v7530
  %v7635 = vunpack.c.l.b16 %v7531
  %v7636 = vunpack.c.l.b16 %v7532
  %v7637 = vunpack.c.l.b16 %v7533
  %v7638 = vunpack.c.l.b16 %v7534
  %v7639 = vunpack.c.l.b16 %v7535
  %v7640 = vunpack.c.l.b16 %v7536
  %v7641 = vunpack.c.l.b16 %v7537
  %v7642 = vunpack.c.l.b16 %v7538
  %v7643 = vunpack.c.l.b16 %v7539
  %v7644 = vunpack.c.l.b16 %v7540
  %v7645 = vunpack.c.l.b16 %v7541
  %v7646 = vunpack.c.l.b16 %v7542
  %v7647 = vunpack.c.l.b16 %v7543
  %v7648 = vunpack.c.l.b16 %v7544
  %v7649 = vunpack.c.l.b16 %v7545
  %v7650 = vunpack.c.l.b16 %v7546
  %v7651 = vunpack.c.l.b16 %v7547
  %v7652 = vunpack.c.l.b16 %v7548
  %v7653 = vunpack.c.l.b16 %v7549
  %v7654 = vunpack.c.l.b16 %v7550
  %v7655 = vunpack.c.l.b16 %v7551
  %v7656 = vunpack.c.l.b16 %v7552
  %v7657 = vunpack.c.l.b16 %v7553
  %v7658 = vunpack.c.l.b16 %v7554
  %v7659 = vunpack.c.l.b16 %v7555
  %v7660 = vunpack.c.l.b16 %v7556
  %v7661 = vunpack.c.l.b16 %v7557
  %v7662 = vunpack.c.l.b16 %v7558
  %v7663 = vunpack.c.l.b16 %v7559
  %v7664 = vunpack.c.l.b16 %v7560
  %v7665 = vunpack.c.l.b16 %v7561
  %v7666 = vunpack.c.l.b16 %v7562
  %v7667 = vunpack.c.l.b16 %v7563
  %v7668 = vunpack.c.l.b16 %v7564
  %v7669 = vunpack.c.l.b16 %v7565
  %v7670 = vunpack.c.l.b16 %v7566
  %v7671 = vunpack.c.l.b16 %v7567
  %v7672 = vunpack.c.l.b16 %v7568
  %v7673 = vunpack.c.l.b16 %v7569
  %v7674 = vunpack.c.l.b16 %v7570
  %v7675 = vunpack.c.l.b16 %v7571
  %v7676 = vunpack.c.l.b16 %v7572
  %v7677 = vunpack.c.l.b16 %v7573
  %v7678 = vunpack.c.l.b16 %v7574
  %v7679 = vunpack.c.l.b16 %v7575
  %v7680 = vunpack.c.l.b16 %v7576
  %v7681 = vunpack.c.l.b16 %v7577
  %v7682 = vunpack.c.l.b16 %v7578
  %v7683 = vunpack.c.l.b16 %v7579
  %v7684 = vpack.c.b16 %v7633, %v7632
  %v7685 = vpack.c.b16 %v7635, %v7634
  %v7686 = vpack.c.b16 %v7637, %v7636
  %v7687 = vpack.c.b16 %v7639, %v7638
  %v7688 = vpack.c.b16 %v7641, %v7640
  %v7689 = vpack.c.b16 %v7643, %v7642
  %v7690 = vpack.c.b16 %v7645, %v7644
  %v7691 = vpack.c.b16 %v7647, %v7646
  %v7692 = vpack.c.b16 %v7649, %v7648
  %v7693 = vpack.c.b16 %v7651, %v7650
  %v7694 = vpack.c.b16 %v7653, %v7652
  %v7695 = vpack.c.b16 %v7655, %v7654
  %v7696 = vpack.c.b16 %v7657, %v7656
  %v7697 = vpack.c.b16 %v7659, %v7658
  %v7698 = vpack.c.b16 %v7661, %v7660
  %v7699 = vpack.c.b16 %v7663, %v7662
  %v7700 = vpack.c.b16 %v7665, %v7664
  %v7701 = vpack.c.b16 %v7667, %v7666
  %v7702 = vpack.c.b16 %v7669, %v7668
  %v7703 = vpack.c.b16 %v7671, %v7670
  %v7704 = vpack.c.b16 %v7673, %v7672
  %v7705 = vpack.c.b16 %v7675, %v7674
  %v7706 = vpack.c.b16 %v7677, %v7676
  %v7707 = vpack.c.b16 %v7679, %v7678
  %v7708 = vpack.c.b16 %v7681, %v7680
  %v7709 = vpack.c.b16 %v7683, %v7682
  %v7737 = vsel %vm2102, %v7526, 0
  %7739 = vmatpush.bf16.msra.mxu0 %v7691
  %7740 = vmatpush.bf16.msra.mxu0 %v7690
  %7741 = vmatpush.bf16.msra.mxu0 %v7689
  %7742 = vmatpush.bf16.msra.mxu0 %v7688
  %7743 = vmatpush.bf16.msra.mxu0 %v7687
  %7744 = vmatpush.bf16.msra.mxu0 %v7686
  %7745 = vmatpush.bf16.msra.mxu0 %v7685
  %7746 = vmatpush.bf16.msra.mxu0 %v7684
  %7747 = vmatmul.bf16.gmra.mxu0 %v7523
  %v7748 = vpop.f32.mrf.mxu0
  %v7749 = vadd.f32 0.0, %v7748
  %v7750 = vpop.f32.mrf.mxu0
  %7751 = vdwg.mxu0
  %7752 = vmatpush.bf16.msra.mxu0 %v7699
  %7753 = vmatpush.bf16.msra.mxu0 %v7698
  %7754 = vmatpush.bf16.msra.mxu0 %v7697
  %7755 = vmatpush.bf16.msra.mxu0 %v7696
  %7756 = vmatpush.bf16.msra.mxu0 %v7695
  %7757 = vmatpush.bf16.msra.mxu0 %v7694
  %7758 = vmatpush.bf16.msra.mxu0 %v7693
  %7759 = vmatpush.bf16.msra.mxu0 %v7692
  %7760 = vmatmul.bf16.gmra.mxu0 %v7524
  %v7761 = vpop.f32.mrf.mxu0
  %v7762 = vadd.f32 %v7749, %v7761
  %v7763 = vpop.f32.mrf.mxu0
  %7764 = vdwg.mxu0
  %7765 = vmatpush.bf16.msra.mxu0 %v7707
  %7766 = vmatpush.bf16.msra.mxu0 %v7706
  %7767 = vmatpush.bf16.msra.mxu0 %v7705
  %7768 = vmatpush.bf16.msra.mxu0 %v7704
  %7769 = vmatpush.bf16.msra.mxu0 %v7703
  %7770 = vmatpush.bf16.msra.mxu0 %v7702
  %7771 = vmatpush.bf16.msra.mxu0 %v7701
  %7772 = vmatpush.bf16.msra.mxu0 %v7700
  %7773 = vmatmul.bf16.gmra.mxu0 %v7525
  %v7774 = vpop.f32.mrf.mxu0
  %v7775 = vadd.f32 %v7762, %v7774
  %v7776 = vpop.f32.mrf.mxu0
  %7777 = vdwg.mxu0
  %7778 = vmatpush.bf16.msra.mxu0 0
  %7779 = vmatpush.bf16.msra.mxu0 0
  %7780 = vmatpush.bf16.msra.mxu0 0
  %7781 = vmatpush.bf16.msra.mxu0 0
  %7782 = vmatpush.bf16.msra.mxu0 0
  %7783 = vmatpush.bf16.msra.mxu0 0
  %7784 = vmatpush.bf16.msra.mxu0 %v7709
  %7785 = vmatpush.bf16.msra.mxu0 %v7708
  %7786 = vmatmul.bf16.gmra.mxu0 %v7737
  %v7787 = vpop.f32.mrf.mxu0
  %v7788 = vadd.f32 %v7775, %v7787
  %v7789 = vpop.f32.mrf.mxu0
  %7790 = vdwg.mxu0
  %v7791 = vadd.f32 %v7449, %v7788
  %v7792 = vld [vmem:[#allocation2 + $0x268] sm:$0xf]
  %v7793 = vld [vmem:[#allocation2 + $0x270] sm:$0xf]
  %v7794 = vld [vmem:[#allocation2 + $0x278] sm:$0xf]
  %v7795 = vld [vmem:[#allocation2 + $0x280] sm:$0xf]
  %v7796 = vld [vmem:[#allocation2 + $0x288] sm:$0xf]
  %v7797 = vld [vmem:[#allocation2 + $0x290] sm:$0xf]
  %v7798 = vld [vmem:[#allocation2 + $0x298] sm:$0xf]
  %v7799 = vld [vmem:[#allocation2 + $0x268] sm:$0xf0]
  %v7800 = vld [vmem:[#allocation2 + $0x270] sm:$0xf0]
  %v7801 = vld [vmem:[#allocation2 + $0x278] sm:$0xf0]
  %v7802 = vld [vmem:[#allocation2 + $0x280] sm:$0xf0]
  %v7803 = vld [vmem:[#allocation2 + $0x288] sm:$0xf0]
  %v7804 = vld [vmem:[#allocation2 + $0x290] sm:$0xf0]
  %v7805 = vld [vmem:[#allocation2 + $0x298] sm:$0xf0]
  %v7813 = vrot.slane %v7799, 4
  %v7814 = vrot.slane %v7800, 4
  %v7815 = vrot.slane %v7801, 4
  %v7816 = vrot.slane %v7802, 4
  %v7817 = vrot.slane %v7803, 4
  %v7818 = vrot.slane %v7804, 4
  %v7819 = vrot.slane %v7805, 4
  %v7827 = vmax.f32 %v7792, %v7813
  %v7828 = vmax.f32 %v7793, %v7814
  %v7829 = vmax.f32 %v7794, %v7815
  %v7830 = vmax.f32 %v7795, %v7816
  %v7831 = vmax.f32 %v7796, %v7817
  %v7832 = vmax.f32 %v7797, %v7818
  %v7833 = vmax.f32 %v7798, %v7819
  %7838 = vrot.lane.b32.xlu0 %v7830, 96
  %v7839 = vpop.permute.xlu0 %7838
  %7840 = vrot.lane.b32.xlu0 %v7831, 96
  %v7841 = vpop.permute.xlu0 %7840
  %7842 = vrot.lane.b32.xlu0 %v7832, 96
  %v7843 = vpop.permute.xlu0 %7842
  %7844 = vrot.lane.b32.xlu0 %v7833, 96
  %v7845 = vpop.permute.xlu0 %7844
  %v7846 = vsel %vm4077, %v7839, %v7841
  %v7847 = vsel %vm4077, %v7841, %v7843
  %v7848 = vsel %vm4077, %v7843, %v7845
  %v7853 = vmax.f32 %v7827, %v7846
  %v7854 = vmax.f32 %v7828, %v7847
  %v7855 = vmax.f32 %v7829, %v7848
  %v7856 = vmax.f32 %v7830, %v7845
  %v7857 = vadd.f32 %v7853, %v4090
  %v7858 = vadd.f32 %v7854, %v4091
  %v7859 = vadd.f32 %v7855, %v4092
  %v7860 = vadd.f32 %v7856, %v4093
  %v7861 = vmax.f32 %v7857, 0.0
  %v7862 = vmax.f32 %v7858, 0.0
  %v7863 = vmax.f32 %v7859, 0.0
  %v7864 = vmax.f32 %v7860, 0.0
  %v7865 = vpack.c.bf16 %v7861, %v7861
  %v7866 = vpack.c.bf16 %v7862, %v7862
  %v7867 = vpack.c.bf16 %v7863, %v7863
  %v7868 = vpack.c.bf16 %v7864, %v7864
  %s7869 = scalar_lea.vmem %s3, 2288
  %v7870 = vld [vmem:[%s7869] sm:$0xf]
  %v7871 = vld [vmem:[%s7869 + $0x4] sm:$0xf]
  %v7872 = vld [vmem:[%s7869 + $0x8] sm:$0xf]
  %v7873 = vld [vmem:[%s7869 + $0xc] sm:$0xf]
  %v7874 = vld [vmem:[%s7869 + $0x10] sm:$0xf]
  %v7875 = vld [vmem:[%s7869 + $0x14] sm:$0xf]
  %v7876 = vld [vmem:[%s7869 + $0x18] sm:$0xf]
  %v7877 = vld [vmem:[%s7869 + $0x1c] sm:$0xf]
  %v7878 = vld [vmem:[%s7869 + $0x20] sm:$0xf]
  %v7879 = vld [vmem:[%s7869 + $0x24] sm:$0xf]
  %v7880 = vld [vmem:[%s7869 + $0x28] sm:$0xf]
  %v7881 = vld [vmem:[%s7869 + $0x2c] sm:$0xf]
  %v7882 = vld [vmem:[%s7869 + $0x30] sm:$0xf]
  %v7883 = vld [vmem:[%s7869 + $0x34] sm:$0xf]
  %v7884 = vld [vmem:[%s7869 + $0x38] sm:$0xf]
  %v7885 = vld [vmem:[%s7869 + $0x3c] sm:$0xf]
  %v7886 = vld [vmem:[%s7869 + $0x40] sm:$0xf]
  %v7887 = vld [vmem:[%s7869 + $0x44] sm:$0xf]
  %v7888 = vld [vmem:[%s7869 + $0x48] sm:$0xf]
  %v7889 = vld [vmem:[%s7869 + $0x4c] sm:$0xf]
  %v7890 = vld [vmem:[%s7869 + $0x50] sm:$0xf]
  %v7891 = vld [vmem:[%s7869 + $0x54] sm:$0xf]
  %v7892 = vld [vmem:[%s7869 + $0x58] sm:$0xf]
  %v7893 = vld [vmem:[%s7869 + $0x5c] sm:$0xf]
  %v7894 = vld [vmem:[%s7869 + $0x60] sm:$0xf]
  %v7895 = vld [vmem:[%s7869 + $0x64] sm:$0xf]
  %v7896 = vld [vmem:[%s7869 + $0x68] sm:$0xf]
  %v7897 = vld [vmem:[%s7869 + $0x6c] sm:$0xf]
  %v7898 = vld [vmem:[%s7869 + $0x70] sm:$0xf]
  %v7899 = vld [vmem:[%s7869 + $0x74] sm:$0xf]
  %v7900 = vld [vmem:[%s7869 + $0x78] sm:$0xf]
  %v7901 = vld [vmem:[%s7869 + $0x7c] sm:$0xf]
  %v7902 = vld [vmem:[%s7869 + $0x80] sm:$0xf]
  %v7903 = vld [vmem:[%s7869 + $0x84] sm:$0xf]
  %v7904 = vld [vmem:[%s7869 + $0x88] sm:$0xf]
  %v7905 = vld [vmem:[%s7869 + $0x8c] sm:$0xf]
  %v7906 = vld [vmem:[%s7869 + $0x90] sm:$0xf]
  %v7907 = vld [vmem:[%s7869 + $0x94] sm:$0xf]
  %v7908 = vld [vmem:[%s7869 + $0x98] sm:$0xf]
  %v7909 = vld [vmem:[%s7869 + $0x9c] sm:$0xf]
  %v7910 = vld [vmem:[%s7869 + $0xa0] sm:$0xf]
  %v7911 = vld [vmem:[%s7869 + $0xa4] sm:$0xf]
  %v7912 = vld [vmem:[%s7869 + $0xa8] sm:$0xf]
  %v7913 = vld [vmem:[%s7869 + $0xac] sm:$0xf]
  %v7914 = vld [vmem:[%s7869 + $0xb0] sm:$0xf]
  %v7915 = vld [vmem:[%s7869 + $0xb4] sm:$0xf]
  %v7916 = vld [vmem:[%s7869 + $0xb8] sm:$0xf]
  %v7917 = vld [vmem:[%s7869 + $0xbc] sm:$0xf]
  %v7918 = vld [vmem:[%s7869 + $0xc0] sm:$0xf]
  %v7919 = vld [vmem:[%s7869 + $0xc4] sm:$0xf]
  %v7920 = vld [vmem:[%s7869 + $0xc8] sm:$0xf]
  %v7921 = vld [vmem:[%s7869 + $0xcc] sm:$0xf]
  %v7974 = vunpack.c.l.b16 %v7870
  %v7975 = vunpack.c.l.b16 %v7871
  %v7976 = vunpack.c.l.b16 %v7872
  %v7977 = vunpack.c.l.b16 %v7873
  %v7978 = vunpack.c.l.b16 %v7874
  %v7979 = vunpack.c.l.b16 %v7875
  %v7980 = vunpack.c.l.b16 %v7876
  %v7981 = vunpack.c.l.b16 %v7877
  %v7982 = vunpack.c.l.b16 %v7878
  %v7983 = vunpack.c.l.b16 %v7879
  %v7984 = vunpack.c.l.b16 %v7880
  %v7985 = vunpack.c.l.b16 %v7881
  %v7986 = vunpack.c.l.b16 %v7882
  %v7987 = vunpack.c.l.b16 %v7883
  %v7988 = vunpack.c.l.b16 %v7884
  %v7989 = vunpack.c.l.b16 %v7885
  %v7990 = vunpack.c.l.b16 %v7886
  %v7991 = vunpack.c.l.b16 %v7887
  %v7992 = vunpack.c.l.b16 %v7888
  %v7993 = vunpack.c.l.b16 %v7889
  %v7994 = vunpack.c.l.b16 %v7890
  %v7995 = vunpack.c.l.b16 %v7891
  %v7996 = vunpack.c.l.b16 %v7892
  %v7997 = vunpack.c.l.b16 %v7893
  %v7998 = vunpack.c.l.b16 %v7894
  %v7999 = vunpack.c.l.b16 %v7895
  %v8000 = vunpack.c.l.b16 %v7896
  %v8001 = vunpack.c.l.b16 %v7897
  %v8002 = vunpack.c.l.b16 %v7898
  %v8003 = vunpack.c.l.b16 %v7899
  %v8004 = vunpack.c.l.b16 %v7900
  %v8005 = vunpack.c.l.b16 %v7901
  %v8006 = vunpack.c.l.b16 %v7902
  %v8007 = vunpack.c.l.b16 %v7903
  %v8008 = vunpack.c.l.b16 %v7904
  %v8009 = vunpack.c.l.b16 %v7905
  %v8010 = vunpack.c.l.b16 %v7906
  %v8011 = vunpack.c.l.b16 %v7907
  %v8012 = vunpack.c.l.b16 %v7908
  %v8013 = vunpack.c.l.b16 %v7909
  %v8014 = vunpack.c.l.b16 %v7910
  %v8015 = vunpack.c.l.b16 %v7911
  %v8016 = vunpack.c.l.b16 %v7912
  %v8017 = vunpack.c.l.b16 %v7913
  %v8018 = vunpack.c.l.b16 %v7914
  %v8019 = vunpack.c.l.b16 %v7915
  %v8020 = vunpack.c.l.b16 %v7916
  %v8021 = vunpack.c.l.b16 %v7917
  %v8022 = vunpack.c.l.b16 %v7918
  %v8023 = vunpack.c.l.b16 %v7919
  %v8024 = vunpack.c.l.b16 %v7920
  %v8025 = vunpack.c.l.b16 %v7921
  %v8026 = vpack.c.b16 %v7975, %v7974
  %v8027 = vpack.c.b16 %v7977, %v7976
  %v8028 = vpack.c.b16 %v7979, %v7978
  %v8029 = vpack.c.b16 %v7981, %v7980
  %v8030 = vpack.c.b16 %v7983, %v7982
  %v8031 = vpack.c.b16 %v7985, %v7984
  %v8032 = vpack.c.b16 %v7987, %v7986
  %v8033 = vpack.c.b16 %v7989, %v7988
  %v8034 = vpack.c.b16 %v7991, %v7990
  %v8035 = vpack.c.b16 %v7993, %v7992
  %v8036 = vpack.c.b16 %v7995, %v7994
  %v8037 = vpack.c.b16 %v7997, %v7996
  %v8038 = vpack.c.b16 %v7999, %v7998
  %v8039 = vpack.c.b16 %v8001, %v8000
  %v8040 = vpack.c.b16 %v8003, %v8002
  %v8041 = vpack.c.b16 %v8005, %v8004
  %v8042 = vpack.c.b16 %v8007, %v8006
  %v8043 = vpack.c.b16 %v8009, %v8008
  %v8044 = vpack.c.b16 %v8011, %v8010
  %v8045 = vpack.c.b16 %v8013, %v8012
  %v8046 = vpack.c.b16 %v8015, %v8014
  %v8047 = vpack.c.b16 %v8017, %v8016
  %v8048 = vpack.c.b16 %v8019, %v8018
  %v8049 = vpack.c.b16 %v8021, %v8020
  %v8050 = vpack.c.b16 %v8023, %v8022
  %v8051 = vpack.c.b16 %v8025, %v8024
  %v8079 = vsel %vm2102, %v7868, 0
  %8081 = vmatpush.bf16.msra.mxu0 %v8033
  %8082 = vmatpush.bf16.msra.mxu0 %v8032
  %8083 = vmatpush.bf16.msra.mxu0 %v8031
  %8084 = vmatpush.bf16.msra.mxu0 %v8030
  %8085 = vmatpush.bf16.msra.mxu0 %v8029
  %8086 = vmatpush.bf16.msra.mxu0 %v8028
  %8087 = vmatpush.bf16.msra.mxu0 %v8027
  %8088 = vmatpush.bf16.msra.mxu0 %v8026
  %8089 = vmatmul.bf16.gmra.mxu0 %v7865
  %v8090 = vpop.f32.mrf.mxu0
  %v8091 = vadd.f32 0.0, %v8090
  %v8092 = vpop.f32.mrf.mxu0
  %8093 = vdwg.mxu0
  %8094 = vmatpush.bf16.msra.mxu0 %v8041
  %8095 = vmatpush.bf16.msra.mxu0 %v8040
  %8096 = vmatpush.bf16.msra.mxu0 %v8039
  %8097 = vmatpush.bf16.msra.mxu0 %v8038
  %8098 = vmatpush.bf16.msra.mxu0 %v8037
  %8099 = vmatpush.bf16.msra.mxu0 %v8036
  %8100 = vmatpush.bf16.msra.mxu0 %v8035
  %8101 = vmatpush.bf16.msra.mxu0 %v8034
  %8102 = vmatmul.bf16.gmra.mxu0 %v7866
  %v8103 = vpop.f32.mrf.mxu0
  %v8104 = vadd.f32 %v8091, %v8103
  %v8105 = vpop.f32.mrf.mxu0
  %8106 = vdwg.mxu0
  %8107 = vmatpush.bf16.msra.mxu0 %v8049
  %8108 = vmatpush.bf16.msra.mxu0 %v8048
  %8109 = vmatpush.bf16.msra.mxu0 %v8047
  %8110 = vmatpush.bf16.msra.mxu0 %v8046
  %8111 = vmatpush.bf16.msra.mxu0 %v8045
  %8112 = vmatpush.bf16.msra.mxu0 %v8044
  %8113 = vmatpush.bf16.msra.mxu0 %v8043
  %8114 = vmatpush.bf16.msra.mxu0 %v8042
  %8115 = vmatmul.bf16.gmra.mxu0 %v7867
  %v8116 = vpop.f32.mrf.mxu0
  %v8117 = vadd.f32 %v8104, %v8116
  %v8118 = vpop.f32.mrf.mxu0
  %8119 = vdwg.mxu0
  %8120 = vmatpush.bf16.msra.mxu0 0
  %8121 = vmatpush.bf16.msra.mxu0 0
  %8122 = vmatpush.bf16.msra.mxu0 0
  %8123 = vmatpush.bf16.msra.mxu0 0
  %8124 = vmatpush.bf16.msra.mxu0 0
  %8125 = vmatpush.bf16.msra.mxu0 0
  %8126 = vmatpush.bf16.msra.mxu0 %v8051
  %8127 = vmatpush.bf16.msra.mxu0 %v8050
  %8128 = vmatmul.bf16.gmra.mxu0 %v8079
  %v8129 = vpop.f32.mrf.mxu0
  %v8130 = vadd.f32 %v8117, %v8129
  %v8131 = vpop.f32.mrf.mxu0
  %8132 = vdwg.mxu0
  %v8133 = vadd.f32 %v7791, %v8130
  %v8134 = vld [vmem:[#allocation2 + $0x2a0] sm:$0xf]
  %v8135 = vld [vmem:[#allocation2 + $0x2a8] sm:$0xf]
  %v8136 = vld [vmem:[#allocation2 + $0x2b0] sm:$0xf]
  %v8137 = vld [vmem:[#allocation2 + $0x2b8] sm:$0xf]
  %v8138 = vld [vmem:[#allocation2 + $0x2c0] sm:$0xf]
  %v8139 = vld [vmem:[#allocation2 + $0x2c8] sm:$0xf]
  %v8140 = vld [vmem:[#allocation2 + $0x2d0] sm:$0xf]
  %v8141 = vld [vmem:[#allocation2 + $0x2a0] sm:$0xf0]
  %v8142 = vld [vmem:[#allocation2 + $0x2a8] sm:$0xf0]
  %v8143 = vld [vmem:[#allocation2 + $0x2b0] sm:$0xf0]
  %v8144 = vld [vmem:[#allocation2 + $0x2b8] sm:$0xf0]
  %v8145 = vld [vmem:[#allocation2 + $0x2c0] sm:$0xf0]
  %v8146 = vld [vmem:[#allocation2 + $0x2c8] sm:$0xf0]
  %v8147 = vld [vmem:[#allocation2 + $0x2d0] sm:$0xf0]
  %v8155 = vrot.slane %v8141, 4
  %v8156 = vrot.slane %v8142, 4
  %v8157 = vrot.slane %v8143, 4
  %v8158 = vrot.slane %v8144, 4
  %v8159 = vrot.slane %v8145, 4
  %v8160 = vrot.slane %v8146, 4
  %v8161 = vrot.slane %v8147, 4
  %v8169 = vmax.f32 %v8134, %v8155
  %v8170 = vmax.f32 %v8135, %v8156
  %v8171 = vmax.f32 %v8136, %v8157
  %v8172 = vmax.f32 %v8137, %v8158
  %v8173 = vmax.f32 %v8138, %v8159
  %v8174 = vmax.f32 %v8139, %v8160
  %v8175 = vmax.f32 %v8140, %v8161
  %8180 = vrot.lane.b32.xlu0 %v8172, 96
  %v8181 = vpop.permute.xlu0 %8180
  %8182 = vrot.lane.b32.xlu0 %v8173, 96
  %v8183 = vpop.permute.xlu0 %8182
  %8184 = vrot.lane.b32.xlu0 %v8174, 96
  %v8185 = vpop.permute.xlu0 %8184
  %8186 = vrot.lane.b32.xlu0 %v8175, 96
  %v8187 = vpop.permute.xlu0 %8186
  %v8188 = vsel %vm4077, %v8181, %v8183
  %v8189 = vsel %vm4077, %v8183, %v8185
  %v8190 = vsel %vm4077, %v8185, %v8187
  %v8195 = vmax.f32 %v8169, %v8188
  %v8196 = vmax.f32 %v8170, %v8189
  %v8197 = vmax.f32 %v8171, %v8190
  %v8198 = vmax.f32 %v8172, %v8187
  %v8199 = vadd.f32 %v8195, %v4090
  %v8200 = vadd.f32 %v8196, %v4091
  %v8201 = vadd.f32 %v8197, %v4092
  %v8202 = vadd.f32 %v8198, %v4093
  %v8203 = vmax.f32 %v8199, 0.0
  %v8204 = vmax.f32 %v8200, 0.0
  %v8205 = vmax.f32 %v8201, 0.0
  %v8206 = vmax.f32 %v8202, 0.0
  %v8207 = vpack.c.bf16 %v8203, %v8203
  %v8208 = vpack.c.bf16 %v8204, %v8204
  %v8209 = vpack.c.bf16 %v8205, %v8205
  %v8210 = vpack.c.bf16 %v8206, %v8206
  %s8211 = scalar_lea.vmem %s3, 2496
  %v8212 = vld [vmem:[%s8211] sm:$0xf]
  %v8213 = vld [vmem:[%s8211 + $0x4] sm:$0xf]
  %v8214 = vld [vmem:[%s8211 + $0x8] sm:$0xf]
  %v8215 = vld [vmem:[%s8211 + $0xc] sm:$0xf]
  %v8216 = vld [vmem:[%s8211 + $0x10] sm:$0xf]
  %v8217 = vld [vmem:[%s8211 + $0x14] sm:$0xf]
  %v8218 = vld [vmem:[%s8211 + $0x18] sm:$0xf]
  %v8219 = vld [vmem:[%s8211 + $0x1c] sm:$0xf]
  %v8220 = vld [vmem:[%s8211 + $0x20] sm:$0xf]
  %v8221 = vld [vmem:[%s8211 + $0x24] sm:$0xf]
  %v8222 = vld [vmem:[%s8211 + $0x28] sm:$0xf]
  %v8223 = vld [vmem:[%s8211 + $0x2c] sm:$0xf]
  %v8224 = vld [vmem:[%s8211 + $0x30] sm:$0xf]
  %v8225 = vld [vmem:[%s8211 + $0x34] sm:$0xf]
  %v8226 = vld [vmem:[%s8211 + $0x38] sm:$0xf]
  %v8227 = vld [vmem:[%s8211 + $0x3c] sm:$0xf]
  %v8228 = vld [vmem:[%s8211 + $0x40] sm:$0xf]
  %v8229 = vld [vmem:[%s8211 + $0x44] sm:$0xf]
  %v8230 = vld [vmem:[%s8211 + $0x48] sm:$0xf]
  %v8231 = vld [vmem:[%s8211 + $0x4c] sm:$0xf]
  %v8232 = vld [vmem:[%s8211 + $0x50] sm:$0xf]
  %v8233 = vld [vmem:[%s8211 + $0x54] sm:$0xf]
  %v8234 = vld [vmem:[%s8211 + $0x58] sm:$0xf]
  %v8235 = vld [vmem:[%s8211 + $0x5c] sm:$0xf]
  %v8236 = vld [vmem:[%s8211 + $0x60] sm:$0xf]
  %v8237 = vld [vmem:[%s8211 + $0x64] sm:$0xf]
  %v8238 = vld [vmem:[%s8211 + $0x68] sm:$0xf]
  %v8239 = vld [vmem:[%s8211 + $0x6c] sm:$0xf]
  %v8240 = vld [vmem:[%s8211 + $0x70] sm:$0xf]
  %v8241 = vld [vmem:[%s8211 + $0x74] sm:$0xf]
  %v8242 = vld [vmem:[%s8211 + $0x78] sm:$0xf]
  %v8243 = vld [vmem:[%s8211 + $0x7c] sm:$0xf]
  %v8244 = vld [vmem:[%s8211 + $0x80] sm:$0xf]
  %v8245 = vld [vmem:[%s8211 + $0x84] sm:$0xf]
  %v8246 = vld [vmem:[%s8211 + $0x88] sm:$0xf]
  %v8247 = vld [vmem:[%s8211 + $0x8c] sm:$0xf]
  %v8248 = vld [vmem:[%s8211 + $0x90] sm:$0xf]
  %v8249 = vld [vmem:[%s8211 + $0x94] sm:$0xf]
  %v8250 = vld [vmem:[%s8211 + $0x98] sm:$0xf]
  %v8251 = vld [vmem:[%s8211 + $0x9c] sm:$0xf]
  %v8252 = vld [vmem:[%s8211 + $0xa0] sm:$0xf]
  %v8253 = vld [vmem:[%s8211 + $0xa4] sm:$0xf]
  %v8254 = vld [vmem:[%s8211 + $0xa8] sm:$0xf]
  %v8255 = vld [vmem:[%s8211 + $0xac] sm:$0xf]
  %v8256 = vld [vmem:[%s8211 + $0xb0] sm:$0xf]
  %v8257 = vld [vmem:[%s8211 + $0xb4] sm:$0xf]
  %v8258 = vld [vmem:[%s8211 + $0xb8] sm:$0xf]
  %v8259 = vld [vmem:[%s8211 + $0xbc] sm:$0xf]
  %v8260 = vld [vmem:[%s8211 + $0xc0] sm:$0xf]
  %v8261 = vld [vmem:[%s8211 + $0xc4] sm:$0xf]
  %v8262 = vld [vmem:[%s8211 + $0xc8] sm:$0xf]
  %v8263 = vld [vmem:[%s8211 + $0xcc] sm:$0xf]
  %v8316 = vunpack.c.l.b16 %v8212
  %v8317 = vunpack.c.l.b16 %v8213
  %v8318 = vunpack.c.l.b16 %v8214
  %v8319 = vunpack.c.l.b16 %v8215
  %v8320 = vunpack.c.l.b16 %v8216
  %v8321 = vunpack.c.l.b16 %v8217
  %v8322 = vunpack.c.l.b16 %v8218
  %v8323 = vunpack.c.l.b16 %v8219
  %v8324 = vunpack.c.l.b16 %v8220
  %v8325 = vunpack.c.l.b16 %v8221
  %v8326 = vunpack.c.l.b16 %v8222
  %v8327 = vunpack.c.l.b16 %v8223
  %v8328 = vunpack.c.l.b16 %v8224
  %v8329 = vunpack.c.l.b16 %v8225
  %v8330 = vunpack.c.l.b16 %v8226
  %v8331 = vunpack.c.l.b16 %v8227
  %v8332 = vunpack.c.l.b16 %v8228
  %v8333 = vunpack.c.l.b16 %v8229
  %v8334 = vunpack.c.l.b16 %v8230
  %v8335 = vunpack.c.l.b16 %v8231
  %v8336 = vunpack.c.l.b16 %v8232
  %v8337 = vunpack.c.l.b16 %v8233
  %v8338 = vunpack.c.l.b16 %v8234
  %v8339 = vunpack.c.l.b16 %v8235
  %v8340 = vunpack.c.l.b16 %v8236
  %v8341 = vunpack.c.l.b16 %v8237
  %v8342 = vunpack.c.l.b16 %v8238
  %v8343 = vunpack.c.l.b16 %v8239
  %v8344 = vunpack.c.l.b16 %v8240
  %v8345 = vunpack.c.l.b16 %v8241
  %v8346 = vunpack.c.l.b16 %v8242
  %v8347 = vunpack.c.l.b16 %v8243
  %v8348 = vunpack.c.l.b16 %v8244
  %v8349 = vunpack.c.l.b16 %v8245
  %v8350 = vunpack.c.l.b16 %v8246
  %v8351 = vunpack.c.l.b16 %v8247
  %v8352 = vunpack.c.l.b16 %v8248
  %v8353 = vunpack.c.l.b16 %v8249
  %v8354 = vunpack.c.l.b16 %v8250
  %v8355 = vunpack.c.l.b16 %v8251
  %v8356 = vunpack.c.l.b16 %v8252
  %v8357 = vunpack.c.l.b16 %v8253
  %v8358 = vunpack.c.l.b16 %v8254
  %v8359 = vunpack.c.l.b16 %v8255
  %v8360 = vunpack.c.l.b16 %v8256
  %v8361 = vunpack.c.l.b16 %v8257
  %v8362 = vunpack.c.l.b16 %v8258
  %v8363 = vunpack.c.l.b16 %v8259
  %v8364 = vunpack.c.l.b16 %v8260
  %v8365 = vunpack.c.l.b16 %v8261
  %v8366 = vunpack.c.l.b16 %v8262
  %v8367 = vunpack.c.l.b16 %v8263
  %v8368 = vpack.c.b16 %v8317, %v8316
  %v8369 = vpack.c.b16 %v8319, %v8318
  %v8370 = vpack.c.b16 %v8321, %v8320
  %v8371 = vpack.c.b16 %v8323, %v8322
  %v8372 = vpack.c.b16 %v8325, %v8324
  %v8373 = vpack.c.b16 %v8327, %v8326
  %v8374 = vpack.c.b16 %v8329, %v8328
  %v8375 = vpack.c.b16 %v8331, %v8330
  %v8376 = vpack.c.b16 %v8333, %v8332
  %v8377 = vpack.c.b16 %v8335, %v8334
  %v8378 = vpack.c.b16 %v8337, %v8336
  %v8379 = vpack.c.b16 %v8339, %v8338
  %v8380 = vpack.c.b16 %v8341, %v8340
  %v8381 = vpack.c.b16 %v8343, %v8342
  %v8382 = vpack.c.b16 %v8345, %v8344
  %v8383 = vpack.c.b16 %v8347, %v8346
  %v8384 = vpack.c.b16 %v8349, %v8348
  %v8385 = vpack.c.b16 %v8351, %v8350
  %v8386 = vpack.c.b16 %v8353, %v8352
  %v8387 = vpack.c.b16 %v8355, %v8354
  %v8388 = vpack.c.b16 %v8357, %v8356
  %v8389 = vpack.c.b16 %v8359, %v8358
  %v8390 = vpack.c.b16 %v8361, %v8360
  %v8391 = vpack.c.b16 %v8363, %v8362
  %v8392 = vpack.c.b16 %v8365, %v8364
  %v8393 = vpack.c.b16 %v8367, %v8366
  %v8421 = vsel %vm2102, %v8210, 0
  %8423 = vmatpush.bf16.msra.mxu0 %v8375
  %8424 = vmatpush.bf16.msra.mxu0 %v8374
  %8425 = vmatpush.bf16.msra.mxu0 %v8373
  %8426 = vmatpush.bf16.msra.mxu0 %v8372
  %8427 = vmatpush.bf16.msra.mxu0 %v8371
  %8428 = vmatpush.bf16.msra.mxu0 %v8370
  %8429 = vmatpush.bf16.msra.mxu0 %v8369
  %8430 = vmatpush.bf16.msra.mxu0 %v8368
  %8431 = vmatmul.bf16.gmra.mxu0 %v8207
  %v8432 = vpop.f32.mrf.mxu0
  %v8433 = vadd.f32 0.0, %v8432
  %v8434 = vpop.f32.mrf.mxu0
  %8435 = vdwg.mxu0
  %8436 = vmatpush.bf16.msra.mxu0 %v8383
  %8437 = vmatpush.bf16.msra.mxu0 %v8382
  %8438 = vmatpush.bf16.msra.mxu0 %v8381
  %8439 = vmatpush.bf16.msra.mxu0 %v8380
  %8440 = vmatpush.bf16.msra.mxu0 %v8379
  %8441 = vmatpush.bf16.msra.mxu0 %v8378
  %8442 = vmatpush.bf16.msra.mxu0 %v8377
  %8443 = vmatpush.bf16.msra.mxu0 %v8376
  %8444 = vmatmul.bf16.gmra.mxu0 %v8208
  %v8445 = vpop.f32.mrf.mxu0
  %v8446 = vadd.f32 %v8433, %v8445
  %v8447 = vpop.f32.mrf.mxu0
  %8448 = vdwg.mxu0
  %8449 = vmatpush.bf16.msra.mxu0 %v8391
  %8450 = vmatpush.bf16.msra.mxu0 %v8390
  %8451 = vmatpush.bf16.msra.mxu0 %v8389
  %8452 = vmatpush.bf16.msra.mxu0 %v8388
  %8453 = vmatpush.bf16.msra.mxu0 %v8387
  %8454 = vmatpush.bf16.msra.mxu0 %v8386
  %8455 = vmatpush.bf16.msra.mxu0 %v8385
  %8456 = vmatpush.bf16.msra.mxu0 %v8384
  %8457 = vmatmul.bf16.gmra.mxu0 %v8209
  %v8458 = vpop.f32.mrf.mxu0
  %v8459 = vadd.f32 %v8446, %v8458
  %v8460 = vpop.f32.mrf.mxu0
  %8461 = vdwg.mxu0
  %8462 = vmatpush.bf16.msra.mxu0 0
  %8463 = vmatpush.bf16.msra.mxu0 0
  %8464 = vmatpush.bf16.msra.mxu0 0
  %8465 = vmatpush.bf16.msra.mxu0 0
  %8466 = vmatpush.bf16.msra.mxu0 0
  %8467 = vmatpush.bf16.msra.mxu0 0
  %8468 = vmatpush.bf16.msra.mxu0 %v8393
  %8469 = vmatpush.bf16.msra.mxu0 %v8392
  %8470 = vmatmul.bf16.gmra.mxu0 %v8421
  %v8471 = vpop.f32.mrf.mxu0
  %v8472 = vadd.f32 %v8459, %v8471
  %v8473 = vpop.f32.mrf.mxu0
  %8474 = vdwg.mxu0
  %v8475 = vadd.f32 %v8133, %v8472
  %v8476 = vld [vmem:[%s4] sm:$0x1]
  %v8478 = vperm.slane %v8476, 0
  %v8480 = vadd.f32 %v8475, %v8478
  %vm8481 = vcmask 125952
  %8482 = vst.msk [vmem:[%s5] sm:$0xf] %vm8481, %v8480
  // Predicated region
  $region22: #{vanilla_cnn_forward.1} parent=0 // pred_check
    _
  $region23: #{vanilla_cnn_forward.1} parent=0 // pred_check_branch
    %8484 = sbr.rel (0) target = $region25
  $region24: #{vanilla_cnn_forward.1} parent=0 // pred_region
    _
  $region25: #{vanilla_cnn_forward.1} parent=0 // pred_fallthru
    _
  // Predicated region
  $region26: #{vanilla_cnn_forward.1} parent=0 // pred_check
    _
  $region27: #{vanilla_cnn_forward.1} parent=0 // pred_check_branch
    %8486 = sbr.rel (0) target = $region29
  $region28: #{vanilla_cnn_forward.1} parent=0 // pred_region
    _
  $region29: #{vanilla_cnn_forward.1} parent=0 // pred_fallthru
    _

</llo_original>
